<compile_context>
chip_gen: v7x
topology: tpu7x:2x2x1
jax: 0.10.0
libtpu: 0.0.40
codegen_flags: <defaults>
</compile_context>

<pallas_src>
import functools

import jax
import jax.numpy as jnp
from jax.experimental import pallas as pl
from jax.experimental.pallas import tpu as pltpu

EPS = 1e-5  # PyTorch BatchNorm2d default

# Row offsets of each matmul weight inside the packed (W_ROWS, 128) weight slab.
W1_OFF = 0      # conv1 : (9, 32)    tap-major
W2_OFF = 16     # conv2 : (288, 64)  (tap, cin)-major
W3_OFF = 304    # conv3 : (576, 128)
F1_OFF = 880    # fc1   : (256, 128)
F2_OFF = 1136   # fc2   : (128, 128)
F3_OFF = 1264   # fc3^T : (1, 128)
W_ROWS = 1272   # multiple of 8 -> aligned sublane starts for every sub-slice

# Row indices inside the packed (V_ROWS, 128) per-channel-vector slab.
(VB1, VS1, VT1, VB2, VS2, VT2, VB3, VS3, VT3, VBF1, VBF2, VBF3) = range(12)
V_ROWS = 16


def _maxpool2x2(h):
    """2x2 / stride-2 max pool on an (N, H, W, C) value held in vregs."""
    n, hh, ww, c = h.shape
    h = jnp.max(h.reshape(n, hh // 2, 2, ww, c), axis=2)        # pool H (leading-dim split)
    h = jnp.max(h.reshape(n, hh // 2, ww // 2, 2, c), axis=3)   # pool W (sublane pairs)
    return h


def wnet_kernel(x_ref, w_ref, v_ref, o_ref,
                pad1, pad2, pad3, im2, im3, *, matmul_dtype):
    f32 = jnp.float32
    TB = x_ref.shape[0]          # batch elements per grid step
    N = 2 * TB                   # conv images per step (2 siamese branches / element)
    M2, M3 = 16 * N, 4 * N       # conv2 / conv3 im2col rows

    def mm(a, b):                # MXU matmul; operands optionally cast (bf16 on v6e/v7x)
        return jnp.dot(a.astype(matmul_dtype), b.astype(matmul_dtype),
                       preferred_element_type=f32)

    # ---------------- conv1: 1 -> 32 ----------------------------------------------------
    # Cin == 1, so an MXU matmul would run at K=9; use 9 VPU FMAs instead.  The padded
    # input keeps W in lanes ((N,10,10)) so zeroing + the interior write cost only a few
    # masked stores per image (much cheaper than the previous (...,1) channel layout).
    pad1[...] = jnp.zeros(pad1.shape, f32)
    pad1[:, 1:9, 1:9] = x_ref[...].reshape(N, 8, 8)
    # Hoisted 1 -> 32 lane broadcast: ONE cross-lane replication per step instead of 9.
    xb = jnp.broadcast_to(pad1[...][..., None], (N, 10, 10, 32))
    w1 = w_ref[W1_OFF:W1_OFF + 9, 0:32]                       # (9, 32) tap-major
    acc1 = jnp.zeros((N, 8, 8, 32), f32)
    for t in range(9):                                        # 9 shifted FMAs on the VPU
        dy, dx = divmod(t, 3)
        acc1 = acc1 + xb[:, dy:dy + 8, dx:dx + 8, :] * w1[t:t + 1, :]
    h1 = jnp.maximum(acc1 + v_ref[VB1:VB1 + 1, 0:32], 0.0)    # conv bias + ReLU
    h1 = h1 * v_ref[VS1:VS1 + 1, 0:32] + v_ref[VT1:VT1 + 1, 0:32]   # folded BN (eval)
    h1 = _maxpool2x2(h1)                                      # (N, 4, 4, 32)

    # ---------------- conv2: 32 -> 64 (one im2col matmul, K = 288) ----------------------
    # Zero W-border is folded into the interior store; only the two H-border planes are
    # zeroed separately -> no full-buffer re-zero per step.
    zc2 = jnp.zeros((N, 4, 1, 32), f32)
    pad2[:, 0, :, :] = jnp.zeros((N, 6, 32), f32)
    pad2[:, 5, :, :] = jnp.zeros((N, 6, 32), f32)
    pad2[:, 1:5, :, :] = jnp.concatenate([zc2, h1, zc2], axis=2)
    for t in range(9):                                        # im2col written straight into
        dy, dx = divmod(t, 3)                                 # the matmul-shaped scratch
        im2[:, 32 * t:32 * (t + 1)] = pad2[:, dy:dy + 4, dx:dx + 4, :].reshape(M2, 32)
    h2 = mm(im2[...], w_ref[W2_OFF:W2_OFF + 288, 0:64])       # (16N, 64)
    h2 = jnp.maximum(h2 + v_ref[VB2:VB2 + 1, 0:64], 0.0)
    h2 = h2 * v_ref[VS2:VS2 + 1, 0:64] + v_ref[VT2:VT2 + 1, 0:64]
    h2 = _maxpool2x2(h2.reshape(N, 4, 4, 64))                 # (N, 2, 2, 64)

    # ---------------- conv3: 64 -> 128 (one im2col matmul, K = 576) ---------------------
    zc3 = jnp.zeros((N, 2, 1, 64), f32)
    pad3[:, 0, :, :] = jnp.zeros((N, 4, 64), f32)
    pad3[:, 3, :, :] = jnp.zeros((N, 4, 64), f32)
    pad3[:, 1:3, :, :] = jnp.concatenate([zc3, h2, zc3], axis=2)
    for t in range(9):
        dy, dx = divmod(t, 3)
        im3[:, 64 * t:64 * (t + 1)] = pad3[:, dy:dy + 2, dx:dx + 2, :].reshape(M3, 64)
    h3 = mm(im3[...], w_ref[W3_OFF:W3_OFF + 576, :])          # (4N, 128)
    h3 = jnp.maximum(h3 + v_ref[VB3:VB3 + 1, :], 0.0)
    h3 = h3 * v_ref[VS3:VS3 + 1, :] + v_ref[VT3:VT3 + 1, :]
    h3 = jnp.max(h3.reshape(N, 4, 128), axis=1)               # final 2x2 max pool -> (N, 128)

    # ---------------- FC head: torch.cat([x1, x2], 1) == row-pair merge -----------------
    feat = h3.reshape(TB, 256)                                # (TB, 256): [branch0 | branch1]
    z = jnp.maximum(mm(feat, w_ref[F1_OFF:F1_OFF + 256, :]) + v_ref[VBF1:VBF1 + 1, :], 0.0)
    z = jnp.maximum(mm(z, w_ref[F2_OFF:F2_OFF + 128, :]) + v_ref[VBF2:VBF2 + 1, :], 0.0)
    # fc3 (K=128 -> 1): VPU multiply + lane reduction fused with the sigmoid -- avoids an
    # N=1 MXU pass on the serial critical path.  Dropout(p=0) is the identity.
    logit = jnp.sum(z * w_ref[F3_OFF:F3_OFF + 1, :], axis=-1, keepdims=True)   # (TB, 1)
    logit = logit + v_ref[VBF3:VBF3 + 1, 0:1]
    sig = 1.0 / (1.0 + jnp.exp(-logit))                       # exact sigmoid (EUP exp + div)
    o_ref[...] = sig.reshape(1, 1, TB)                        # one lane-dense row per step


def prepare_params(params):
    """Host-side one-time prep: fold BN into scale/shift and pack everything into two
    VMEM-friendly slabs (matmul weights / per-channel vectors)."""
    def fold(name):
        w, b, g, be, mu, va = params[name]                    # w: HWIO (3, 3, Cin, Cout)
        s = g * jax.lax.rsqrt(va + EPS)
        return w.reshape(-1, w.shape[-1]), b, s, be - mu * s

    w1, b1, s1, t1 = fold("conv1")
    w2, b2, s2, t2 = fold("conv2")
    w3, b3, s3, t3 = fold("conv3")
    wf1, bf1, wf2, bf2, wf3, bf3 = params["fc"]

    w_slab = jnp.zeros((W_ROWS, 128), jnp.float32)
    for off, mat in ((W1_OFF, w1), (W2_OFF, w2), (W3_OFF, w3),
                     (F1_OFF, wf1), (F2_OFF, wf2), (F3_OFF, wf3.reshape(1, -1))):
        r, c = mat.shape
        w_slab = w_slab.at[off:off + r, :c].set(mat)

    v_slab = jnp.zeros((V_ROWS, 128), jnp.float32)
    for row, vec in enumerate((b1, s1, t1, b2, s2, t2, b3, s3, t3, bf1, bf2, bf3)):
        v_slab = v_slab.at[row, :vec.shape[0]].set(vec)
    return w_slab, v_slab


def w_net_forward(x, packed, *, tb=None, matmul_dtype=jnp.float32):
    """x: NCHW (B, 2, 8, 8) float32 -> sigmoid outputs (B, 1); packed from prepare_params()."""
    w_slab, v_slab = packed
    B = x.shape[0]
    if tb is None:
        # >= 2 grid steps whenever B >= 2 (keeps both v7x TensorCores busy); cap the tile
        # so per-step scratch (~150 KB / batch element) stays well inside every
        # generation's VMEM (v7x has 64 MiB).
        tb = max(1, min(64, pl.cdiv(B, 2)))
    n_steps = pl.cdiv(B, tb)
    b_pad = n_steps * tb
    if b_pad != B:
        x = jnp.concatenate([x, jnp.zeros((b_pad - B,) + x.shape[1:], x.dtype)], axis=0)

    N = 2 * tb
    kernel = functools.partial(wnet_kernel, matmul_dtype=matmul_dtype)

    flops_per_elem = (2 * (9 * 64 * 32 * 2 + 16 * 288 * 64 * 2 + 4 * 576 * 128 * 2)
                      + 256 * 128 * 2 + 128 * 128 * 2 + 128 * 2)
    cost = pl.CostEstimate(
        flops=int(flops_per_elem * b_pad),
        transcendentals=int(b_pad),
        bytes_accessed=int(x.size * 4 + w_slab.size * 4 + v_slab.size * 4 + b_pad * 4))

    out = pl.pallas_call(
        kernel,
        out_shape=jax.ShapeDtypeStruct((n_steps, 1, tb), jnp.float32),
        grid=(n_steps,),
        in_specs=[
            pl.BlockSpec((tb, 2, 8, 8), lambda i: (i, 0, 0, 0)),   # per-step batch tile
            pl.BlockSpec(w_slab.shape, lambda i: (0, 0)),          # grid-invariant weight slab
            pl.BlockSpec(v_slab.shape, lambda i: (0, 0)),          # grid-invariant bias/BN slab
        ],
        out_specs=pl.BlockSpec((1, 1, tb), lambda i: (i, 0, 0)),   # lane-dense output row
        scratch_shapes=[
            pltpu.VMEM((N, 10, 10), jnp.float32),     # conv1 zero-padded input (W in lanes)
            pltpu.VMEM((N, 6, 6, 32), jnp.float32),   # conv2 zero-padded input
            pltpu.VMEM((N, 4, 4, 64), jnp.float32),   # conv3 zero-padded input
            pltpu.VMEM((16 * N, 288), jnp.float32),   # conv2 im2col (matmul-shaped)
            pltpu.VMEM((4 * N, 576), jnp.float32),    # conv3 im2col (matmul-shaped)
        ],
        compiler_params=pltpu.CompilerParams(
            dimension_semantics=("parallel",),
            vmem_limit_bytes=48 * 1024 * 1024),
        cost_estimate=cost,
    )(x, w_slab, v_slab)
    return out.reshape(b_pad)[:B].reshape(B, 1)


# ----------------------------------------------------------------------------
# Pure-JAX reference (for correctness check)
# ----------------------------------------------------------------------------
def ref_forward(x, params):
    B, C, H, W = x.shape
    h = x.reshape(B * C, H, W)[..., None]
    for name in ("conv1", "conv2", "conv3"):
        w, b, g, be, mu, va = params[name]
        h = jax.lax.conv_general_dilated(
            h, w, (1, 1), "SAME", dimension_numbers=("NHWC", "HWIO", "NHWC"))
        h = jnp.maximum(h + b, 0.0)
        h = (h - mu) * jax.lax.rsqrt(va + EPS) * g + be
        h = jax.lax.reduce_window(h, -jnp.inf, jax.lax.max,
                                  (1, 2, 2, 1), (1, 2, 2, 1), "VALID")
    feat = h.reshape(B, -1)
    w1, b1, w2, b2, w3, b3 = params["fc"]
    t = jnp.maximum(feat @ w1 + b1, 0.0)
    t = jnp.maximum(t @ w2 + b2, 0.0)
    return jax.nn.sigmoid(t @ w3 + b3)


if __name__ == "__main__":
    keys = iter(jax.random.split(jax.random.PRNGKey(0), 32))

    def nrm(shape, scale=0.1):
        return scale * jax.random.normal(next(keys), shape, jnp.float32)

    params = {}
    for name, cin, cout in (("conv1", 1, 32), ("conv2", 32, 64), ("conv3", 64, 128)):
        params[name] = (nrm((3, 3, cin, cout)),          # HWIO conv weights
                        nrm((cout,)),                    # conv bias
                        1.0 + nrm((cout,)),              # BN gamma
                        nrm((cout,)),                    # BN beta
                        nrm((cout,)),                    # BN running mean
                        1.0 + jnp.abs(nrm((cout,))))     # BN running var
    params["fc"] = (nrm((256, 128)), nrm((128,)),        # Linear(256, 128)
                    nrm((128, 128)), nrm((128,)),        # fc_layer Linear(128, 128)
                    nrm((128, 1)), nrm((1,)))            # Linear(128, 1)

    # Input: B=8, 2 "siamese" channels, 8x8 spatial (=> 1x1x128 per branch after the convs).
    # Default tiling: tb=4 -> grid=(2,) so the batch fills the matmul M dim and the
    # parallel axis still has 2 steps.
    x = jax.random.normal(next(keys), (8, 2, 8, 8), jnp.float32)

    packed = prepare_params(params)                      # host-side, once per model
    out = jax.block_until_ready(jax.jit(w_net_forward)(x, packed))
    ref = ref_forward(x, params)
    assert out.shape == (8, 1), out.shape
    assert float(jnp.max(jnp.abs(out - ref))) < 1e-3, (out, ref)
    print("KERNEL_OK")
</pallas_src>

<mosaic_0001>
module attributes {stable_mosaic.version = 11 : i64} {
  func.func @wnet_kernel(%arg0: i32, %arg1: memref<4x2x8x8xf32, #tpu.memory_space<vmem>>, %arg2: memref<1272x128xf32, #tpu.memory_space<vmem>>, %arg3: memref<16x128xf32, #tpu.memory_space<vmem>>, %arg4: memref<1x1x4xf32, #tpu.memory_space<vmem>>, %arg5: memref<8x10x10xf32, #tpu.memory_space<vmem>>, %arg6: memref<8x6x6x32xf32, #tpu.memory_space<vmem>>, %arg7: memref<8x4x4x64xf32, #tpu.memory_space<vmem>>, %arg8: memref<128x288xf32, #tpu.memory_space<vmem>>, %arg9: memref<32x576xf32, #tpu.memory_space<vmem>>) attributes {dimension_semantics = [#tpu.dimension_semantics<parallel>], iteration_bounds = array<i64: 2>, scalar_prefetch = 0 : i64, scratch_operands = 5 : i64, tpu.core_type = #tpu.core_type<tc>, window_params = [{transform_indices = @transform_0, window_bounds = array<i64: 4, 2, 8, 8>}, {pipeline_mode = #tpu.pipeline_mode<synchronous>, transform_indices = @transform_1, window_bounds = array<i64: 1272, 128>}, {pipeline_mode = #tpu.pipeline_mode<synchronous>, transform_indices = @transform_2, window_bounds = array<i64: 16, 128>}, {transform_indices = @transform_3, window_bounds = array<i64: 1, 1, 4>}]} {
    %cst = arith.constant 0.000000e+00 : f32
    %0 = vector.broadcast %cst : f32 to vector<8x10x10xf32>
    %c0 = arith.constant 0 : index
    %c0_0 = arith.constant 0 : index
    %c0_1 = arith.constant 0 : index
    %1 = vector.load %arg5[%c0, %c0_0, %c0_1] : memref<8x10x10xf32, #tpu.memory_space<vmem>>, vector<8x10x10xf32>
    tpu.vector_store %arg5[%c0, %c0_0, %c0_1], %0 {strides = array<i32>} : memref<8x10x10xf32, #tpu.memory_space<vmem>>, vector<8x10x10xf32>,
    %c0_2 = arith.constant 0 : index
    %c0_3 = arith.constant 0 : index
    %c0_4 = arith.constant 0 : index
    %c0_5 = arith.constant 0 : index
    %2 = vector.load %arg1[%c0_2, %c0_3, %c0_4, %c0_5] : memref<4x2x8x8xf32, #tpu.memory_space<vmem>>, vector<4x2x8x8xf32>
    %3 = vector.shape_cast %2 : vector<4x2x8x8xf32> to vector<8x8x8xf32>
    %c0_6 = arith.constant 0 : index
    %c1 = arith.constant 1 : index
    %c1_7 = arith.constant 1 : index
    %4 = vector.load %arg5[%c0_6, %c1, %c1_7] : memref<8x10x10xf32, #tpu.memory_space<vmem>>, vector<8x8x8xf32>
    tpu.vector_store %arg5[%c0_6, %c1, %c1_7], %3 {strides = array<i32>} : memref<8x10x10xf32, #tpu.memory_space<vmem>>, vector<8x8x8xf32>,
    %c0_8 = arith.constant 0 : index
    %c0_9 = arith.constant 0 : index
    %c0_10 = arith.constant 0 : index
    %5 = vector.load %arg5[%c0_8, %c0_9, %c0_10] : memref<8x10x10xf32, #tpu.memory_space<vmem>>, vector<8x10x10xf32>
    %6 = vector.shape_cast %5 : vector<8x10x10xf32> to vector<8x10x10x1xf32>
    %7 = vector.shape_cast %6 : vector<8x10x10x1xf32> to vector<8x10x10x1xf32>
    %8 = vector.broadcast %7 : vector<8x10x10x1xf32> to vector<8x10x10x32xf32>
    %c0_11 = arith.constant 0 : index
    %c0_12 = arith.constant 0 : index
    %9 = vector.load %arg2[%c0_11, %c0_12] : memref<1272x128xf32, #tpu.memory_space<vmem>>, vector<9x32xf32>
    %cst_13 = arith.constant 0.000000e+00 : f32
    %10 = vector.broadcast %cst_13 : f32 to vector<8x8x8x32xf32>
    %11 = vector.extract_strided_slice %8 {offsets = [0, 0, 0, 0], sizes = [8, 8, 8, 32], strides = [1, 1, 1, 1]} : vector<8x10x10x32xf32> to vector<8x8x8x32xf32>
    %12 = vector.extract_strided_slice %9 {offsets = [0, 0], sizes = [1, 32], strides = [1, 1]} : vector<9x32xf32> to vector<1x32xf32>
    %13 = vector.shape_cast %12 : vector<1x32xf32> to vector<1x1x1x32xf32>
    %14 = vector.broadcast %13 : vector<1x1x1x32xf32> to vector<8x8x8x32xf32>
    %15 = arith.mulf %11, %14 : vector<8x8x8x32xf32>
    %16 = arith.addf %10, %15 : vector<8x8x8x32xf32>
    %17 = vector.extract_strided_slice %8 {offsets = [0, 0, 1, 0], sizes = [8, 8, 8, 32], strides = [1, 1, 1, 1]} : vector<8x10x10x32xf32> to vector<8x8x8x32xf32>
    %18 = vector.extract_strided_slice %9 {offsets = [1, 0], sizes = [1, 32], strides = [1, 1]} : vector<9x32xf32> to vector<1x32xf32>
    %19 = vector.shape_cast %18 : vector<1x32xf32> to vector<1x1x1x32xf32>
    %20 = vector.broadcast %19 : vector<1x1x1x32xf32> to vector<8x8x8x32xf32>
    %21 = arith.mulf %17, %20 : vector<8x8x8x32xf32>
    %22 = arith.addf %16, %21 : vector<8x8x8x32xf32>
    %23 = vector.extract_strided_slice %8 {offsets = [0, 0, 2, 0], sizes = [8, 8, 8, 32], strides = [1, 1, 1, 1]} : vector<8x10x10x32xf32> to vector<8x8x8x32xf32>
    %24 = vector.extract_strided_slice %9 {offsets = [2, 0], sizes = [1, 32], strides = [1, 1]} : vector<9x32xf32> to vector<1x32xf32>
    %25 = vector.shape_cast %24 : vector<1x32xf32> to vector<1x1x1x32xf32>
    %26 = vector.broadcast %25 : vector<1x1x1x32xf32> to vector<8x8x8x32xf32>
    %27 = arith.mulf %23, %26 : vector<8x8x8x32xf32>
    %28 = arith.addf %22, %27 : vector<8x8x8x32xf32>
    %29 = vector.extract_strided_slice %8 {offsets = [0, 1, 0, 0], sizes = [8, 8, 8, 32], strides = [1, 1, 1, 1]} : vector<8x10x10x32xf32> to vector<8x8x8x32xf32>
    %30 = vector.extract_strided_slice %9 {offsets = [3, 0], sizes = [1, 32], strides = [1, 1]} : vector<9x32xf32> to vector<1x32xf32>
    %31 = vector.shape_cast %30 : vector<1x32xf32> to vector<1x1x1x32xf32>
    %32 = vector.broadcast %31 : vector<1x1x1x32xf32> to vector<8x8x8x32xf32>
    %33 = arith.mulf %29, %32 : vector<8x8x8x32xf32>
    %34 = arith.addf %28, %33 : vector<8x8x8x32xf32>
    %35 = vector.extract_strided_slice %8 {offsets = [0, 1, 1, 0], sizes = [8, 8, 8, 32], strides = [1, 1, 1, 1]} : vector<8x10x10x32xf32> to vector<8x8x8x32xf32>
    %36 = vector.extract_strided_slice %9 {offsets = [4, 0], sizes = [1, 32], strides = [1, 1]} : vector<9x32xf32> to vector<1x32xf32>
    %37 = vector.shape_cast %36 : vector<1x32xf32> to vector<1x1x1x32xf32>
    %38 = vector.broadcast %37 : vector<1x1x1x32xf32> to vector<8x8x8x32xf32>
    %39 = arith.mulf %35, %38 : vector<8x8x8x32xf32>
    %40 = arith.addf %34, %39 : vector<8x8x8x32xf32>
    %41 = vector.extract_strided_slice %8 {offsets = [0, 1, 2, 0], sizes = [8, 8, 8, 32], strides = [1, 1, 1, 1]} : vector<8x10x10x32xf32> to vector<8x8x8x32xf32>
    %42 = vector.extract_strided_slice %9 {offsets = [5, 0], sizes = [1, 32], strides = [1, 1]} : vector<9x32xf32> to vector<1x32xf32>
    %43 = vector.shape_cast %42 : vector<1x32xf32> to vector<1x1x1x32xf32>
    %44 = vector.broadcast %43 : vector<1x1x1x32xf32> to vector<8x8x8x32xf32>
    %45 = arith.mulf %41, %44 : vector<8x8x8x32xf32>
    %46 = arith.addf %40, %45 : vector<8x8x8x32xf32>
    %47 = vector.extract_strided_slice %8 {offsets = [0, 2, 0, 0], sizes = [8, 8, 8, 32], strides = [1, 1, 1, 1]} : vector<8x10x10x32xf32> to vector<8x8x8x32xf32>
    %48 = vector.extract_strided_slice %9 {offsets = [6, 0], sizes = [1, 32], strides = [1, 1]} : vector<9x32xf32> to vector<1x32xf32>
    %49 = vector.shape_cast %48 : vector<1x32xf32> to vector<1x1x1x32xf32>
    %50 = vector.broadcast %49 : vector<1x1x1x32xf32> to vector<8x8x8x32xf32>
    %51 = arith.mulf %47, %50 : vector<8x8x8x32xf32>
    %52 = arith.addf %46, %51 : vector<8x8x8x32xf32>
    %53 = vector.extract_strided_slice %8 {offsets = [0, 2, 1, 0], sizes = [8, 8, 8, 32], strides = [1, 1, 1, 1]} : vector<8x10x10x32xf32> to vector<8x8x8x32xf32>
    %54 = vector.extract_strided_slice %9 {offsets = [7, 0], sizes = [1, 32], strides = [1, 1]} : vector<9x32xf32> to vector<1x32xf32>
    %55 = vector.shape_cast %54 : vector<1x32xf32> to vector<1x1x1x32xf32>
    %56 = vector.broadcast %55 : vector<1x1x1x32xf32> to vector<8x8x8x32xf32>
    %57 = arith.mulf %53, %56 : vector<8x8x8x32xf32>
    %58 = arith.addf %52, %57 : vector<8x8x8x32xf32>
    %59 = vector.extract_strided_slice %8 {offsets = [0, 2, 2, 0], sizes = [8, 8, 8, 32], strides = [1, 1, 1, 1]} : vector<8x10x10x32xf32> to vector<8x8x8x32xf32>
    %60 = vector.extract_strided_slice %9 {offsets = [8, 0], sizes = [1, 32], strides = [1, 1]} : vector<9x32xf32> to vector<1x32xf32>
    %61 = vector.shape_cast %60 : vector<1x32xf32> to vector<1x1x1x32xf32>
    %62 = vector.broadcast %61 : vector<1x1x1x32xf32> to vector<8x8x8x32xf32>
    %63 = arith.mulf %59, %62 : vector<8x8x8x32xf32>
    %64 = arith.addf %58, %63 : vector<8x8x8x32xf32>
    %c0_14 = arith.constant 0 : index
    %c0_15 = arith.constant 0 : index
    %65 = vector.load %arg3[%c0_14, %c0_15] : memref<16x128xf32, #tpu.memory_space<vmem>>, vector<1x32xf32>
    %66 = vector.shape_cast %65 : vector<1x32xf32> to vector<1x1x1x32xf32>
    %67 = vector.broadcast %66 : vector<1x1x1x32xf32> to vector<8x8x8x32xf32>
    %68 = arith.addf %64, %67 : vector<8x8x8x32xf32>
    %cst_16 = arith.constant 0.000000e+00 : f32
    %69 = vector.broadcast %cst_16 : f32 to vector<8x8x8x32xf32>
    %70 = arith.maximumf %68, %69 : vector<8x8x8x32xf32>
    %c1_17 = arith.constant 1 : index
    %c0_18 = arith.constant 0 : index
    %71 = vector.load %arg3[%c1_17, %c0_18] : memref<16x128xf32, #tpu.memory_space<vmem>>, vector<1x32xf32>
    %72 = vector.shape_cast %71 : vector<1x32xf32> to vector<1x1x1x32xf32>
    %73 = vector.broadcast %72 : vector<1x1x1x32xf32> to vector<8x8x8x32xf32>
    %74 = arith.mulf %70, %73 : vector<8x8x8x32xf32>
    %c2 = arith.constant 2 : index
    %c0_19 = arith.constant 0 : index
    %75 = vector.load %arg3[%c2, %c0_19] : memref<16x128xf32, #tpu.memory_space<vmem>>, vector<1x32xf32>
    %76 = vector.shape_cast %75 : vector<1x32xf32> to vector<1x1x1x32xf32>
    %77 = vector.broadcast %76 : vector<1x1x1x32xf32> to vector<8x8x8x32xf32>
    %78 = arith.addf %74, %77 : vector<8x8x8x32xf32>
    %79 = vector.shape_cast %78 : vector<8x8x8x32xf32> to vector<8x4x2x8x32xf32>
    %cst_20 = arith.constant dense<0xFF800000> : vector<8x4x8x32xf32>
    %80 = vector.multi_reduction <maximumf>, %79, %cst_20 [2] : vector<8x4x2x8x32xf32> to vector<8x4x8x32xf32>
    %81 = vector.shape_cast %80 : vector<8x4x8x32xf32> to vector<8x4x4x2x32xf32>
    %cst_21 = arith.constant dense<0xFF800000> : vector<8x4x4x32xf32>
    %82 = vector.multi_reduction <maximumf>, %81, %cst_21 [3] : vector<8x4x4x2x32xf32> to vector<8x4x4x32xf32>
    %cst_22 = arith.constant 0.000000e+00 : f32
    %83 = vector.broadcast %cst_22 : f32 to vector<8x4x1x32xf32>
    %cst_23 = arith.constant 0.000000e+00 : f32
    %84 = vector.broadcast %cst_23 : f32 to vector<8x6x32xf32>
    %c0_24 = arith.constant 0 : index
    %c0_25 = arith.constant 0 : index
    %c0_26 = arith.constant 0 : index
    %c0_27 = arith.constant 0 : index
    %85 = vector.load %arg6[%c0_24, %c0_25, %c0_26, %c0_27] : memref<8x6x6x32xf32, #tpu.memory_space<vmem>>, vector<8x1x6x32xf32>
    %86 = vector.shape_cast %85 : vector<8x1x6x32xf32> to vector<8x6x32xf32>
    %87 = vector.shape_cast %84 : vector<8x6x32xf32> to vector<8x1x6x32xf32>
    tpu.vector_store %arg6[%c0_24, %c0_25, %c0_26, %c0_27], %87 {strides = array<i32>} : memref<8x6x6x32xf32, #tpu.memory_space<vmem>>, vector<8x1x6x32xf32>,
    %cst_28 = arith.constant 0.000000e+00 : f32
    %88 = vector.broadcast %cst_28 : f32 to vector<8x6x32xf32>
    %c0_29 = arith.constant 0 : index
    %c5 = arith.constant 5 : index
    %c0_30 = arith.constant 0 : index
    %c0_31 = arith.constant 0 : index
    %89 = vector.load %arg6[%c0_29, %c5, %c0_30, %c0_31] : memref<8x6x6x32xf32, #tpu.memory_space<vmem>>, vector<8x1x6x32xf32>
    %90 = vector.shape_cast %89 : vector<8x1x6x32xf32> to vector<8x6x32xf32>
    %91 = vector.shape_cast %88 : vector<8x6x32xf32> to vector<8x1x6x32xf32>
    tpu.vector_store %arg6[%c0_29, %c5, %c0_30, %c0_31], %91 {strides = array<i32>} : memref<8x6x6x32xf32, #tpu.memory_space<vmem>>, vector<8x1x6x32xf32>,
    %92 = tpu.concatenate %83, %82, %83 in 2 : vector<8x4x1x32xf32>, vector<8x4x4x32xf32>, vector<8x4x1x32xf32> -> vector<8x4x6x32xf32>
    %c0_32 = arith.constant 0 : index
    %c1_33 = arith.constant 1 : index
    %c0_34 = arith.constant 0 : index
    %c0_35 = arith.constant 0 : index
    %93 = vector.load %arg6[%c0_32, %c1_33, %c0_34, %c0_35] : memref<8x6x6x32xf32, #tpu.memory_space<vmem>>, vector<8x4x6x32xf32>
    tpu.vector_store %arg6[%c0_32, %c1_33, %c0_34, %c0_35], %92 {strides = array<i32>} : memref<8x6x6x32xf32, #tpu.memory_space<vmem>>, vector<8x4x6x32xf32>,
    %c0_36 = arith.constant 0 : index
    %c0_37 = arith.constant 0 : index
    %c0_38 = arith.constant 0 : index
    %c0_39 = arith.constant 0 : index
    %94 = vector.load %arg6[%c0_36, %c0_37, %c0_38, %c0_39] : memref<8x6x6x32xf32, #tpu.memory_space<vmem>>, vector<8x4x4x32xf32>
    %95 = vector.shape_cast %94 : vector<8x4x4x32xf32> to vector<128x32xf32>
    %c0_40 = arith.constant 0 : index
    %c0_41 = arith.constant 0 : index
    %96 = vector.load %arg8[%c0_40, %c0_41] : memref<128x288xf32, #tpu.memory_space<vmem>>, vector<128x32xf32>
    tpu.vector_store %arg8[%c0_40, %c0_41], %95 {strides = array<i32>} : memref<128x288xf32, #tpu.memory_space<vmem>>, vector<128x32xf32>,
    %c0_42 = arith.constant 0 : index
    %c0_43 = arith.constant 0 : index
    %c1_44 = arith.constant 1 : index
    %c0_45 = arith.constant 0 : index
    %97 = vector.load %arg6[%c0_42, %c0_43, %c1_44, %c0_45] : memref<8x6x6x32xf32, #tpu.memory_space<vmem>>, vector<8x4x4x32xf32>
    %98 = vector.shape_cast %97 : vector<8x4x4x32xf32> to vector<128x32xf32>
    %c0_46 = arith.constant 0 : index
    %c32 = arith.constant 32 : index
    %99 = vector.load %arg8[%c0_46, %c32] : memref<128x288xf32, #tpu.memory_space<vmem>>, vector<128x32xf32>
    tpu.vector_store %arg8[%c0_46, %c32], %98 {strides = array<i32>} : memref<128x288xf32, #tpu.memory_space<vmem>>, vector<128x32xf32>,
    %c0_47 = arith.constant 0 : index
    %c0_48 = arith.constant 0 : index
    %c2_49 = arith.constant 2 : index
    %c0_50 = arith.constant 0 : index
    %100 = vector.load %arg6[%c0_47, %c0_48, %c2_49, %c0_50] : memref<8x6x6x32xf32, #tpu.memory_space<vmem>>, vector<8x4x4x32xf32>
    %101 = vector.shape_cast %100 : vector<8x4x4x32xf32> to vector<128x32xf32>
    %c0_51 = arith.constant 0 : index
    %c64 = arith.constant 64 : index
    %102 = vector.load %arg8[%c0_51, %c64] : memref<128x288xf32, #tpu.memory_space<vmem>>, vector<128x32xf32>
    tpu.vector_store %arg8[%c0_51, %c64], %101 {strides = array<i32>} : memref<128x288xf32, #tpu.memory_space<vmem>>, vector<128x32xf32>,
    %c0_52 = arith.constant 0 : index
    %c1_53 = arith.constant 1 : index
    %c0_54 = arith.constant 0 : index
    %c0_55 = arith.constant 0 : index
    %103 = vector.load %arg6[%c0_52, %c1_53, %c0_54, %c0_55] : memref<8x6x6x32xf32, #tpu.memory_space<vmem>>, vector<8x4x4x32xf32>
    %104 = vector.shape_cast %103 : vector<8x4x4x32xf32> to vector<128x32xf32>
    %c0_56 = arith.constant 0 : index
    %c96 = arith.constant 96 : index
    %105 = vector.load %arg8[%c0_56, %c96] : memref<128x288xf32, #tpu.memory_space<vmem>>, vector<128x32xf32>
    tpu.vector_store %arg8[%c0_56, %c96], %104 {strides = array<i32>} : memref<128x288xf32, #tpu.memory_space<vmem>>, vector<128x32xf32>,
    %c0_57 = arith.constant 0 : index
    %c1_58 = arith.constant 1 : index
    %c1_59 = arith.constant 1 : index
    %c0_60 = arith.constant 0 : index
    %106 = vector.load %arg6[%c0_57, %c1_58, %c1_59, %c0_60] : memref<8x6x6x32xf32, #tpu.memory_space<vmem>>, vector<8x4x4x32xf32>
    %107 = vector.shape_cast %106 : vector<8x4x4x32xf32> to vector<128x32xf32>
    %c0_61 = arith.constant 0 : index
    %c128 = arith.constant 128 : index
    %108 = vector.load %arg8[%c0_61, %c128] : memref<128x288xf32, #tpu.memory_space<vmem>>, vector<128x32xf32>
    tpu.vector_store %arg8[%c0_61, %c128], %107 {strides = array<i32>} : memref<128x288xf32, #tpu.memory_space<vmem>>, vector<128x32xf32>,
    %c0_62 = arith.constant 0 : index
    %c1_63 = arith.constant 1 : index
    %c2_64 = arith.constant 2 : index
    %c0_65 = arith.constant 0 : index
    %109 = vector.load %arg6[%c0_62, %c1_63, %c2_64, %c0_65] : memref<8x6x6x32xf32, #tpu.memory_space<vmem>>, vector<8x4x4x32xf32>
    %110 = vector.shape_cast %109 : vector<8x4x4x32xf32> to vector<128x32xf32>
    %c0_66 = arith.constant 0 : index
    %c160 = arith.constant 160 : index
    %111 = vector.load %arg8[%c0_66, %c160] : memref<128x288xf32, #tpu.memory_space<vmem>>, vector<128x32xf32>
    tpu.vector_store %arg8[%c0_66, %c160], %110 {strides = array<i32>} : memref<128x288xf32, #tpu.memory_space<vmem>>, vector<128x32xf32>,
    %c0_67 = arith.constant 0 : index
    %c2_68 = arith.constant 2 : index
    %c0_69 = arith.constant 0 : index
    %c0_70 = arith.constant 0 : index
    %112 = vector.load %arg6[%c0_67, %c2_68, %c0_69, %c0_70] : memref<8x6x6x32xf32, #tpu.memory_space<vmem>>, vector<8x4x4x32xf32>
    %113 = vector.shape_cast %112 : vector<8x4x4x32xf32> to vector<128x32xf32>
    %c0_71 = arith.constant 0 : index
    %c192 = arith.constant 192 : index
    %114 = vector.load %arg8[%c0_71, %c192] : memref<128x288xf32, #tpu.memory_space<vmem>>, vector<128x32xf32>
    tpu.vector_store %arg8[%c0_71, %c192], %113 {strides = array<i32>} : memref<128x288xf32, #tpu.memory_space<vmem>>, vector<128x32xf32>,
    %c0_72 = arith.constant 0 : index
    %c2_73 = arith.constant 2 : index
    %c1_74 = arith.constant 1 : index
    %c0_75 = arith.constant 0 : index
    %115 = vector.load %arg6[%c0_72, %c2_73, %c1_74, %c0_75] : memref<8x6x6x32xf32, #tpu.memory_space<vmem>>, vector<8x4x4x32xf32>
    %116 = vector.shape_cast %115 : vector<8x4x4x32xf32> to vector<128x32xf32>
    %c0_76 = arith.constant 0 : index
    %c224 = arith.constant 224 : index
    %117 = vector.load %arg8[%c0_76, %c224] : memref<128x288xf32, #tpu.memory_space<vmem>>, vector<128x32xf32>
    tpu.vector_store %arg8[%c0_76, %c224], %116 {strides = array<i32>} : memref<128x288xf32, #tpu.memory_space<vmem>>, vector<128x32xf32>,
    %c0_77 = arith.constant 0 : index
    %c2_78 = arith.constant 2 : index
    %c2_79 = arith.constant 2 : index
    %c0_80 = arith.constant 0 : index
    %118 = vector.load %arg6[%c0_77, %c2_78, %c2_79, %c0_80] : memref<8x6x6x32xf32, #tpu.memory_space<vmem>>, vector<8x4x4x32xf32>
    %119 = vector.shape_cast %118 : vector<8x4x4x32xf32> to vector<128x32xf32>
    %c0_81 = arith.constant 0 : index
    %c256 = arith.constant 256 : index
    %120 = vector.load %arg8[%c0_81, %c256] : memref<128x288xf32, #tpu.memory_space<vmem>>, vector<128x32xf32>
    tpu.vector_store %arg8[%c0_81, %c256], %119 {strides = array<i32>} : memref<128x288xf32, #tpu.memory_space<vmem>>, vector<128x32xf32>,
    %c0_82 = arith.constant 0 : index
    %c0_83 = arith.constant 0 : index
    %121 = vector.load %arg8[%c0_82, %c0_83] : memref<128x288xf32, #tpu.memory_space<vmem>>, vector<128x288xf32>
    %c16 = arith.constant 16 : index
    %c0_84 = arith.constant 0 : index
    %122 = vector.load %arg2[%c16, %c0_84] : memref<1272x128xf32, #tpu.memory_space<vmem>>, vector<288x64xf32>
    %cst_85 = arith.constant dense<0.000000e+00> : vector<128x64xf32>
    %123 = tpu.matmul %121, %122, %cst_85 {dimension_numbers = #tpu.dot_dimension_numbers<[1], [0], [0], [1], [0, 0, 1, 1], [], []>} : vector<128x288xf32>, vector<288x64xf32>, vector<128x64xf32> -> vector<128x64xf32>
    %c3 = arith.constant 3 : index
    %c0_86 = arith.constant 0 : index
    %124 = vector.load %arg3[%c3, %c0_86] : memref<16x128xf32, #tpu.memory_space<vmem>>, vector<1x64xf32>
    %125 = vector.broadcast %124 : vector<1x64xf32> to vector<128x64xf32>
    %126 = arith.addf %123, %125 : vector<128x64xf32>
    %cst_87 = arith.constant 0.000000e+00 : f32
    %127 = vector.broadcast %cst_87 : f32 to vector<128x64xf32>
    %128 = arith.maximumf %126, %127 : vector<128x64xf32>
    %c4 = arith.constant 4 : index
    %c0_88 = arith.constant 0 : index
    %129 = vector.load %arg3[%c4, %c0_88] : memref<16x128xf32, #tpu.memory_space<vmem>>, vector<1x64xf32>
    %130 = vector.broadcast %129 : vector<1x64xf32> to vector<128x64xf32>
    %131 = arith.mulf %128, %130 : vector<128x64xf32>
    %c5_89 = arith.constant 5 : index
    %c0_90 = arith.constant 0 : index
    %132 = vector.load %arg3[%c5_89, %c0_90] : memref<16x128xf32, #tpu.memory_space<vmem>>, vector<1x64xf32>
    %133 = vector.broadcast %132 : vector<1x64xf32> to vector<128x64xf32>
    %134 = arith.addf %131, %133 : vector<128x64xf32>
    %135 = vector.shape_cast %134 : vector<128x64xf32> to vector<8x4x4x64xf32>
    %136 = vector.shape_cast %135 : vector<8x4x4x64xf32> to vector<8x2x2x4x64xf32>
    %cst_91 = arith.constant dense<0xFF800000> : vector<8x2x4x64xf32>
    %137 = vector.multi_reduction <maximumf>, %136, %cst_91 [2] : vector<8x2x2x4x64xf32> to vector<8x2x4x64xf32>
    %138 = vector.shape_cast %137 : vector<8x2x4x64xf32> to vector<8x2x2x2x64xf32>
    %cst_92 = arith.constant dense<0xFF800000> : vector<8x2x2x64xf32>
    %139 = vector.multi_reduction <maximumf>, %138, %cst_92 [3] : vector<8x2x2x2x64xf32> to vector<8x2x2x64xf32>
    %cst_93 = arith.constant 0.000000e+00 : f32
    %140 = vector.broadcast %cst_93 : f32 to vector<8x2x1x64xf32>
    %cst_94 = arith.constant 0.000000e+00 : f32
    %141 = vector.broadcast %cst_94 : f32 to vector<8x4x64xf32>
    %c0_95 = arith.constant 0 : index
    %c0_96 = arith.constant 0 : index
    %c0_97 = arith.constant 0 : index
    %c0_98 = arith.constant 0 : index
    %142 = vector.load %arg7[%c0_95, %c0_96, %c0_97, %c0_98] : memref<8x4x4x64xf32, #tpu.memory_space<vmem>>, vector<8x1x4x64xf32>
    %143 = vector.shape_cast %142 : vector<8x1x4x64xf32> to vector<8x4x64xf32>
    %144 = vector.shape_cast %141 : vector<8x4x64xf32> to vector<8x1x4x64xf32>
    tpu.vector_store %arg7[%c0_95, %c0_96, %c0_97, %c0_98], %144 {strides = array<i32>} : memref<8x4x4x64xf32, #tpu.memory_space<vmem>>, vector<8x1x4x64xf32>,
    %cst_99 = arith.constant 0.000000e+00 : f32
    %145 = vector.broadcast %cst_99 : f32 to vector<8x4x64xf32>
    %c0_100 = arith.constant 0 : index
    %c3_101 = arith.constant 3 : index
    %c0_102 = arith.constant 0 : index
    %c0_103 = arith.constant 0 : index
    %146 = vector.load %arg7[%c0_100, %c3_101, %c0_102, %c0_103] : memref<8x4x4x64xf32, #tpu.memory_space<vmem>>, vector<8x1x4x64xf32>
    %147 = vector.shape_cast %146 : vector<8x1x4x64xf32> to vector<8x4x64xf32>
    %148 = vector.shape_cast %145 : vector<8x4x64xf32> to vector<8x1x4x64xf32>
    tpu.vector_store %arg7[%c0_100, %c3_101, %c0_102, %c0_103], %148 {strides = array<i32>} : memref<8x4x4x64xf32, #tpu.memory_space<vmem>>, vector<8x1x4x64xf32>,
    %149 = tpu.concatenate %140, %139, %140 in 2 : vector<8x2x1x64xf32>, vector<8x2x2x64xf32>, vector<8x2x1x64xf32> -> vector<8x2x4x64xf32>
    %c0_104 = arith.constant 0 : index
    %c1_105 = arith.constant 1 : index
    %c0_106 = arith.constant 0 : index
    %c0_107 = arith.constant 0 : index
    %150 = vector.load %arg7[%c0_104, %c1_105, %c0_106, %c0_107] : memref<8x4x4x64xf32, #tpu.memory_space<vmem>>, vector<8x2x4x64xf32>
    tpu.vector_store %arg7[%c0_104, %c1_105, %c0_106, %c0_107], %149 {strides = array<i32>} : memref<8x4x4x64xf32, #tpu.memory_space<vmem>>, vector<8x2x4x64xf32>,
    %c0_108 = arith.constant 0 : index
    %c0_109 = arith.constant 0 : index
    %c0_110 = arith.constant 0 : index
    %c0_111 = arith.constant 0 : index
    %151 = vector.load %arg7[%c0_108, %c0_109, %c0_110, %c0_111] : memref<8x4x4x64xf32, #tpu.memory_space<vmem>>, vector<8x2x2x64xf32>
    %152 = vector.shape_cast %151 : vector<8x2x2x64xf32> to vector<32x64xf32>
    %c0_112 = arith.constant 0 : index
    %c0_113 = arith.constant 0 : index
    %153 = vector.load %arg9[%c0_112, %c0_113] : memref<32x576xf32, #tpu.memory_space<vmem>>, vector<32x64xf32>
    tpu.vector_store %arg9[%c0_112, %c0_113], %152 {strides = array<i32>} : memref<32x576xf32, #tpu.memory_space<vmem>>, vector<32x64xf32>,
    %c0_114 = arith.constant 0 : index
    %c0_115 = arith.constant 0 : index
    %c1_116 = arith.constant 1 : index
    %c0_117 = arith.constant 0 : index
    %154 = vector.load %arg7[%c0_114, %c0_115, %c1_116, %c0_117] : memref<8x4x4x64xf32, #tpu.memory_space<vmem>>, vector<8x2x2x64xf32>
    %155 = vector.shape_cast %154 : vector<8x2x2x64xf32> to vector<32x64xf32>
    %c0_118 = arith.constant 0 : index
    %c64_119 = arith.constant 64 : index
    %156 = vector.load %arg9[%c0_118, %c64_119] : memref<32x576xf32, #tpu.memory_space<vmem>>, vector<32x64xf32>
    tpu.vector_store %arg9[%c0_118, %c64_119], %155 {strides = array<i32>} : memref<32x576xf32, #tpu.memory_space<vmem>>, vector<32x64xf32>,
    %c0_120 = arith.constant 0 : index
    %c0_121 = arith.constant 0 : index
    %c2_122 = arith.constant 2 : index
    %c0_123 = arith.constant 0 : index
    %157 = vector.load %arg7[%c0_120, %c0_121, %c2_122, %c0_123] : memref<8x4x4x64xf32, #tpu.memory_space<vmem>>, vector<8x2x2x64xf32>
    %158 = vector.shape_cast %157 : vector<8x2x2x64xf32> to vector<32x64xf32>
    %c0_124 = arith.constant 0 : index
    %c128_125 = arith.constant 128 : index
    %159 = vector.load %arg9[%c0_124, %c128_125] : memref<32x576xf32, #tpu.memory_space<vmem>>, vector<32x64xf32>
    tpu.vector_store %arg9[%c0_124, %c128_125], %158 {strides = array<i32>} : memref<32x576xf32, #tpu.memory_space<vmem>>, vector<32x64xf32>,
    %c0_126 = arith.constant 0 : index
    %c1_127 = arith.constant 1 : index
    %c0_128 = arith.constant 0 : index
    %c0_129 = arith.constant 0 : index
    %160 = vector.load %arg7[%c0_126, %c1_127, %c0_128, %c0_129] : memref<8x4x4x64xf32, #tpu.memory_space<vmem>>, vector<8x2x2x64xf32>
    %161 = vector.shape_cast %160 : vector<8x2x2x64xf32> to vector<32x64xf32>
    %c0_130 = arith.constant 0 : index
    %c192_131 = arith.constant 192 : index
    %162 = vector.load %arg9[%c0_130, %c192_131] : memref<32x576xf32, #tpu.memory_space<vmem>>, vector<32x64xf32>
    tpu.vector_store %arg9[%c0_130, %c192_131], %161 {strides = array<i32>} : memref<32x576xf32, #tpu.memory_space<vmem>>, vector<32x64xf32>,
    %c0_132 = arith.constant 0 : index
    %c1_133 = arith.constant 1 : index
    %c1_134 = arith.constant 1 : index
    %c0_135 = arith.constant 0 : index
    %163 = vector.load %arg7[%c0_132, %c1_133, %c1_134, %c0_135] : memref<8x4x4x64xf32, #tpu.memory_space<vmem>>, vector<8x2x2x64xf32>
    %164 = vector.shape_cast %163 : vector<8x2x2x64xf32> to vector<32x64xf32>
    %c0_136 = arith.constant 0 : index
    %c256_137 = arith.constant 256 : index
    %165 = vector.load %arg9[%c0_136, %c256_137] : memref<32x576xf32, #tpu.memory_space<vmem>>, vector<32x64xf32>
    tpu.vector_store %arg9[%c0_136, %c256_137], %164 {strides = array<i32>} : memref<32x576xf32, #tpu.memory_space<vmem>>, vector<32x64xf32>,
    %c0_138 = arith.constant 0 : index
    %c1_139 = arith.constant 1 : index
    %c2_140 = arith.constant 2 : index
    %c0_141 = arith.constant 0 : index
    %166 = vector.load %arg7[%c0_138, %c1_139, %c2_140, %c0_141] : memref<8x4x4x64xf32, #tpu.memory_space<vmem>>, vector<8x2x2x64xf32>
    %167 = vector.shape_cast %166 : vector<8x2x2x64xf32> to vector<32x64xf32>
    %c0_142 = arith.constant 0 : index
    %c320 = arith.constant 320 : index
    %168 = vector.load %arg9[%c0_142, %c320] : memref<32x576xf32, #tpu.memory_space<vmem>>, vector<32x64xf32>
    tpu.vector_store %arg9[%c0_142, %c320], %167 {strides = array<i32>} : memref<32x576xf32, #tpu.memory_space<vmem>>, vector<32x64xf32>,
    %c0_143 = arith.constant 0 : index
    %c2_144 = arith.constant 2 : index
    %c0_145 = arith.constant 0 : index
    %c0_146 = arith.constant 0 : index
    %169 = vector.load %arg7[%c0_143, %c2_144, %c0_145, %c0_146] : memref<8x4x4x64xf32, #tpu.memory_space<vmem>>, vector<8x2x2x64xf32>
    %170 = vector.shape_cast %169 : vector<8x2x2x64xf32> to vector<32x64xf32>
    %c0_147 = arith.constant 0 : index
    %c384 = arith.constant 384 : index
    %171 = vector.load %arg9[%c0_147, %c384] : memref<32x576xf32, #tpu.memory_space<vmem>>, vector<32x64xf32>
    tpu.vector_store %arg9[%c0_147, %c384], %170 {strides = array<i32>} : memref<32x576xf32, #tpu.memory_space<vmem>>, vector<32x64xf32>,
    %c0_148 = arith.constant 0 : index
    %c2_149 = arith.constant 2 : index
    %c1_150 = arith.constant 1 : index
    %c0_151 = arith.constant 0 : index
    %172 = vector.load %arg7[%c0_148, %c2_149, %c1_150, %c0_151] : memref<8x4x4x64xf32, #tpu.memory_space<vmem>>, vector<8x2x2x64xf32>
    %173 = vector.shape_cast %172 : vector<8x2x2x64xf32> to vector<32x64xf32>
    %c0_152 = arith.constant 0 : index
    %c448 = arith.constant 448 : index
    %174 = vector.load %arg9[%c0_152, %c448] : memref<32x576xf32, #tpu.memory_space<vmem>>, vector<32x64xf32>
    tpu.vector_store %arg9[%c0_152, %c448], %173 {strides = array<i32>} : memref<32x576xf32, #tpu.memory_space<vmem>>, vector<32x64xf32>,
    %c0_153 = arith.constant 0 : index
    %c2_154 = arith.constant 2 : index
    %c2_155 = arith.constant 2 : index
    %c0_156 = arith.constant 0 : index
    %175 = vector.load %arg7[%c0_153, %c2_154, %c2_155, %c0_156] : memref<8x4x4x64xf32, #tpu.memory_space<vmem>>, vector<8x2x2x64xf32>
    %176 = vector.shape_cast %175 : vector<8x2x2x64xf32> to vector<32x64xf32>
    %c0_157 = arith.constant 0 : index
    %c512 = arith.constant 512 : index
    %177 = vector.load %arg9[%c0_157, %c512] : memref<32x576xf32, #tpu.memory_space<vmem>>, vector<32x64xf32>
    tpu.vector_store %arg9[%c0_157, %c512], %176 {strides = array<i32>} : memref<32x576xf32, #tpu.memory_space<vmem>>, vector<32x64xf32>,
    %c0_158 = arith.constant 0 : index
    %c0_159 = arith.constant 0 : index
    %178 = vector.load %arg9[%c0_158, %c0_159] : memref<32x576xf32, #tpu.memory_space<vmem>>, vector<32x576xf32>
    %c304 = arith.constant 304 : index
    %c0_160 = arith.constant 0 : index
    %179 = vector.load %arg2[%c304, %c0_160] : memref<1272x128xf32, #tpu.memory_space<vmem>>, vector<576x128xf32>
    %cst_161 = arith.constant dense<0.000000e+00> : vector<32x128xf32>
    %180 = tpu.matmul %178, %179, %cst_161 {dimension_numbers = #tpu.dot_dimension_numbers<[1], [0], [0], [1], [0, 0, 1, 1], [], []>} : vector<32x576xf32>, vector<576x128xf32>, vector<32x128xf32> -> vector<32x128xf32>
    %c6 = arith.constant 6 : index
    %c0_162 = arith.constant 0 : index
    %181 = vector.load %arg3[%c6, %c0_162] : memref<16x128xf32, #tpu.memory_space<vmem>>, vector<1x128xf32>
    %182 = vector.broadcast %181 : vector<1x128xf32> to vector<32x128xf32>
    %183 = arith.addf %180, %182 : vector<32x128xf32>
    %cst_163 = arith.constant 0.000000e+00 : f32
    %184 = vector.broadcast %cst_163 : f32 to vector<32x128xf32>
    %185 = arith.maximumf %183, %184 : vector<32x128xf32>
    %c7 = arith.constant 7 : index
    %c0_164 = arith.constant 0 : index
    %186 = vector.load %arg3[%c7, %c0_164] : memref<16x128xf32, #tpu.memory_space<vmem>>, vector<1x128xf32>
    %187 = vector.broadcast %186 : vector<1x128xf32> to vector<32x128xf32>
    %188 = arith.mulf %185, %187 : vector<32x128xf32>
    %c8 = arith.constant 8 : index
    %c0_165 = arith.constant 0 : index
    %189 = vector.load %arg3[%c8, %c0_165] : memref<16x128xf32, #tpu.memory_space<vmem>>, vector<1x128xf32>
    %190 = vector.broadcast %189 : vector<1x128xf32> to vector<32x128xf32>
    %191 = arith.addf %188, %190 : vector<32x128xf32>
    %192 = vector.shape_cast %191 : vector<32x128xf32> to vector<8x4x128xf32>
    %cst_166 = arith.constant dense<0xFF800000> : vector<8x128xf32>
    %193 = vector.multi_reduction <maximumf>, %192, %cst_166 [1] : vector<8x4x128xf32> to vector<8x128xf32>
    %194 = vector.shape_cast %193 : vector<8x128xf32> to vector<4x256xf32>
    %c880 = arith.constant 880 : index
    %c0_167 = arith.constant 0 : index
    %195 = vector.load %arg2[%c880, %c0_167] : memref<1272x128xf32, #tpu.memory_space<vmem>>, vector<256x128xf32>
    %cst_168 = arith.constant dense<0.000000e+00> : vector<4x128xf32>
    %196 = tpu.matmul %194, %195, %cst_168 {dimension_numbers = #tpu.dot_dimension_numbers<[1], [0], [0], [1], [0, 0, 1, 1], [], []>} : vector<4x256xf32>, vector<256x128xf32>, vector<4x128xf32> -> vector<4x128xf32>
    %c9 = arith.constant 9 : index
    %c0_169 = arith.constant 0 : index
    %197 = vector.load %arg3[%c9, %c0_169] : memref<16x128xf32, #tpu.memory_space<vmem>>, vector<1x128xf32>
    %198 = vector.broadcast %197 : vector<1x128xf32> to vector<4x128xf32>
    %199 = arith.addf %196, %198 : vector<4x128xf32>
    %cst_170 = arith.constant 0.000000e+00 : f32
    %200 = vector.broadcast %cst_170 : f32 to vector<4x128xf32>
    %201 = arith.maximumf %199, %200 : vector<4x128xf32>
    %c1136 = arith.constant 1136 : index
    %c0_171 = arith.constant 0 : index
    %202 = vector.load %arg2[%c1136, %c0_171] : memref<1272x128xf32, #tpu.memory_space<vmem>>, vector<128x128xf32>
    %cst_172 = arith.constant dense<0.000000e+00> : vector<4x128xf32>
    %203 = tpu.matmul %201, %202, %cst_172 {dimension_numbers = #tpu.dot_dimension_numbers<[1], [0], [0], [1], [0, 0, 1, 1], [], []>} : vector<4x128xf32>, vector<128x128xf32>, vector<4x128xf32> -> vector<4x128xf32>
    %c10 = arith.constant 10 : index
    %c0_173 = arith.constant 0 : index
    %204 = vector.load %arg3[%c10, %c0_173] : memref<16x128xf32, #tpu.memory_space<vmem>>, vector<1x128xf32>
    %205 = vector.broadcast %204 : vector<1x128xf32> to vector<4x128xf32>
    %206 = arith.addf %203, %205 : vector<4x128xf32>
    %cst_174 = arith.constant 0.000000e+00 : f32
    %207 = vector.broadcast %cst_174 : f32 to vector<4x128xf32>
    %208 = arith.maximumf %206, %207 : vector<4x128xf32>
    %c1264 = arith.constant 1264 : index
    %c0_175 = arith.constant 0 : index
    %209 = vector.load %arg2[%c1264, %c0_175] : memref<1272x128xf32, #tpu.memory_space<vmem>>, vector<1x128xf32>
    %210 = vector.broadcast %209 : vector<1x128xf32> to vector<4x128xf32>
    %211 = arith.mulf %208, %210 : vector<4x128xf32>
    %cst_176 = arith.constant dense<0.000000e+00> : vector<4xf32>
    %212 = vector.multi_reduction <add>, %211, %cst_176 [1] : vector<4x128xf32> to vector<4xf32>
    %213 = vector.shape_cast %212 : vector<4xf32> to vector<4x1xf32>
    %c11 = arith.constant 11 : index
    %c0_177 = arith.constant 0 : index
    %214 = vector.load %arg3[%c11, %c0_177] : memref<16x128xf32, #tpu.memory_space<vmem>>, vector<1x1xf32>
    %215 = vector.broadcast %214 : vector<1x1xf32> to vector<4x1xf32>
    %216 = arith.addf %213, %215 : vector<4x1xf32>
    %cst_178 = arith.constant 0.000000e+00 : f32
    %217 = vector.broadcast %cst_178 : f32 to vector<4x1xf32>
    %218 = arith.subf %217, %216 : vector<4x1xf32>
    %219 = math.exp %218 : vector<4x1xf32>
    %cst_179 = arith.constant 1.000000e+00 : f32
    %220 = vector.broadcast %cst_179 : f32 to vector<4x1xf32>
    %221 = arith.addf %220, %219 : vector<4x1xf32>
    %cst_180 = arith.constant 1.000000e+00 : f32
    %222 = vector.broadcast %cst_180 : f32 to vector<4x1xf32>
    %223 = arith.divf %222, %221 : vector<4x1xf32>
    %224 = vector.shape_cast %223 : vector<4x1xf32> to vector<1x1x4xf32>
    %c0_181 = arith.constant 0 : index
    %c0_182 = arith.constant 0 : index
    %c0_183 = arith.constant 0 : index
    %225 = vector.load %arg4[%c0_181, %c0_182, %c0_183] : memref<1x1x4xf32, #tpu.memory_space<vmem>>, vector<1x1x4xf32>
    tpu.vector_store %arg4[%c0_181, %c0_182, %c0_183], %224 {strides = array<i32>} : memref<1x1x4xf32, #tpu.memory_space<vmem>>, vector<1x1x4xf32>,
    return
  }
  func.func @transform_0(%arg0: i32) -> (i32, i32, i32, i32) {
    %c0_i32 = arith.constant 0 : i32
    %c0_i32_0 = arith.constant 0 : i32
    %c0_i32_1 = arith.constant 0 : i32
    %c0_i32_2 = arith.constant 0 : i32
    return %arg0, %c0_i32, %c0_i32_0, %c0_i32_1 : i32, i32, i32, i32
  }
  func.func @transform_1(%arg0: i32) -> (i32, i32) {
    %c0_i32 = arith.constant 0 : i32
    %c0_i32_0 = arith.constant 0 : i32
    %c0_i32_1 = arith.constant 0 : i32
    return %c0_i32, %c0_i32_0 : i32, i32
  }
  func.func @transform_2(%arg0: i32) -> (i32, i32) {
    %c0_i32 = arith.constant 0 : i32
    %c0_i32_0 = arith.constant 0 : i32
    %c0_i32_1 = arith.constant 0 : i32
    return %c0_i32, %c0_i32_0 : i32, i32
  }
  func.func @transform_3(%arg0: i32) -> (i32, i32, i32) {
    %c0_i32 = arith.constant 0 : i32
    %c0_i32_0 = arith.constant 0 : i32
    %c0_i32_1 = arith.constant 0 : i32
    return %arg0, %c0_i32, %c0_i32_0 : i32, i32, i32
  }
}

</mosaic_0001>

<llo_original>
// kernel: w_net_forward.1
$region0: #{w_net_forward.1}
  #allocation0 [shape = 'u32[]', space=smem, size = 0x4, offset = 0x4, fixed_abs, tag = 'smem constant byte address 0x4 - core index']
  #allocation1 [shape = 'u32[144,128]{1,0:T(1,128)}', space=vmem, size = 0x12000, scoped, tag = 'internal scratch']
  #allocation2 [shape = 'f32[8,10,10]{2,1,0:T(8,128)}', space=vmem, size = 0x10000, scoped, tag = 'scratch operand']
  #allocation3 [shape = 'f32[8,6,6,32]{3,2,1,0:T(8,128)}', space=vmem, size = 0x30000, scoped, tag = 'scratch operand']
  #allocation4 [shape = 'f32[8,4,4,64]{3,2,1,0:T(4,128)}', space=vmem, size = 0x10000, scoped, tag = 'scratch operand']
  #allocation5 [shape = 'f32[128,288]{1,0:T(8,128)}', space=vmem, size = 0x30000, scoped, tag = 'scratch operand']
  #allocation6 [shape = 'f32[32,576]{1,0:T(8,128)}', space=vmem, size = 0x14000, scoped, tag = 'scratch operand']
  %s0 = inlined_call_operand.hbm [shape: f32[8,2,8,8], index: 0, kind: input, shape index: {}]
  %s1 = inlined_call_operand.hbm [shape: f32[1272,128], index: 1, kind: input, shape index: {}]
  %s2 = inlined_call_operand.hbm [shape: f32[16,128], index: 2, kind: input, shape index: {}]
  %s3 = inlined_call_operand.vmem [shape: f32[2,1,4], index: 3, kind: output, shape index: {}]
  %s4 = sld [smem:[#allocation0]]
  $region57: #{w_net_forward.1} parent=0
    _
  %s6 = ssub.s32 1, %s4
  %s7 = scalar_select 0, %s6, %s4
  $region1: #{w_net_forward.1} parent=0
    #allocation7 [shape = 'u8[65536]{0}', space=vmem, size = 0x10000, scoped, tag = 'input window, operand 0']
    #allocation8 [shape = 's32[2]{0}', space=sflag, size = 0x8, scoped, tag = 'scoped memory for w_net_forward.1']
    #allocation9 [shape = 'u8[651264]{0}', space=vmem, size = 0x9f000, scoped, tag = 'input window, operand 1, single buffered']
    #allocation10 [shape = 's32[1]{0}', space=sflag, size = 0x4, scoped, tag = 'scoped memory for w_net_forward.1']
    #allocation11 [shape = 'u8[8192]{0}', space=vmem, size = 0x2000, scoped, tag = 'input window, operand 2, single buffered']
    %8 = vsyncpa [#allocation8], 0
    %s9 = scalar_lea.sflag [#allocation8], 1
    %10 = vsyncpa %s9, 0
    %11 = vsyncpa [#allocation10], 0
    loop: start=0, step=1, limit=4
    $region2: #{w_net_forward.1} parent=1 // loop_pre_header
      _
    $region3: #{w_net_forward.1} parent=1 // loop_header
      %s13 = sphi 0, %s17
      %p14 = scmp.ge.s32.totalorder %s13, 4
      %s23 = sphi 0, %s25
      %s26 = sphi 0, %s23
      %s27 = sphi 0, %s26
      %s43 = sphi 0, %s27
      %s47 = sphi 0, %s47
      %s49 = sphi 0, %s47
      %s50 = sphi 0, %s49
      %s64 = sphi 0, %s50
      %s68 = sphi 0, %s68
      %s70 = sphi 0, %s68
      %s71 = sphi 0, %s70
      %s85 = sphi 0, %s71
      %s91 = sphi 0, %s93
      %s94 = sphi 0, %s91
      %s95 = sphi 0, %s94
      %s111 = sphi 0, %s95
    $region4: #{w_net_forward.1} parent=1 // loop_header_branch
      %16 = sbr.rel (%p14) target = $region8
    $region5: #{w_net_forward.1} parent=1 // loop_body
      %s18 = ssub.s32 %s13, 1
      %s19 = ssub.s32 %s13, 2
      %s20 = sadd.s32 %s13, 1
      %s21 = ssub.s32 %s13, %s20
      %p22 = scmp.eq.s32.totalorder %s21, 0
      %s24 = sadd.s32 %s23, 1
      %s25 = scalar_select %p22, %s23, %s24
      %p28 = pneg %p22
      %p29 = scmp.eq.s32.totalorder %s13, 1
      %p30 = por %p28, %p29
      %p31 = scmp.ne.s32.totalorder %s23, %s26
      %p32 = scmp.eq.s32.totalorder %s13, 0
      %p33 = por %p31, %p32
      %p34 = scmp.ne.s32.totalorder %s23, %s26
      %p35 = scmp.eq.s32.totalorder %s18, 1
      %p36 = por %p34, %p35
      %p37 = scmp.ne.s32.totalorder %s26, %s27
      %p38 = scmp.eq.s32.totalorder %s18, 0
      %p39 = por %p37, %p38
      %p40 = scmp.ne.s32.totalorder %s26, %s27
      %p41 = scmp.eq.s32.totalorder %s19, 1
      %p42 = por %p40, %p41
      %p44 = scmp.ne.s32.totalorder %s27, %s43
      %p45 = scmp.eq.s32.totalorder %s19, 0
      %p46 = por %p44, %p45
      %s48 = sadd.s32 %s47, 1
      %p51 = scmp.eq.s32.totalorder %s13, 1
      %p52 = scmp.ne.s32.totalorder %s47, %s49
      %p53 = scmp.eq.s32.totalorder %s13, 0
      %p54 = por %p52, %p53
      %p55 = scmp.ne.s32.totalorder %s47, %s49
      %p56 = scmp.eq.s32.totalorder %s18, 1
      %p57 = por %p55, %p56
      %p58 = scmp.ne.s32.totalorder %s49, %s50
      %p59 = scmp.eq.s32.totalorder %s18, 0
      %p60 = por %p58, %p59
      %p61 = scmp.ne.s32.totalorder %s49, %s50
      %p62 = scmp.eq.s32.totalorder %s19, 1
      %p63 = por %p61, %p62
      %p65 = scmp.ne.s32.totalorder %s50, %s64
      %p66 = scmp.eq.s32.totalorder %s19, 0
      %p67 = por %p65, %p66
      %s69 = sadd.s32 %s68, 1
      %p72 = scmp.eq.s32.totalorder %s13, 1
      %p73 = scmp.ne.s32.totalorder %s68, %s70
      %p74 = scmp.eq.s32.totalorder %s13, 0
      %p75 = por %p73, %p74
      %p76 = scmp.ne.s32.totalorder %s68, %s70
      %p77 = scmp.eq.s32.totalorder %s18, 1
      %p78 = por %p76, %p77
      %p79 = scmp.ne.s32.totalorder %s70, %s71
      %p80 = scmp.eq.s32.totalorder %s18, 0
      %p81 = por %p79, %p80
      %p82 = scmp.ne.s32.totalorder %s70, %s71
      %p83 = scmp.eq.s32.totalorder %s19, 1
      %p84 = por %p82, %p83
      %p86 = scmp.ne.s32.totalorder %s71, %s85
      %p87 = scmp.eq.s32.totalorder %s19, 0
      %p88 = por %p86, %p87
      %s89 = ssub.s32 %s13, %s20
      %p90 = scmp.eq.s32.totalorder %s89, 0
      %s92 = sadd.s32 %s91, 1
      %s93 = scalar_select %p90, %s91, %s92
      %p96 = pneg %p90
      %p97 = scmp.eq.s32.totalorder %s13, 1
      %p98 = por %p96, %p97
      %p99 = scmp.ne.s32.totalorder %s91, %s94
      %p100 = scmp.eq.s32.totalorder %s13, 0
      %p101 = por %p99, %p100
      %p102 = scmp.ne.s32.totalorder %s91, %s94
      %p103 = scmp.eq.s32.totalorder %s18, 1
      %p104 = por %p102, %p103
      %p105 = scmp.ne.s32.totalorder %s94, %s95
      %p106 = scmp.eq.s32.totalorder %s18, 0
      %p107 = por %p105, %p106
      %p108 = scmp.ne.s32.totalorder %s94, %s95
      %p109 = scmp.eq.s32.totalorder %s19, 1
      %p110 = por %p108, %p109
      %p112 = scmp.ne.s32.totalorder %s95, %s111
      %p113 = scmp.eq.s32.totalorder %s19, 0
      %p114 = por %p112, %p113
      %p115 = scmp.le.s32.totalorder 1, %s13
      %p116 = scmp.lt.s32.totalorder %s13, 3
      %p117 = pnand %p115, %p116
      %p118 = pneg %p117
      // Predicated region
      $region9: #{w_net_forward.1} parent=5 // pred_check
        _
      $region10: #{w_net_forward.1} parent=5 // pred_check_branch
        %120 = sbr.rel (%p117) target = $region12
      $region11: #{w_net_forward.1} parent=5 // pred_region
        %s121 = ssub.s32 %s13, 1
        // Predicated region
        $region13: #{w_net_forward.1} parent=11 // pred_check
          %p122 = pneg %p60
        $region14: #{w_net_forward.1} parent=11 // pred_check_branch
          %124 = sbr.rel (%p122) target = $region16
        $region15: #{w_net_forward.1} parent=11 // pred_region
          %s126 = ssub.s32 20352, 20352
          %127 = vsyncadd [#allocation10], %s126
          %s128 = sshll.u32 [#allocation9], 4
          %s129 = int_to_ptr.vmem [resolvable:$true] %s128
          %134 = dma.hbm_to_vmem [thread:$0]  %s1, 20352, %s129, [#allocation10], 128, 128, 8
        $region16: #{w_net_forward.1} parent=11 // pred_fallthru
          _
        // Predicated region
        $region17: #{w_net_forward.1} parent=11 // pred_check
          %p135 = pneg %p81
        $region18: #{w_net_forward.1} parent=11 // pred_check_branch
          %137 = sbr.rel (%p135) target = $region20
        $region19: #{w_net_forward.1} parent=11 // pred_region
          %s139 = ssub.s32 256, 256
          %140 = vsyncadd [#allocation10], %s139
          %s141 = sshll.u32 [#allocation11], 4
          %s142 = int_to_ptr.vmem [resolvable:$true] %s141
          %147 = dma.hbm_to_vmem [thread:$0]  %s2, 256, %s142, [#allocation10], 128, 128, 8
        $region20: #{w_net_forward.1} parent=11 // pred_fallthru
          _
      $region12: #{w_net_forward.1} parent=5 // pred_fallthru
        _
      %p148 = scmp.lt.s32.totalorder %s13, 2
      // Predicated region
      $region21: #{w_net_forward.1} parent=5 // pred_check
        %p149 = pneg %p148
      $region22: #{w_net_forward.1} parent=5 // pred_check_branch
        %151 = sbr.rel (%p149) target = $region24
      $region23: #{w_net_forward.1} parent=5 // pred_region
        // Predicated region
        $region25: #{w_net_forward.1} parent=23 // pred_check
          %p152 = pneg %p33
        $region26: #{w_net_forward.1} parent=23 // pred_check_branch
          %154 = sbr.rel (%p152) target = $region28
        $region27: #{w_net_forward.1} parent=23 // pred_region
          %s155 = sand.u32 %s23, 1
          %s156 = scalar_lea.sflag [#allocation8], %s155
          %s157 = sand.u32 %s23, 1
          %s158 = smul.addr %s157, 64
          %s159 = scalar_lea.vmem [#allocation7], %s158
          %s160 = smul.u32 4, %s13
          %s162 = ssub.s32 1024, 1024
          %163 = vsyncadd %s156, %s162
          %s164 = smul.addr %s160, 2
          %s165 = smul.addr %s164, 128
          %s166 = scalar_lea.hbm %s0, %s165
          %s167 = sshll.u32 %s159, 4
          %s168 = int_to_ptr.vmem [resolvable:$true] %s167
          %173 = dma.hbm_to_vmem [thread:$0]  %s166, 1024, %s168, %s156, 128, 128, 8
        $region28: #{w_net_forward.1} parent=23 // pred_fallthru
          _
      $region24: #{w_net_forward.1} parent=5 // pred_fallthru
        _
      %p174 = scmp.le.s32.totalorder 1, %s13
      %p175 = scmp.lt.s32.totalorder %s13, 3
      %p176 = pnand %p174, %p175
      %p177 = pneg %p176
      // Predicated region
      $region29: #{w_net_forward.1} parent=5 // pred_check
        _
      $region30: #{w_net_forward.1} parent=5 // pred_check_branch
        %179 = sbr.rel (%p176) target = $region32
      $region31: #{w_net_forward.1} parent=5 // pred_region
        %s180 = ssub.s32 %s13, 1
        %s181 = sand.u32 %s26, 1
        %s182 = scalar_lea.sflag [#allocation8], %s181
        %s183 = sand.u32 %s26, 1
        %s184 = smul.addr %s183, 64
        %s185 = scalar_lea.vmem [#allocation7], %s184
        // Predicated region
        $region33: #{w_net_forward.1} parent=31 // pred_check
          %p186 = pneg %p39
        $region34: #{w_net_forward.1} parent=31 // pred_check_branch
          %188 = sbr.rel (%p186) target = $region36
        $region35: #{w_net_forward.1} parent=31 // pred_region
          %189 = dma.done %s182, 1024
        $region36: #{w_net_forward.1} parent=31 // pred_fallthru
          _
        // Predicated region
        $region37: #{w_net_forward.1} parent=31 // pred_check
          %p190 = pneg %p60
        $region38: #{w_net_forward.1} parent=31 // pred_check_branch
          %192 = sbr.rel (%p190) target = $region40
        $region39: #{w_net_forward.1} parent=31 // pred_region
          %193 = dma.done [#allocation10], 20352
        $region40: #{w_net_forward.1} parent=31 // pred_fallthru
          _
        // Predicated region
        $region41: #{w_net_forward.1} parent=31 // pred_check
          %p194 = pneg %p81
        $region42: #{w_net_forward.1} parent=31 // pred_check_branch
          %196 = sbr.rel (%p194) target = $region44
        $region43: #{w_net_forward.1} parent=31 // pred_region
          %197 = dma.done [#allocation10], 256
        $region44: #{w_net_forward.1} parent=31 // pred_fallthru
          _
        %s198 = sand.u32 %s26, 1
        %s199 = scalar_lea.sflag [#allocation8], %s198
        %s200 = sand.u32 %s26, 1
        %s201 = smul.addr %s200, 64
        %s202 = scalar_lea.vmem [#allocation7], %s201
        %p203 = pneg %p39
        %p204 = pneg %p36
        %p205 = pneg %p60
        %p206 = pneg %p57
        %p207 = pneg %p81
        %p208 = pneg %p78
        %p209 = pneg %p107
        %p210 = pneg %p104
        %p211 = scmp.lt.s32.totalorder %s18, 1
        %s212 = scalar_select %p211, %s18, 1
        %s213 = scalar_lea.vmem %s3, %s212
        %s214 = smul.u32 4, %s18
        %p215 = scmp.lt.s32.totalorder %s18, 1
        %s216 = scalar_select %p215, %s18, 1
        %s217 = scalar_lea.vmem %s3, %s216
        %vm218 = vcmask 80896
        %219 = vst.msk [vmem:[#allocation2] sm:$0xff] %vm218, 0.0
        %vm220 = vcmask 74752
        %221 = vst.msk [vmem:[#allocation2 + $0x8] sm:$0x3] %vm220, 0.0
        %222 = vst.msk [vmem:[#allocation2 + $0x10] sm:$0xff] %vm218, 0.0
        %223 = vst.msk [vmem:[#allocation2 + $0x18] sm:$0x3] %vm220, 0.0
        %224 = vst.msk [vmem:[#allocation2 + $0x20] sm:$0xff] %vm218, 0.0
        %225 = vst.msk [vmem:[#allocation2 + $0x28] sm:$0x3] %vm220, 0.0
        %226 = vst.msk [vmem:[#allocation2 + $0x30] sm:$0xff] %vm218, 0.0
        %227 = vst.msk [vmem:[#allocation2 + $0x38] sm:$0x3] %vm220, 0.0
        %228 = vst.msk [vmem:[#allocation2 + $0x40] sm:$0xff] %vm218, 0.0
        %229 = vst.msk [vmem:[#allocation2 + $0x48] sm:$0x3] %vm220, 0.0
        %230 = vst.msk [vmem:[#allocation2 + $0x50] sm:$0xff] %vm218, 0.0
        %231 = vst.msk [vmem:[#allocation2 + $0x58] sm:$0x3] %vm220, 0.0
        %232 = vst.msk [vmem:[#allocation2 + $0x60] sm:$0xff] %vm218, 0.0
        %233 = vst.msk [vmem:[#allocation2 + $0x68] sm:$0x3] %vm220, 0.0
        %234 = vst.msk [vmem:[#allocation2 + $0x70] sm:$0xff] %vm218, 0.0
        %235 = vst.msk [vmem:[#allocation2 + $0x78] sm:$0x3] %vm220, 0.0
        %v236 = vld [vmem:[%s185] sm:$0xff]
        %v237 = vld [vmem:[%s185 + $0x8] sm:$0xff]
        %v238 = vld [vmem:[%s185 + $0x10] sm:$0xff]
        %v239 = vld [vmem:[%s185 + $0x18] sm:$0xff]
        %v240 = vld [vmem:[%s185 + $0x20] sm:$0xff]
        %v241 = vld [vmem:[%s185 + $0x28] sm:$0xff]
        %v242 = vld [vmem:[%s185 + $0x30] sm:$0xff]
        %v243 = vld [vmem:[%s185 + $0x38] sm:$0xff]
        %252 = vrot.lane.b32.xlu0 %v236, 1
        %v253 = vpop.permute.xlu0 %252
        %254 = vrot.lane.b32.xlu0 %v237, 1
        %v255 = vpop.permute.xlu0 %254
        %256 = vrot.lane.b32.xlu0 %v238, 1
        %v257 = vpop.permute.xlu0 %256
        %258 = vrot.lane.b32.xlu0 %v239, 1
        %v259 = vpop.permute.xlu0 %258
        %260 = vrot.lane.b32.xlu0 %v240, 1
        %v261 = vpop.permute.xlu0 %260
        %262 = vrot.lane.b32.xlu0 %v241, 1
        %v263 = vpop.permute.xlu0 %262
        %264 = vrot.lane.b32.xlu0 %v242, 1
        %v265 = vpop.permute.xlu0 %264
        %266 = vrot.lane.b32.xlu0 %v243, 1
        %v267 = vpop.permute.xlu0 %266
        %vm276 = vcmask 72712
        %277 = vst.msk [vmem:[#allocation2 + $0x1] sm:$0xff] %vm276, %v253
        %278 = vst.msk [vmem:[#allocation2 + $0x11] sm:$0xff] %vm276, %v255
        %279 = vst.msk [vmem:[#allocation2 + $0x21] sm:$0xff] %vm276, %v257
        %280 = vst.msk [vmem:[#allocation2 + $0x31] sm:$0xff] %vm276, %v259
        %281 = vst.msk [vmem:[#allocation2 + $0x41] sm:$0xff] %vm276, %v261
        %282 = vst.msk [vmem:[#allocation2 + $0x51] sm:$0xff] %vm276, %v263
        %283 = vst.msk [vmem:[#allocation2 + $0x61] sm:$0xff] %vm276, %v265
        %284 = vst.msk [vmem:[#allocation2 + $0x71] sm:$0xff] %vm276, %v267
        %v285 = vld [vmem:[#allocation2] sm:$0xff]
        %v286 = vld [vmem:[#allocation2 + $0x8] sm:$0x3]
        %v287 = vld [vmem:[#allocation2 + $0x10] sm:$0xff]
        %v288 = vld [vmem:[#allocation2 + $0x18] sm:$0x3]
        %v289 = vld [vmem:[#allocation2 + $0x20] sm:$0xff]
        %v290 = vld [vmem:[#allocation2 + $0x28] sm:$0x3]
        %v291 = vld [vmem:[#allocation2 + $0x30] sm:$0xff]
        %v292 = vld [vmem:[#allocation2 + $0x38] sm:$0x3]
        %v293 = vld [vmem:[#allocation2 + $0x40] sm:$0xff]
        %v294 = vld [vmem:[#allocation2 + $0x48] sm:$0x3]
        %v295 = vld [vmem:[#allocation2 + $0x50] sm:$0xff]
        %v296 = vld [vmem:[#allocation2 + $0x58] sm:$0x3]
        %v297 = vld [vmem:[#allocation2 + $0x60] sm:$0xff]
        %v298 = vld [vmem:[#allocation2 + $0x68] sm:$0x3]
        %v299 = vld [vmem:[#allocation2 + $0x70] sm:$0xff]
        %v300 = vld [vmem:[#allocation2 + $0x78] sm:$0x3]
        %v301 = vlaneseq
        %v302 = vshrl.u32 %v301, 7
        %v303 = vsub.s32 0, %v302
        %v304 = vrot.slane %v285, %v303
        %306 = vbcast.lane.b32.xlu0 %v304, 256
        %v307 = vpop.permute.xlu0 %306
        %s309 = sor.u32 256, 8
        %310 = vbcast.lane.b32.xlu0 %v304, %s309
        %v311 = vpop.permute.xlu0 %310
        %v312 = vlaneseq
        %v313 = vshrl.u32 %v312, 7
        %v314 = vsub.s32 1, %v313
        %v315 = vrot.slane %v285, %v314
        %317 = vbcast.lane.b32.xlu0 %v315, 256
        %v318 = vpop.permute.xlu0 %317
        %s320 = sor.u32 256, 8
        %321 = vbcast.lane.b32.xlu0 %v315, %s320
        %v322 = vpop.permute.xlu0 %321
        %v323 = vlaneseq
        %v324 = vshrl.u32 %v323, 7
        %v325 = vsub.s32 2, %v324
        %v326 = vrot.slane %v285, %v325
        %328 = vbcast.lane.b32.xlu0 %v326, 256
        %v329 = vpop.permute.xlu0 %328
        %s331 = sor.u32 256, 8
        %332 = vbcast.lane.b32.xlu0 %v326, %s331
        %v333 = vpop.permute.xlu0 %332
        %v334 = vlaneseq
        %v335 = vshrl.u32 %v334, 7
        %v336 = vsub.s32 3, %v335
        %v337 = vrot.slane %v285, %v336
        %339 = vbcast.lane.b32.xlu0 %v337, 256
        %v340 = vpop.permute.xlu0 %339
        %s342 = sor.u32 256, 8
        %343 = vbcast.lane.b32.xlu0 %v337, %s342
        %v344 = vpop.permute.xlu0 %343
        %v345 = vlaneseq
        %v346 = vshrl.u32 %v345, 7
        %v347 = vsub.s32 4, %v346
        %v348 = vrot.slane %v285, %v347
        %350 = vbcast.lane.b32.xlu0 %v348, 256
        %v351 = vpop.permute.xlu0 %350
        %s353 = sor.u32 256, 8
        %354 = vbcast.lane.b32.xlu0 %v348, %s353
        %v355 = vpop.permute.xlu0 %354
        %v356 = vlaneseq
        %v357 = vshrl.u32 %v356, 7
        %v358 = vsub.s32 5, %v357
        %v359 = vrot.slane %v285, %v358
        %361 = vbcast.lane.b32.xlu0 %v359, 256
        %v362 = vpop.permute.xlu0 %361
        %s364 = sor.u32 256, 8
        %365 = vbcast.lane.b32.xlu0 %v359, %s364
        %v366 = vpop.permute.xlu0 %365
        %v367 = vlaneseq
        %v368 = vshrl.u32 %v367, 7
        %v369 = vsub.s32 6, %v368
        %v370 = vrot.slane %v285, %v369
        %372 = vbcast.lane.b32.xlu0 %v370, 256
        %v373 = vpop.permute.xlu0 %372
        %s375 = sor.u32 256, 8
        %376 = vbcast.lane.b32.xlu0 %v370, %s375
        %v377 = vpop.permute.xlu0 %376
        %v378 = vlaneseq
        %v379 = vshrl.u32 %v378, 7
        %v380 = vsub.s32 7, %v379
        %v381 = vrot.slane %v285, %v380
        %383 = vbcast.lane.b32.xlu0 %v381, 256
        %v384 = vpop.permute.xlu0 %383
        %s386 = sor.u32 256, 8
        %387 = vbcast.lane.b32.xlu0 %v381, %s386
        %v388 = vpop.permute.xlu0 %387
        %v389 = vlaneseq
        %v390 = vshrl.u32 %v389, 7
        %v391 = vsub.s32 0, %v390
        %v392 = vrot.slane %v286, %v391
        %394 = vbcast.lane.b32.xlu0 %v392, 256
        %v395 = vpop.permute.xlu0 %394
        %s397 = sor.u32 256, 8
        %398 = vbcast.lane.b32.xlu0 %v392, %s397
        %v399 = vpop.permute.xlu0 %398
        %v400 = vlaneseq
        %v401 = vshrl.u32 %v400, 7
        %v402 = vsub.s32 1, %v401
        %v403 = vrot.slane %v286, %v402
        %405 = vbcast.lane.b32.xlu0 %v403, 256
        %v406 = vpop.permute.xlu0 %405
        %s408 = sor.u32 256, 8
        %409 = vbcast.lane.b32.xlu0 %v403, %s408
        %v410 = vpop.permute.xlu0 %409
        %v411 = vlaneseq
        %v412 = vshrl.u32 %v411, 7
        %v413 = vsub.s32 0, %v412
        %v414 = vrot.slane %v287, %v413
        %416 = vbcast.lane.b32.xlu0 %v414, 256
        %v417 = vpop.permute.xlu0 %416
        %s419 = sor.u32 256, 8
        %420 = vbcast.lane.b32.xlu0 %v414, %s419
        %v421 = vpop.permute.xlu0 %420
        %v422 = vlaneseq
        %v423 = vshrl.u32 %v422, 7
        %v424 = vsub.s32 1, %v423
        %v425 = vrot.slane %v287, %v424
        %427 = vbcast.lane.b32.xlu0 %v425, 256
        %v428 = vpop.permute.xlu0 %427
        %s430 = sor.u32 256, 8
        %431 = vbcast.lane.b32.xlu0 %v425, %s430
        %v432 = vpop.permute.xlu0 %431
        %v433 = vlaneseq
        %v434 = vshrl.u32 %v433, 7
        %v435 = vsub.s32 2, %v434
        %v436 = vrot.slane %v287, %v435
        %438 = vbcast.lane.b32.xlu0 %v436, 256
        %v439 = vpop.permute.xlu0 %438
        %s441 = sor.u32 256, 8
        %442 = vbcast.lane.b32.xlu0 %v436, %s441
        %v443 = vpop.permute.xlu0 %442
        %v444 = vlaneseq
        %v445 = vshrl.u32 %v444, 7
        %v446 = vsub.s32 3, %v445
        %v447 = vrot.slane %v287, %v446
        %449 = vbcast.lane.b32.xlu0 %v447, 256
        %v450 = vpop.permute.xlu0 %449
        %s452 = sor.u32 256, 8
        %453 = vbcast.lane.b32.xlu0 %v447, %s452
        %v454 = vpop.permute.xlu0 %453
        %v455 = vlaneseq
        %v456 = vshrl.u32 %v455, 7
        %v457 = vsub.s32 4, %v456
        %v458 = vrot.slane %v287, %v457
        %460 = vbcast.lane.b32.xlu0 %v458, 256
        %v461 = vpop.permute.xlu0 %460
        %s463 = sor.u32 256, 8
        %464 = vbcast.lane.b32.xlu0 %v458, %s463
        %v465 = vpop.permute.xlu0 %464
        %v466 = vlaneseq
        %v467 = vshrl.u32 %v466, 7
        %v468 = vsub.s32 5, %v467
        %v469 = vrot.slane %v287, %v468
        %471 = vbcast.lane.b32.xlu0 %v469, 256
        %v472 = vpop.permute.xlu0 %471
        %s474 = sor.u32 256, 8
        %475 = vbcast.lane.b32.xlu0 %v469, %s474
        %v476 = vpop.permute.xlu0 %475
        %v477 = vlaneseq
        %v478 = vshrl.u32 %v477, 7
        %v479 = vsub.s32 6, %v478
        %v480 = vrot.slane %v287, %v479
        %482 = vbcast.lane.b32.xlu0 %v480, 256
        %v483 = vpop.permute.xlu0 %482
        %s485 = sor.u32 256, 8
        %486 = vbcast.lane.b32.xlu0 %v480, %s485
        %v487 = vpop.permute.xlu0 %486
        %v488 = vlaneseq
        %v489 = vshrl.u32 %v488, 7
        %v490 = vsub.s32 7, %v489
        %v491 = vrot.slane %v287, %v490
        %493 = vbcast.lane.b32.xlu0 %v491, 256
        %v494 = vpop.permute.xlu0 %493
        %s496 = sor.u32 256, 8
        %497 = vbcast.lane.b32.xlu0 %v491, %s496
        %v498 = vpop.permute.xlu0 %497
        %v499 = vlaneseq
        %v500 = vshrl.u32 %v499, 7
        %v501 = vsub.s32 0, %v500
        %v502 = vrot.slane %v288, %v501
        %504 = vbcast.lane.b32.xlu0 %v502, 256
        %v505 = vpop.permute.xlu0 %504
        %s507 = sor.u32 256, 8
        %508 = vbcast.lane.b32.xlu0 %v502, %s507
        %v509 = vpop.permute.xlu0 %508
        %v510 = vlaneseq
        %v511 = vshrl.u32 %v510, 7
        %v512 = vsub.s32 1, %v511
        %v513 = vrot.slane %v288, %v512
        %515 = vbcast.lane.b32.xlu0 %v513, 256
        %v516 = vpop.permute.xlu0 %515
        %s518 = sor.u32 256, 8
        %519 = vbcast.lane.b32.xlu0 %v513, %s518
        %v520 = vpop.permute.xlu0 %519
        %v521 = vlaneseq
        %v522 = vshrl.u32 %v521, 7
        %v523 = vsub.s32 0, %v522
        %v524 = vrot.slane %v289, %v523
        %526 = vbcast.lane.b32.xlu0 %v524, 256
        %v527 = vpop.permute.xlu0 %526
        %s529 = sor.u32 256, 8
        %530 = vbcast.lane.b32.xlu0 %v524, %s529
        %v531 = vpop.permute.xlu0 %530
        %v532 = vlaneseq
        %v533 = vshrl.u32 %v532, 7
        %v534 = vsub.s32 1, %v533
        %v535 = vrot.slane %v289, %v534
        %537 = vbcast.lane.b32.xlu0 %v535, 256
        %v538 = vpop.permute.xlu0 %537
        %s540 = sor.u32 256, 8
        %541 = vbcast.lane.b32.xlu0 %v535, %s540
        %v542 = vpop.permute.xlu0 %541
        %v543 = vlaneseq
        %v544 = vshrl.u32 %v543, 7
        %v545 = vsub.s32 2, %v544
        %v546 = vrot.slane %v289, %v545
        %548 = vbcast.lane.b32.xlu0 %v546, 256
        %v549 = vpop.permute.xlu0 %548
        %s551 = sor.u32 256, 8
        %552 = vbcast.lane.b32.xlu0 %v546, %s551
        %v553 = vpop.permute.xlu0 %552
        %v554 = vlaneseq
        %v555 = vshrl.u32 %v554, 7
        %v556 = vsub.s32 3, %v555
        %v557 = vrot.slane %v289, %v556
        %559 = vbcast.lane.b32.xlu0 %v557, 256
        %v560 = vpop.permute.xlu0 %559
        %s562 = sor.u32 256, 8
        %563 = vbcast.lane.b32.xlu0 %v557, %s562
        %v564 = vpop.permute.xlu0 %563
        %v565 = vlaneseq
        %v566 = vshrl.u32 %v565, 7
        %v567 = vsub.s32 4, %v566
        %v568 = vrot.slane %v289, %v567
        %570 = vbcast.lane.b32.xlu0 %v568, 256
        %v571 = vpop.permute.xlu0 %570
        %s573 = sor.u32 256, 8
        %574 = vbcast.lane.b32.xlu0 %v568, %s573
        %v575 = vpop.permute.xlu0 %574
        %v576 = vlaneseq
        %v577 = vshrl.u32 %v576, 7
        %v578 = vsub.s32 5, %v577
        %v579 = vrot.slane %v289, %v578
        %581 = vbcast.lane.b32.xlu0 %v579, 256
        %v582 = vpop.permute.xlu0 %581
        %s584 = sor.u32 256, 8
        %585 = vbcast.lane.b32.xlu0 %v579, %s584
        %v586 = vpop.permute.xlu0 %585
        %v587 = vlaneseq
        %v588 = vshrl.u32 %v587, 7
        %v589 = vsub.s32 6, %v588
        %v590 = vrot.slane %v289, %v589
        %592 = vbcast.lane.b32.xlu0 %v590, 256
        %v593 = vpop.permute.xlu0 %592
        %s595 = sor.u32 256, 8
        %596 = vbcast.lane.b32.xlu0 %v590, %s595
        %v597 = vpop.permute.xlu0 %596
        %v598 = vlaneseq
        %v599 = vshrl.u32 %v598, 7
        %v600 = vsub.s32 7, %v599
        %v601 = vrot.slane %v289, %v600
        %603 = vbcast.lane.b32.xlu0 %v601, 256
        %v604 = vpop.permute.xlu0 %603
        %s606 = sor.u32 256, 8
        %607 = vbcast.lane.b32.xlu0 %v601, %s606
        %v608 = vpop.permute.xlu0 %607
        %v609 = vlaneseq
        %v610 = vshrl.u32 %v609, 7
        %v611 = vsub.s32 0, %v610
        %v612 = vrot.slane %v290, %v611
        %614 = vbcast.lane.b32.xlu0 %v612, 256
        %v615 = vpop.permute.xlu0 %614
        %s617 = sor.u32 256, 8
        %618 = vbcast.lane.b32.xlu0 %v612, %s617
        %v619 = vpop.permute.xlu0 %618
        %v620 = vlaneseq
        %v621 = vshrl.u32 %v620, 7
        %v622 = vsub.s32 1, %v621
        %v623 = vrot.slane %v290, %v622
        %625 = vbcast.lane.b32.xlu0 %v623, 256
        %v626 = vpop.permute.xlu0 %625
        %s628 = sor.u32 256, 8
        %629 = vbcast.lane.b32.xlu0 %v623, %s628
        %v630 = vpop.permute.xlu0 %629
        %v631 = vlaneseq
        %v632 = vshrl.u32 %v631, 7
        %v633 = vsub.s32 0, %v632
        %v634 = vrot.slane %v291, %v633
        %636 = vbcast.lane.b32.xlu0 %v634, 256
        %v637 = vpop.permute.xlu0 %636
        %s639 = sor.u32 256, 8
        %640 = vbcast.lane.b32.xlu0 %v634, %s639
        %v641 = vpop.permute.xlu0 %640
        %v642 = vlaneseq
        %v643 = vshrl.u32 %v642, 7
        %v644 = vsub.s32 1, %v643
        %v645 = vrot.slane %v291, %v644
        %647 = vbcast.lane.b32.xlu0 %v645, 256
        %v648 = vpop.permute.xlu0 %647
        %s650 = sor.u32 256, 8
        %651 = vbcast.lane.b32.xlu0 %v645, %s650
        %v652 = vpop.permute.xlu0 %651
        %v653 = vlaneseq
        %v654 = vshrl.u32 %v653, 7
        %v655 = vsub.s32 2, %v654
        %v656 = vrot.slane %v291, %v655
        %658 = vbcast.lane.b32.xlu0 %v656, 256
        %v659 = vpop.permute.xlu0 %658
        %s661 = sor.u32 256, 8
        %662 = vbcast.lane.b32.xlu0 %v656, %s661
        %v663 = vpop.permute.xlu0 %662
        %v664 = vlaneseq
        %v665 = vshrl.u32 %v664, 7
        %v666 = vsub.s32 3, %v665
        %v667 = vrot.slane %v291, %v666
        %669 = vbcast.lane.b32.xlu0 %v667, 256
        %v670 = vpop.permute.xlu0 %669
        %s672 = sor.u32 256, 8
        %673 = vbcast.lane.b32.xlu0 %v667, %s672
        %v674 = vpop.permute.xlu0 %673
        %v675 = vlaneseq
        %v676 = vshrl.u32 %v675, 7
        %v677 = vsub.s32 4, %v676
        %v678 = vrot.slane %v291, %v677
        %680 = vbcast.lane.b32.xlu0 %v678, 256
        %v681 = vpop.permute.xlu0 %680
        %s683 = sor.u32 256, 8
        %684 = vbcast.lane.b32.xlu0 %v678, %s683
        %v685 = vpop.permute.xlu0 %684
        %v686 = vlaneseq
        %v687 = vshrl.u32 %v686, 7
        %v688 = vsub.s32 5, %v687
        %v689 = vrot.slane %v291, %v688
        %691 = vbcast.lane.b32.xlu0 %v689, 256
        %v692 = vpop.permute.xlu0 %691
        %s694 = sor.u32 256, 8
        %695 = vbcast.lane.b32.xlu0 %v689, %s694
        %v696 = vpop.permute.xlu0 %695
        %v697 = vlaneseq
        %v698 = vshrl.u32 %v697, 7
        %v699 = vsub.s32 6, %v698
        %v700 = vrot.slane %v291, %v699
        %702 = vbcast.lane.b32.xlu0 %v700, 256
        %v703 = vpop.permute.xlu0 %702
        %s705 = sor.u32 256, 8
        %706 = vbcast.lane.b32.xlu0 %v700, %s705
        %v707 = vpop.permute.xlu0 %706
        %v708 = vlaneseq
        %v709 = vshrl.u32 %v708, 7
        %v710 = vsub.s32 7, %v709
        %v711 = vrot.slane %v291, %v710
        %713 = vbcast.lane.b32.xlu0 %v711, 256
        %v714 = vpop.permute.xlu0 %713
        %s716 = sor.u32 256, 8
        %717 = vbcast.lane.b32.xlu0 %v711, %s716
        %v718 = vpop.permute.xlu0 %717
        %v719 = vlaneseq
        %v720 = vshrl.u32 %v719, 7
        %v721 = vsub.s32 0, %v720
        %v722 = vrot.slane %v292, %v721
        %724 = vbcast.lane.b32.xlu0 %v722, 256
        %v725 = vpop.permute.xlu0 %724
        %s727 = sor.u32 256, 8
        %728 = vbcast.lane.b32.xlu0 %v722, %s727
        %v729 = vpop.permute.xlu0 %728
        %v730 = vlaneseq
        %v731 = vshrl.u32 %v730, 7
        %v732 = vsub.s32 1, %v731
        %v733 = vrot.slane %v292, %v732
        %735 = vbcast.lane.b32.xlu0 %v733, 256
        %v736 = vpop.permute.xlu0 %735
        %s738 = sor.u32 256, 8
        %739 = vbcast.lane.b32.xlu0 %v733, %s738
        %v740 = vpop.permute.xlu0 %739
        %v741 = vlaneseq
        %v742 = vshrl.u32 %v741, 7
        %v743 = vsub.s32 0, %v742
        %v744 = vrot.slane %v293, %v743
        %746 = vbcast.lane.b32.xlu0 %v744, 256
        %v747 = vpop.permute.xlu0 %746
        %s749 = sor.u32 256, 8
        %750 = vbcast.lane.b32.xlu0 %v744, %s749
        %v751 = vpop.permute.xlu0 %750
        %v752 = vlaneseq
        %v753 = vshrl.u32 %v752, 7
        %v754 = vsub.s32 1, %v753
        %v755 = vrot.slane %v293, %v754
        %757 = vbcast.lane.b32.xlu0 %v755, 256
        %v758 = vpop.permute.xlu0 %757
        %s760 = sor.u32 256, 8
        %761 = vbcast.lane.b32.xlu0 %v755, %s760
        %v762 = vpop.permute.xlu0 %761
        %v763 = vlaneseq
        %v764 = vshrl.u32 %v763, 7
        %v765 = vsub.s32 2, %v764
        %v766 = vrot.slane %v293, %v765
        %768 = vbcast.lane.b32.xlu0 %v766, 256
        %v769 = vpop.permute.xlu0 %768
        %s771 = sor.u32 256, 8
        %772 = vbcast.lane.b32.xlu0 %v766, %s771
        %v773 = vpop.permute.xlu0 %772
        %v774 = vlaneseq
        %v775 = vshrl.u32 %v774, 7
        %v776 = vsub.s32 3, %v775
        %v777 = vrot.slane %v293, %v776
        %779 = vbcast.lane.b32.xlu0 %v777, 256
        %v780 = vpop.permute.xlu0 %779
        %s782 = sor.u32 256, 8
        %783 = vbcast.lane.b32.xlu0 %v777, %s782
        %v784 = vpop.permute.xlu0 %783
        %v785 = vlaneseq
        %v786 = vshrl.u32 %v785, 7
        %v787 = vsub.s32 4, %v786
        %v788 = vrot.slane %v293, %v787
        %790 = vbcast.lane.b32.xlu0 %v788, 256
        %v791 = vpop.permute.xlu0 %790
        %s793 = sor.u32 256, 8
        %794 = vbcast.lane.b32.xlu0 %v788, %s793
        %v795 = vpop.permute.xlu0 %794
        %v796 = vlaneseq
        %v797 = vshrl.u32 %v796, 7
        %v798 = vsub.s32 5, %v797
        %v799 = vrot.slane %v293, %v798
        %801 = vbcast.lane.b32.xlu0 %v799, 256
        %v802 = vpop.permute.xlu0 %801
        %s804 = sor.u32 256, 8
        %805 = vbcast.lane.b32.xlu0 %v799, %s804
        %v806 = vpop.permute.xlu0 %805
        %v807 = vlaneseq
        %v808 = vshrl.u32 %v807, 7
        %v809 = vsub.s32 6, %v808
        %v810 = vrot.slane %v293, %v809
        %812 = vbcast.lane.b32.xlu0 %v810, 256
        %v813 = vpop.permute.xlu0 %812
        %s815 = sor.u32 256, 8
        %816 = vbcast.lane.b32.xlu0 %v810, %s815
        %v817 = vpop.permute.xlu0 %816
        %v818 = vlaneseq
        %v819 = vshrl.u32 %v818, 7
        %v820 = vsub.s32 7, %v819
        %v821 = vrot.slane %v293, %v820
        %823 = vbcast.lane.b32.xlu0 %v821, 256
        %v824 = vpop.permute.xlu0 %823
        %s826 = sor.u32 256, 8
        %827 = vbcast.lane.b32.xlu0 %v821, %s826
        %v828 = vpop.permute.xlu0 %827
        %v829 = vlaneseq
        %v830 = vshrl.u32 %v829, 7
        %v831 = vsub.s32 0, %v830
        %v832 = vrot.slane %v294, %v831
        %834 = vbcast.lane.b32.xlu0 %v832, 256
        %v835 = vpop.permute.xlu0 %834
        %s837 = sor.u32 256, 8
        %838 = vbcast.lane.b32.xlu0 %v832, %s837
        %v839 = vpop.permute.xlu0 %838
        %v840 = vlaneseq
        %v841 = vshrl.u32 %v840, 7
        %v842 = vsub.s32 1, %v841
        %v843 = vrot.slane %v294, %v842
        %845 = vbcast.lane.b32.xlu0 %v843, 256
        %v846 = vpop.permute.xlu0 %845
        %s848 = sor.u32 256, 8
        %849 = vbcast.lane.b32.xlu0 %v843, %s848
        %v850 = vpop.permute.xlu0 %849
        %v851 = vlaneseq
        %v852 = vshrl.u32 %v851, 7
        %v853 = vsub.s32 0, %v852
        %v854 = vrot.slane %v295, %v853
        %856 = vbcast.lane.b32.xlu0 %v854, 256
        %v857 = vpop.permute.xlu0 %856
        %s859 = sor.u32 256, 8
        %860 = vbcast.lane.b32.xlu0 %v854, %s859
        %v861 = vpop.permute.xlu0 %860
        %v862 = vlaneseq
        %v863 = vshrl.u32 %v862, 7
        %v864 = vsub.s32 1, %v863
        %v865 = vrot.slane %v295, %v864
        %867 = vbcast.lane.b32.xlu0 %v865, 256
        %v868 = vpop.permute.xlu0 %867
        %s870 = sor.u32 256, 8
        %871 = vbcast.lane.b32.xlu0 %v865, %s870
        %v872 = vpop.permute.xlu0 %871
        %v873 = vlaneseq
        %v874 = vshrl.u32 %v873, 7
        %v875 = vsub.s32 2, %v874
        %v876 = vrot.slane %v295, %v875
        %878 = vbcast.lane.b32.xlu0 %v876, 256
        %v879 = vpop.permute.xlu0 %878
        %s881 = sor.u32 256, 8
        %882 = vbcast.lane.b32.xlu0 %v876, %s881
        %v883 = vpop.permute.xlu0 %882
        %v884 = vlaneseq
        %v885 = vshrl.u32 %v884, 7
        %v886 = vsub.s32 3, %v885
        %v887 = vrot.slane %v295, %v886
        %889 = vbcast.lane.b32.xlu0 %v887, 256
        %v890 = vpop.permute.xlu0 %889
        %s892 = sor.u32 256, 8
        %893 = vbcast.lane.b32.xlu0 %v887, %s892
        %v894 = vpop.permute.xlu0 %893
        %v895 = vlaneseq
        %v896 = vshrl.u32 %v895, 7
        %v897 = vsub.s32 4, %v896
        %v898 = vrot.slane %v295, %v897
        %900 = vbcast.lane.b32.xlu0 %v898, 256
        %v901 = vpop.permute.xlu0 %900
        %s903 = sor.u32 256, 8
        %904 = vbcast.lane.b32.xlu0 %v898, %s903
        %v905 = vpop.permute.xlu0 %904
        %v906 = vlaneseq
        %v907 = vshrl.u32 %v906, 7
        %v908 = vsub.s32 5, %v907
        %v909 = vrot.slane %v295, %v908
        %911 = vbcast.lane.b32.xlu0 %v909, 256
        %v912 = vpop.permute.xlu0 %911
        %s914 = sor.u32 256, 8
        %915 = vbcast.lane.b32.xlu0 %v909, %s914
        %v916 = vpop.permute.xlu0 %915
        %v917 = vlaneseq
        %v918 = vshrl.u32 %v917, 7
        %v919 = vsub.s32 6, %v918
        %v920 = vrot.slane %v295, %v919
        %922 = vbcast.lane.b32.xlu0 %v920, 256
        %v923 = vpop.permute.xlu0 %922
        %s925 = sor.u32 256, 8
        %926 = vbcast.lane.b32.xlu0 %v920, %s925
        %v927 = vpop.permute.xlu0 %926
        %v928 = vlaneseq
        %v929 = vshrl.u32 %v928, 7
        %v930 = vsub.s32 7, %v929
        %v931 = vrot.slane %v295, %v930
        %933 = vbcast.lane.b32.xlu0 %v931, 256
        %v934 = vpop.permute.xlu0 %933
        %s936 = sor.u32 256, 8
        %937 = vbcast.lane.b32.xlu0 %v931, %s936
        %v938 = vpop.permute.xlu0 %937
        %v939 = vlaneseq
        %v940 = vshrl.u32 %v939, 7
        %v941 = vsub.s32 0, %v940
        %v942 = vrot.slane %v296, %v941
        %944 = vbcast.lane.b32.xlu0 %v942, 256
        %v945 = vpop.permute.xlu0 %944
        %s947 = sor.u32 256, 8
        %948 = vbcast.lane.b32.xlu0 %v942, %s947
        %v949 = vpop.permute.xlu0 %948
        %v950 = vlaneseq
        %v951 = vshrl.u32 %v950, 7
        %v952 = vsub.s32 1, %v951
        %v953 = vrot.slane %v296, %v952
        %955 = vbcast.lane.b32.xlu0 %v953, 256
        %v956 = vpop.permute.xlu0 %955
        %s958 = sor.u32 256, 8
        %959 = vbcast.lane.b32.xlu0 %v953, %s958
        %v960 = vpop.permute.xlu0 %959
        %v961 = vlaneseq
        %v962 = vshrl.u32 %v961, 7
        %v963 = vsub.s32 0, %v962
        %v964 = vrot.slane %v297, %v963
        %966 = vbcast.lane.b32.xlu0 %v964, 256
        %v967 = vpop.permute.xlu0 %966
        %s969 = sor.u32 256, 8
        %970 = vbcast.lane.b32.xlu0 %v964, %s969
        %v971 = vpop.permute.xlu0 %970
        %v972 = vlaneseq
        %v973 = vshrl.u32 %v972, 7
        %v974 = vsub.s32 1, %v973
        %v975 = vrot.slane %v297, %v974
        %977 = vbcast.lane.b32.xlu0 %v975, 256
        %v978 = vpop.permute.xlu0 %977
        %s980 = sor.u32 256, 8
        %981 = vbcast.lane.b32.xlu0 %v975, %s980
        %v982 = vpop.permute.xlu0 %981
        %v983 = vlaneseq
        %v984 = vshrl.u32 %v983, 7
        %v985 = vsub.s32 2, %v984
        %v986 = vrot.slane %v297, %v985
        %988 = vbcast.lane.b32.xlu0 %v986, 256
        %v989 = vpop.permute.xlu0 %988
        %s991 = sor.u32 256, 8
        %992 = vbcast.lane.b32.xlu0 %v986, %s991
        %v993 = vpop.permute.xlu0 %992
        %v994 = vlaneseq
        %v995 = vshrl.u32 %v994, 7
        %v996 = vsub.s32 3, %v995
        %v997 = vrot.slane %v297, %v996
        %999 = vbcast.lane.b32.xlu0 %v997, 256
        %v1000 = vpop.permute.xlu0 %999
        %s1002 = sor.u32 256, 8
        %1003 = vbcast.lane.b32.xlu0 %v997, %s1002
        %v1004 = vpop.permute.xlu0 %1003
        %v1005 = vlaneseq
        %v1006 = vshrl.u32 %v1005, 7
        %v1007 = vsub.s32 4, %v1006
        %v1008 = vrot.slane %v297, %v1007
        %1010 = vbcast.lane.b32.xlu0 %v1008, 256
        %v1011 = vpop.permute.xlu0 %1010
        %s1013 = sor.u32 256, 8
        %1014 = vbcast.lane.b32.xlu0 %v1008, %s1013
        %v1015 = vpop.permute.xlu0 %1014
        %v1016 = vlaneseq
        %v1017 = vshrl.u32 %v1016, 7
        %v1018 = vsub.s32 5, %v1017
        %v1019 = vrot.slane %v297, %v1018
        %1021 = vbcast.lane.b32.xlu0 %v1019, 256
        %v1022 = vpop.permute.xlu0 %1021
        %s1024 = sor.u32 256, 8
        %1025 = vbcast.lane.b32.xlu0 %v1019, %s1024
        %v1026 = vpop.permute.xlu0 %1025
        %v1027 = vlaneseq
        %v1028 = vshrl.u32 %v1027, 7
        %v1029 = vsub.s32 6, %v1028
        %v1030 = vrot.slane %v297, %v1029
        %1032 = vbcast.lane.b32.xlu0 %v1030, 256
        %v1033 = vpop.permute.xlu0 %1032
        %s1035 = sor.u32 256, 8
        %1036 = vbcast.lane.b32.xlu0 %v1030, %s1035
        %v1037 = vpop.permute.xlu0 %1036
        %v1038 = vlaneseq
        %v1039 = vshrl.u32 %v1038, 7
        %v1040 = vsub.s32 7, %v1039
        %v1041 = vrot.slane %v297, %v1040
        %1043 = vbcast.lane.b32.xlu0 %v1041, 256
        %v1044 = vpop.permute.xlu0 %1043
        %s1046 = sor.u32 256, 8
        %1047 = vbcast.lane.b32.xlu0 %v1041, %s1046
        %v1048 = vpop.permute.xlu0 %1047
        %v1049 = vlaneseq
        %v1050 = vshrl.u32 %v1049, 7
        %v1051 = vsub.s32 0, %v1050
        %v1052 = vrot.slane %v298, %v1051
        %1054 = vbcast.lane.b32.xlu0 %v1052, 256
        %v1055 = vpop.permute.xlu0 %1054
        %s1057 = sor.u32 256, 8
        %1058 = vbcast.lane.b32.xlu0 %v1052, %s1057
        %v1059 = vpop.permute.xlu0 %1058
        %v1060 = vlaneseq
        %v1061 = vshrl.u32 %v1060, 7
        %v1062 = vsub.s32 1, %v1061
        %v1063 = vrot.slane %v298, %v1062
        %1065 = vbcast.lane.b32.xlu0 %v1063, 256
        %v1066 = vpop.permute.xlu0 %1065
        %s1068 = sor.u32 256, 8
        %1069 = vbcast.lane.b32.xlu0 %v1063, %s1068
        %v1070 = vpop.permute.xlu0 %1069
        %v1071 = vlaneseq
        %v1072 = vshrl.u32 %v1071, 7
        %v1073 = vsub.s32 0, %v1072
        %v1074 = vrot.slane %v299, %v1073
        %1076 = vbcast.lane.b32.xlu0 %v1074, 256
        %v1077 = vpop.permute.xlu0 %1076
        %s1079 = sor.u32 256, 8
        %1080 = vbcast.lane.b32.xlu0 %v1074, %s1079
        %v1081 = vpop.permute.xlu0 %1080
        %v1082 = vlaneseq
        %v1083 = vshrl.u32 %v1082, 7
        %v1084 = vsub.s32 1, %v1083
        %v1085 = vrot.slane %v299, %v1084
        %1087 = vbcast.lane.b32.xlu0 %v1085, 256
        %v1088 = vpop.permute.xlu0 %1087
        %s1090 = sor.u32 256, 8
        %1091 = vbcast.lane.b32.xlu0 %v1085, %s1090
        %v1092 = vpop.permute.xlu0 %1091
        %v1093 = vlaneseq
        %v1094 = vshrl.u32 %v1093, 7
        %v1095 = vsub.s32 2, %v1094
        %v1096 = vrot.slane %v299, %v1095
        %1098 = vbcast.lane.b32.xlu0 %v1096, 256
        %v1099 = vpop.permute.xlu0 %1098
        %s1101 = sor.u32 256, 8
        %1102 = vbcast.lane.b32.xlu0 %v1096, %s1101
        %v1103 = vpop.permute.xlu0 %1102
        %v1104 = vlaneseq
        %v1105 = vshrl.u32 %v1104, 7
        %v1106 = vsub.s32 3, %v1105
        %v1107 = vrot.slane %v299, %v1106
        %1109 = vbcast.lane.b32.xlu0 %v1107, 256
        %v1110 = vpop.permute.xlu0 %1109
        %s1112 = sor.u32 256, 8
        %1113 = vbcast.lane.b32.xlu0 %v1107, %s1112
        %v1114 = vpop.permute.xlu0 %1113
        %v1115 = vlaneseq
        %v1116 = vshrl.u32 %v1115, 7
        %v1117 = vsub.s32 4, %v1116
        %v1118 = vrot.slane %v299, %v1117
        %1120 = vbcast.lane.b32.xlu0 %v1118, 256
        %v1121 = vpop.permute.xlu0 %1120
        %s1123 = sor.u32 256, 8
        %1124 = vbcast.lane.b32.xlu0 %v1118, %s1123
        %v1125 = vpop.permute.xlu0 %1124
        %v1126 = vlaneseq
        %v1127 = vshrl.u32 %v1126, 7
        %v1128 = vsub.s32 5, %v1127
        %v1129 = vrot.slane %v299, %v1128
        %1131 = vbcast.lane.b32.xlu0 %v1129, 256
        %v1132 = vpop.permute.xlu0 %1131
        %s1134 = sor.u32 256, 8
        %1135 = vbcast.lane.b32.xlu0 %v1129, %s1134
        %v1136 = vpop.permute.xlu0 %1135
        %v1137 = vlaneseq
        %v1138 = vshrl.u32 %v1137, 7
        %v1139 = vsub.s32 6, %v1138
        %v1140 = vrot.slane %v299, %v1139
        %1142 = vbcast.lane.b32.xlu0 %v1140, 256
        %v1143 = vpop.permute.xlu0 %1142
        %s1145 = sor.u32 256, 8
        %1146 = vbcast.lane.b32.xlu0 %v1140, %s1145
        %v1147 = vpop.permute.xlu0 %1146
        %v1148 = vlaneseq
        %v1149 = vshrl.u32 %v1148, 7
        %v1150 = vsub.s32 7, %v1149
        %v1151 = vrot.slane %v299, %v1150
        %1153 = vbcast.lane.b32.xlu0 %v1151, 256
        %v1154 = vpop.permute.xlu0 %1153
        %s1156 = sor.u32 256, 8
        %1157 = vbcast.lane.b32.xlu0 %v1151, %s1156
        %v1158 = vpop.permute.xlu0 %1157
        %v1159 = vlaneseq
        %v1160 = vshrl.u32 %v1159, 7
        %v1161 = vsub.s32 0, %v1160
        %v1162 = vrot.slane %v300, %v1161
        %1164 = vbcast.lane.b32.xlu0 %v1162, 256
        %v1165 = vpop.permute.xlu0 %1164
        %s1167 = sor.u32 256, 8
        %1168 = vbcast.lane.b32.xlu0 %v1162, %s1167
        %v1169 = vpop.permute.xlu0 %1168
        %v1170 = vlaneseq
        %v1171 = vshrl.u32 %v1170, 7
        %v1172 = vsub.s32 1, %v1171
        %v1173 = vrot.slane %v300, %v1172
        %1175 = vbcast.lane.b32.xlu0 %v1173, 256
        %v1176 = vpop.permute.xlu0 %1175
        %s1178 = sor.u32 256, 8
        %1179 = vbcast.lane.b32.xlu0 %v1173, %s1178
        %v1180 = vpop.permute.xlu0 %1179
        %v1181 = vld [vmem:[#allocation9] sm:$0xff]
        %v1182 = vld [vmem:[#allocation9 + $0x8] sm:$0x1]
        %v1183 = vlaneseq
        %v1184 = vshrl.u32 %v1183, 7
        %v1185 = vsub.s32 0, %v1184
        %v1186 = vrot.slane %v1181, %v1185
        %v1187 = vmul.f32 %v307, %v1186
        %v1188 = vmul.f32 %v318, %v1186
        %v1189 = vmul.f32 %v329, %v1186
        %v1190 = vmul.f32 %v340, %v1186
        %v1191 = vmul.f32 %v351, %v1186
        %v1192 = vmul.f32 %v362, %v1186
        %v1193 = vmul.f32 %v373, %v1186
        %v1194 = vmul.f32 %v384, %v1186
        %v1195 = vmul.f32 %v417, %v1186
        %v1196 = vmul.f32 %v428, %v1186
        %v1197 = vmul.f32 %v439, %v1186
        %v1198 = vmul.f32 %v450, %v1186
        %v1199 = vmul.f32 %v461, %v1186
        %v1200 = vmul.f32 %v472, %v1186
        %v1201 = vmul.f32 %v483, %v1186
        %v1202 = vmul.f32 %v494, %v1186
        %v1203 = vmul.f32 %v527, %v1186
        %v1204 = vmul.f32 %v538, %v1186
        %v1205 = vmul.f32 %v549, %v1186
        %v1206 = vmul.f32 %v560, %v1186
        %v1207 = vmul.f32 %v571, %v1186
        %v1208 = vmul.f32 %v582, %v1186
        %v1209 = vmul.f32 %v593, %v1186
        %v1210 = vmul.f32 %v604, %v1186
        %v1211 = vmul.f32 %v637, %v1186
        %v1212 = vmul.f32 %v648, %v1186
        %v1213 = vmul.f32 %v659, %v1186
        %v1214 = vmul.f32 %v670, %v1186
        %v1215 = vmul.f32 %v681, %v1186
        %v1216 = vmul.f32 %v692, %v1186
        %v1217 = vmul.f32 %v703, %v1186
        %v1218 = vmul.f32 %v714, %v1186
        %v1219 = vmul.f32 %v747, %v1186
        %v1220 = vmul.f32 %v758, %v1186
        %v1221 = vmul.f32 %v769, %v1186
        %v1222 = vmul.f32 %v780, %v1186
        %v1223 = vmul.f32 %v791, %v1186
        %v1224 = vmul.f32 %v802, %v1186
        %v1225 = vmul.f32 %v813, %v1186
        %v1226 = vmul.f32 %v824, %v1186
        %v1227 = vmul.f32 %v857, %v1186
        %v1228 = vmul.f32 %v868, %v1186
        %v1229 = vmul.f32 %v879, %v1186
        %v1230 = vmul.f32 %v890, %v1186
        %v1231 = vmul.f32 %v901, %v1186
        %v1232 = vmul.f32 %v912, %v1186
        %v1233 = vmul.f32 %v923, %v1186
        %v1234 = vmul.f32 %v934, %v1186
        %v1235 = vmul.f32 %v967, %v1186
        %v1236 = vmul.f32 %v978, %v1186
        %v1237 = vmul.f32 %v989, %v1186
        %v1238 = vmul.f32 %v1000, %v1186
        %v1239 = vmul.f32 %v1011, %v1186
        %v1240 = vmul.f32 %v1022, %v1186
        %v1241 = vmul.f32 %v1033, %v1186
        %v1242 = vmul.f32 %v1044, %v1186
        %v1243 = vmul.f32 %v1077, %v1186
        %v1244 = vmul.f32 %v1088, %v1186
        %v1245 = vmul.f32 %v1099, %v1186
        %v1246 = vmul.f32 %v1110, %v1186
        %v1247 = vmul.f32 %v1121, %v1186
        %v1248 = vmul.f32 %v1132, %v1186
        %v1249 = vmul.f32 %v1143, %v1186
        %v1250 = vmul.f32 %v1154, %v1186
        %v1251 = vadd.f32 %v1187, 0.0
        %v1252 = vadd.f32 %v1188, 0.0
        %v1253 = vadd.f32 %v1189, 0.0
        %v1254 = vadd.f32 %v1190, 0.0
        %v1255 = vadd.f32 %v1191, 0.0
        %v1256 = vadd.f32 %v1192, 0.0
        %v1257 = vadd.f32 %v1193, 0.0
        %v1258 = vadd.f32 %v1194, 0.0
        %v1259 = vadd.f32 %v1195, 0.0
        %v1260 = vadd.f32 %v1196, 0.0
        %v1261 = vadd.f32 %v1197, 0.0
        %v1262 = vadd.f32 %v1198, 0.0
        %v1263 = vadd.f32 %v1199, 0.0
        %v1264 = vadd.f32 %v1200, 0.0
        %v1265 = vadd.f32 %v1201, 0.0
        %v1266 = vadd.f32 %v1202, 0.0
        %v1267 = vadd.f32 %v1203, 0.0
        %v1268 = vadd.f32 %v1204, 0.0
        %v1269 = vadd.f32 %v1205, 0.0
        %v1270 = vadd.f32 %v1206, 0.0
        %v1271 = vadd.f32 %v1207, 0.0
        %v1272 = vadd.f32 %v1208, 0.0
        %v1273 = vadd.f32 %v1209, 0.0
        %v1274 = vadd.f32 %v1210, 0.0
        %v1275 = vadd.f32 %v1211, 0.0
        %v1276 = vadd.f32 %v1212, 0.0
        %v1277 = vadd.f32 %v1213, 0.0
        %v1278 = vadd.f32 %v1214, 0.0
        %v1279 = vadd.f32 %v1215, 0.0
        %v1280 = vadd.f32 %v1216, 0.0
        %v1281 = vadd.f32 %v1217, 0.0
        %v1282 = vadd.f32 %v1218, 0.0
        %v1283 = vadd.f32 %v1219, 0.0
        %v1284 = vadd.f32 %v1220, 0.0
        %v1285 = vadd.f32 %v1221, 0.0
        %v1286 = vadd.f32 %v1222, 0.0
        %v1287 = vadd.f32 %v1223, 0.0
        %v1288 = vadd.f32 %v1224, 0.0
        %v1289 = vadd.f32 %v1225, 0.0
        %v1290 = vadd.f32 %v1226, 0.0
        %v1291 = vadd.f32 %v1227, 0.0
        %v1292 = vadd.f32 %v1228, 0.0
        %v1293 = vadd.f32 %v1229, 0.0
        %v1294 = vadd.f32 %v1230, 0.0
        %v1295 = vadd.f32 %v1231, 0.0
        %v1296 = vadd.f32 %v1232, 0.0
        %v1297 = vadd.f32 %v1233, 0.0
        %v1298 = vadd.f32 %v1234, 0.0
        %v1299 = vadd.f32 %v1235, 0.0
        %v1300 = vadd.f32 %v1236, 0.0
        %v1301 = vadd.f32 %v1237, 0.0
        %v1302 = vadd.f32 %v1238, 0.0
        %v1303 = vadd.f32 %v1239, 0.0
        %v1304 = vadd.f32 %v1240, 0.0
        %v1305 = vadd.f32 %v1241, 0.0
        %v1306 = vadd.f32 %v1242, 0.0
        %v1307 = vadd.f32 %v1243, 0.0
        %v1308 = vadd.f32 %v1244, 0.0
        %v1309 = vadd.f32 %v1245, 0.0
        %v1310 = vadd.f32 %v1246, 0.0
        %v1311 = vadd.f32 %v1247, 0.0
        %v1312 = vadd.f32 %v1248, 0.0
        %v1313 = vadd.f32 %v1249, 0.0
        %v1314 = vadd.f32 %v1250, 0.0
        %v1315 = vlaneseq
        %v1316 = vshrl.u32 %v1315, 7
        %v1317 = vsub.s32 1, %v1316
        %v1318 = vrot.slane %v1181, %v1317
        %v1319 = vmul.f32 %v307, %v1318
        %v1320 = vmul.f32 %v311, %v1318
        %v1321 = vmul.f32 %v318, %v1318
        %v1322 = vmul.f32 %v322, %v1318
        %v1323 = vmul.f32 %v329, %v1318
        %v1324 = vmul.f32 %v333, %v1318
        %v1325 = vmul.f32 %v340, %v1318
        %v1326 = vmul.f32 %v344, %v1318
        %v1327 = vmul.f32 %v351, %v1318
        %v1328 = vmul.f32 %v355, %v1318
        %v1329 = vmul.f32 %v362, %v1318
        %v1330 = vmul.f32 %v366, %v1318
        %v1331 = vmul.f32 %v373, %v1318
        %v1332 = vmul.f32 %v377, %v1318
        %v1333 = vmul.f32 %v384, %v1318
        %v1334 = vmul.f32 %v388, %v1318
        %v1335 = vmul.f32 %v417, %v1318
        %v1336 = vmul.f32 %v421, %v1318
        %v1337 = vmul.f32 %v428, %v1318
        %v1338 = vmul.f32 %v432, %v1318
        %v1339 = vmul.f32 %v439, %v1318
        %v1340 = vmul.f32 %v443, %v1318
        %v1341 = vmul.f32 %v450, %v1318
        %v1342 = vmul.f32 %v454, %v1318
        %v1343 = vmul.f32 %v461, %v1318
        %v1344 = vmul.f32 %v465, %v1318
        %v1345 = vmul.f32 %v472, %v1318
        %v1346 = vmul.f32 %v476, %v1318
        %v1347 = vmul.f32 %v483, %v1318
        %v1348 = vmul.f32 %v487, %v1318
        %v1349 = vmul.f32 %v494, %v1318
        %v1350 = vmul.f32 %v498, %v1318
        %v1351 = vmul.f32 %v527, %v1318
        %v1352 = vmul.f32 %v531, %v1318
        %v1353 = vmul.f32 %v538, %v1318
        %v1354 = vmul.f32 %v542, %v1318
        %v1355 = vmul.f32 %v549, %v1318
        %v1356 = vmul.f32 %v553, %v1318
        %v1357 = vmul.f32 %v560, %v1318
        %v1358 = vmul.f32 %v564, %v1318
        %v1359 = vmul.f32 %v571, %v1318
        %v1360 = vmul.f32 %v575, %v1318
        %v1361 = vmul.f32 %v582, %v1318
        %v1362 = vmul.f32 %v586, %v1318
        %v1363 = vmul.f32 %v593, %v1318
        %v1364 = vmul.f32 %v597, %v1318
        %v1365 = vmul.f32 %v604, %v1318
        %v1366 = vmul.f32 %v608, %v1318
        %v1367 = vmul.f32 %v637, %v1318
        %v1368 = vmul.f32 %v641, %v1318
        %v1369 = vmul.f32 %v648, %v1318
        %v1370 = vmul.f32 %v652, %v1318
        %v1371 = vmul.f32 %v659, %v1318
        %v1372 = vmul.f32 %v663, %v1318
        %v1373 = vmul.f32 %v670, %v1318
        %v1374 = vmul.f32 %v674, %v1318
        %v1375 = vmul.f32 %v681, %v1318
        %v1376 = vmul.f32 %v685, %v1318
        %v1377 = vmul.f32 %v692, %v1318
        %v1378 = vmul.f32 %v696, %v1318
        %v1379 = vmul.f32 %v703, %v1318
        %v1380 = vmul.f32 %v707, %v1318
        %v1381 = vmul.f32 %v714, %v1318
        %v1382 = vmul.f32 %v718, %v1318
        %v1383 = vmul.f32 %v747, %v1318
        %v1384 = vmul.f32 %v751, %v1318
        %v1385 = vmul.f32 %v758, %v1318
        %v1386 = vmul.f32 %v762, %v1318
        %v1387 = vmul.f32 %v769, %v1318
        %v1388 = vmul.f32 %v773, %v1318
        %v1389 = vmul.f32 %v780, %v1318
        %v1390 = vmul.f32 %v784, %v1318
        %v1391 = vmul.f32 %v791, %v1318
        %v1392 = vmul.f32 %v795, %v1318
        %v1393 = vmul.f32 %v802, %v1318
        %v1394 = vmul.f32 %v806, %v1318
        %v1395 = vmul.f32 %v813, %v1318
        %v1396 = vmul.f32 %v817, %v1318
        %v1397 = vmul.f32 %v824, %v1318
        %v1398 = vmul.f32 %v828, %v1318
        %v1399 = vmul.f32 %v857, %v1318
        %v1400 = vmul.f32 %v861, %v1318
        %v1401 = vmul.f32 %v868, %v1318
        %v1402 = vmul.f32 %v872, %v1318
        %v1403 = vmul.f32 %v879, %v1318
        %v1404 = vmul.f32 %v883, %v1318
        %v1405 = vmul.f32 %v890, %v1318
        %v1406 = vmul.f32 %v894, %v1318
        %v1407 = vmul.f32 %v901, %v1318
        %v1408 = vmul.f32 %v905, %v1318
        %v1409 = vmul.f32 %v912, %v1318
        %v1410 = vmul.f32 %v916, %v1318
        %v1411 = vmul.f32 %v923, %v1318
        %v1412 = vmul.f32 %v927, %v1318
        %v1413 = vmul.f32 %v934, %v1318
        %v1414 = vmul.f32 %v938, %v1318
        %v1415 = vmul.f32 %v967, %v1318
        %v1416 = vmul.f32 %v971, %v1318
        %v1417 = vmul.f32 %v978, %v1318
        %v1418 = vmul.f32 %v982, %v1318
        %v1419 = vmul.f32 %v989, %v1318
        %v1420 = vmul.f32 %v993, %v1318
        %v1421 = vmul.f32 %v1000, %v1318
        %v1422 = vmul.f32 %v1004, %v1318
        %v1423 = vmul.f32 %v1011, %v1318
        %v1424 = vmul.f32 %v1015, %v1318
        %v1425 = vmul.f32 %v1022, %v1318
        %v1426 = vmul.f32 %v1026, %v1318
        %v1427 = vmul.f32 %v1033, %v1318
        %v1428 = vmul.f32 %v1037, %v1318
        %v1429 = vmul.f32 %v1044, %v1318
        %v1430 = vmul.f32 %v1048, %v1318
        %v1431 = vmul.f32 %v1077, %v1318
        %v1432 = vmul.f32 %v1081, %v1318
        %v1433 = vmul.f32 %v1088, %v1318
        %v1434 = vmul.f32 %v1092, %v1318
        %v1435 = vmul.f32 %v1099, %v1318
        %v1436 = vmul.f32 %v1103, %v1318
        %v1437 = vmul.f32 %v1110, %v1318
        %v1438 = vmul.f32 %v1114, %v1318
        %v1439 = vmul.f32 %v1121, %v1318
        %v1440 = vmul.f32 %v1125, %v1318
        %v1441 = vmul.f32 %v1132, %v1318
        %v1442 = vmul.f32 %v1136, %v1318
        %v1443 = vmul.f32 %v1143, %v1318
        %v1444 = vmul.f32 %v1147, %v1318
        %v1445 = vmul.f32 %v1154, %v1318
        %v1446 = vmul.f32 %v1158, %v1318
        %vm1575 = vcmask 1046528
        %v1576 = vrot.slane %v1319, 1
        %v1577 = vrot.slane %v1320, 1
        %v1578 = vsel %vm1575, %v1576, %v1577
        %v1579 = vrot.slane %v1321, 1
        %v1580 = vrot.slane %v1322, 1
        %v1581 = vsel %vm1575, %v1579, %v1580
        %v1582 = vrot.slane %v1323, 1
        %v1583 = vrot.slane %v1324, 1
        %v1584 = vsel %vm1575, %v1582, %v1583
        %v1585 = vrot.slane %v1325, 1
        %v1586 = vrot.slane %v1326, 1
        %v1587 = vsel %vm1575, %v1585, %v1586
        %v1588 = vrot.slane %v1327, 1
        %v1589 = vrot.slane %v1328, 1
        %v1590 = vsel %vm1575, %v1588, %v1589
        %v1591 = vrot.slane %v1329, 1
        %v1592 = vrot.slane %v1330, 1
        %v1593 = vsel %vm1575, %v1591, %v1592
        %v1594 = vrot.slane %v1331, 1
        %v1595 = vrot.slane %v1332, 1
        %v1596 = vsel %vm1575, %v1594, %v1595
        %v1597 = vrot.slane %v1333, 1
        %v1598 = vrot.slane %v1334, 1
        %v1599 = vsel %vm1575, %v1597, %v1598
        %v1600 = vrot.slane %v1335, 1
        %v1601 = vrot.slane %v1336, 1
        %v1602 = vsel %vm1575, %v1600, %v1601
        %v1603 = vrot.slane %v1337, 1
        %v1604 = vrot.slane %v1338, 1
        %v1605 = vsel %vm1575, %v1603, %v1604
        %v1606 = vrot.slane %v1339, 1
        %v1607 = vrot.slane %v1340, 1
        %v1608 = vsel %vm1575, %v1606, %v1607
        %v1609 = vrot.slane %v1341, 1
        %v1610 = vrot.slane %v1342, 1
        %v1611 = vsel %vm1575, %v1609, %v1610
        %v1612 = vrot.slane %v1343, 1
        %v1613 = vrot.slane %v1344, 1
        %v1614 = vsel %vm1575, %v1612, %v1613
        %v1615 = vrot.slane %v1345, 1
        %v1616 = vrot.slane %v1346, 1
        %v1617 = vsel %vm1575, %v1615, %v1616
        %v1618 = vrot.slane %v1347, 1
        %v1619 = vrot.slane %v1348, 1
        %v1620 = vsel %vm1575, %v1618, %v1619
        %v1621 = vrot.slane %v1349, 1
        %v1622 = vrot.slane %v1350, 1
        %v1623 = vsel %vm1575, %v1621, %v1622
        %v1624 = vrot.slane %v1351, 1
        %v1625 = vrot.slane %v1352, 1
        %v1626 = vsel %vm1575, %v1624, %v1625
        %v1627 = vrot.slane %v1353, 1
        %v1628 = vrot.slane %v1354, 1
        %v1629 = vsel %vm1575, %v1627, %v1628
        %v1630 = vrot.slane %v1355, 1
        %v1631 = vrot.slane %v1356, 1
        %v1632 = vsel %vm1575, %v1630, %v1631
        %v1633 = vrot.slane %v1357, 1
        %v1634 = vrot.slane %v1358, 1
        %v1635 = vsel %vm1575, %v1633, %v1634
        %v1636 = vrot.slane %v1359, 1
        %v1637 = vrot.slane %v1360, 1
        %v1638 = vsel %vm1575, %v1636, %v1637
        %v1639 = vrot.slane %v1361, 1
        %v1640 = vrot.slane %v1362, 1
        %v1641 = vsel %vm1575, %v1639, %v1640
        %v1642 = vrot.slane %v1363, 1
        %v1643 = vrot.slane %v1364, 1
        %v1644 = vsel %vm1575, %v1642, %v1643
        %v1645 = vrot.slane %v1365, 1
        %v1646 = vrot.slane %v1366, 1
        %v1647 = vsel %vm1575, %v1645, %v1646
        %v1648 = vrot.slane %v1367, 1
        %v1649 = vrot.slane %v1368, 1
        %v1650 = vsel %vm1575, %v1648, %v1649
        %v1651 = vrot.slane %v1369, 1
        %v1652 = vrot.slane %v1370, 1
        %v1653 = vsel %vm1575, %v1651, %v1652
        %v1654 = vrot.slane %v1371, 1
        %v1655 = vrot.slane %v1372, 1
        %v1656 = vsel %vm1575, %v1654, %v1655
        %v1657 = vrot.slane %v1373, 1
        %v1658 = vrot.slane %v1374, 1
        %v1659 = vsel %vm1575, %v1657, %v1658
        %v1660 = vrot.slane %v1375, 1
        %v1661 = vrot.slane %v1376, 1
        %v1662 = vsel %vm1575, %v1660, %v1661
        %v1663 = vrot.slane %v1377, 1
        %v1664 = vrot.slane %v1378, 1
        %v1665 = vsel %vm1575, %v1663, %v1664
        %v1666 = vrot.slane %v1379, 1
        %v1667 = vrot.slane %v1380, 1
        %v1668 = vsel %vm1575, %v1666, %v1667
        %v1669 = vrot.slane %v1381, 1
        %v1670 = vrot.slane %v1382, 1
        %v1671 = vsel %vm1575, %v1669, %v1670
        %v1672 = vrot.slane %v1383, 1
        %v1673 = vrot.slane %v1384, 1
        %v1674 = vsel %vm1575, %v1672, %v1673
        %v1675 = vrot.slane %v1385, 1
        %v1676 = vrot.slane %v1386, 1
        %v1677 = vsel %vm1575, %v1675, %v1676
        %v1678 = vrot.slane %v1387, 1
        %v1679 = vrot.slane %v1388, 1
        %v1680 = vsel %vm1575, %v1678, %v1679
        %v1681 = vrot.slane %v1389, 1
        %v1682 = vrot.slane %v1390, 1
        %v1683 = vsel %vm1575, %v1681, %v1682
        %v1684 = vrot.slane %v1391, 1
        %v1685 = vrot.slane %v1392, 1
        %v1686 = vsel %vm1575, %v1684, %v1685
        %v1687 = vrot.slane %v1393, 1
        %v1688 = vrot.slane %v1394, 1
        %v1689 = vsel %vm1575, %v1687, %v1688
        %v1690 = vrot.slane %v1395, 1
        %v1691 = vrot.slane %v1396, 1
        %v1692 = vsel %vm1575, %v1690, %v1691
        %v1693 = vrot.slane %v1397, 1
        %v1694 = vrot.slane %v1398, 1
        %v1695 = vsel %vm1575, %v1693, %v1694
        %v1696 = vrot.slane %v1399, 1
        %v1697 = vrot.slane %v1400, 1
        %v1698 = vsel %vm1575, %v1696, %v1697
        %v1699 = vrot.slane %v1401, 1
        %v1700 = vrot.slane %v1402, 1
        %v1701 = vsel %vm1575, %v1699, %v1700
        %v1702 = vrot.slane %v1403, 1
        %v1703 = vrot.slane %v1404, 1
        %v1704 = vsel %vm1575, %v1702, %v1703
        %v1705 = vrot.slane %v1405, 1
        %v1706 = vrot.slane %v1406, 1
        %v1707 = vsel %vm1575, %v1705, %v1706
        %v1708 = vrot.slane %v1407, 1
        %v1709 = vrot.slane %v1408, 1
        %v1710 = vsel %vm1575, %v1708, %v1709
        %v1711 = vrot.slane %v1409, 1
        %v1712 = vrot.slane %v1410, 1
        %v1713 = vsel %vm1575, %v1711, %v1712
        %v1714 = vrot.slane %v1411, 1
        %v1715 = vrot.slane %v1412, 1
        %v1716 = vsel %vm1575, %v1714, %v1715
        %v1717 = vrot.slane %v1413, 1
        %v1718 = vrot.slane %v1414, 1
        %v1719 = vsel %vm1575, %v1717, %v1718
        %v1720 = vrot.slane %v1415, 1
        %v1721 = vrot.slane %v1416, 1
        %v1722 = vsel %vm1575, %v1720, %v1721
        %v1723 = vrot.slane %v1417, 1
        %v1724 = vrot.slane %v1418, 1
        %v1725 = vsel %vm1575, %v1723, %v1724
        %v1726 = vrot.slane %v1419, 1
        %v1727 = vrot.slane %v1420, 1
        %v1728 = vsel %vm1575, %v1726, %v1727
        %v1729 = vrot.slane %v1421, 1
        %v1730 = vrot.slane %v1422, 1
        %v1731 = vsel %vm1575, %v1729, %v1730
        %v1732 = vrot.slane %v1423, 1
        %v1733 = vrot.slane %v1424, 1
        %v1734 = vsel %vm1575, %v1732, %v1733
        %v1735 = vrot.slane %v1425, 1
        %v1736 = vrot.slane %v1426, 1
        %v1737 = vsel %vm1575, %v1735, %v1736
        %v1738 = vrot.slane %v1427, 1
        %v1739 = vrot.slane %v1428, 1
        %v1740 = vsel %vm1575, %v1738, %v1739
        %v1741 = vrot.slane %v1429, 1
        %v1742 = vrot.slane %v1430, 1
        %v1743 = vsel %vm1575, %v1741, %v1742
        %v1744 = vrot.slane %v1431, 1
        %v1745 = vrot.slane %v1432, 1
        %v1746 = vsel %vm1575, %v1744, %v1745
        %v1747 = vrot.slane %v1433, 1
        %v1748 = vrot.slane %v1434, 1
        %v1749 = vsel %vm1575, %v1747, %v1748
        %v1750 = vrot.slane %v1435, 1
        %v1751 = vrot.slane %v1436, 1
        %v1752 = vsel %vm1575, %v1750, %v1751
        %v1753 = vrot.slane %v1437, 1
        %v1754 = vrot.slane %v1438, 1
        %v1755 = vsel %vm1575, %v1753, %v1754
        %v1756 = vrot.slane %v1439, 1
        %v1757 = vrot.slane %v1440, 1
        %v1758 = vsel %vm1575, %v1756, %v1757
        %v1759 = vrot.slane %v1441, 1
        %v1760 = vrot.slane %v1442, 1
        %v1761 = vsel %vm1575, %v1759, %v1760
        %v1762 = vrot.slane %v1443, 1
        %v1763 = vrot.slane %v1444, 1
        %v1764 = vsel %vm1575, %v1762, %v1763
        %v1765 = vrot.slane %v1445, 1
        %v1766 = vrot.slane %v1446, 1
        %v1767 = vsel %vm1575, %v1765, %v1766
        %v1832 = vadd.f32 %v1251, %v1578
        %v1833 = vadd.f32 %v1252, %v1581
        %v1834 = vadd.f32 %v1253, %v1584
        %v1835 = vadd.f32 %v1254, %v1587
        %v1836 = vadd.f32 %v1255, %v1590
        %v1837 = vadd.f32 %v1256, %v1593
        %v1838 = vadd.f32 %v1257, %v1596
        %v1839 = vadd.f32 %v1258, %v1599
        %v1840 = vadd.f32 %v1259, %v1602
        %v1841 = vadd.f32 %v1260, %v1605
        %v1842 = vadd.f32 %v1261, %v1608
        %v1843 = vadd.f32 %v1262, %v1611
        %v1844 = vadd.f32 %v1263, %v1614
        %v1845 = vadd.f32 %v1264, %v1617
        %v1846 = vadd.f32 %v1265, %v1620
        %v1847 = vadd.f32 %v1266, %v1623
        %v1848 = vadd.f32 %v1267, %v1626
        %v1849 = vadd.f32 %v1268, %v1629
        %v1850 = vadd.f32 %v1269, %v1632
        %v1851 = vadd.f32 %v1270, %v1635
        %v1852 = vadd.f32 %v1271, %v1638
        %v1853 = vadd.f32 %v1272, %v1641
        %v1854 = vadd.f32 %v1273, %v1644
        %v1855 = vadd.f32 %v1274, %v1647
        %v1856 = vadd.f32 %v1275, %v1650
        %v1857 = vadd.f32 %v1276, %v1653
        %v1858 = vadd.f32 %v1277, %v1656
        %v1859 = vadd.f32 %v1278, %v1659
        %v1860 = vadd.f32 %v1279, %v1662
        %v1861 = vadd.f32 %v1280, %v1665
        %v1862 = vadd.f32 %v1281, %v1668
        %v1863 = vadd.f32 %v1282, %v1671
        %v1864 = vadd.f32 %v1283, %v1674
        %v1865 = vadd.f32 %v1284, %v1677
        %v1866 = vadd.f32 %v1285, %v1680
        %v1867 = vadd.f32 %v1286, %v1683
        %v1868 = vadd.f32 %v1287, %v1686
        %v1869 = vadd.f32 %v1288, %v1689
        %v1870 = vadd.f32 %v1289, %v1692
        %v1871 = vadd.f32 %v1290, %v1695
        %v1872 = vadd.f32 %v1291, %v1698
        %v1873 = vadd.f32 %v1292, %v1701
        %v1874 = vadd.f32 %v1293, %v1704
        %v1875 = vadd.f32 %v1294, %v1707
        %v1876 = vadd.f32 %v1295, %v1710
        %v1877 = vadd.f32 %v1296, %v1713
        %v1878 = vadd.f32 %v1297, %v1716
        %v1879 = vadd.f32 %v1298, %v1719
        %v1880 = vadd.f32 %v1299, %v1722
        %v1881 = vadd.f32 %v1300, %v1725
        %v1882 = vadd.f32 %v1301, %v1728
        %v1883 = vadd.f32 %v1302, %v1731
        %v1884 = vadd.f32 %v1303, %v1734
        %v1885 = vadd.f32 %v1304, %v1737
        %v1886 = vadd.f32 %v1305, %v1740
        %v1887 = vadd.f32 %v1306, %v1743
        %v1888 = vadd.f32 %v1307, %v1746
        %v1889 = vadd.f32 %v1308, %v1749
        %v1890 = vadd.f32 %v1309, %v1752
        %v1891 = vadd.f32 %v1310, %v1755
        %v1892 = vadd.f32 %v1311, %v1758
        %v1893 = vadd.f32 %v1312, %v1761
        %v1894 = vadd.f32 %v1313, %v1764
        %v1895 = vadd.f32 %v1314, %v1767
        %v1896 = vlaneseq
        %v1897 = vshrl.u32 %v1896, 7
        %v1898 = vsub.s32 2, %v1897
        %v1899 = vrot.slane %v1181, %v1898
        %v1900 = vmul.f32 %v307, %v1899
        %v1901 = vmul.f32 %v311, %v1899
        %v1902 = vmul.f32 %v318, %v1899
        %v1903 = vmul.f32 %v322, %v1899
        %v1904 = vmul.f32 %v329, %v1899
        %v1905 = vmul.f32 %v333, %v1899
        %v1906 = vmul.f32 %v340, %v1899
        %v1907 = vmul.f32 %v344, %v1899
        %v1908 = vmul.f32 %v351, %v1899
        %v1909 = vmul.f32 %v355, %v1899
        %v1910 = vmul.f32 %v362, %v1899
        %v1911 = vmul.f32 %v366, %v1899
        %v1912 = vmul.f32 %v373, %v1899
        %v1913 = vmul.f32 %v377, %v1899
        %v1914 = vmul.f32 %v384, %v1899
        %v1915 = vmul.f32 %v388, %v1899
        %v1916 = vmul.f32 %v417, %v1899
        %v1917 = vmul.f32 %v421, %v1899
        %v1918 = vmul.f32 %v428, %v1899
        %v1919 = vmul.f32 %v432, %v1899
        %v1920 = vmul.f32 %v439, %v1899
        %v1921 = vmul.f32 %v443, %v1899
        %v1922 = vmul.f32 %v450, %v1899
        %v1923 = vmul.f32 %v454, %v1899
        %v1924 = vmul.f32 %v461, %v1899
        %v1925 = vmul.f32 %v465, %v1899
        %v1926 = vmul.f32 %v472, %v1899
        %v1927 = vmul.f32 %v476, %v1899
        %v1928 = vmul.f32 %v483, %v1899
        %v1929 = vmul.f32 %v487, %v1899
        %v1930 = vmul.f32 %v494, %v1899
        %v1931 = vmul.f32 %v498, %v1899
        %v1932 = vmul.f32 %v527, %v1899
        %v1933 = vmul.f32 %v531, %v1899
        %v1934 = vmul.f32 %v538, %v1899
        %v1935 = vmul.f32 %v542, %v1899
        %v1936 = vmul.f32 %v549, %v1899
        %v1937 = vmul.f32 %v553, %v1899
        %v1938 = vmul.f32 %v560, %v1899
        %v1939 = vmul.f32 %v564, %v1899
        %v1940 = vmul.f32 %v571, %v1899
        %v1941 = vmul.f32 %v575, %v1899
        %v1942 = vmul.f32 %v582, %v1899
        %v1943 = vmul.f32 %v586, %v1899
        %v1944 = vmul.f32 %v593, %v1899
        %v1945 = vmul.f32 %v597, %v1899
        %v1946 = vmul.f32 %v604, %v1899
        %v1947 = vmul.f32 %v608, %v1899
        %v1948 = vmul.f32 %v637, %v1899
        %v1949 = vmul.f32 %v641, %v1899
        %v1950 = vmul.f32 %v648, %v1899
        %v1951 = vmul.f32 %v652, %v1899
        %v1952 = vmul.f32 %v659, %v1899
        %v1953 = vmul.f32 %v663, %v1899
        %v1954 = vmul.f32 %v670, %v1899
        %v1955 = vmul.f32 %v674, %v1899
        %v1956 = vmul.f32 %v681, %v1899
        %v1957 = vmul.f32 %v685, %v1899
        %v1958 = vmul.f32 %v692, %v1899
        %v1959 = vmul.f32 %v696, %v1899
        %v1960 = vmul.f32 %v703, %v1899
        %v1961 = vmul.f32 %v707, %v1899
        %v1962 = vmul.f32 %v714, %v1899
        %v1963 = vmul.f32 %v718, %v1899
        %v1964 = vmul.f32 %v747, %v1899
        %v1965 = vmul.f32 %v751, %v1899
        %v1966 = vmul.f32 %v758, %v1899
        %v1967 = vmul.f32 %v762, %v1899
        %v1968 = vmul.f32 %v769, %v1899
        %v1969 = vmul.f32 %v773, %v1899
        %v1970 = vmul.f32 %v780, %v1899
        %v1971 = vmul.f32 %v784, %v1899
        %v1972 = vmul.f32 %v791, %v1899
        %v1973 = vmul.f32 %v795, %v1899
        %v1974 = vmul.f32 %v802, %v1899
        %v1975 = vmul.f32 %v806, %v1899
        %v1976 = vmul.f32 %v813, %v1899
        %v1977 = vmul.f32 %v817, %v1899
        %v1978 = vmul.f32 %v824, %v1899
        %v1979 = vmul.f32 %v828, %v1899
        %v1980 = vmul.f32 %v857, %v1899
        %v1981 = vmul.f32 %v861, %v1899
        %v1982 = vmul.f32 %v868, %v1899
        %v1983 = vmul.f32 %v872, %v1899
        %v1984 = vmul.f32 %v879, %v1899
        %v1985 = vmul.f32 %v883, %v1899
        %v1986 = vmul.f32 %v890, %v1899
        %v1987 = vmul.f32 %v894, %v1899
        %v1988 = vmul.f32 %v901, %v1899
        %v1989 = vmul.f32 %v905, %v1899
        %v1990 = vmul.f32 %v912, %v1899
        %v1991 = vmul.f32 %v916, %v1899
        %v1992 = vmul.f32 %v923, %v1899
        %v1993 = vmul.f32 %v927, %v1899
        %v1994 = vmul.f32 %v934, %v1899
        %v1995 = vmul.f32 %v938, %v1899
        %v1996 = vmul.f32 %v967, %v1899
        %v1997 = vmul.f32 %v971, %v1899
        %v1998 = vmul.f32 %v978, %v1899
        %v1999 = vmul.f32 %v982, %v1899
        %v2000 = vmul.f32 %v989, %v1899
        %v2001 = vmul.f32 %v993, %v1899
        %v2002 = vmul.f32 %v1000, %v1899
        %v2003 = vmul.f32 %v1004, %v1899
        %v2004 = vmul.f32 %v1011, %v1899
        %v2005 = vmul.f32 %v1015, %v1899
        %v2006 = vmul.f32 %v1022, %v1899
        %v2007 = vmul.f32 %v1026, %v1899
        %v2008 = vmul.f32 %v1033, %v1899
        %v2009 = vmul.f32 %v1037, %v1899
        %v2010 = vmul.f32 %v1044, %v1899
        %v2011 = vmul.f32 %v1048, %v1899
        %v2012 = vmul.f32 %v1077, %v1899
        %v2013 = vmul.f32 %v1081, %v1899
        %v2014 = vmul.f32 %v1088, %v1899
        %v2015 = vmul.f32 %v1092, %v1899
        %v2016 = vmul.f32 %v1099, %v1899
        %v2017 = vmul.f32 %v1103, %v1899
        %v2018 = vmul.f32 %v1110, %v1899
        %v2019 = vmul.f32 %v1114, %v1899
        %v2020 = vmul.f32 %v1121, %v1899
        %v2021 = vmul.f32 %v1125, %v1899
        %v2022 = vmul.f32 %v1132, %v1899
        %v2023 = vmul.f32 %v1136, %v1899
        %v2024 = vmul.f32 %v1143, %v1899
        %v2025 = vmul.f32 %v1147, %v1899
        %v2026 = vmul.f32 %v1154, %v1899
        %v2027 = vmul.f32 %v1158, %v1899
        %vm2156 = vcmask 1045504
        %v2157 = vrot.slane %v1900, 2
        %v2158 = vrot.slane %v1901, 2
        %v2159 = vsel %vm2156, %v2157, %v2158
        %v2160 = vrot.slane %v1902, 2
        %v2161 = vrot.slane %v1903, 2
        %v2162 = vsel %vm2156, %v2160, %v2161
        %v2163 = vrot.slane %v1904, 2
        %v2164 = vrot.slane %v1905, 2
        %v2165 = vsel %vm2156, %v2163, %v2164
        %v2166 = vrot.slane %v1906, 2
        %v2167 = vrot.slane %v1907, 2
        %v2168 = vsel %vm2156, %v2166, %v2167
        %v2169 = vrot.slane %v1908, 2
        %v2170 = vrot.slane %v1909, 2
        %v2171 = vsel %vm2156, %v2169, %v2170
        %v2172 = vrot.slane %v1910, 2
        %v2173 = vrot.slane %v1911, 2
        %v2174 = vsel %vm2156, %v2172, %v2173
        %v2175 = vrot.slane %v1912, 2
        %v2176 = vrot.slane %v1913, 2
        %v2177 = vsel %vm2156, %v2175, %v2176
        %v2178 = vrot.slane %v1914, 2
        %v2179 = vrot.slane %v1915, 2
        %v2180 = vsel %vm2156, %v2178, %v2179
        %v2181 = vrot.slane %v1916, 2
        %v2182 = vrot.slane %v1917, 2
        %v2183 = vsel %vm2156, %v2181, %v2182
        %v2184 = vrot.slane %v1918, 2
        %v2185 = vrot.slane %v1919, 2
        %v2186 = vsel %vm2156, %v2184, %v2185
        %v2187 = vrot.slane %v1920, 2
        %v2188 = vrot.slane %v1921, 2
        %v2189 = vsel %vm2156, %v2187, %v2188
        %v2190 = vrot.slane %v1922, 2
        %v2191 = vrot.slane %v1923, 2
        %v2192 = vsel %vm2156, %v2190, %v2191
        %v2193 = vrot.slane %v1924, 2
        %v2194 = vrot.slane %v1925, 2
        %v2195 = vsel %vm2156, %v2193, %v2194
        %v2196 = vrot.slane %v1926, 2
        %v2197 = vrot.slane %v1927, 2
        %v2198 = vsel %vm2156, %v2196, %v2197
        %v2199 = vrot.slane %v1928, 2
        %v2200 = vrot.slane %v1929, 2
        %v2201 = vsel %vm2156, %v2199, %v2200
        %v2202 = vrot.slane %v1930, 2
        %v2203 = vrot.slane %v1931, 2
        %v2204 = vsel %vm2156, %v2202, %v2203
        %v2205 = vrot.slane %v1932, 2
        %v2206 = vrot.slane %v1933, 2
        %v2207 = vsel %vm2156, %v2205, %v2206
        %v2208 = vrot.slane %v1934, 2
        %v2209 = vrot.slane %v1935, 2
        %v2210 = vsel %vm2156, %v2208, %v2209
        %v2211 = vrot.slane %v1936, 2
        %v2212 = vrot.slane %v1937, 2
        %v2213 = vsel %vm2156, %v2211, %v2212
        %v2214 = vrot.slane %v1938, 2
        %v2215 = vrot.slane %v1939, 2
        %v2216 = vsel %vm2156, %v2214, %v2215
        %v2217 = vrot.slane %v1940, 2
        %v2218 = vrot.slane %v1941, 2
        %v2219 = vsel %vm2156, %v2217, %v2218
        %v2220 = vrot.slane %v1942, 2
        %v2221 = vrot.slane %v1943, 2
        %v2222 = vsel %vm2156, %v2220, %v2221
        %v2223 = vrot.slane %v1944, 2
        %v2224 = vrot.slane %v1945, 2
        %v2225 = vsel %vm2156, %v2223, %v2224
        %v2226 = vrot.slane %v1946, 2
        %v2227 = vrot.slane %v1947, 2
        %v2228 = vsel %vm2156, %v2226, %v2227
        %v2229 = vrot.slane %v1948, 2
        %v2230 = vrot.slane %v1949, 2
        %v2231 = vsel %vm2156, %v2229, %v2230
        %v2232 = vrot.slane %v1950, 2
        %v2233 = vrot.slane %v1951, 2
        %v2234 = vsel %vm2156, %v2232, %v2233
        %v2235 = vrot.slane %v1952, 2
        %v2236 = vrot.slane %v1953, 2
        %v2237 = vsel %vm2156, %v2235, %v2236
        %v2238 = vrot.slane %v1954, 2
        %v2239 = vrot.slane %v1955, 2
        %v2240 = vsel %vm2156, %v2238, %v2239
        %v2241 = vrot.slane %v1956, 2
        %v2242 = vrot.slane %v1957, 2
        %v2243 = vsel %vm2156, %v2241, %v2242
        %v2244 = vrot.slane %v1958, 2
        %v2245 = vrot.slane %v1959, 2
        %v2246 = vsel %vm2156, %v2244, %v2245
        %v2247 = vrot.slane %v1960, 2
        %v2248 = vrot.slane %v1961, 2
        %v2249 = vsel %vm2156, %v2247, %v2248
        %v2250 = vrot.slane %v1962, 2
        %v2251 = vrot.slane %v1963, 2
        %v2252 = vsel %vm2156, %v2250, %v2251
        %v2253 = vrot.slane %v1964, 2
        %v2254 = vrot.slane %v1965, 2
        %v2255 = vsel %vm2156, %v2253, %v2254
        %v2256 = vrot.slane %v1966, 2
        %v2257 = vrot.slane %v1967, 2
        %v2258 = vsel %vm2156, %v2256, %v2257
        %v2259 = vrot.slane %v1968, 2
        %v2260 = vrot.slane %v1969, 2
        %v2261 = vsel %vm2156, %v2259, %v2260
        %v2262 = vrot.slane %v1970, 2
        %v2263 = vrot.slane %v1971, 2
        %v2264 = vsel %vm2156, %v2262, %v2263
        %v2265 = vrot.slane %v1972, 2
        %v2266 = vrot.slane %v1973, 2
        %v2267 = vsel %vm2156, %v2265, %v2266
        %v2268 = vrot.slane %v1974, 2
        %v2269 = vrot.slane %v1975, 2
        %v2270 = vsel %vm2156, %v2268, %v2269
        %v2271 = vrot.slane %v1976, 2
        %v2272 = vrot.slane %v1977, 2
        %v2273 = vsel %vm2156, %v2271, %v2272
        %v2274 = vrot.slane %v1978, 2
        %v2275 = vrot.slane %v1979, 2
        %v2276 = vsel %vm2156, %v2274, %v2275
        %v2277 = vrot.slane %v1980, 2
        %v2278 = vrot.slane %v1981, 2
        %v2279 = vsel %vm2156, %v2277, %v2278
        %v2280 = vrot.slane %v1982, 2
        %v2281 = vrot.slane %v1983, 2
        %v2282 = vsel %vm2156, %v2280, %v2281
        %v2283 = vrot.slane %v1984, 2
        %v2284 = vrot.slane %v1985, 2
        %v2285 = vsel %vm2156, %v2283, %v2284
        %v2286 = vrot.slane %v1986, 2
        %v2287 = vrot.slane %v1987, 2
        %v2288 = vsel %vm2156, %v2286, %v2287
        %v2289 = vrot.slane %v1988, 2
        %v2290 = vrot.slane %v1989, 2
        %v2291 = vsel %vm2156, %v2289, %v2290
        %v2292 = vrot.slane %v1990, 2
        %v2293 = vrot.slane %v1991, 2
        %v2294 = vsel %vm2156, %v2292, %v2293
        %v2295 = vrot.slane %v1992, 2
        %v2296 = vrot.slane %v1993, 2
        %v2297 = vsel %vm2156, %v2295, %v2296
        %v2298 = vrot.slane %v1994, 2
        %v2299 = vrot.slane %v1995, 2
        %v2300 = vsel %vm2156, %v2298, %v2299
        %v2301 = vrot.slane %v1996, 2
        %v2302 = vrot.slane %v1997, 2
        %v2303 = vsel %vm2156, %v2301, %v2302
        %v2304 = vrot.slane %v1998, 2
        %v2305 = vrot.slane %v1999, 2
        %v2306 = vsel %vm2156, %v2304, %v2305
        %v2307 = vrot.slane %v2000, 2
        %v2308 = vrot.slane %v2001, 2
        %v2309 = vsel %vm2156, %v2307, %v2308
        %v2310 = vrot.slane %v2002, 2
        %v2311 = vrot.slane %v2003, 2
        %v2312 = vsel %vm2156, %v2310, %v2311
        %v2313 = vrot.slane %v2004, 2
        %v2314 = vrot.slane %v2005, 2
        %v2315 = vsel %vm2156, %v2313, %v2314
        %v2316 = vrot.slane %v2006, 2
        %v2317 = vrot.slane %v2007, 2
        %v2318 = vsel %vm2156, %v2316, %v2317
        %v2319 = vrot.slane %v2008, 2
        %v2320 = vrot.slane %v2009, 2
        %v2321 = vsel %vm2156, %v2319, %v2320
        %v2322 = vrot.slane %v2010, 2
        %v2323 = vrot.slane %v2011, 2
        %v2324 = vsel %vm2156, %v2322, %v2323
        %v2325 = vrot.slane %v2012, 2
        %v2326 = vrot.slane %v2013, 2
        %v2327 = vsel %vm2156, %v2325, %v2326
        %v2328 = vrot.slane %v2014, 2
        %v2329 = vrot.slane %v2015, 2
        %v2330 = vsel %vm2156, %v2328, %v2329
        %v2331 = vrot.slane %v2016, 2
        %v2332 = vrot.slane %v2017, 2
        %v2333 = vsel %vm2156, %v2331, %v2332
        %v2334 = vrot.slane %v2018, 2
        %v2335 = vrot.slane %v2019, 2
        %v2336 = vsel %vm2156, %v2334, %v2335
        %v2337 = vrot.slane %v2020, 2
        %v2338 = vrot.slane %v2021, 2
        %v2339 = vsel %vm2156, %v2337, %v2338
        %v2340 = vrot.slane %v2022, 2
        %v2341 = vrot.slane %v2023, 2
        %v2342 = vsel %vm2156, %v2340, %v2341
        %v2343 = vrot.slane %v2024, 2
        %v2344 = vrot.slane %v2025, 2
        %v2345 = vsel %vm2156, %v2343, %v2344
        %v2346 = vrot.slane %v2026, 2
        %v2347 = vrot.slane %v2027, 2
        %v2348 = vsel %vm2156, %v2346, %v2347
        %v2413 = vadd.f32 %v1832, %v2159
        %v2414 = vadd.f32 %v1833, %v2162
        %v2415 = vadd.f32 %v1834, %v2165
        %v2416 = vadd.f32 %v1835, %v2168
        %v2417 = vadd.f32 %v1836, %v2171
        %v2418 = vadd.f32 %v1837, %v2174
        %v2419 = vadd.f32 %v1838, %v2177
        %v2420 = vadd.f32 %v1839, %v2180
        %v2421 = vadd.f32 %v1840, %v2183
        %v2422 = vadd.f32 %v1841, %v2186
        %v2423 = vadd.f32 %v1842, %v2189
        %v2424 = vadd.f32 %v1843, %v2192
        %v2425 = vadd.f32 %v1844, %v2195
        %v2426 = vadd.f32 %v1845, %v2198
        %v2427 = vadd.f32 %v1846, %v2201
        %v2428 = vadd.f32 %v1847, %v2204
        %v2429 = vadd.f32 %v1848, %v2207
        %v2430 = vadd.f32 %v1849, %v2210
        %v2431 = vadd.f32 %v1850, %v2213
        %v2432 = vadd.f32 %v1851, %v2216
        %v2433 = vadd.f32 %v1852, %v2219
        %v2434 = vadd.f32 %v1853, %v2222
        %v2435 = vadd.f32 %v1854, %v2225
        %v2436 = vadd.f32 %v1855, %v2228
        %v2437 = vadd.f32 %v1856, %v2231
        %v2438 = vadd.f32 %v1857, %v2234
        %v2439 = vadd.f32 %v1858, %v2237
        %v2440 = vadd.f32 %v1859, %v2240
        %v2441 = vadd.f32 %v1860, %v2243
        %v2442 = vadd.f32 %v1861, %v2246
        %v2443 = vadd.f32 %v1862, %v2249
        %v2444 = vadd.f32 %v1863, %v2252
        %v2445 = vadd.f32 %v1864, %v2255
        %v2446 = vadd.f32 %v1865, %v2258
        %v2447 = vadd.f32 %v1866, %v2261
        %v2448 = vadd.f32 %v1867, %v2264
        %v2449 = vadd.f32 %v1868, %v2267
        %v2450 = vadd.f32 %v1869, %v2270
        %v2451 = vadd.f32 %v1870, %v2273
        %v2452 = vadd.f32 %v1871, %v2276
        %v2453 = vadd.f32 %v1872, %v2279
        %v2454 = vadd.f32 %v1873, %v2282
        %v2455 = vadd.f32 %v1874, %v2285
        %v2456 = vadd.f32 %v1875, %v2288
        %v2457 = vadd.f32 %v1876, %v2291
        %v2458 = vadd.f32 %v1877, %v2294
        %v2459 = vadd.f32 %v1878, %v2297
        %v2460 = vadd.f32 %v1879, %v2300
        %v2461 = vadd.f32 %v1880, %v2303
        %v2462 = vadd.f32 %v1881, %v2306
        %v2463 = vadd.f32 %v1882, %v2309
        %v2464 = vadd.f32 %v1883, %v2312
        %v2465 = vadd.f32 %v1884, %v2315
        %v2466 = vadd.f32 %v1885, %v2318
        %v2467 = vadd.f32 %v1886, %v2321
        %v2468 = vadd.f32 %v1887, %v2324
        %v2469 = vadd.f32 %v1888, %v2327
        %v2470 = vadd.f32 %v1889, %v2330
        %v2471 = vadd.f32 %v1890, %v2333
        %v2472 = vadd.f32 %v1891, %v2336
        %v2473 = vadd.f32 %v1892, %v2339
        %v2474 = vadd.f32 %v1893, %v2342
        %v2475 = vadd.f32 %v1894, %v2345
        %v2476 = vadd.f32 %v1895, %v2348
        %v2477 = vlaneseq
        %v2478 = vshrl.u32 %v2477, 7
        %v2479 = vsub.s32 3, %v2478
        %v2480 = vrot.slane %v1181, %v2479
        %v2481 = vmul.f32 %v318, %v2480
        %v2482 = vmul.f32 %v329, %v2480
        %v2483 = vmul.f32 %v340, %v2480
        %v2484 = vmul.f32 %v351, %v2480
        %v2485 = vmul.f32 %v362, %v2480
        %v2486 = vmul.f32 %v373, %v2480
        %v2487 = vmul.f32 %v384, %v2480
        %v2488 = vmul.f32 %v395, %v2480
        %v2489 = vmul.f32 %v428, %v2480
        %v2490 = vmul.f32 %v439, %v2480
        %v2491 = vmul.f32 %v450, %v2480
        %v2492 = vmul.f32 %v461, %v2480
        %v2493 = vmul.f32 %v472, %v2480
        %v2494 = vmul.f32 %v483, %v2480
        %v2495 = vmul.f32 %v494, %v2480
        %v2496 = vmul.f32 %v505, %v2480
        %v2497 = vmul.f32 %v538, %v2480
        %v2498 = vmul.f32 %v549, %v2480
        %v2499 = vmul.f32 %v560, %v2480
        %v2500 = vmul.f32 %v571, %v2480
        %v2501 = vmul.f32 %v582, %v2480
        %v2502 = vmul.f32 %v593, %v2480
        %v2503 = vmul.f32 %v604, %v2480
        %v2504 = vmul.f32 %v615, %v2480
        %v2505 = vmul.f32 %v648, %v2480
        %v2506 = vmul.f32 %v659, %v2480
        %v2507 = vmul.f32 %v670, %v2480
        %v2508 = vmul.f32 %v681, %v2480
        %v2509 = vmul.f32 %v692, %v2480
        %v2510 = vmul.f32 %v703, %v2480
        %v2511 = vmul.f32 %v714, %v2480
        %v2512 = vmul.f32 %v725, %v2480
        %v2513 = vmul.f32 %v758, %v2480
        %v2514 = vmul.f32 %v769, %v2480
        %v2515 = vmul.f32 %v780, %v2480
        %v2516 = vmul.f32 %v791, %v2480
        %v2517 = vmul.f32 %v802, %v2480
        %v2518 = vmul.f32 %v813, %v2480
        %v2519 = vmul.f32 %v824, %v2480
        %v2520 = vmul.f32 %v835, %v2480
        %v2521 = vmul.f32 %v868, %v2480
        %v2522 = vmul.f32 %v879, %v2480
        %v2523 = vmul.f32 %v890, %v2480
        %v2524 = vmul.f32 %v901, %v2480
        %v2525 = vmul.f32 %v912, %v2480
        %v2526 = vmul.f32 %v923, %v2480
        %v2527 = vmul.f32 %v934, %v2480
        %v2528 = vmul.f32 %v945, %v2480
        %v2529 = vmul.f32 %v978, %v2480
        %v2530 = vmul.f32 %v989, %v2480
        %v2531 = vmul.f32 %v1000, %v2480
        %v2532 = vmul.f32 %v1011, %v2480
        %v2533 = vmul.f32 %v1022, %v2480
        %v2534 = vmul.f32 %v1033, %v2480
        %v2535 = vmul.f32 %v1044, %v2480
        %v2536 = vmul.f32 %v1055, %v2480
        %v2537 = vmul.f32 %v1088, %v2480
        %v2538 = vmul.f32 %v1099, %v2480
        %v2539 = vmul.f32 %v1110, %v2480
        %v2540 = vmul.f32 %v1121, %v2480
        %v2541 = vmul.f32 %v1132, %v2480
        %v2542 = vmul.f32 %v1143, %v2480
        %v2543 = vmul.f32 %v1154, %v2480
        %v2544 = vmul.f32 %v1165, %v2480
        %v2545 = vadd.f32 %v2413, %v2481
        %v2546 = vadd.f32 %v2414, %v2482
        %v2547 = vadd.f32 %v2415, %v2483
        %v2548 = vadd.f32 %v2416, %v2484
        %v2549 = vadd.f32 %v2417, %v2485
        %v2550 = vadd.f32 %v2418, %v2486
        %v2551 = vadd.f32 %v2419, %v2487
        %v2552 = vadd.f32 %v2420, %v2488
        %v2553 = vadd.f32 %v2421, %v2489
        %v2554 = vadd.f32 %v2422, %v2490
        %v2555 = vadd.f32 %v2423, %v2491
        %v2556 = vadd.f32 %v2424, %v2492
        %v2557 = vadd.f32 %v2425, %v2493
        %v2558 = vadd.f32 %v2426, %v2494
        %v2559 = vadd.f32 %v2427, %v2495
        %v2560 = vadd.f32 %v2428, %v2496
        %v2561 = vadd.f32 %v2429, %v2497
        %v2562 = vadd.f32 %v2430, %v2498
        %v2563 = vadd.f32 %v2431, %v2499
        %v2564 = vadd.f32 %v2432, %v2500
        %v2565 = vadd.f32 %v2433, %v2501
        %v2566 = vadd.f32 %v2434, %v2502
        %v2567 = vadd.f32 %v2435, %v2503
        %v2568 = vadd.f32 %v2436, %v2504
        %v2569 = vadd.f32 %v2437, %v2505
        %v2570 = vadd.f32 %v2438, %v2506
        %v2571 = vadd.f32 %v2439, %v2507
        %v2572 = vadd.f32 %v2440, %v2508
        %v2573 = vadd.f32 %v2441, %v2509
        %v2574 = vadd.f32 %v2442, %v2510
        %v2575 = vadd.f32 %v2443, %v2511
        %v2576 = vadd.f32 %v2444, %v2512
        %v2577 = vadd.f32 %v2445, %v2513
        %v2578 = vadd.f32 %v2446, %v2514
        %v2579 = vadd.f32 %v2447, %v2515
        %v2580 = vadd.f32 %v2448, %v2516
        %v2581 = vadd.f32 %v2449, %v2517
        %v2582 = vadd.f32 %v2450, %v2518
        %v2583 = vadd.f32 %v2451, %v2519
        %v2584 = vadd.f32 %v2452, %v2520
        %v2585 = vadd.f32 %v2453, %v2521
        %v2586 = vadd.f32 %v2454, %v2522
        %v2587 = vadd.f32 %v2455, %v2523
        %v2588 = vadd.f32 %v2456, %v2524
        %v2589 = vadd.f32 %v2457, %v2525
        %v2590 = vadd.f32 %v2458, %v2526
        %v2591 = vadd.f32 %v2459, %v2527
        %v2592 = vadd.f32 %v2460, %v2528
        %v2593 = vadd.f32 %v2461, %v2529
        %v2594 = vadd.f32 %v2462, %v2530
        %v2595 = vadd.f32 %v2463, %v2531
        %v2596 = vadd.f32 %v2464, %v2532
        %v2597 = vadd.f32 %v2465, %v2533
        %v2598 = vadd.f32 %v2466, %v2534
        %v2599 = vadd.f32 %v2467, %v2535
        %v2600 = vadd.f32 %v2468, %v2536
        %v2601 = vadd.f32 %v2469, %v2537
        %v2602 = vadd.f32 %v2470, %v2538
        %v2603 = vadd.f32 %v2471, %v2539
        %v2604 = vadd.f32 %v2472, %v2540
        %v2605 = vadd.f32 %v2473, %v2541
        %v2606 = vadd.f32 %v2474, %v2542
        %v2607 = vadd.f32 %v2475, %v2543
        %v2608 = vadd.f32 %v2476, %v2544
        %v2609 = vlaneseq
        %v2610 = vshrl.u32 %v2609, 7
        %v2611 = vsub.s32 4, %v2610
        %v2612 = vrot.slane %v1181, %v2611
        %v2613 = vmul.f32 %v318, %v2612
        %v2614 = vmul.f32 %v322, %v2612
        %v2615 = vmul.f32 %v329, %v2612
        %v2616 = vmul.f32 %v333, %v2612
        %v2617 = vmul.f32 %v340, %v2612
        %v2618 = vmul.f32 %v344, %v2612
        %v2619 = vmul.f32 %v351, %v2612
        %v2620 = vmul.f32 %v355, %v2612
        %v2621 = vmul.f32 %v362, %v2612
        %v2622 = vmul.f32 %v366, %v2612
        %v2623 = vmul.f32 %v373, %v2612
        %v2624 = vmul.f32 %v377, %v2612
        %v2625 = vmul.f32 %v384, %v2612
        %v2626 = vmul.f32 %v388, %v2612
        %v2627 = vmul.f32 %v395, %v2612
        %v2628 = vmul.f32 %v399, %v2612
        %v2629 = vmul.f32 %v428, %v2612
        %v2630 = vmul.f32 %v432, %v2612
        %v2631 = vmul.f32 %v439, %v2612
        %v2632 = vmul.f32 %v443, %v2612
        %v2633 = vmul.f32 %v450, %v2612
        %v2634 = vmul.f32 %v454, %v2612
        %v2635 = vmul.f32 %v461, %v2612
        %v2636 = vmul.f32 %v465, %v2612
        %v2637 = vmul.f32 %v472, %v2612
        %v2638 = vmul.f32 %v476, %v2612
        %v2639 = vmul.f32 %v483, %v2612
        %v2640 = vmul.f32 %v487, %v2612
        %v2641 = vmul.f32 %v494, %v2612
        %v2642 = vmul.f32 %v498, %v2612
        %v2643 = vmul.f32 %v505, %v2612
        %v2644 = vmul.f32 %v509, %v2612
        %v2645 = vmul.f32 %v538, %v2612
        %v2646 = vmul.f32 %v542, %v2612
        %v2647 = vmul.f32 %v549, %v2612
        %v2648 = vmul.f32 %v553, %v2612
        %v2649 = vmul.f32 %v560, %v2612
        %v2650 = vmul.f32 %v564, %v2612
        %v2651 = vmul.f32 %v571, %v2612
        %v2652 = vmul.f32 %v575, %v2612
        %v2653 = vmul.f32 %v582, %v2612
        %v2654 = vmul.f32 %v586, %v2612
        %v2655 = vmul.f32 %v593, %v2612
        %v2656 = vmul.f32 %v597, %v2612
        %v2657 = vmul.f32 %v604, %v2612
        %v2658 = vmul.f32 %v608, %v2612
        %v2659 = vmul.f32 %v615, %v2612
        %v2660 = vmul.f32 %v619, %v2612
        %v2661 = vmul.f32 %v648, %v2612
        %v2662 = vmul.f32 %v652, %v2612
        %v2663 = vmul.f32 %v659, %v2612
        %v2664 = vmul.f32 %v663, %v2612
        %v2665 = vmul.f32 %v670, %v2612
        %v2666 = vmul.f32 %v674, %v2612
        %v2667 = vmul.f32 %v681, %v2612
        %v2668 = vmul.f32 %v685, %v2612
        %v2669 = vmul.f32 %v692, %v2612
        %v2670 = vmul.f32 %v696, %v2612
        %v2671 = vmul.f32 %v703, %v2612
        %v2672 = vmul.f32 %v707, %v2612
        %v2673 = vmul.f32 %v714, %v2612
        %v2674 = vmul.f32 %v718, %v2612
        %v2675 = vmul.f32 %v725, %v2612
        %v2676 = vmul.f32 %v729, %v2612
        %v2677 = vmul.f32 %v758, %v2612
        %v2678 = vmul.f32 %v762, %v2612
        %v2679 = vmul.f32 %v769, %v2612
        %v2680 = vmul.f32 %v773, %v2612
        %v2681 = vmul.f32 %v780, %v2612
        %v2682 = vmul.f32 %v784, %v2612
        %v2683 = vmul.f32 %v791, %v2612
        %v2684 = vmul.f32 %v795, %v2612
        %v2685 = vmul.f32 %v802, %v2612
        %v2686 = vmul.f32 %v806, %v2612
        %v2687 = vmul.f32 %v813, %v2612
        %v2688 = vmul.f32 %v817, %v2612
        %v2689 = vmul.f32 %v824, %v2612
        %v2690 = vmul.f32 %v828, %v2612
        %v2691 = vmul.f32 %v835, %v2612
        %v2692 = vmul.f32 %v839, %v2612
        %v2693 = vmul.f32 %v868, %v2612
        %v2694 = vmul.f32 %v872, %v2612
        %v2695 = vmul.f32 %v879, %v2612
        %v2696 = vmul.f32 %v883, %v2612
        %v2697 = vmul.f32 %v890, %v2612
        %v2698 = vmul.f32 %v894, %v2612
        %v2699 = vmul.f32 %v901, %v2612
        %v2700 = vmul.f32 %v905, %v2612
        %v2701 = vmul.f32 %v912, %v2612
        %v2702 = vmul.f32 %v916, %v2612
        %v2703 = vmul.f32 %v923, %v2612
        %v2704 = vmul.f32 %v927, %v2612
        %v2705 = vmul.f32 %v934, %v2612
        %v2706 = vmul.f32 %v938, %v2612
        %v2707 = vmul.f32 %v945, %v2612
        %v2708 = vmul.f32 %v949, %v2612
        %v2709 = vmul.f32 %v978, %v2612
        %v2710 = vmul.f32 %v982, %v2612
        %v2711 = vmul.f32 %v989, %v2612
        %v2712 = vmul.f32 %v993, %v2612
        %v2713 = vmul.f32 %v1000, %v2612
        %v2714 = vmul.f32 %v1004, %v2612
        %v2715 = vmul.f32 %v1011, %v2612
        %v2716 = vmul.f32 %v1015, %v2612
        %v2717 = vmul.f32 %v1022, %v2612
        %v2718 = vmul.f32 %v1026, %v2612
        %v2719 = vmul.f32 %v1033, %v2612
        %v2720 = vmul.f32 %v1037, %v2612
        %v2721 = vmul.f32 %v1044, %v2612
        %v2722 = vmul.f32 %v1048, %v2612
        %v2723 = vmul.f32 %v1055, %v2612
        %v2724 = vmul.f32 %v1059, %v2612
        %v2725 = vmul.f32 %v1088, %v2612
        %v2726 = vmul.f32 %v1092, %v2612
        %v2727 = vmul.f32 %v1099, %v2612
        %v2728 = vmul.f32 %v1103, %v2612
        %v2729 = vmul.f32 %v1110, %v2612
        %v2730 = vmul.f32 %v1114, %v2612
        %v2731 = vmul.f32 %v1121, %v2612
        %v2732 = vmul.f32 %v1125, %v2612
        %v2733 = vmul.f32 %v1132, %v2612
        %v2734 = vmul.f32 %v1136, %v2612
        %v2735 = vmul.f32 %v1143, %v2612
        %v2736 = vmul.f32 %v1147, %v2612
        %v2737 = vmul.f32 %v1154, %v2612
        %v2738 = vmul.f32 %v1158, %v2612
        %v2739 = vmul.f32 %v1165, %v2612
        %v2740 = vmul.f32 %v1169, %v2612
        %v2869 = vrot.slane %v2613, 1
        %v2870 = vrot.slane %v2614, 1
        %v2871 = vsel %vm1575, %v2869, %v2870
        %v2872 = vrot.slane %v2615, 1
        %v2873 = vrot.slane %v2616, 1
        %v2874 = vsel %vm1575, %v2872, %v2873
        %v2875 = vrot.slane %v2617, 1
        %v2876 = vrot.slane %v2618, 1
        %v2877 = vsel %vm1575, %v2875, %v2876
        %v2878 = vrot.slane %v2619, 1
        %v2879 = vrot.slane %v2620, 1
        %v2880 = vsel %vm1575, %v2878, %v2879
        %v2881 = vrot.slane %v2621, 1
        %v2882 = vrot.slane %v2622, 1
        %v2883 = vsel %vm1575, %v2881, %v2882
        %v2884 = vrot.slane %v2623, 1
        %v2885 = vrot.slane %v2624, 1
        %v2886 = vsel %vm1575, %v2884, %v2885
        %v2887 = vrot.slane %v2625, 1
        %v2888 = vrot.slane %v2626, 1
        %v2889 = vsel %vm1575, %v2887, %v2888
        %v2890 = vrot.slane %v2627, 1
        %v2891 = vrot.slane %v2628, 1
        %v2892 = vsel %vm1575, %v2890, %v2891
        %v2893 = vrot.slane %v2629, 1
        %v2894 = vrot.slane %v2630, 1
        %v2895 = vsel %vm1575, %v2893, %v2894
        %v2896 = vrot.slane %v2631, 1
        %v2897 = vrot.slane %v2632, 1
        %v2898 = vsel %vm1575, %v2896, %v2897
        %v2899 = vrot.slane %v2633, 1
        %v2900 = vrot.slane %v2634, 1
        %v2901 = vsel %vm1575, %v2899, %v2900
        %v2902 = vrot.slane %v2635, 1
        %v2903 = vrot.slane %v2636, 1
        %v2904 = vsel %vm1575, %v2902, %v2903
        %v2905 = vrot.slane %v2637, 1
        %v2906 = vrot.slane %v2638, 1
        %v2907 = vsel %vm1575, %v2905, %v2906
        %v2908 = vrot.slane %v2639, 1
        %v2909 = vrot.slane %v2640, 1
        %v2910 = vsel %vm1575, %v2908, %v2909
        %v2911 = vrot.slane %v2641, 1
        %v2912 = vrot.slane %v2642, 1
        %v2913 = vsel %vm1575, %v2911, %v2912
        %v2914 = vrot.slane %v2643, 1
        %v2915 = vrot.slane %v2644, 1
        %v2916 = vsel %vm1575, %v2914, %v2915
        %v2917 = vrot.slane %v2645, 1
        %v2918 = vrot.slane %v2646, 1
        %v2919 = vsel %vm1575, %v2917, %v2918
        %v2920 = vrot.slane %v2647, 1
        %v2921 = vrot.slane %v2648, 1
        %v2922 = vsel %vm1575, %v2920, %v2921
        %v2923 = vrot.slane %v2649, 1
        %v2924 = vrot.slane %v2650, 1
        %v2925 = vsel %vm1575, %v2923, %v2924
        %v2926 = vrot.slane %v2651, 1
        %v2927 = vrot.slane %v2652, 1
        %v2928 = vsel %vm1575, %v2926, %v2927
        %v2929 = vrot.slane %v2653, 1
        %v2930 = vrot.slane %v2654, 1
        %v2931 = vsel %vm1575, %v2929, %v2930
        %v2932 = vrot.slane %v2655, 1
        %v2933 = vrot.slane %v2656, 1
        %v2934 = vsel %vm1575, %v2932, %v2933
        %v2935 = vrot.slane %v2657, 1
        %v2936 = vrot.slane %v2658, 1
        %v2937 = vsel %vm1575, %v2935, %v2936
        %v2938 = vrot.slane %v2659, 1
        %v2939 = vrot.slane %v2660, 1
        %v2940 = vsel %vm1575, %v2938, %v2939
        %v2941 = vrot.slane %v2661, 1
        %v2942 = vrot.slane %v2662, 1
        %v2943 = vsel %vm1575, %v2941, %v2942
        %v2944 = vrot.slane %v2663, 1
        %v2945 = vrot.slane %v2664, 1
        %v2946 = vsel %vm1575, %v2944, %v2945
        %v2947 = vrot.slane %v2665, 1
        %v2948 = vrot.slane %v2666, 1
        %v2949 = vsel %vm1575, %v2947, %v2948
        %v2950 = vrot.slane %v2667, 1
        %v2951 = vrot.slane %v2668, 1
        %v2952 = vsel %vm1575, %v2950, %v2951
        %v2953 = vrot.slane %v2669, 1
        %v2954 = vrot.slane %v2670, 1
        %v2955 = vsel %vm1575, %v2953, %v2954
        %v2956 = vrot.slane %v2671, 1
        %v2957 = vrot.slane %v2672, 1
        %v2958 = vsel %vm1575, %v2956, %v2957
        %v2959 = vrot.slane %v2673, 1
        %v2960 = vrot.slane %v2674, 1
        %v2961 = vsel %vm1575, %v2959, %v2960
        %v2962 = vrot.slane %v2675, 1
        %v2963 = vrot.slane %v2676, 1
        %v2964 = vsel %vm1575, %v2962, %v2963
        %v2965 = vrot.slane %v2677, 1
        %v2966 = vrot.slane %v2678, 1
        %v2967 = vsel %vm1575, %v2965, %v2966
        %v2968 = vrot.slane %v2679, 1
        %v2969 = vrot.slane %v2680, 1
        %v2970 = vsel %vm1575, %v2968, %v2969
        %v2971 = vrot.slane %v2681, 1
        %v2972 = vrot.slane %v2682, 1
        %v2973 = vsel %vm1575, %v2971, %v2972
        %v2974 = vrot.slane %v2683, 1
        %v2975 = vrot.slane %v2684, 1
        %v2976 = vsel %vm1575, %v2974, %v2975
        %v2977 = vrot.slane %v2685, 1
        %v2978 = vrot.slane %v2686, 1
        %v2979 = vsel %vm1575, %v2977, %v2978
        %v2980 = vrot.slane %v2687, 1
        %v2981 = vrot.slane %v2688, 1
        %v2982 = vsel %vm1575, %v2980, %v2981
        %v2983 = vrot.slane %v2689, 1
        %v2984 = vrot.slane %v2690, 1
        %v2985 = vsel %vm1575, %v2983, %v2984
        %v2986 = vrot.slane %v2691, 1
        %v2987 = vrot.slane %v2692, 1
        %v2988 = vsel %vm1575, %v2986, %v2987
        %v2989 = vrot.slane %v2693, 1
        %v2990 = vrot.slane %v2694, 1
        %v2991 = vsel %vm1575, %v2989, %v2990
        %v2992 = vrot.slane %v2695, 1
        %v2993 = vrot.slane %v2696, 1
        %v2994 = vsel %vm1575, %v2992, %v2993
        %v2995 = vrot.slane %v2697, 1
        %v2996 = vrot.slane %v2698, 1
        %v2997 = vsel %vm1575, %v2995, %v2996
        %v2998 = vrot.slane %v2699, 1
        %v2999 = vrot.slane %v2700, 1
        %v3000 = vsel %vm1575, %v2998, %v2999
        %v3001 = vrot.slane %v2701, 1
        %v3002 = vrot.slane %v2702, 1
        %v3003 = vsel %vm1575, %v3001, %v3002
        %v3004 = vrot.slane %v2703, 1
        %v3005 = vrot.slane %v2704, 1
        %v3006 = vsel %vm1575, %v3004, %v3005
        %v3007 = vrot.slane %v2705, 1
        %v3008 = vrot.slane %v2706, 1
        %v3009 = vsel %vm1575, %v3007, %v3008
        %v3010 = vrot.slane %v2707, 1
        %v3011 = vrot.slane %v2708, 1
        %v3012 = vsel %vm1575, %v3010, %v3011
        %v3013 = vrot.slane %v2709, 1
        %v3014 = vrot.slane %v2710, 1
        %v3015 = vsel %vm1575, %v3013, %v3014
        %v3016 = vrot.slane %v2711, 1
        %v3017 = vrot.slane %v2712, 1
        %v3018 = vsel %vm1575, %v3016, %v3017
        %v3019 = vrot.slane %v2713, 1
        %v3020 = vrot.slane %v2714, 1
        %v3021 = vsel %vm1575, %v3019, %v3020
        %v3022 = vrot.slane %v2715, 1
        %v3023 = vrot.slane %v2716, 1
        %v3024 = vsel %vm1575, %v3022, %v3023
        %v3025 = vrot.slane %v2717, 1
        %v3026 = vrot.slane %v2718, 1
        %v3027 = vsel %vm1575, %v3025, %v3026
        %v3028 = vrot.slane %v2719, 1
        %v3029 = vrot.slane %v2720, 1
        %v3030 = vsel %vm1575, %v3028, %v3029
        %v3031 = vrot.slane %v2721, 1
        %v3032 = vrot.slane %v2722, 1
        %v3033 = vsel %vm1575, %v3031, %v3032
        %v3034 = vrot.slane %v2723, 1
        %v3035 = vrot.slane %v2724, 1
        %v3036 = vsel %vm1575, %v3034, %v3035
        %v3037 = vrot.slane %v2725, 1
        %v3038 = vrot.slane %v2726, 1
        %v3039 = vsel %vm1575, %v3037, %v3038
        %v3040 = vrot.slane %v2727, 1
        %v3041 = vrot.slane %v2728, 1
        %v3042 = vsel %vm1575, %v3040, %v3041
        %v3043 = vrot.slane %v2729, 1
        %v3044 = vrot.slane %v2730, 1
        %v3045 = vsel %vm1575, %v3043, %v3044
        %v3046 = vrot.slane %v2731, 1
        %v3047 = vrot.slane %v2732, 1
        %v3048 = vsel %vm1575, %v3046, %v3047
        %v3049 = vrot.slane %v2733, 1
        %v3050 = vrot.slane %v2734, 1
        %v3051 = vsel %vm1575, %v3049, %v3050
        %v3052 = vrot.slane %v2735, 1
        %v3053 = vrot.slane %v2736, 1
        %v3054 = vsel %vm1575, %v3052, %v3053
        %v3055 = vrot.slane %v2737, 1
        %v3056 = vrot.slane %v2738, 1
        %v3057 = vsel %vm1575, %v3055, %v3056
        %v3058 = vrot.slane %v2739, 1
        %v3059 = vrot.slane %v2740, 1
        %v3060 = vsel %vm1575, %v3058, %v3059
        %v3125 = vadd.f32 %v2545, %v2871
        %v3126 = vadd.f32 %v2546, %v2874
        %v3127 = vadd.f32 %v2547, %v2877
        %v3128 = vadd.f32 %v2548, %v2880
        %v3129 = vadd.f32 %v2549, %v2883
        %v3130 = vadd.f32 %v2550, %v2886
        %v3131 = vadd.f32 %v2551, %v2889
        %v3132 = vadd.f32 %v2552, %v2892
        %v3133 = vadd.f32 %v2553, %v2895
        %v3134 = vadd.f32 %v2554, %v2898
        %v3135 = vadd.f32 %v2555, %v2901
        %v3136 = vadd.f32 %v2556, %v2904
        %v3137 = vadd.f32 %v2557, %v2907
        %v3138 = vadd.f32 %v2558, %v2910
        %v3139 = vadd.f32 %v2559, %v2913
        %v3140 = vadd.f32 %v2560, %v2916
        %v3141 = vadd.f32 %v2561, %v2919
        %v3142 = vadd.f32 %v2562, %v2922
        %v3143 = vadd.f32 %v2563, %v2925
        %v3144 = vadd.f32 %v2564, %v2928
        %v3145 = vadd.f32 %v2565, %v2931
        %v3146 = vadd.f32 %v2566, %v2934
        %v3147 = vadd.f32 %v2567, %v2937
        %v3148 = vadd.f32 %v2568, %v2940
        %v3149 = vadd.f32 %v2569, %v2943
        %v3150 = vadd.f32 %v2570, %v2946
        %v3151 = vadd.f32 %v2571, %v2949
        %v3152 = vadd.f32 %v2572, %v2952
        %v3153 = vadd.f32 %v2573, %v2955
        %v3154 = vadd.f32 %v2574, %v2958
        %v3155 = vadd.f32 %v2575, %v2961
        %v3156 = vadd.f32 %v2576, %v2964
        %v3157 = vadd.f32 %v2577, %v2967
        %v3158 = vadd.f32 %v2578, %v2970
        %v3159 = vadd.f32 %v2579, %v2973
        %v3160 = vadd.f32 %v2580, %v2976
        %v3161 = vadd.f32 %v2581, %v2979
        %v3162 = vadd.f32 %v2582, %v2982
        %v3163 = vadd.f32 %v2583, %v2985
        %v3164 = vadd.f32 %v2584, %v2988
        %v3165 = vadd.f32 %v2585, %v2991
        %v3166 = vadd.f32 %v2586, %v2994
        %v3167 = vadd.f32 %v2587, %v2997
        %v3168 = vadd.f32 %v2588, %v3000
        %v3169 = vadd.f32 %v2589, %v3003
        %v3170 = vadd.f32 %v2590, %v3006
        %v3171 = vadd.f32 %v2591, %v3009
        %v3172 = vadd.f32 %v2592, %v3012
        %v3173 = vadd.f32 %v2593, %v3015
        %v3174 = vadd.f32 %v2594, %v3018
        %v3175 = vadd.f32 %v2595, %v3021
        %v3176 = vadd.f32 %v2596, %v3024
        %v3177 = vadd.f32 %v2597, %v3027
        %v3178 = vadd.f32 %v2598, %v3030
        %v3179 = vadd.f32 %v2599, %v3033
        %v3180 = vadd.f32 %v2600, %v3036
        %v3181 = vadd.f32 %v2601, %v3039
        %v3182 = vadd.f32 %v2602, %v3042
        %v3183 = vadd.f32 %v2603, %v3045
        %v3184 = vadd.f32 %v2604, %v3048
        %v3185 = vadd.f32 %v2605, %v3051
        %v3186 = vadd.f32 %v2606, %v3054
        %v3187 = vadd.f32 %v2607, %v3057
        %v3188 = vadd.f32 %v2608, %v3060
        %v3189 = vlaneseq
        %v3190 = vshrl.u32 %v3189, 7
        %v3191 = vsub.s32 5, %v3190
        %v3192 = vrot.slane %v1181, %v3191
        %v3193 = vmul.f32 %v318, %v3192
        %v3194 = vmul.f32 %v322, %v3192
        %v3195 = vmul.f32 %v329, %v3192
        %v3196 = vmul.f32 %v333, %v3192
        %v3197 = vmul.f32 %v340, %v3192
        %v3198 = vmul.f32 %v344, %v3192
        %v3199 = vmul.f32 %v351, %v3192
        %v3200 = vmul.f32 %v355, %v3192
        %v3201 = vmul.f32 %v362, %v3192
        %v3202 = vmul.f32 %v366, %v3192
        %v3203 = vmul.f32 %v373, %v3192
        %v3204 = vmul.f32 %v377, %v3192
        %v3205 = vmul.f32 %v384, %v3192
        %v3206 = vmul.f32 %v388, %v3192
        %v3207 = vmul.f32 %v395, %v3192
        %v3208 = vmul.f32 %v399, %v3192
        %v3209 = vmul.f32 %v428, %v3192
        %v3210 = vmul.f32 %v432, %v3192
        %v3211 = vmul.f32 %v439, %v3192
        %v3212 = vmul.f32 %v443, %v3192
        %v3213 = vmul.f32 %v450, %v3192
        %v3214 = vmul.f32 %v454, %v3192
        %v3215 = vmul.f32 %v461, %v3192
        %v3216 = vmul.f32 %v465, %v3192
        %v3217 = vmul.f32 %v472, %v3192
        %v3218 = vmul.f32 %v476, %v3192
        %v3219 = vmul.f32 %v483, %v3192
        %v3220 = vmul.f32 %v487, %v3192
        %v3221 = vmul.f32 %v494, %v3192
        %v3222 = vmul.f32 %v498, %v3192
        %v3223 = vmul.f32 %v505, %v3192
        %v3224 = vmul.f32 %v509, %v3192
        %v3225 = vmul.f32 %v538, %v3192
        %v3226 = vmul.f32 %v542, %v3192
        %v3227 = vmul.f32 %v549, %v3192
        %v3228 = vmul.f32 %v553, %v3192
        %v3229 = vmul.f32 %v560, %v3192
        %v3230 = vmul.f32 %v564, %v3192
        %v3231 = vmul.f32 %v571, %v3192
        %v3232 = vmul.f32 %v575, %v3192
        %v3233 = vmul.f32 %v582, %v3192
        %v3234 = vmul.f32 %v586, %v3192
        %v3235 = vmul.f32 %v593, %v3192
        %v3236 = vmul.f32 %v597, %v3192
        %v3237 = vmul.f32 %v604, %v3192
        %v3238 = vmul.f32 %v608, %v3192
        %v3239 = vmul.f32 %v615, %v3192
        %v3240 = vmul.f32 %v619, %v3192
        %v3241 = vmul.f32 %v648, %v3192
        %v3242 = vmul.f32 %v652, %v3192
        %v3243 = vmul.f32 %v659, %v3192
        %v3244 = vmul.f32 %v663, %v3192
        %v3245 = vmul.f32 %v670, %v3192
        %v3246 = vmul.f32 %v674, %v3192
        %v3247 = vmul.f32 %v681, %v3192
        %v3248 = vmul.f32 %v685, %v3192
        %v3249 = vmul.f32 %v692, %v3192
        %v3250 = vmul.f32 %v696, %v3192
        %v3251 = vmul.f32 %v703, %v3192
        %v3252 = vmul.f32 %v707, %v3192
        %v3253 = vmul.f32 %v714, %v3192
        %v3254 = vmul.f32 %v718, %v3192
        %v3255 = vmul.f32 %v725, %v3192
        %v3256 = vmul.f32 %v729, %v3192
        %v3257 = vmul.f32 %v758, %v3192
        %v3258 = vmul.f32 %v762, %v3192
        %v3259 = vmul.f32 %v769, %v3192
        %v3260 = vmul.f32 %v773, %v3192
        %v3261 = vmul.f32 %v780, %v3192
        %v3262 = vmul.f32 %v784, %v3192
        %v3263 = vmul.f32 %v791, %v3192
        %v3264 = vmul.f32 %v795, %v3192
        %v3265 = vmul.f32 %v802, %v3192
        %v3266 = vmul.f32 %v806, %v3192
        %v3267 = vmul.f32 %v813, %v3192
        %v3268 = vmul.f32 %v817, %v3192
        %v3269 = vmul.f32 %v824, %v3192
        %v3270 = vmul.f32 %v828, %v3192
        %v3271 = vmul.f32 %v835, %v3192
        %v3272 = vmul.f32 %v839, %v3192
        %v3273 = vmul.f32 %v868, %v3192
        %v3274 = vmul.f32 %v872, %v3192
        %v3275 = vmul.f32 %v879, %v3192
        %v3276 = vmul.f32 %v883, %v3192
        %v3277 = vmul.f32 %v890, %v3192
        %v3278 = vmul.f32 %v894, %v3192
        %v3279 = vmul.f32 %v901, %v3192
        %v3280 = vmul.f32 %v905, %v3192
        %v3281 = vmul.f32 %v912, %v3192
        %v3282 = vmul.f32 %v916, %v3192
        %v3283 = vmul.f32 %v923, %v3192
        %v3284 = vmul.f32 %v927, %v3192
        %v3285 = vmul.f32 %v934, %v3192
        %v3286 = vmul.f32 %v938, %v3192
        %v3287 = vmul.f32 %v945, %v3192
        %v3288 = vmul.f32 %v949, %v3192
        %v3289 = vmul.f32 %v978, %v3192
        %v3290 = vmul.f32 %v982, %v3192
        %v3291 = vmul.f32 %v989, %v3192
        %v3292 = vmul.f32 %v993, %v3192
        %v3293 = vmul.f32 %v1000, %v3192
        %v3294 = vmul.f32 %v1004, %v3192
        %v3295 = vmul.f32 %v1011, %v3192
        %v3296 = vmul.f32 %v1015, %v3192
        %v3297 = vmul.f32 %v1022, %v3192
        %v3298 = vmul.f32 %v1026, %v3192
        %v3299 = vmul.f32 %v1033, %v3192
        %v3300 = vmul.f32 %v1037, %v3192
        %v3301 = vmul.f32 %v1044, %v3192
        %v3302 = vmul.f32 %v1048, %v3192
        %v3303 = vmul.f32 %v1055, %v3192
        %v3304 = vmul.f32 %v1059, %v3192
        %v3305 = vmul.f32 %v1088, %v3192
        %v3306 = vmul.f32 %v1092, %v3192
        %v3307 = vmul.f32 %v1099, %v3192
        %v3308 = vmul.f32 %v1103, %v3192
        %v3309 = vmul.f32 %v1110, %v3192
        %v3310 = vmul.f32 %v1114, %v3192
        %v3311 = vmul.f32 %v1121, %v3192
        %v3312 = vmul.f32 %v1125, %v3192
        %v3313 = vmul.f32 %v1132, %v3192
        %v3314 = vmul.f32 %v1136, %v3192
        %v3315 = vmul.f32 %v1143, %v3192
        %v3316 = vmul.f32 %v1147, %v3192
        %v3317 = vmul.f32 %v1154, %v3192
        %v3318 = vmul.f32 %v1158, %v3192
        %v3319 = vmul.f32 %v1165, %v3192
        %v3320 = vmul.f32 %v1169, %v3192
        %v3449 = vrot.slane %v3193, 2
        %v3450 = vrot.slane %v3194, 2
        %v3451 = vsel %vm2156, %v3449, %v3450
        %v3452 = vrot.slane %v3195, 2
        %v3453 = vrot.slane %v3196, 2
        %v3454 = vsel %vm2156, %v3452, %v3453
        %v3455 = vrot.slane %v3197, 2
        %v3456 = vrot.slane %v3198, 2
        %v3457 = vsel %vm2156, %v3455, %v3456
        %v3458 = vrot.slane %v3199, 2
        %v3459 = vrot.slane %v3200, 2
        %v3460 = vsel %vm2156, %v3458, %v3459
        %v3461 = vrot.slane %v3201, 2
        %v3462 = vrot.slane %v3202, 2
        %v3463 = vsel %vm2156, %v3461, %v3462
        %v3464 = vrot.slane %v3203, 2
        %v3465 = vrot.slane %v3204, 2
        %v3466 = vsel %vm2156, %v3464, %v3465
        %v3467 = vrot.slane %v3205, 2
        %v3468 = vrot.slane %v3206, 2
        %v3469 = vsel %vm2156, %v3467, %v3468
        %v3470 = vrot.slane %v3207, 2
        %v3471 = vrot.slane %v3208, 2
        %v3472 = vsel %vm2156, %v3470, %v3471
        %v3473 = vrot.slane %v3209, 2
        %v3474 = vrot.slane %v3210, 2
        %v3475 = vsel %vm2156, %v3473, %v3474
        %v3476 = vrot.slane %v3211, 2
        %v3477 = vrot.slane %v3212, 2
        %v3478 = vsel %vm2156, %v3476, %v3477
        %v3479 = vrot.slane %v3213, 2
        %v3480 = vrot.slane %v3214, 2
        %v3481 = vsel %vm2156, %v3479, %v3480
        %v3482 = vrot.slane %v3215, 2
        %v3483 = vrot.slane %v3216, 2
        %v3484 = vsel %vm2156, %v3482, %v3483
        %v3485 = vrot.slane %v3217, 2
        %v3486 = vrot.slane %v3218, 2
        %v3487 = vsel %vm2156, %v3485, %v3486
        %v3488 = vrot.slane %v3219, 2
        %v3489 = vrot.slane %v3220, 2
        %v3490 = vsel %vm2156, %v3488, %v3489
        %v3491 = vrot.slane %v3221, 2
        %v3492 = vrot.slane %v3222, 2
        %v3493 = vsel %vm2156, %v3491, %v3492
        %v3494 = vrot.slane %v3223, 2
        %v3495 = vrot.slane %v3224, 2
        %v3496 = vsel %vm2156, %v3494, %v3495
        %v3497 = vrot.slane %v3225, 2
        %v3498 = vrot.slane %v3226, 2
        %v3499 = vsel %vm2156, %v3497, %v3498
        %v3500 = vrot.slane %v3227, 2
        %v3501 = vrot.slane %v3228, 2
        %v3502 = vsel %vm2156, %v3500, %v3501
        %v3503 = vrot.slane %v3229, 2
        %v3504 = vrot.slane %v3230, 2
        %v3505 = vsel %vm2156, %v3503, %v3504
        %v3506 = vrot.slane %v3231, 2
        %v3507 = vrot.slane %v3232, 2
        %v3508 = vsel %vm2156, %v3506, %v3507
        %v3509 = vrot.slane %v3233, 2
        %v3510 = vrot.slane %v3234, 2
        %v3511 = vsel %vm2156, %v3509, %v3510
        %v3512 = vrot.slane %v3235, 2
        %v3513 = vrot.slane %v3236, 2
        %v3514 = vsel %vm2156, %v3512, %v3513
        %v3515 = vrot.slane %v3237, 2
        %v3516 = vrot.slane %v3238, 2
        %v3517 = vsel %vm2156, %v3515, %v3516
        %v3518 = vrot.slane %v3239, 2
        %v3519 = vrot.slane %v3240, 2
        %v3520 = vsel %vm2156, %v3518, %v3519
        %v3521 = vrot.slane %v3241, 2
        %v3522 = vrot.slane %v3242, 2
        %v3523 = vsel %vm2156, %v3521, %v3522
        %v3524 = vrot.slane %v3243, 2
        %v3525 = vrot.slane %v3244, 2
        %v3526 = vsel %vm2156, %v3524, %v3525
        %v3527 = vrot.slane %v3245, 2
        %v3528 = vrot.slane %v3246, 2
        %v3529 = vsel %vm2156, %v3527, %v3528
        %v3530 = vrot.slane %v3247, 2
        %v3531 = vrot.slane %v3248, 2
        %v3532 = vsel %vm2156, %v3530, %v3531
        %v3533 = vrot.slane %v3249, 2
        %v3534 = vrot.slane %v3250, 2
        %v3535 = vsel %vm2156, %v3533, %v3534
        %v3536 = vrot.slane %v3251, 2
        %v3537 = vrot.slane %v3252, 2
        %v3538 = vsel %vm2156, %v3536, %v3537
        %v3539 = vrot.slane %v3253, 2
        %v3540 = vrot.slane %v3254, 2
        %v3541 = vsel %vm2156, %v3539, %v3540
        %v3542 = vrot.slane %v3255, 2
        %v3543 = vrot.slane %v3256, 2
        %v3544 = vsel %vm2156, %v3542, %v3543
        %v3545 = vrot.slane %v3257, 2
        %v3546 = vrot.slane %v3258, 2
        %v3547 = vsel %vm2156, %v3545, %v3546
        %v3548 = vrot.slane %v3259, 2
        %v3549 = vrot.slane %v3260, 2
        %v3550 = vsel %vm2156, %v3548, %v3549
        %v3551 = vrot.slane %v3261, 2
        %v3552 = vrot.slane %v3262, 2
        %v3553 = vsel %vm2156, %v3551, %v3552
        %v3554 = vrot.slane %v3263, 2
        %v3555 = vrot.slane %v3264, 2
        %v3556 = vsel %vm2156, %v3554, %v3555
        %v3557 = vrot.slane %v3265, 2
        %v3558 = vrot.slane %v3266, 2
        %v3559 = vsel %vm2156, %v3557, %v3558
        %v3560 = vrot.slane %v3267, 2
        %v3561 = vrot.slane %v3268, 2
        %v3562 = vsel %vm2156, %v3560, %v3561
        %v3563 = vrot.slane %v3269, 2
        %v3564 = vrot.slane %v3270, 2
        %v3565 = vsel %vm2156, %v3563, %v3564
        %v3566 = vrot.slane %v3271, 2
        %v3567 = vrot.slane %v3272, 2
        %v3568 = vsel %vm2156, %v3566, %v3567
        %v3569 = vrot.slane %v3273, 2
        %v3570 = vrot.slane %v3274, 2
        %v3571 = vsel %vm2156, %v3569, %v3570
        %v3572 = vrot.slane %v3275, 2
        %v3573 = vrot.slane %v3276, 2
        %v3574 = vsel %vm2156, %v3572, %v3573
        %v3575 = vrot.slane %v3277, 2
        %v3576 = vrot.slane %v3278, 2
        %v3577 = vsel %vm2156, %v3575, %v3576
        %v3578 = vrot.slane %v3279, 2
        %v3579 = vrot.slane %v3280, 2
        %v3580 = vsel %vm2156, %v3578, %v3579
        %v3581 = vrot.slane %v3281, 2
        %v3582 = vrot.slane %v3282, 2
        %v3583 = vsel %vm2156, %v3581, %v3582
        %v3584 = vrot.slane %v3283, 2
        %v3585 = vrot.slane %v3284, 2
        %v3586 = vsel %vm2156, %v3584, %v3585
        %v3587 = vrot.slane %v3285, 2
        %v3588 = vrot.slane %v3286, 2
        %v3589 = vsel %vm2156, %v3587, %v3588
        %v3590 = vrot.slane %v3287, 2
        %v3591 = vrot.slane %v3288, 2
        %v3592 = vsel %vm2156, %v3590, %v3591
        %v3593 = vrot.slane %v3289, 2
        %v3594 = vrot.slane %v3290, 2
        %v3595 = vsel %vm2156, %v3593, %v3594
        %v3596 = vrot.slane %v3291, 2
        %v3597 = vrot.slane %v3292, 2
        %v3598 = vsel %vm2156, %v3596, %v3597
        %v3599 = vrot.slane %v3293, 2
        %v3600 = vrot.slane %v3294, 2
        %v3601 = vsel %vm2156, %v3599, %v3600
        %v3602 = vrot.slane %v3295, 2
        %v3603 = vrot.slane %v3296, 2
        %v3604 = vsel %vm2156, %v3602, %v3603
        %v3605 = vrot.slane %v3297, 2
        %v3606 = vrot.slane %v3298, 2
        %v3607 = vsel %vm2156, %v3605, %v3606
        %v3608 = vrot.slane %v3299, 2
        %v3609 = vrot.slane %v3300, 2
        %v3610 = vsel %vm2156, %v3608, %v3609
        %v3611 = vrot.slane %v3301, 2
        %v3612 = vrot.slane %v3302, 2
        %v3613 = vsel %vm2156, %v3611, %v3612
        %v3614 = vrot.slane %v3303, 2
        %v3615 = vrot.slane %v3304, 2
        %v3616 = vsel %vm2156, %v3614, %v3615
        %v3617 = vrot.slane %v3305, 2
        %v3618 = vrot.slane %v3306, 2
        %v3619 = vsel %vm2156, %v3617, %v3618
        %v3620 = vrot.slane %v3307, 2
        %v3621 = vrot.slane %v3308, 2
        %v3622 = vsel %vm2156, %v3620, %v3621
        %v3623 = vrot.slane %v3309, 2
        %v3624 = vrot.slane %v3310, 2
        %v3625 = vsel %vm2156, %v3623, %v3624
        %v3626 = vrot.slane %v3311, 2
        %v3627 = vrot.slane %v3312, 2
        %v3628 = vsel %vm2156, %v3626, %v3627
        %v3629 = vrot.slane %v3313, 2
        %v3630 = vrot.slane %v3314, 2
        %v3631 = vsel %vm2156, %v3629, %v3630
        %v3632 = vrot.slane %v3315, 2
        %v3633 = vrot.slane %v3316, 2
        %v3634 = vsel %vm2156, %v3632, %v3633
        %v3635 = vrot.slane %v3317, 2
        %v3636 = vrot.slane %v3318, 2
        %v3637 = vsel %vm2156, %v3635, %v3636
        %v3638 = vrot.slane %v3319, 2
        %v3639 = vrot.slane %v3320, 2
        %v3640 = vsel %vm2156, %v3638, %v3639
        %v3705 = vadd.f32 %v3125, %v3451
        %v3706 = vadd.f32 %v3126, %v3454
        %v3707 = vadd.f32 %v3127, %v3457
        %v3708 = vadd.f32 %v3128, %v3460
        %v3709 = vadd.f32 %v3129, %v3463
        %v3710 = vadd.f32 %v3130, %v3466
        %v3711 = vadd.f32 %v3131, %v3469
        %v3712 = vadd.f32 %v3132, %v3472
        %v3713 = vadd.f32 %v3133, %v3475
        %v3714 = vadd.f32 %v3134, %v3478
        %v3715 = vadd.f32 %v3135, %v3481
        %v3716 = vadd.f32 %v3136, %v3484
        %v3717 = vadd.f32 %v3137, %v3487
        %v3718 = vadd.f32 %v3138, %v3490
        %v3719 = vadd.f32 %v3139, %v3493
        %v3720 = vadd.f32 %v3140, %v3496
        %v3721 = vadd.f32 %v3141, %v3499
        %v3722 = vadd.f32 %v3142, %v3502
        %v3723 = vadd.f32 %v3143, %v3505
        %v3724 = vadd.f32 %v3144, %v3508
        %v3725 = vadd.f32 %v3145, %v3511
        %v3726 = vadd.f32 %v3146, %v3514
        %v3727 = vadd.f32 %v3147, %v3517
        %v3728 = vadd.f32 %v3148, %v3520
        %v3729 = vadd.f32 %v3149, %v3523
        %v3730 = vadd.f32 %v3150, %v3526
        %v3731 = vadd.f32 %v3151, %v3529
        %v3732 = vadd.f32 %v3152, %v3532
        %v3733 = vadd.f32 %v3153, %v3535
        %v3734 = vadd.f32 %v3154, %v3538
        %v3735 = vadd.f32 %v3155, %v3541
        %v3736 = vadd.f32 %v3156, %v3544
        %v3737 = vadd.f32 %v3157, %v3547
        %v3738 = vadd.f32 %v3158, %v3550
        %v3739 = vadd.f32 %v3159, %v3553
        %v3740 = vadd.f32 %v3160, %v3556
        %v3741 = vadd.f32 %v3161, %v3559
        %v3742 = vadd.f32 %v3162, %v3562
        %v3743 = vadd.f32 %v3163, %v3565
        %v3744 = vadd.f32 %v3164, %v3568
        %v3745 = vadd.f32 %v3165, %v3571
        %v3746 = vadd.f32 %v3166, %v3574
        %v3747 = vadd.f32 %v3167, %v3577
        %v3748 = vadd.f32 %v3168, %v3580
        %v3749 = vadd.f32 %v3169, %v3583
        %v3750 = vadd.f32 %v3170, %v3586
        %v3751 = vadd.f32 %v3171, %v3589
        %v3752 = vadd.f32 %v3172, %v3592
        %v3753 = vadd.f32 %v3173, %v3595
        %v3754 = vadd.f32 %v3174, %v3598
        %v3755 = vadd.f32 %v3175, %v3601
        %v3756 = vadd.f32 %v3176, %v3604
        %v3757 = vadd.f32 %v3177, %v3607
        %v3758 = vadd.f32 %v3178, %v3610
        %v3759 = vadd.f32 %v3179, %v3613
        %v3760 = vadd.f32 %v3180, %v3616
        %v3761 = vadd.f32 %v3181, %v3619
        %v3762 = vadd.f32 %v3182, %v3622
        %v3763 = vadd.f32 %v3183, %v3625
        %v3764 = vadd.f32 %v3184, %v3628
        %v3765 = vadd.f32 %v3185, %v3631
        %v3766 = vadd.f32 %v3186, %v3634
        %v3767 = vadd.f32 %v3187, %v3637
        %v3768 = vadd.f32 %v3188, %v3640
        %v3769 = vlaneseq
        %v3770 = vshrl.u32 %v3769, 7
        %v3771 = vsub.s32 6, %v3770
        %v3772 = vrot.slane %v1181, %v3771
        %v3773 = vmul.f32 %v329, %v3772
        %v3774 = vmul.f32 %v340, %v3772
        %v3775 = vmul.f32 %v351, %v3772
        %v3776 = vmul.f32 %v362, %v3772
        %v3777 = vmul.f32 %v373, %v3772
        %v3778 = vmul.f32 %v384, %v3772
        %v3779 = vmul.f32 %v395, %v3772
        %v3780 = vmul.f32 %v406, %v3772
        %v3781 = vmul.f32 %v439, %v3772
        %v3782 = vmul.f32 %v450, %v3772
        %v3783 = vmul.f32 %v461, %v3772
        %v3784 = vmul.f32 %v472, %v3772
        %v3785 = vmul.f32 %v483, %v3772
        %v3786 = vmul.f32 %v494, %v3772
        %v3787 = vmul.f32 %v505, %v3772
        %v3788 = vmul.f32 %v516, %v3772
        %v3789 = vmul.f32 %v549, %v3772
        %v3790 = vmul.f32 %v560, %v3772
        %v3791 = vmul.f32 %v571, %v3772
        %v3792 = vmul.f32 %v582, %v3772
        %v3793 = vmul.f32 %v593, %v3772
        %v3794 = vmul.f32 %v604, %v3772
        %v3795 = vmul.f32 %v615, %v3772
        %v3796 = vmul.f32 %v626, %v3772
        %v3797 = vmul.f32 %v659, %v3772
        %v3798 = vmul.f32 %v670, %v3772
        %v3799 = vmul.f32 %v681, %v3772
        %v3800 = vmul.f32 %v692, %v3772
        %v3801 = vmul.f32 %v703, %v3772
        %v3802 = vmul.f32 %v714, %v3772
        %v3803 = vmul.f32 %v725, %v3772
        %v3804 = vmul.f32 %v736, %v3772
        %v3805 = vmul.f32 %v769, %v3772
        %v3806 = vmul.f32 %v780, %v3772
        %v3807 = vmul.f32 %v791, %v3772
        %v3808 = vmul.f32 %v802, %v3772
        %v3809 = vmul.f32 %v813, %v3772
        %v3810 = vmul.f32 %v824, %v3772
        %v3811 = vmul.f32 %v835, %v3772
        %v3812 = vmul.f32 %v846, %v3772
        %v3813 = vmul.f32 %v879, %v3772
        %v3814 = vmul.f32 %v890, %v3772
        %v3815 = vmul.f32 %v901, %v3772
        %v3816 = vmul.f32 %v912, %v3772
        %v3817 = vmul.f32 %v923, %v3772
        %v3818 = vmul.f32 %v934, %v3772
        %v3819 = vmul.f32 %v945, %v3772
        %v3820 = vmul.f32 %v956, %v3772
        %v3821 = vmul.f32 %v989, %v3772
        %v3822 = vmul.f32 %v1000, %v3772
        %v3823 = vmul.f32 %v1011, %v3772
        %v3824 = vmul.f32 %v1022, %v3772
        %v3825 = vmul.f32 %v1033, %v3772
        %v3826 = vmul.f32 %v1044, %v3772
        %v3827 = vmul.f32 %v1055, %v3772
        %v3828 = vmul.f32 %v1066, %v3772
        %v3829 = vmul.f32 %v1099, %v3772
        %v3830 = vmul.f32 %v1110, %v3772
        %v3831 = vmul.f32 %v1121, %v3772
        %v3832 = vmul.f32 %v1132, %v3772
        %v3833 = vmul.f32 %v1143, %v3772
        %v3834 = vmul.f32 %v1154, %v3772
        %v3835 = vmul.f32 %v1165, %v3772
        %v3836 = vmul.f32 %v1176, %v3772
        %v3837 = vadd.f32 %v3705, %v3773
        %v3838 = vadd.f32 %v3706, %v3774
        %v3839 = vadd.f32 %v3707, %v3775
        %v3840 = vadd.f32 %v3708, %v3776
        %v3841 = vadd.f32 %v3709, %v3777
        %v3842 = vadd.f32 %v3710, %v3778
        %v3843 = vadd.f32 %v3711, %v3779
        %v3844 = vadd.f32 %v3712, %v3780
        %v3845 = vadd.f32 %v3713, %v3781
        %v3846 = vadd.f32 %v3714, %v3782
        %v3847 = vadd.f32 %v3715, %v3783
        %v3848 = vadd.f32 %v3716, %v3784
        %v3849 = vadd.f32 %v3717, %v3785
        %v3850 = vadd.f32 %v3718, %v3786
        %v3851 = vadd.f32 %v3719, %v3787
        %v3852 = vadd.f32 %v3720, %v3788
        %v3853 = vadd.f32 %v3721, %v3789
        %v3854 = vadd.f32 %v3722, %v3790
        %v3855 = vadd.f32 %v3723, %v3791
        %v3856 = vadd.f32 %v3724, %v3792
        %v3857 = vadd.f32 %v3725, %v3793
        %v3858 = vadd.f32 %v3726, %v3794
        %v3859 = vadd.f32 %v3727, %v3795
        %v3860 = vadd.f32 %v3728, %v3796
        %v3861 = vadd.f32 %v3729, %v3797
        %v3862 = vadd.f32 %v3730, %v3798
        %v3863 = vadd.f32 %v3731, %v3799
        %v3864 = vadd.f32 %v3732, %v3800
        %v3865 = vadd.f32 %v3733, %v3801
        %v3866 = vadd.f32 %v3734, %v3802
        %v3867 = vadd.f32 %v3735, %v3803
        %v3868 = vadd.f32 %v3736, %v3804
        %v3869 = vadd.f32 %v3737, %v3805
        %v3870 = vadd.f32 %v3738, %v3806
        %v3871 = vadd.f32 %v3739, %v3807
        %v3872 = vadd.f32 %v3740, %v3808
        %v3873 = vadd.f32 %v3741, %v3809
        %v3874 = vadd.f32 %v3742, %v3810
        %v3875 = vadd.f32 %v3743, %v3811
        %v3876 = vadd.f32 %v3744, %v3812
        %v3877 = vadd.f32 %v3745, %v3813
        %v3878 = vadd.f32 %v3746, %v3814
        %v3879 = vadd.f32 %v3747, %v3815
        %v3880 = vadd.f32 %v3748, %v3816
        %v3881 = vadd.f32 %v3749, %v3817
        %v3882 = vadd.f32 %v3750, %v3818
        %v3883 = vadd.f32 %v3751, %v3819
        %v3884 = vadd.f32 %v3752, %v3820
        %v3885 = vadd.f32 %v3753, %v3821
        %v3886 = vadd.f32 %v3754, %v3822
        %v3887 = vadd.f32 %v3755, %v3823
        %v3888 = vadd.f32 %v3756, %v3824
        %v3889 = vadd.f32 %v3757, %v3825
        %v3890 = vadd.f32 %v3758, %v3826
        %v3891 = vadd.f32 %v3759, %v3827
        %v3892 = vadd.f32 %v3760, %v3828
        %v3893 = vadd.f32 %v3761, %v3829
        %v3894 = vadd.f32 %v3762, %v3830
        %v3895 = vadd.f32 %v3763, %v3831
        %v3896 = vadd.f32 %v3764, %v3832
        %v3897 = vadd.f32 %v3765, %v3833
        %v3898 = vadd.f32 %v3766, %v3834
        %v3899 = vadd.f32 %v3767, %v3835
        %v3900 = vadd.f32 %v3768, %v3836
        %v3901 = vlaneseq
        %v3902 = vshrl.u32 %v3901, 7
        %v3903 = vsub.s32 7, %v3902
        %v3904 = vrot.slane %v1181, %v3903
        %v3905 = vmul.f32 %v329, %v3904
        %v3906 = vmul.f32 %v333, %v3904
        %v3907 = vmul.f32 %v340, %v3904
        %v3908 = vmul.f32 %v344, %v3904
        %v3909 = vmul.f32 %v351, %v3904
        %v3910 = vmul.f32 %v355, %v3904
        %v3911 = vmul.f32 %v362, %v3904
        %v3912 = vmul.f32 %v366, %v3904
        %v3913 = vmul.f32 %v373, %v3904
        %v3914 = vmul.f32 %v377, %v3904
        %v3915 = vmul.f32 %v384, %v3904
        %v3916 = vmul.f32 %v388, %v3904
        %v3917 = vmul.f32 %v395, %v3904
        %v3918 = vmul.f32 %v399, %v3904
        %v3919 = vmul.f32 %v406, %v3904
        %v3920 = vmul.f32 %v410, %v3904
        %v3921 = vmul.f32 %v439, %v3904
        %v3922 = vmul.f32 %v443, %v3904
        %v3923 = vmul.f32 %v450, %v3904
        %v3924 = vmul.f32 %v454, %v3904
        %v3925 = vmul.f32 %v461, %v3904
        %v3926 = vmul.f32 %v465, %v3904
        %v3927 = vmul.f32 %v472, %v3904
        %v3928 = vmul.f32 %v476, %v3904
        %v3929 = vmul.f32 %v483, %v3904
        %v3930 = vmul.f32 %v487, %v3904
        %v3931 = vmul.f32 %v494, %v3904
        %v3932 = vmul.f32 %v498, %v3904
        %v3933 = vmul.f32 %v505, %v3904
        %v3934 = vmul.f32 %v509, %v3904
        %v3935 = vmul.f32 %v516, %v3904
        %v3936 = vmul.f32 %v520, %v3904
        %v3937 = vmul.f32 %v549, %v3904
        %v3938 = vmul.f32 %v553, %v3904
        %v3939 = vmul.f32 %v560, %v3904
        %v3940 = vmul.f32 %v564, %v3904
        %v3941 = vmul.f32 %v571, %v3904
        %v3942 = vmul.f32 %v575, %v3904
        %v3943 = vmul.f32 %v582, %v3904
        %v3944 = vmul.f32 %v586, %v3904
        %v3945 = vmul.f32 %v593, %v3904
        %v3946 = vmul.f32 %v597, %v3904
        %v3947 = vmul.f32 %v604, %v3904
        %v3948 = vmul.f32 %v608, %v3904
        %v3949 = vmul.f32 %v615, %v3904
        %v3950 = vmul.f32 %v619, %v3904
        %v3951 = vmul.f32 %v626, %v3904
        %v3952 = vmul.f32 %v630, %v3904
        %v3953 = vmul.f32 %v659, %v3904
        %v3954 = vmul.f32 %v663, %v3904
        %v3955 = vmul.f32 %v670, %v3904
        %v3956 = vmul.f32 %v674, %v3904
        %v3957 = vmul.f32 %v681, %v3904
        %v3958 = vmul.f32 %v685, %v3904
        %v3959 = vmul.f32 %v692, %v3904
        %v3960 = vmul.f32 %v696, %v3904
        %v3961 = vmul.f32 %v703, %v3904
        %v3962 = vmul.f32 %v707, %v3904
        %v3963 = vmul.f32 %v714, %v3904
        %v3964 = vmul.f32 %v718, %v3904
        %v3965 = vmul.f32 %v725, %v3904
        %v3966 = vmul.f32 %v729, %v3904
        %v3967 = vmul.f32 %v736, %v3904
        %v3968 = vmul.f32 %v740, %v3904
        %v3969 = vmul.f32 %v769, %v3904
        %v3970 = vmul.f32 %v773, %v3904
        %v3971 = vmul.f32 %v780, %v3904
        %v3972 = vmul.f32 %v784, %v3904
        %v3973 = vmul.f32 %v791, %v3904
        %v3974 = vmul.f32 %v795, %v3904
        %v3975 = vmul.f32 %v802, %v3904
        %v3976 = vmul.f32 %v806, %v3904
        %v3977 = vmul.f32 %v813, %v3904
        %v3978 = vmul.f32 %v817, %v3904
        %v3979 = vmul.f32 %v824, %v3904
        %v3980 = vmul.f32 %v828, %v3904
        %v3981 = vmul.f32 %v835, %v3904
        %v3982 = vmul.f32 %v839, %v3904
        %v3983 = vmul.f32 %v846, %v3904
        %v3984 = vmul.f32 %v850, %v3904
        %v3985 = vmul.f32 %v879, %v3904
        %v3986 = vmul.f32 %v883, %v3904
        %v3987 = vmul.f32 %v890, %v3904
        %v3988 = vmul.f32 %v894, %v3904
        %v3989 = vmul.f32 %v901, %v3904
        %v3990 = vmul.f32 %v905, %v3904
        %v3991 = vmul.f32 %v912, %v3904
        %v3992 = vmul.f32 %v916, %v3904
        %v3993 = vmul.f32 %v923, %v3904
        %v3994 = vmul.f32 %v927, %v3904
        %v3995 = vmul.f32 %v934, %v3904
        %v3996 = vmul.f32 %v938, %v3904
        %v3997 = vmul.f32 %v945, %v3904
        %v3998 = vmul.f32 %v949, %v3904
        %v3999 = vmul.f32 %v956, %v3904
        %v4000 = vmul.f32 %v960, %v3904
        %v4001 = vmul.f32 %v989, %v3904
        %v4002 = vmul.f32 %v993, %v3904
        %v4003 = vmul.f32 %v1000, %v3904
        %v4004 = vmul.f32 %v1004, %v3904
        %v4005 = vmul.f32 %v1011, %v3904
        %v4006 = vmul.f32 %v1015, %v3904
        %v4007 = vmul.f32 %v1022, %v3904
        %v4008 = vmul.f32 %v1026, %v3904
        %v4009 = vmul.f32 %v1033, %v3904
        %v4010 = vmul.f32 %v1037, %v3904
        %v4011 = vmul.f32 %v1044, %v3904
        %v4012 = vmul.f32 %v1048, %v3904
        %v4013 = vmul.f32 %v1055, %v3904
        %v4014 = vmul.f32 %v1059, %v3904
        %v4015 = vmul.f32 %v1066, %v3904
        %v4016 = vmul.f32 %v1070, %v3904
        %v4017 = vmul.f32 %v1099, %v3904
        %v4018 = vmul.f32 %v1103, %v3904
        %v4019 = vmul.f32 %v1110, %v3904
        %v4020 = vmul.f32 %v1114, %v3904
        %v4021 = vmul.f32 %v1121, %v3904
        %v4022 = vmul.f32 %v1125, %v3904
        %v4023 = vmul.f32 %v1132, %v3904
        %v4024 = vmul.f32 %v1136, %v3904
        %v4025 = vmul.f32 %v1143, %v3904
        %v4026 = vmul.f32 %v1147, %v3904
        %v4027 = vmul.f32 %v1154, %v3904
        %v4028 = vmul.f32 %v1158, %v3904
        %v4029 = vmul.f32 %v1165, %v3904
        %v4030 = vmul.f32 %v1169, %v3904
        %v4031 = vmul.f32 %v1176, %v3904
        %v4032 = vmul.f32 %v1180, %v3904
        %v4161 = vrot.slane %v3905, 1
        %v4162 = vrot.slane %v3906, 1
        %v4163 = vsel %vm1575, %v4161, %v4162
        %v4164 = vrot.slane %v3907, 1
        %v4165 = vrot.slane %v3908, 1
        %v4166 = vsel %vm1575, %v4164, %v4165
        %v4167 = vrot.slane %v3909, 1
        %v4168 = vrot.slane %v3910, 1
        %v4169 = vsel %vm1575, %v4167, %v4168
        %v4170 = vrot.slane %v3911, 1
        %v4171 = vrot.slane %v3912, 1
        %v4172 = vsel %vm1575, %v4170, %v4171
        %v4173 = vrot.slane %v3913, 1
        %v4174 = vrot.slane %v3914, 1
        %v4175 = vsel %vm1575, %v4173, %v4174
        %v4176 = vrot.slane %v3915, 1
        %v4177 = vrot.slane %v3916, 1
        %v4178 = vsel %vm1575, %v4176, %v4177
        %v4179 = vrot.slane %v3917, 1
        %v4180 = vrot.slane %v3918, 1
        %v4181 = vsel %vm1575, %v4179, %v4180
        %v4182 = vrot.slane %v3919, 1
        %v4183 = vrot.slane %v3920, 1
        %v4184 = vsel %vm1575, %v4182, %v4183
        %v4185 = vrot.slane %v3921, 1
        %v4186 = vrot.slane %v3922, 1
        %v4187 = vsel %vm1575, %v4185, %v4186
        %v4188 = vrot.slane %v3923, 1
        %v4189 = vrot.slane %v3924, 1
        %v4190 = vsel %vm1575, %v4188, %v4189
        %v4191 = vrot.slane %v3925, 1
        %v4192 = vrot.slane %v3926, 1
        %v4193 = vsel %vm1575, %v4191, %v4192
        %v4194 = vrot.slane %v3927, 1
        %v4195 = vrot.slane %v3928, 1
        %v4196 = vsel %vm1575, %v4194, %v4195
        %v4197 = vrot.slane %v3929, 1
        %v4198 = vrot.slane %v3930, 1
        %v4199 = vsel %vm1575, %v4197, %v4198
        %v4200 = vrot.slane %v3931, 1
        %v4201 = vrot.slane %v3932, 1
        %v4202 = vsel %vm1575, %v4200, %v4201
        %v4203 = vrot.slane %v3933, 1
        %v4204 = vrot.slane %v3934, 1
        %v4205 = vsel %vm1575, %v4203, %v4204
        %v4206 = vrot.slane %v3935, 1
        %v4207 = vrot.slane %v3936, 1
        %v4208 = vsel %vm1575, %v4206, %v4207
        %v4209 = vrot.slane %v3937, 1
        %v4210 = vrot.slane %v3938, 1
        %v4211 = vsel %vm1575, %v4209, %v4210
        %v4212 = vrot.slane %v3939, 1
        %v4213 = vrot.slane %v3940, 1
        %v4214 = vsel %vm1575, %v4212, %v4213
        %v4215 = vrot.slane %v3941, 1
        %v4216 = vrot.slane %v3942, 1
        %v4217 = vsel %vm1575, %v4215, %v4216
        %v4218 = vrot.slane %v3943, 1
        %v4219 = vrot.slane %v3944, 1
        %v4220 = vsel %vm1575, %v4218, %v4219
        %v4221 = vrot.slane %v3945, 1
        %v4222 = vrot.slane %v3946, 1
        %v4223 = vsel %vm1575, %v4221, %v4222
        %v4224 = vrot.slane %v3947, 1
        %v4225 = vrot.slane %v3948, 1
        %v4226 = vsel %vm1575, %v4224, %v4225
        %v4227 = vrot.slane %v3949, 1
        %v4228 = vrot.slane %v3950, 1
        %v4229 = vsel %vm1575, %v4227, %v4228
        %v4230 = vrot.slane %v3951, 1
        %v4231 = vrot.slane %v3952, 1
        %v4232 = vsel %vm1575, %v4230, %v4231
        %v4233 = vrot.slane %v3953, 1
        %v4234 = vrot.slane %v3954, 1
        %v4235 = vsel %vm1575, %v4233, %v4234
        %v4236 = vrot.slane %v3955, 1
        %v4237 = vrot.slane %v3956, 1
        %v4238 = vsel %vm1575, %v4236, %v4237
        %v4239 = vrot.slane %v3957, 1
        %v4240 = vrot.slane %v3958, 1
        %v4241 = vsel %vm1575, %v4239, %v4240
        %v4242 = vrot.slane %v3959, 1
        %v4243 = vrot.slane %v3960, 1
        %v4244 = vsel %vm1575, %v4242, %v4243
        %v4245 = vrot.slane %v3961, 1
        %v4246 = vrot.slane %v3962, 1
        %v4247 = vsel %vm1575, %v4245, %v4246
        %v4248 = vrot.slane %v3963, 1
        %v4249 = vrot.slane %v3964, 1
        %v4250 = vsel %vm1575, %v4248, %v4249
        %v4251 = vrot.slane %v3965, 1
        %v4252 = vrot.slane %v3966, 1
        %v4253 = vsel %vm1575, %v4251, %v4252
        %v4254 = vrot.slane %v3967, 1
        %v4255 = vrot.slane %v3968, 1
        %v4256 = vsel %vm1575, %v4254, %v4255
        %v4257 = vrot.slane %v3969, 1
        %v4258 = vrot.slane %v3970, 1
        %v4259 = vsel %vm1575, %v4257, %v4258
        %v4260 = vrot.slane %v3971, 1
        %v4261 = vrot.slane %v3972, 1
        %v4262 = vsel %vm1575, %v4260, %v4261
        %v4263 = vrot.slane %v3973, 1
        %v4264 = vrot.slane %v3974, 1
        %v4265 = vsel %vm1575, %v4263, %v4264
        %v4266 = vrot.slane %v3975, 1
        %v4267 = vrot.slane %v3976, 1
        %v4268 = vsel %vm1575, %v4266, %v4267
        %v4269 = vrot.slane %v3977, 1
        %v4270 = vrot.slane %v3978, 1
        %v4271 = vsel %vm1575, %v4269, %v4270
        %v4272 = vrot.slane %v3979, 1
        %v4273 = vrot.slane %v3980, 1
        %v4274 = vsel %vm1575, %v4272, %v4273
        %v4275 = vrot.slane %v3981, 1
        %v4276 = vrot.slane %v3982, 1
        %v4277 = vsel %vm1575, %v4275, %v4276
        %v4278 = vrot.slane %v3983, 1
        %v4279 = vrot.slane %v3984, 1
        %v4280 = vsel %vm1575, %v4278, %v4279
        %v4281 = vrot.slane %v3985, 1
        %v4282 = vrot.slane %v3986, 1
        %v4283 = vsel %vm1575, %v4281, %v4282
        %v4284 = vrot.slane %v3987, 1
        %v4285 = vrot.slane %v3988, 1
        %v4286 = vsel %vm1575, %v4284, %v4285
        %v4287 = vrot.slane %v3989, 1
        %v4288 = vrot.slane %v3990, 1
        %v4289 = vsel %vm1575, %v4287, %v4288
        %v4290 = vrot.slane %v3991, 1
        %v4291 = vrot.slane %v3992, 1
        %v4292 = vsel %vm1575, %v4290, %v4291
        %v4293 = vrot.slane %v3993, 1
        %v4294 = vrot.slane %v3994, 1
        %v4295 = vsel %vm1575, %v4293, %v4294
        %v4296 = vrot.slane %v3995, 1
        %v4297 = vrot.slane %v3996, 1
        %v4298 = vsel %vm1575, %v4296, %v4297
        %v4299 = vrot.slane %v3997, 1
        %v4300 = vrot.slane %v3998, 1
        %v4301 = vsel %vm1575, %v4299, %v4300
        %v4302 = vrot.slane %v3999, 1
        %v4303 = vrot.slane %v4000, 1
        %v4304 = vsel %vm1575, %v4302, %v4303
        %v4305 = vrot.slane %v4001, 1
        %v4306 = vrot.slane %v4002, 1
        %v4307 = vsel %vm1575, %v4305, %v4306
        %v4308 = vrot.slane %v4003, 1
        %v4309 = vrot.slane %v4004, 1
        %v4310 = vsel %vm1575, %v4308, %v4309
        %v4311 = vrot.slane %v4005, 1
        %v4312 = vrot.slane %v4006, 1
        %v4313 = vsel %vm1575, %v4311, %v4312
        %v4314 = vrot.slane %v4007, 1
        %v4315 = vrot.slane %v4008, 1
        %v4316 = vsel %vm1575, %v4314, %v4315
        %v4317 = vrot.slane %v4009, 1
        %v4318 = vrot.slane %v4010, 1
        %v4319 = vsel %vm1575, %v4317, %v4318
        %v4320 = vrot.slane %v4011, 1
        %v4321 = vrot.slane %v4012, 1
        %v4322 = vsel %vm1575, %v4320, %v4321
        %v4323 = vrot.slane %v4013, 1
        %v4324 = vrot.slane %v4014, 1
        %v4325 = vsel %vm1575, %v4323, %v4324
        %v4326 = vrot.slane %v4015, 1
        %v4327 = vrot.slane %v4016, 1
        %v4328 = vsel %vm1575, %v4326, %v4327
        %v4329 = vrot.slane %v4017, 1
        %v4330 = vrot.slane %v4018, 1
        %v4331 = vsel %vm1575, %v4329, %v4330
        %v4332 = vrot.slane %v4019, 1
        %v4333 = vrot.slane %v4020, 1
        %v4334 = vsel %vm1575, %v4332, %v4333
        %v4335 = vrot.slane %v4021, 1
        %v4336 = vrot.slane %v4022, 1
        %v4337 = vsel %vm1575, %v4335, %v4336
        %v4338 = vrot.slane %v4023, 1
        %v4339 = vrot.slane %v4024, 1
        %v4340 = vsel %vm1575, %v4338, %v4339
        %v4341 = vrot.slane %v4025, 1
        %v4342 = vrot.slane %v4026, 1
        %v4343 = vsel %vm1575, %v4341, %v4342
        %v4344 = vrot.slane %v4027, 1
        %v4345 = vrot.slane %v4028, 1
        %v4346 = vsel %vm1575, %v4344, %v4345
        %v4347 = vrot.slane %v4029, 1
        %v4348 = vrot.slane %v4030, 1
        %v4349 = vsel %vm1575, %v4347, %v4348
        %v4350 = vrot.slane %v4031, 1
        %v4351 = vrot.slane %v4032, 1
        %v4352 = vsel %vm1575, %v4350, %v4351
        %v4417 = vadd.f32 %v3837, %v4163
        %v4418 = vadd.f32 %v3838, %v4166
        %v4419 = vadd.f32 %v3839, %v4169
        %v4420 = vadd.f32 %v3840, %v4172
        %v4421 = vadd.f32 %v3841, %v4175
        %v4422 = vadd.f32 %v3842, %v4178
        %v4423 = vadd.f32 %v3843, %v4181
        %v4424 = vadd.f32 %v3844, %v4184
        %v4425 = vadd.f32 %v3845, %v4187
        %v4426 = vadd.f32 %v3846, %v4190
        %v4427 = vadd.f32 %v3847, %v4193
        %v4428 = vadd.f32 %v3848, %v4196
        %v4429 = vadd.f32 %v3849, %v4199
        %v4430 = vadd.f32 %v3850, %v4202
        %v4431 = vadd.f32 %v3851, %v4205
        %v4432 = vadd.f32 %v3852, %v4208
        %v4433 = vadd.f32 %v3853, %v4211
        %v4434 = vadd.f32 %v3854, %v4214
        %v4435 = vadd.f32 %v3855, %v4217
        %v4436 = vadd.f32 %v3856, %v4220
        %v4437 = vadd.f32 %v3857, %v4223
        %v4438 = vadd.f32 %v3858, %v4226
        %v4439 = vadd.f32 %v3859, %v4229
        %v4440 = vadd.f32 %v3860, %v4232
        %v4441 = vadd.f32 %v3861, %v4235
        %v4442 = vadd.f32 %v3862, %v4238
        %v4443 = vadd.f32 %v3863, %v4241
        %v4444 = vadd.f32 %v3864, %v4244
        %v4445 = vadd.f32 %v3865, %v4247
        %v4446 = vadd.f32 %v3866, %v4250
        %v4447 = vadd.f32 %v3867, %v4253
        %v4448 = vadd.f32 %v3868, %v4256
        %v4449 = vadd.f32 %v3869, %v4259
        %v4450 = vadd.f32 %v3870, %v4262
        %v4451 = vadd.f32 %v3871, %v4265
        %v4452 = vadd.f32 %v3872, %v4268
        %v4453 = vadd.f32 %v3873, %v4271
        %v4454 = vadd.f32 %v3874, %v4274
        %v4455 = vadd.f32 %v3875, %v4277
        %v4456 = vadd.f32 %v3876, %v4280
        %v4457 = vadd.f32 %v3877, %v4283
        %v4458 = vadd.f32 %v3878, %v4286
        %v4459 = vadd.f32 %v3879, %v4289
        %v4460 = vadd.f32 %v3880, %v4292
        %v4461 = vadd.f32 %v3881, %v4295
        %v4462 = vadd.f32 %v3882, %v4298
        %v4463 = vadd.f32 %v3883, %v4301
        %v4464 = vadd.f32 %v3884, %v4304
        %v4465 = vadd.f32 %v3885, %v4307
        %v4466 = vadd.f32 %v3886, %v4310
        %v4467 = vadd.f32 %v3887, %v4313
        %v4468 = vadd.f32 %v3888, %v4316
        %v4469 = vadd.f32 %v3889, %v4319
        %v4470 = vadd.f32 %v3890, %v4322
        %v4471 = vadd.f32 %v3891, %v4325
        %v4472 = vadd.f32 %v3892, %v4328
        %v4473 = vadd.f32 %v3893, %v4331
        %v4474 = vadd.f32 %v3894, %v4334
        %v4475 = vadd.f32 %v3895, %v4337
        %v4476 = vadd.f32 %v3896, %v4340
        %v4477 = vadd.f32 %v3897, %v4343
        %v4478 = vadd.f32 %v3898, %v4346
        %v4479 = vadd.f32 %v3899, %v4349
        %v4480 = vadd.f32 %v3900, %v4352
        %v4481 = vlaneseq
        %v4482 = vshrl.u32 %v4481, 7
        %v4483 = vsub.s32 0, %v4482
        %v4484 = vrot.slane %v1182, %v4483
        %v4485 = vmul.f32 %v329, %v4484
        %v4486 = vmul.f32 %v333, %v4484
        %v4487 = vmul.f32 %v340, %v4484
        %v4488 = vmul.f32 %v344, %v4484
        %v4489 = vmul.f32 %v351, %v4484
        %v4490 = vmul.f32 %v355, %v4484
        %v4491 = vmul.f32 %v362, %v4484
        %v4492 = vmul.f32 %v366, %v4484
        %v4493 = vmul.f32 %v373, %v4484
        %v4494 = vmul.f32 %v377, %v4484
        %v4495 = vmul.f32 %v384, %v4484
        %v4496 = vmul.f32 %v388, %v4484
        %v4497 = vmul.f32 %v395, %v4484
        %v4498 = vmul.f32 %v399, %v4484
        %v4499 = vmul.f32 %v406, %v4484
        %v4500 = vmul.f32 %v410, %v4484
        %v4501 = vmul.f32 %v439, %v4484
        %v4502 = vmul.f32 %v443, %v4484
        %v4503 = vmul.f32 %v450, %v4484
        %v4504 = vmul.f32 %v454, %v4484
        %v4505 = vmul.f32 %v461, %v4484
        %v4506 = vmul.f32 %v465, %v4484
        %v4507 = vmul.f32 %v472, %v4484
        %v4508 = vmul.f32 %v476, %v4484
        %v4509 = vmul.f32 %v483, %v4484
        %v4510 = vmul.f32 %v487, %v4484
        %v4511 = vmul.f32 %v494, %v4484
        %v4512 = vmul.f32 %v498, %v4484
        %v4513 = vmul.f32 %v505, %v4484
        %v4514 = vmul.f32 %v509, %v4484
        %v4515 = vmul.f32 %v516, %v4484
        %v4516 = vmul.f32 %v520, %v4484
        %v4517 = vmul.f32 %v549, %v4484
        %v4518 = vmul.f32 %v553, %v4484
        %v4519 = vmul.f32 %v560, %v4484
        %v4520 = vmul.f32 %v564, %v4484
        %v4521 = vmul.f32 %v571, %v4484
        %v4522 = vmul.f32 %v575, %v4484
        %v4523 = vmul.f32 %v582, %v4484
        %v4524 = vmul.f32 %v586, %v4484
        %v4525 = vmul.f32 %v593, %v4484
        %v4526 = vmul.f32 %v597, %v4484
        %v4527 = vmul.f32 %v604, %v4484
        %v4528 = vmul.f32 %v608, %v4484
        %v4529 = vmul.f32 %v615, %v4484
        %v4530 = vmul.f32 %v619, %v4484
        %v4531 = vmul.f32 %v626, %v4484
        %v4532 = vmul.f32 %v630, %v4484
        %v4533 = vmul.f32 %v659, %v4484
        %v4534 = vmul.f32 %v663, %v4484
        %v4535 = vmul.f32 %v670, %v4484
        %v4536 = vmul.f32 %v674, %v4484
        %v4537 = vmul.f32 %v681, %v4484
        %v4538 = vmul.f32 %v685, %v4484
        %v4539 = vmul.f32 %v692, %v4484
        %v4540 = vmul.f32 %v696, %v4484
        %v4541 = vmul.f32 %v703, %v4484
        %v4542 = vmul.f32 %v707, %v4484
        %v4543 = vmul.f32 %v714, %v4484
        %v4544 = vmul.f32 %v718, %v4484
        %v4545 = vmul.f32 %v725, %v4484
        %v4546 = vmul.f32 %v729, %v4484
        %v4547 = vmul.f32 %v736, %v4484
        %v4548 = vmul.f32 %v740, %v4484
        %v4549 = vmul.f32 %v769, %v4484
        %v4550 = vmul.f32 %v773, %v4484
        %v4551 = vmul.f32 %v780, %v4484
        %v4552 = vmul.f32 %v784, %v4484
        %v4553 = vmul.f32 %v791, %v4484
        %v4554 = vmul.f32 %v795, %v4484
        %v4555 = vmul.f32 %v802, %v4484
        %v4556 = vmul.f32 %v806, %v4484
        %v4557 = vmul.f32 %v813, %v4484
        %v4558 = vmul.f32 %v817, %v4484
        %v4559 = vmul.f32 %v824, %v4484
        %v4560 = vmul.f32 %v828, %v4484
        %v4561 = vmul.f32 %v835, %v4484
        %v4562 = vmul.f32 %v839, %v4484
        %v4563 = vmul.f32 %v846, %v4484
        %v4564 = vmul.f32 %v850, %v4484
        %v4565 = vmul.f32 %v879, %v4484
        %v4566 = vmul.f32 %v883, %v4484
        %v4567 = vmul.f32 %v890, %v4484
        %v4568 = vmul.f32 %v894, %v4484
        %v4569 = vmul.f32 %v901, %v4484
        %v4570 = vmul.f32 %v905, %v4484
        %v4571 = vmul.f32 %v912, %v4484
        %v4572 = vmul.f32 %v916, %v4484
        %v4573 = vmul.f32 %v923, %v4484
        %v4574 = vmul.f32 %v927, %v4484
        %v4575 = vmul.f32 %v934, %v4484
        %v4576 = vmul.f32 %v938, %v4484
        %v4577 = vmul.f32 %v945, %v4484
        %v4578 = vmul.f32 %v949, %v4484
        %v4579 = vmul.f32 %v956, %v4484
        %v4580 = vmul.f32 %v960, %v4484
        %v4581 = vmul.f32 %v989, %v4484
        %v4582 = vmul.f32 %v993, %v4484
        %v4583 = vmul.f32 %v1000, %v4484
        %v4584 = vmul.f32 %v1004, %v4484
        %v4585 = vmul.f32 %v1011, %v4484
        %v4586 = vmul.f32 %v1015, %v4484
        %v4587 = vmul.f32 %v1022, %v4484
        %v4588 = vmul.f32 %v1026, %v4484
        %v4589 = vmul.f32 %v1033, %v4484
        %v4590 = vmul.f32 %v1037, %v4484
        %v4591 = vmul.f32 %v1044, %v4484
        %v4592 = vmul.f32 %v1048, %v4484
        %v4593 = vmul.f32 %v1055, %v4484
        %v4594 = vmul.f32 %v1059, %v4484
        %v4595 = vmul.f32 %v1066, %v4484
        %v4596 = vmul.f32 %v1070, %v4484
        %v4597 = vmul.f32 %v1099, %v4484
        %v4598 = vmul.f32 %v1103, %v4484
        %v4599 = vmul.f32 %v1110, %v4484
        %v4600 = vmul.f32 %v1114, %v4484
        %v4601 = vmul.f32 %v1121, %v4484
        %v4602 = vmul.f32 %v1125, %v4484
        %v4603 = vmul.f32 %v1132, %v4484
        %v4604 = vmul.f32 %v1136, %v4484
        %v4605 = vmul.f32 %v1143, %v4484
        %v4606 = vmul.f32 %v1147, %v4484
        %v4607 = vmul.f32 %v1154, %v4484
        %v4608 = vmul.f32 %v1158, %v4484
        %v4609 = vmul.f32 %v1165, %v4484
        %v4610 = vmul.f32 %v1169, %v4484
        %v4611 = vmul.f32 %v1176, %v4484
        %v4612 = vmul.f32 %v1180, %v4484
        %v4741 = vrot.slane %v4485, 2
        %v4742 = vrot.slane %v4486, 2
        %v4743 = vsel %vm2156, %v4741, %v4742
        %v4744 = vrot.slane %v4487, 2
        %v4745 = vrot.slane %v4488, 2
        %v4746 = vsel %vm2156, %v4744, %v4745
        %v4747 = vrot.slane %v4489, 2
        %v4748 = vrot.slane %v4490, 2
        %v4749 = vsel %vm2156, %v4747, %v4748
        %v4750 = vrot.slane %v4491, 2
        %v4751 = vrot.slane %v4492, 2
        %v4752 = vsel %vm2156, %v4750, %v4751
        %v4753 = vrot.slane %v4493, 2
        %v4754 = vrot.slane %v4494, 2
        %v4755 = vsel %vm2156, %v4753, %v4754
        %v4756 = vrot.slane %v4495, 2
        %v4757 = vrot.slane %v4496, 2
        %v4758 = vsel %vm2156, %v4756, %v4757
        %v4759 = vrot.slane %v4497, 2
        %v4760 = vrot.slane %v4498, 2
        %v4761 = vsel %vm2156, %v4759, %v4760
        %v4762 = vrot.slane %v4499, 2
        %v4763 = vrot.slane %v4500, 2
        %v4764 = vsel %vm2156, %v4762, %v4763
        %v4765 = vrot.slane %v4501, 2
        %v4766 = vrot.slane %v4502, 2
        %v4767 = vsel %vm2156, %v4765, %v4766
        %v4768 = vrot.slane %v4503, 2
        %v4769 = vrot.slane %v4504, 2
        %v4770 = vsel %vm2156, %v4768, %v4769
        %v4771 = vrot.slane %v4505, 2
        %v4772 = vrot.slane %v4506, 2
        %v4773 = vsel %vm2156, %v4771, %v4772
        %v4774 = vrot.slane %v4507, 2
        %v4775 = vrot.slane %v4508, 2
        %v4776 = vsel %vm2156, %v4774, %v4775
        %v4777 = vrot.slane %v4509, 2
        %v4778 = vrot.slane %v4510, 2
        %v4779 = vsel %vm2156, %v4777, %v4778
        %v4780 = vrot.slane %v4511, 2
        %v4781 = vrot.slane %v4512, 2
        %v4782 = vsel %vm2156, %v4780, %v4781
        %v4783 = vrot.slane %v4513, 2
        %v4784 = vrot.slane %v4514, 2
        %v4785 = vsel %vm2156, %v4783, %v4784
        %v4786 = vrot.slane %v4515, 2
        %v4787 = vrot.slane %v4516, 2
        %v4788 = vsel %vm2156, %v4786, %v4787
        %v4789 = vrot.slane %v4517, 2
        %v4790 = vrot.slane %v4518, 2
        %v4791 = vsel %vm2156, %v4789, %v4790
        %v4792 = vrot.slane %v4519, 2
        %v4793 = vrot.slane %v4520, 2
        %v4794 = vsel %vm2156, %v4792, %v4793
        %v4795 = vrot.slane %v4521, 2
        %v4796 = vrot.slane %v4522, 2
        %v4797 = vsel %vm2156, %v4795, %v4796
        %v4798 = vrot.slane %v4523, 2
        %v4799 = vrot.slane %v4524, 2
        %v4800 = vsel %vm2156, %v4798, %v4799
        %v4801 = vrot.slane %v4525, 2
        %v4802 = vrot.slane %v4526, 2
        %v4803 = vsel %vm2156, %v4801, %v4802
        %v4804 = vrot.slane %v4527, 2
        %v4805 = vrot.slane %v4528, 2
        %v4806 = vsel %vm2156, %v4804, %v4805
        %v4807 = vrot.slane %v4529, 2
        %v4808 = vrot.slane %v4530, 2
        %v4809 = vsel %vm2156, %v4807, %v4808
        %v4810 = vrot.slane %v4531, 2
        %v4811 = vrot.slane %v4532, 2
        %v4812 = vsel %vm2156, %v4810, %v4811
        %v4813 = vrot.slane %v4533, 2
        %v4814 = vrot.slane %v4534, 2
        %v4815 = vsel %vm2156, %v4813, %v4814
        %v4816 = vrot.slane %v4535, 2
        %v4817 = vrot.slane %v4536, 2
        %v4818 = vsel %vm2156, %v4816, %v4817
        %v4819 = vrot.slane %v4537, 2
        %v4820 = vrot.slane %v4538, 2
        %v4821 = vsel %vm2156, %v4819, %v4820
        %v4822 = vrot.slane %v4539, 2
        %v4823 = vrot.slane %v4540, 2
        %v4824 = vsel %vm2156, %v4822, %v4823
        %v4825 = vrot.slane %v4541, 2
        %v4826 = vrot.slane %v4542, 2
        %v4827 = vsel %vm2156, %v4825, %v4826
        %v4828 = vrot.slane %v4543, 2
        %v4829 = vrot.slane %v4544, 2
        %v4830 = vsel %vm2156, %v4828, %v4829
        %v4831 = vrot.slane %v4545, 2
        %v4832 = vrot.slane %v4546, 2
        %v4833 = vsel %vm2156, %v4831, %v4832
        %v4834 = vrot.slane %v4547, 2
        %v4835 = vrot.slane %v4548, 2
        %v4836 = vsel %vm2156, %v4834, %v4835
        %v4837 = vrot.slane %v4549, 2
        %v4838 = vrot.slane %v4550, 2
        %v4839 = vsel %vm2156, %v4837, %v4838
        %v4840 = vrot.slane %v4551, 2
        %v4841 = vrot.slane %v4552, 2
        %v4842 = vsel %vm2156, %v4840, %v4841
        %v4843 = vrot.slane %v4553, 2
        %v4844 = vrot.slane %v4554, 2
        %v4845 = vsel %vm2156, %v4843, %v4844
        %v4846 = vrot.slane %v4555, 2
        %v4847 = vrot.slane %v4556, 2
        %v4848 = vsel %vm2156, %v4846, %v4847
        %v4849 = vrot.slane %v4557, 2
        %v4850 = vrot.slane %v4558, 2
        %v4851 = vsel %vm2156, %v4849, %v4850
        %v4852 = vrot.slane %v4559, 2
        %v4853 = vrot.slane %v4560, 2
        %v4854 = vsel %vm2156, %v4852, %v4853
        %v4855 = vrot.slane %v4561, 2
        %v4856 = vrot.slane %v4562, 2
        %v4857 = vsel %vm2156, %v4855, %v4856
        %v4858 = vrot.slane %v4563, 2
        %v4859 = vrot.slane %v4564, 2
        %v4860 = vsel %vm2156, %v4858, %v4859
        %v4861 = vrot.slane %v4565, 2
        %v4862 = vrot.slane %v4566, 2
        %v4863 = vsel %vm2156, %v4861, %v4862
        %v4864 = vrot.slane %v4567, 2
        %v4865 = vrot.slane %v4568, 2
        %v4866 = vsel %vm2156, %v4864, %v4865
        %v4867 = vrot.slane %v4569, 2
        %v4868 = vrot.slane %v4570, 2
        %v4869 = vsel %vm2156, %v4867, %v4868
        %v4870 = vrot.slane %v4571, 2
        %v4871 = vrot.slane %v4572, 2
        %v4872 = vsel %vm2156, %v4870, %v4871
        %v4873 = vrot.slane %v4573, 2
        %v4874 = vrot.slane %v4574, 2
        %v4875 = vsel %vm2156, %v4873, %v4874
        %v4876 = vrot.slane %v4575, 2
        %v4877 = vrot.slane %v4576, 2
        %v4878 = vsel %vm2156, %v4876, %v4877
        %v4879 = vrot.slane %v4577, 2
        %v4880 = vrot.slane %v4578, 2
        %v4881 = vsel %vm2156, %v4879, %v4880
        %v4882 = vrot.slane %v4579, 2
        %v4883 = vrot.slane %v4580, 2
        %v4884 = vsel %vm2156, %v4882, %v4883
        %v4885 = vrot.slane %v4581, 2
        %v4886 = vrot.slane %v4582, 2
        %v4887 = vsel %vm2156, %v4885, %v4886
        %v4888 = vrot.slane %v4583, 2
        %v4889 = vrot.slane %v4584, 2
        %v4890 = vsel %vm2156, %v4888, %v4889
        %v4891 = vrot.slane %v4585, 2
        %v4892 = vrot.slane %v4586, 2
        %v4893 = vsel %vm2156, %v4891, %v4892
        %v4894 = vrot.slane %v4587, 2
        %v4895 = vrot.slane %v4588, 2
        %v4896 = vsel %vm2156, %v4894, %v4895
        %v4897 = vrot.slane %v4589, 2
        %v4898 = vrot.slane %v4590, 2
        %v4899 = vsel %vm2156, %v4897, %v4898
        %v4900 = vrot.slane %v4591, 2
        %v4901 = vrot.slane %v4592, 2
        %v4902 = vsel %vm2156, %v4900, %v4901
        %v4903 = vrot.slane %v4593, 2
        %v4904 = vrot.slane %v4594, 2
        %v4905 = vsel %vm2156, %v4903, %v4904
        %v4906 = vrot.slane %v4595, 2
        %v4907 = vrot.slane %v4596, 2
        %v4908 = vsel %vm2156, %v4906, %v4907
        %v4909 = vrot.slane %v4597, 2
        %v4910 = vrot.slane %v4598, 2
        %v4911 = vsel %vm2156, %v4909, %v4910
        %v4912 = vrot.slane %v4599, 2
        %v4913 = vrot.slane %v4600, 2
        %v4914 = vsel %vm2156, %v4912, %v4913
        %v4915 = vrot.slane %v4601, 2
        %v4916 = vrot.slane %v4602, 2
        %v4917 = vsel %vm2156, %v4915, %v4916
        %v4918 = vrot.slane %v4603, 2
        %v4919 = vrot.slane %v4604, 2
        %v4920 = vsel %vm2156, %v4918, %v4919
        %v4921 = vrot.slane %v4605, 2
        %v4922 = vrot.slane %v4606, 2
        %v4923 = vsel %vm2156, %v4921, %v4922
        %v4924 = vrot.slane %v4607, 2
        %v4925 = vrot.slane %v4608, 2
        %v4926 = vsel %vm2156, %v4924, %v4925
        %v4927 = vrot.slane %v4609, 2
        %v4928 = vrot.slane %v4610, 2
        %v4929 = vsel %vm2156, %v4927, %v4928
        %v4930 = vrot.slane %v4611, 2
        %v4931 = vrot.slane %v4612, 2
        %v4932 = vsel %vm2156, %v4930, %v4931
        %v4997 = vadd.f32 %v4417, %v4743
        %v4998 = vadd.f32 %v4418, %v4746
        %v4999 = vadd.f32 %v4419, %v4749
        %v5000 = vadd.f32 %v4420, %v4752
        %v5001 = vadd.f32 %v4421, %v4755
        %v5002 = vadd.f32 %v4422, %v4758
        %v5003 = vadd.f32 %v4423, %v4761
        %v5004 = vadd.f32 %v4424, %v4764
        %v5005 = vadd.f32 %v4425, %v4767
        %v5006 = vadd.f32 %v4426, %v4770
        %v5007 = vadd.f32 %v4427, %v4773
        %v5008 = vadd.f32 %v4428, %v4776
        %v5009 = vadd.f32 %v4429, %v4779
        %v5010 = vadd.f32 %v4430, %v4782
        %v5011 = vadd.f32 %v4431, %v4785
        %v5012 = vadd.f32 %v4432, %v4788
        %v5013 = vadd.f32 %v4433, %v4791
        %v5014 = vadd.f32 %v4434, %v4794
        %v5015 = vadd.f32 %v4435, %v4797
        %v5016 = vadd.f32 %v4436, %v4800
        %v5017 = vadd.f32 %v4437, %v4803
        %v5018 = vadd.f32 %v4438, %v4806
        %v5019 = vadd.f32 %v4439, %v4809
        %v5020 = vadd.f32 %v4440, %v4812
        %v5021 = vadd.f32 %v4441, %v4815
        %v5022 = vadd.f32 %v4442, %v4818
        %v5023 = vadd.f32 %v4443, %v4821
        %v5024 = vadd.f32 %v4444, %v4824
        %v5025 = vadd.f32 %v4445, %v4827
        %v5026 = vadd.f32 %v4446, %v4830
        %v5027 = vadd.f32 %v4447, %v4833
        %v5028 = vadd.f32 %v4448, %v4836
        %v5029 = vadd.f32 %v4449, %v4839
        %v5030 = vadd.f32 %v4450, %v4842
        %v5031 = vadd.f32 %v4451, %v4845
        %v5032 = vadd.f32 %v4452, %v4848
        %v5033 = vadd.f32 %v4453, %v4851
        %v5034 = vadd.f32 %v4454, %v4854
        %v5035 = vadd.f32 %v4455, %v4857
        %v5036 = vadd.f32 %v4456, %v4860
        %v5037 = vadd.f32 %v4457, %v4863
        %v5038 = vadd.f32 %v4458, %v4866
        %v5039 = vadd.f32 %v4459, %v4869
        %v5040 = vadd.f32 %v4460, %v4872
        %v5041 = vadd.f32 %v4461, %v4875
        %v5042 = vadd.f32 %v4462, %v4878
        %v5043 = vadd.f32 %v4463, %v4881
        %v5044 = vadd.f32 %v4464, %v4884
        %v5045 = vadd.f32 %v4465, %v4887
        %v5046 = vadd.f32 %v4466, %v4890
        %v5047 = vadd.f32 %v4467, %v4893
        %v5048 = vadd.f32 %v4468, %v4896
        %v5049 = vadd.f32 %v4469, %v4899
        %v5050 = vadd.f32 %v4470, %v4902
        %v5051 = vadd.f32 %v4471, %v4905
        %v5052 = vadd.f32 %v4472, %v4908
        %v5053 = vadd.f32 %v4473, %v4911
        %v5054 = vadd.f32 %v4474, %v4914
        %v5055 = vadd.f32 %v4475, %v4917
        %v5056 = vadd.f32 %v4476, %v4920
        %v5057 = vadd.f32 %v4477, %v4923
        %v5058 = vadd.f32 %v4478, %v4926
        %v5059 = vadd.f32 %v4479, %v4929
        %v5060 = vadd.f32 %v4480, %v4932
        %v5061 = vld [vmem:[#allocation11] sm:$0x1]
        %v5062 = vlaneseq
        %v5063 = vshrl.u32 %v5062, 7
        %v5064 = vsub.s32 0, %v5063
        %v5065 = vrot.slane %v5061, %v5064
        %v5066 = vadd.f32 %v4997, %v5065
        %v5067 = vadd.f32 %v4998, %v5065
        %v5068 = vadd.f32 %v4999, %v5065
        %v5069 = vadd.f32 %v5000, %v5065
        %v5070 = vadd.f32 %v5001, %v5065
        %v5071 = vadd.f32 %v5002, %v5065
        %v5072 = vadd.f32 %v5003, %v5065
        %v5073 = vadd.f32 %v5004, %v5065
        %v5074 = vadd.f32 %v5005, %v5065
        %v5075 = vadd.f32 %v5006, %v5065
        %v5076 = vadd.f32 %v5007, %v5065
        %v5077 = vadd.f32 %v5008, %v5065
        %v5078 = vadd.f32 %v5009, %v5065
        %v5079 = vadd.f32 %v5010, %v5065
        %v5080 = vadd.f32 %v5011, %v5065
        %v5081 = vadd.f32 %v5012, %v5065
        %v5082 = vadd.f32 %v5013, %v5065
        %v5083 = vadd.f32 %v5014, %v5065
        %v5084 = vadd.f32 %v5015, %v5065
        %v5085 = vadd.f32 %v5016, %v5065
        %v5086 = vadd.f32 %v5017, %v5065
        %v5087 = vadd.f32 %v5018, %v5065
        %v5088 = vadd.f32 %v5019, %v5065
        %v5089 = vadd.f32 %v5020, %v5065
        %v5090 = vadd.f32 %v5021, %v5065
        %v5091 = vadd.f32 %v5022, %v5065
        %v5092 = vadd.f32 %v5023, %v5065
        %v5093 = vadd.f32 %v5024, %v5065
        %v5094 = vadd.f32 %v5025, %v5065
        %v5095 = vadd.f32 %v5026, %v5065
        %v5096 = vadd.f32 %v5027, %v5065
        %v5097 = vadd.f32 %v5028, %v5065
        %v5098 = vadd.f32 %v5029, %v5065
        %v5099 = vadd.f32 %v5030, %v5065
        %v5100 = vadd.f32 %v5031, %v5065
        %v5101 = vadd.f32 %v5032, %v5065
        %v5102 = vadd.f32 %v5033, %v5065
        %v5103 = vadd.f32 %v5034, %v5065
        %v5104 = vadd.f32 %v5035, %v5065
        %v5105 = vadd.f32 %v5036, %v5065
        %v5106 = vadd.f32 %v5037, %v5065
        %v5107 = vadd.f32 %v5038, %v5065
        %v5108 = vadd.f32 %v5039, %v5065
        %v5109 = vadd.f32 %v5040, %v5065
        %v5110 = vadd.f32 %v5041, %v5065
        %v5111 = vadd.f32 %v5042, %v5065
        %v5112 = vadd.f32 %v5043, %v5065
        %v5113 = vadd.f32 %v5044, %v5065
        %v5114 = vadd.f32 %v5045, %v5065
        %v5115 = vadd.f32 %v5046, %v5065
        %v5116 = vadd.f32 %v5047, %v5065
        %v5117 = vadd.f32 %v5048, %v5065
        %v5118 = vadd.f32 %v5049, %v5065
        %v5119 = vadd.f32 %v5050, %v5065
        %v5120 = vadd.f32 %v5051, %v5065
        %v5121 = vadd.f32 %v5052, %v5065
        %v5122 = vadd.f32 %v5053, %v5065
        %v5123 = vadd.f32 %v5054, %v5065
        %v5124 = vadd.f32 %v5055, %v5065
        %v5125 = vadd.f32 %v5056, %v5065
        %v5126 = vadd.f32 %v5057, %v5065
        %v5127 = vadd.f32 %v5058, %v5065
        %v5128 = vadd.f32 %v5059, %v5065
        %v5129 = vadd.f32 %v5060, %v5065
        %v5130 = vmax.f32 %v5066, 0.0
        %v5131 = vmax.f32 %v5067, 0.0
        %v5132 = vmax.f32 %v5068, 0.0
        %v5133 = vmax.f32 %v5069, 0.0
        %v5134 = vmax.f32 %v5070, 0.0
        %v5135 = vmax.f32 %v5071, 0.0
        %v5136 = vmax.f32 %v5072, 0.0
        %v5137 = vmax.f32 %v5073, 0.0
        %v5138 = vmax.f32 %v5074, 0.0
        %v5139 = vmax.f32 %v5075, 0.0
        %v5140 = vmax.f32 %v5076, 0.0
        %v5141 = vmax.f32 %v5077, 0.0
        %v5142 = vmax.f32 %v5078, 0.0
        %v5143 = vmax.f32 %v5079, 0.0
        %v5144 = vmax.f32 %v5080, 0.0
        %v5145 = vmax.f32 %v5081, 0.0
        %v5146 = vmax.f32 %v5082, 0.0
        %v5147 = vmax.f32 %v5083, 0.0
        %v5148 = vmax.f32 %v5084, 0.0
        %v5149 = vmax.f32 %v5085, 0.0
        %v5150 = vmax.f32 %v5086, 0.0
        %v5151 = vmax.f32 %v5087, 0.0
        %v5152 = vmax.f32 %v5088, 0.0
        %v5153 = vmax.f32 %v5089, 0.0
        %v5154 = vmax.f32 %v5090, 0.0
        %v5155 = vmax.f32 %v5091, 0.0
        %v5156 = vmax.f32 %v5092, 0.0
        %v5157 = vmax.f32 %v5093, 0.0
        %v5158 = vmax.f32 %v5094, 0.0
        %v5159 = vmax.f32 %v5095, 0.0
        %v5160 = vmax.f32 %v5096, 0.0
        %v5161 = vmax.f32 %v5097, 0.0
        %v5162 = vmax.f32 %v5098, 0.0
        %v5163 = vmax.f32 %v5099, 0.0
        %v5164 = vmax.f32 %v5100, 0.0
        %v5165 = vmax.f32 %v5101, 0.0
        %v5166 = vmax.f32 %v5102, 0.0
        %v5167 = vmax.f32 %v5103, 0.0
        %v5168 = vmax.f32 %v5104, 0.0
        %v5169 = vmax.f32 %v5105, 0.0
        %v5170 = vmax.f32 %v5106, 0.0
        %v5171 = vmax.f32 %v5107, 0.0
        %v5172 = vmax.f32 %v5108, 0.0
        %v5173 = vmax.f32 %v5109, 0.0
        %v5174 = vmax.f32 %v5110, 0.0
        %v5175 = vmax.f32 %v5111, 0.0
        %v5176 = vmax.f32 %v5112, 0.0
        %v5177 = vmax.f32 %v5113, 0.0
        %v5178 = vmax.f32 %v5114, 0.0
        %v5179 = vmax.f32 %v5115, 0.0
        %v5180 = vmax.f32 %v5116, 0.0
        %v5181 = vmax.f32 %v5117, 0.0
        %v5182 = vmax.f32 %v5118, 0.0
        %v5183 = vmax.f32 %v5119, 0.0
        %v5184 = vmax.f32 %v5120, 0.0
        %v5185 = vmax.f32 %v5121, 0.0
        %v5186 = vmax.f32 %v5122, 0.0
        %v5187 = vmax.f32 %v5123, 0.0
        %v5188 = vmax.f32 %v5124, 0.0
        %v5189 = vmax.f32 %v5125, 0.0
        %v5190 = vmax.f32 %v5126, 0.0
        %v5191 = vmax.f32 %v5127, 0.0
        %v5192 = vmax.f32 %v5128, 0.0
        %v5193 = vmax.f32 %v5129, 0.0
        %v5194 = vld [vmem:[#allocation11 + $0x1] sm:$0x1]
        %v5195 = vlaneseq
        %v5196 = vshrl.u32 %v5195, 7
        %v5197 = vsub.s32 0, %v5196
        %v5198 = vrot.slane %v5194, %v5197
        %v5199 = vmul.f32 %v5130, %v5198
        %v5200 = vmul.f32 %v5131, %v5198
        %v5201 = vmul.f32 %v5132, %v5198
        %v5202 = vmul.f32 %v5133, %v5198
        %v5203 = vmul.f32 %v5134, %v5198
        %v5204 = vmul.f32 %v5135, %v5198
        %v5205 = vmul.f32 %v5136, %v5198
        %v5206 = vmul.f32 %v5137, %v5198
        %v5207 = vmul.f32 %v5138, %v5198
        %v5208 = vmul.f32 %v5139, %v5198
        %v5209 = vmul.f32 %v5140, %v5198
        %v5210 = vmul.f32 %v5141, %v5198
        %v5211 = vmul.f32 %v5142, %v5198
        %v5212 = vmul.f32 %v5143, %v5198
        %v5213 = vmul.f32 %v5144, %v5198
        %v5214 = vmul.f32 %v5145, %v5198
        %v5215 = vmul.f32 %v5146, %v5198
        %v5216 = vmul.f32 %v5147, %v5198
        %v5217 = vmul.f32 %v5148, %v5198
        %v5218 = vmul.f32 %v5149, %v5198
        %v5219 = vmul.f32 %v5150, %v5198
        %v5220 = vmul.f32 %v5151, %v5198
        %v5221 = vmul.f32 %v5152, %v5198
        %v5222 = vmul.f32 %v5153, %v5198
        %v5223 = vmul.f32 %v5154, %v5198
        %v5224 = vmul.f32 %v5155, %v5198
        %v5225 = vmul.f32 %v5156, %v5198
        %v5226 = vmul.f32 %v5157, %v5198
        %v5227 = vmul.f32 %v5158, %v5198
        %v5228 = vmul.f32 %v5159, %v5198
        %v5229 = vmul.f32 %v5160, %v5198
        %v5230 = vmul.f32 %v5161, %v5198
        %v5231 = vmul.f32 %v5162, %v5198
        %v5232 = vmul.f32 %v5163, %v5198
        %v5233 = vmul.f32 %v5164, %v5198
        %v5234 = vmul.f32 %v5165, %v5198
        %v5235 = vmul.f32 %v5166, %v5198
        %v5236 = vmul.f32 %v5167, %v5198
        %v5237 = vmul.f32 %v5168, %v5198
        %v5238 = vmul.f32 %v5169, %v5198
        %v5239 = vmul.f32 %v5170, %v5198
        %v5240 = vmul.f32 %v5171, %v5198
        %v5241 = vmul.f32 %v5172, %v5198
        %v5242 = vmul.f32 %v5173, %v5198
        %v5243 = vmul.f32 %v5174, %v5198
        %v5244 = vmul.f32 %v5175, %v5198
        %v5245 = vmul.f32 %v5176, %v5198
        %v5246 = vmul.f32 %v5177, %v5198
        %v5247 = vmul.f32 %v5178, %v5198
        %v5248 = vmul.f32 %v5179, %v5198
        %v5249 = vmul.f32 %v5180, %v5198
        %v5250 = vmul.f32 %v5181, %v5198
        %v5251 = vmul.f32 %v5182, %v5198
        %v5252 = vmul.f32 %v5183, %v5198
        %v5253 = vmul.f32 %v5184, %v5198
        %v5254 = vmul.f32 %v5185, %v5198
        %v5255 = vmul.f32 %v5186, %v5198
        %v5256 = vmul.f32 %v5187, %v5198
        %v5257 = vmul.f32 %v5188, %v5198
        %v5258 = vmul.f32 %v5189, %v5198
        %v5259 = vmul.f32 %v5190, %v5198
        %v5260 = vmul.f32 %v5191, %v5198
        %v5261 = vmul.f32 %v5192, %v5198
        %v5262 = vmul.f32 %v5193, %v5198
        %v5263 = vld [vmem:[#allocation11 + $0x2] sm:$0x1]
        %v5264 = vlaneseq
        %v5265 = vshrl.u32 %v5264, 7
        %v5266 = vsub.s32 0, %v5265
        %v5267 = vrot.slane %v5263, %v5266
        %v5268 = vadd.f32 %v5199, %v5267
        %v5269 = vadd.f32 %v5200, %v5267
        %v5270 = vadd.f32 %v5201, %v5267
        %v5271 = vadd.f32 %v5202, %v5267
        %v5272 = vadd.f32 %v5203, %v5267
        %v5273 = vadd.f32 %v5204, %v5267
        %v5274 = vadd.f32 %v5205, %v5267
        %v5275 = vadd.f32 %v5206, %v5267
        %v5276 = vadd.f32 %v5207, %v5267
        %v5277 = vadd.f32 %v5208, %v5267
        %v5278 = vadd.f32 %v5209, %v5267
        %v5279 = vadd.f32 %v5210, %v5267
        %v5280 = vadd.f32 %v5211, %v5267
        %v5281 = vadd.f32 %v5212, %v5267
        %v5282 = vadd.f32 %v5213, %v5267
        %v5283 = vadd.f32 %v5214, %v5267
        %v5284 = vadd.f32 %v5215, %v5267
        %v5285 = vadd.f32 %v5216, %v5267
        %v5286 = vadd.f32 %v5217, %v5267
        %v5287 = vadd.f32 %v5218, %v5267
        %v5288 = vadd.f32 %v5219, %v5267
        %v5289 = vadd.f32 %v5220, %v5267
        %v5290 = vadd.f32 %v5221, %v5267
        %v5291 = vadd.f32 %v5222, %v5267
        %v5292 = vadd.f32 %v5223, %v5267
        %v5293 = vadd.f32 %v5224, %v5267
        %v5294 = vadd.f32 %v5225, %v5267
        %v5295 = vadd.f32 %v5226, %v5267
        %v5296 = vadd.f32 %v5227, %v5267
        %v5297 = vadd.f32 %v5228, %v5267
        %v5298 = vadd.f32 %v5229, %v5267
        %v5299 = vadd.f32 %v5230, %v5267
        %v5300 = vadd.f32 %v5231, %v5267
        %v5301 = vadd.f32 %v5232, %v5267
        %v5302 = vadd.f32 %v5233, %v5267
        %v5303 = vadd.f32 %v5234, %v5267
        %v5304 = vadd.f32 %v5235, %v5267
        %v5305 = vadd.f32 %v5236, %v5267
        %v5306 = vadd.f32 %v5237, %v5267
        %v5307 = vadd.f32 %v5238, %v5267
        %v5308 = vadd.f32 %v5239, %v5267
        %v5309 = vadd.f32 %v5240, %v5267
        %v5310 = vadd.f32 %v5241, %v5267
        %v5311 = vadd.f32 %v5242, %v5267
        %v5312 = vadd.f32 %v5243, %v5267
        %v5313 = vadd.f32 %v5244, %v5267
        %v5314 = vadd.f32 %v5245, %v5267
        %v5315 = vadd.f32 %v5246, %v5267
        %v5316 = vadd.f32 %v5247, %v5267
        %v5317 = vadd.f32 %v5248, %v5267
        %v5318 = vadd.f32 %v5249, %v5267
        %v5319 = vadd.f32 %v5250, %v5267
        %v5320 = vadd.f32 %v5251, %v5267
        %v5321 = vadd.f32 %v5252, %v5267
        %v5322 = vadd.f32 %v5253, %v5267
        %v5323 = vadd.f32 %v5254, %v5267
        %v5324 = vadd.f32 %v5255, %v5267
        %v5325 = vadd.f32 %v5256, %v5267
        %v5326 = vadd.f32 %v5257, %v5267
        %v5327 = vadd.f32 %v5258, %v5267
        %v5328 = vadd.f32 %v5259, %v5267
        %v5329 = vadd.f32 %v5260, %v5267
        %v5330 = vadd.f32 %v5261, %v5267
        %v5331 = vadd.f32 %v5262, %v5267
        %vm5332 = vcmask 261120
        %v5333 = vsel %vm5332, %v5268, -inf
        %v5334 = vsel %vm5332, %v5269, -inf
        %v5335 = vmax.f32 %v5333, %v5334
        %v5336 = vsel %vm5332, %v5270, -inf
        %v5337 = vsel %vm5332, %v5271, -inf
        %v5338 = vmax.f32 %v5336, %v5337
        %v5339 = vsel %vm5332, %v5272, -inf
        %v5340 = vsel %vm5332, %v5273, -inf
        %v5341 = vmax.f32 %v5339, %v5340
        %v5342 = vsel %vm5332, %v5274, -inf
        %v5343 = vsel %vm5332, %v5275, -inf
        %v5344 = vmax.f32 %v5342, %v5343
        %v5345 = vsel %vm5332, %v5276, -inf
        %v5346 = vsel %vm5332, %v5277, -inf
        %v5347 = vmax.f32 %v5345, %v5346
        %v5348 = vsel %vm5332, %v5278, -inf
        %v5349 = vsel %vm5332, %v5279, -inf
        %v5350 = vmax.f32 %v5348, %v5349
        %v5351 = vsel %vm5332, %v5280, -inf
        %v5352 = vsel %vm5332, %v5281, -inf
        %v5353 = vmax.f32 %v5351, %v5352
        %v5354 = vsel %vm5332, %v5282, -inf
        %v5355 = vsel %vm5332, %v5283, -inf
        %v5356 = vmax.f32 %v5354, %v5355
        %v5357 = vsel %vm5332, %v5284, -inf
        %v5358 = vsel %vm5332, %v5285, -inf
        %v5359 = vmax.f32 %v5357, %v5358
        %v5360 = vsel %vm5332, %v5286, -inf
        %v5361 = vsel %vm5332, %v5287, -inf
        %v5362 = vmax.f32 %v5360, %v5361
        %v5363 = vsel %vm5332, %v5288, -inf
        %v5364 = vsel %vm5332, %v5289, -inf
        %v5365 = vmax.f32 %v5363, %v5364
        %v5366 = vsel %vm5332, %v5290, -inf
        %v5367 = vsel %vm5332, %v5291, -inf
        %v5368 = vmax.f32 %v5366, %v5367
        %v5369 = vsel %vm5332, %v5292, -inf
        %v5370 = vsel %vm5332, %v5293, -inf
        %v5371 = vmax.f32 %v5369, %v5370
        %v5372 = vsel %vm5332, %v5294, -inf
        %v5373 = vsel %vm5332, %v5295, -inf
        %v5374 = vmax.f32 %v5372, %v5373
        %v5375 = vsel %vm5332, %v5296, -inf
        %v5376 = vsel %vm5332, %v5297, -inf
        %v5377 = vmax.f32 %v5375, %v5376
        %v5378 = vsel %vm5332, %v5298, -inf
        %v5379 = vsel %vm5332, %v5299, -inf
        %v5380 = vmax.f32 %v5378, %v5379
        %v5381 = vsel %vm5332, %v5300, -inf
        %v5382 = vsel %vm5332, %v5301, -inf
        %v5383 = vmax.f32 %v5381, %v5382
        %v5384 = vsel %vm5332, %v5302, -inf
        %v5385 = vsel %vm5332, %v5303, -inf
        %v5386 = vmax.f32 %v5384, %v5385
        %v5387 = vsel %vm5332, %v5304, -inf
        %v5388 = vsel %vm5332, %v5305, -inf
        %v5389 = vmax.f32 %v5387, %v5388
        %v5390 = vsel %vm5332, %v5306, -inf
        %v5391 = vsel %vm5332, %v5307, -inf
        %v5392 = vmax.f32 %v5390, %v5391
        %v5393 = vsel %vm5332, %v5308, -inf
        %v5394 = vsel %vm5332, %v5309, -inf
        %v5395 = vmax.f32 %v5393, %v5394
        %v5396 = vsel %vm5332, %v5310, -inf
        %v5397 = vsel %vm5332, %v5311, -inf
        %v5398 = vmax.f32 %v5396, %v5397
        %v5399 = vsel %vm5332, %v5312, -inf
        %v5400 = vsel %vm5332, %v5313, -inf
        %v5401 = vmax.f32 %v5399, %v5400
        %v5402 = vsel %vm5332, %v5314, -inf
        %v5403 = vsel %vm5332, %v5315, -inf
        %v5404 = vmax.f32 %v5402, %v5403
        %v5405 = vsel %vm5332, %v5316, -inf
        %v5406 = vsel %vm5332, %v5317, -inf
        %v5407 = vmax.f32 %v5405, %v5406
        %v5408 = vsel %vm5332, %v5318, -inf
        %v5409 = vsel %vm5332, %v5319, -inf
        %v5410 = vmax.f32 %v5408, %v5409
        %v5411 = vsel %vm5332, %v5320, -inf
        %v5412 = vsel %vm5332, %v5321, -inf
        %v5413 = vmax.f32 %v5411, %v5412
        %v5414 = vsel %vm5332, %v5322, -inf
        %v5415 = vsel %vm5332, %v5323, -inf
        %v5416 = vmax.f32 %v5414, %v5415
        %v5417 = vsel %vm5332, %v5324, -inf
        %v5418 = vsel %vm5332, %v5325, -inf
        %v5419 = vmax.f32 %v5417, %v5418
        %v5420 = vsel %vm5332, %v5326, -inf
        %v5421 = vsel %vm5332, %v5327, -inf
        %v5422 = vmax.f32 %v5420, %v5421
        %v5423 = vsel %vm5332, %v5328, -inf
        %v5424 = vsel %vm5332, %v5329, -inf
        %v5425 = vmax.f32 %v5423, %v5424
        %v5426 = vsel %vm5332, %v5330, -inf
        %v5427 = vsel %vm5332, %v5331, -inf
        %v5428 = vmax.f32 %v5426, %v5427
        %v5461 = vcombine.high %v5335, %v5335
        %v5463 = vunpack.c.l.s4 1983009808
        %v5464 = vunpack.c.0.s8 %v5463
        %v5465 = vlaneseq
        %v5466 = vshrl.u32 %v5465, 7
        %v5467 = vsub.s32 %v5464, %v5466
        %v5468 = vrot.slane %v5335, %v5467
        %v5470 = vunpack.c.l.s4 1983009808
        %v5471 = vunpack.c.0.s8 %v5470
        %v5472 = vlaneseq
        %v5473 = vshrl.u32 %v5472, 7
        %v5474 = vsub.s32 %v5471, %v5473
        %v5475 = vrot.slane %v5461, %v5474
        %v5476 = vcombine.high %v5468, %v5468
        %v5477 = vcombine.high %v5475, %v5475
        %v5478 = vcombine.high %v5338, %v5338
        %v5480 = vunpack.c.l.s4 1983009808
        %v5481 = vunpack.c.0.s8 %v5480
        %v5482 = vlaneseq
        %v5483 = vshrl.u32 %v5482, 7
        %v5484 = vsub.s32 %v5481, %v5483
        %v5485 = vrot.slane %v5338, %v5484
        %v5487 = vunpack.c.l.s4 1983009808
        %v5488 = vunpack.c.0.s8 %v5487
        %v5489 = vlaneseq
        %v5490 = vshrl.u32 %v5489, 7
        %v5491 = vsub.s32 %v5488, %v5490
        %v5492 = vrot.slane %v5478, %v5491
        %v5493 = vcombine.high %v5485, %v5485
        %v5494 = vcombine.high %v5492, %v5492
        %v5495 = vcombine.high %v5341, %v5341
        %v5497 = vunpack.c.l.s4 1983009808
        %v5498 = vunpack.c.0.s8 %v5497
        %v5499 = vlaneseq
        %v5500 = vshrl.u32 %v5499, 7
        %v5501 = vsub.s32 %v5498, %v5500
        %v5502 = vrot.slane %v5341, %v5501
        %v5504 = vunpack.c.l.s4 1983009808
        %v5505 = vunpack.c.0.s8 %v5504
        %v5506 = vlaneseq
        %v5507 = vshrl.u32 %v5506, 7
        %v5508 = vsub.s32 %v5505, %v5507
        %v5509 = vrot.slane %v5495, %v5508
        %v5510 = vcombine.high %v5502, %v5502
        %v5511 = vcombine.high %v5509, %v5509
        %v5512 = vcombine.high %v5344, %v5344
        %v5514 = vunpack.c.l.s4 1983009808
        %v5515 = vunpack.c.0.s8 %v5514
        %v5516 = vlaneseq
        %v5517 = vshrl.u32 %v5516, 7
        %v5518 = vsub.s32 %v5515, %v5517
        %v5519 = vrot.slane %v5344, %v5518
        %v5521 = vunpack.c.l.s4 1983009808
        %v5522 = vunpack.c.0.s8 %v5521
        %v5523 = vlaneseq
        %v5524 = vshrl.u32 %v5523, 7
        %v5525 = vsub.s32 %v5522, %v5524
        %v5526 = vrot.slane %v5512, %v5525
        %v5527 = vcombine.high %v5519, %v5519
        %v5528 = vcombine.high %v5526, %v5526
        %v5529 = vcombine.high %v5347, %v5347
        %v5531 = vunpack.c.l.s4 1983009808
        %v5532 = vunpack.c.0.s8 %v5531
        %v5533 = vlaneseq
        %v5534 = vshrl.u32 %v5533, 7
        %v5535 = vsub.s32 %v5532, %v5534
        %v5536 = vrot.slane %v5347, %v5535
        %v5538 = vunpack.c.l.s4 1983009808
        %v5539 = vunpack.c.0.s8 %v5538
        %v5540 = vlaneseq
        %v5541 = vshrl.u32 %v5540, 7
        %v5542 = vsub.s32 %v5539, %v5541
        %v5543 = vrot.slane %v5529, %v5542
        %v5544 = vcombine.high %v5536, %v5536
        %v5545 = vcombine.high %v5543, %v5543
        %v5546 = vcombine.high %v5350, %v5350
        %v5548 = vunpack.c.l.s4 1983009808
        %v5549 = vunpack.c.0.s8 %v5548
        %v5550 = vlaneseq
        %v5551 = vshrl.u32 %v5550, 7
        %v5552 = vsub.s32 %v5549, %v5551
        %v5553 = vrot.slane %v5350, %v5552
        %v5555 = vunpack.c.l.s4 1983009808
        %v5556 = vunpack.c.0.s8 %v5555
        %v5557 = vlaneseq
        %v5558 = vshrl.u32 %v5557, 7
        %v5559 = vsub.s32 %v5556, %v5558
        %v5560 = vrot.slane %v5546, %v5559
        %v5561 = vcombine.high %v5553, %v5553
        %v5562 = vcombine.high %v5560, %v5560
        %v5563 = vcombine.high %v5353, %v5353
        %v5565 = vunpack.c.l.s4 1983009808
        %v5566 = vunpack.c.0.s8 %v5565
        %v5567 = vlaneseq
        %v5568 = vshrl.u32 %v5567, 7
        %v5569 = vsub.s32 %v5566, %v5568
        %v5570 = vrot.slane %v5353, %v5569
        %v5572 = vunpack.c.l.s4 1983009808
        %v5573 = vunpack.c.0.s8 %v5572
        %v5574 = vlaneseq
        %v5575 = vshrl.u32 %v5574, 7
        %v5576 = vsub.s32 %v5573, %v5575
        %v5577 = vrot.slane %v5563, %v5576
        %v5578 = vcombine.high %v5570, %v5570
        %v5579 = vcombine.high %v5577, %v5577
        %v5580 = vcombine.high %v5356, %v5356
        %v5582 = vunpack.c.l.s4 1983009808
        %v5583 = vunpack.c.0.s8 %v5582
        %v5584 = vlaneseq
        %v5585 = vshrl.u32 %v5584, 7
        %v5586 = vsub.s32 %v5583, %v5585
        %v5587 = vrot.slane %v5356, %v5586
        %v5589 = vunpack.c.l.s4 1983009808
        %v5590 = vunpack.c.0.s8 %v5589
        %v5591 = vlaneseq
        %v5592 = vshrl.u32 %v5591, 7
        %v5593 = vsub.s32 %v5590, %v5592
        %v5594 = vrot.slane %v5580, %v5593
        %v5595 = vcombine.high %v5587, %v5587
        %v5596 = vcombine.high %v5594, %v5594
        %v5597 = vcombine.high %v5359, %v5359
        %v5599 = vunpack.c.l.s4 1983009808
        %v5600 = vunpack.c.0.s8 %v5599
        %v5601 = vlaneseq
        %v5602 = vshrl.u32 %v5601, 7
        %v5603 = vsub.s32 %v5600, %v5602
        %v5604 = vrot.slane %v5359, %v5603
        %v5606 = vunpack.c.l.s4 1983009808
        %v5607 = vunpack.c.0.s8 %v5606
        %v5608 = vlaneseq
        %v5609 = vshrl.u32 %v5608, 7
        %v5610 = vsub.s32 %v5607, %v5609
        %v5611 = vrot.slane %v5597, %v5610
        %v5612 = vcombine.high %v5604, %v5604
        %v5613 = vcombine.high %v5611, %v5611
        %v5614 = vcombine.high %v5362, %v5362
        %v5616 = vunpack.c.l.s4 1983009808
        %v5617 = vunpack.c.0.s8 %v5616
        %v5618 = vlaneseq
        %v5619 = vshrl.u32 %v5618, 7
        %v5620 = vsub.s32 %v5617, %v5619
        %v5621 = vrot.slane %v5362, %v5620
        %v5623 = vunpack.c.l.s4 1983009808
        %v5624 = vunpack.c.0.s8 %v5623
        %v5625 = vlaneseq
        %v5626 = vshrl.u32 %v5625, 7
        %v5627 = vsub.s32 %v5624, %v5626
        %v5628 = vrot.slane %v5614, %v5627
        %v5629 = vcombine.high %v5621, %v5621
        %v5630 = vcombine.high %v5628, %v5628
        %v5631 = vcombine.high %v5365, %v5365
        %v5633 = vunpack.c.l.s4 1983009808
        %v5634 = vunpack.c.0.s8 %v5633
        %v5635 = vlaneseq
        %v5636 = vshrl.u32 %v5635, 7
        %v5637 = vsub.s32 %v5634, %v5636
        %v5638 = vrot.slane %v5365, %v5637
        %v5640 = vunpack.c.l.s4 1983009808
        %v5641 = vunpack.c.0.s8 %v5640
        %v5642 = vlaneseq
        %v5643 = vshrl.u32 %v5642, 7
        %v5644 = vsub.s32 %v5641, %v5643
        %v5645 = vrot.slane %v5631, %v5644
        %v5646 = vcombine.high %v5638, %v5638
        %v5647 = vcombine.high %v5645, %v5645
        %v5648 = vcombine.high %v5368, %v5368
        %v5650 = vunpack.c.l.s4 1983009808
        %v5651 = vunpack.c.0.s8 %v5650
        %v5652 = vlaneseq
        %v5653 = vshrl.u32 %v5652, 7
        %v5654 = vsub.s32 %v5651, %v5653
        %v5655 = vrot.slane %v5368, %v5654
        %v5657 = vunpack.c.l.s4 1983009808
        %v5658 = vunpack.c.0.s8 %v5657
        %v5659 = vlaneseq
        %v5660 = vshrl.u32 %v5659, 7
        %v5661 = vsub.s32 %v5658, %v5660
        %v5662 = vrot.slane %v5648, %v5661
        %v5663 = vcombine.high %v5655, %v5655
        %v5664 = vcombine.high %v5662, %v5662
        %v5665 = vcombine.high %v5371, %v5371
        %v5667 = vunpack.c.l.s4 1983009808
        %v5668 = vunpack.c.0.s8 %v5667
        %v5669 = vlaneseq
        %v5670 = vshrl.u32 %v5669, 7
        %v5671 = vsub.s32 %v5668, %v5670
        %v5672 = vrot.slane %v5371, %v5671
        %v5674 = vunpack.c.l.s4 1983009808
        %v5675 = vunpack.c.0.s8 %v5674
        %v5676 = vlaneseq
        %v5677 = vshrl.u32 %v5676, 7
        %v5678 = vsub.s32 %v5675, %v5677
        %v5679 = vrot.slane %v5665, %v5678
        %v5680 = vcombine.high %v5672, %v5672
        %v5681 = vcombine.high %v5679, %v5679
        %v5682 = vcombine.high %v5374, %v5374
        %v5684 = vunpack.c.l.s4 1983009808
        %v5685 = vunpack.c.0.s8 %v5684
        %v5686 = vlaneseq
        %v5687 = vshrl.u32 %v5686, 7
        %v5688 = vsub.s32 %v5685, %v5687
        %v5689 = vrot.slane %v5374, %v5688
        %v5691 = vunpack.c.l.s4 1983009808
        %v5692 = vunpack.c.0.s8 %v5691
        %v5693 = vlaneseq
        %v5694 = vshrl.u32 %v5693, 7
        %v5695 = vsub.s32 %v5692, %v5694
        %v5696 = vrot.slane %v5682, %v5695
        %v5697 = vcombine.high %v5689, %v5689
        %v5698 = vcombine.high %v5696, %v5696
        %v5699 = vcombine.high %v5377, %v5377
        %v5701 = vunpack.c.l.s4 1983009808
        %v5702 = vunpack.c.0.s8 %v5701
        %v5703 = vlaneseq
        %v5704 = vshrl.u32 %v5703, 7
        %v5705 = vsub.s32 %v5702, %v5704
        %v5706 = vrot.slane %v5377, %v5705
        %v5708 = vunpack.c.l.s4 1983009808
        %v5709 = vunpack.c.0.s8 %v5708
        %v5710 = vlaneseq
        %v5711 = vshrl.u32 %v5710, 7
        %v5712 = vsub.s32 %v5709, %v5711
        %v5713 = vrot.slane %v5699, %v5712
        %v5714 = vcombine.high %v5706, %v5706
        %v5715 = vcombine.high %v5713, %v5713
        %v5716 = vcombine.high %v5380, %v5380
        %v5718 = vunpack.c.l.s4 1983009808
        %v5719 = vunpack.c.0.s8 %v5718
        %v5720 = vlaneseq
        %v5721 = vshrl.u32 %v5720, 7
        %v5722 = vsub.s32 %v5719, %v5721
        %v5723 = vrot.slane %v5380, %v5722
        %v5725 = vunpack.c.l.s4 1983009808
        %v5726 = vunpack.c.0.s8 %v5725
        %v5727 = vlaneseq
        %v5728 = vshrl.u32 %v5727, 7
        %v5729 = vsub.s32 %v5726, %v5728
        %v5730 = vrot.slane %v5716, %v5729
        %v5731 = vcombine.high %v5723, %v5723
        %v5732 = vcombine.high %v5730, %v5730
        %v5733 = vcombine.high %v5383, %v5383
        %v5735 = vunpack.c.l.s4 1983009808
        %v5736 = vunpack.c.0.s8 %v5735
        %v5737 = vlaneseq
        %v5738 = vshrl.u32 %v5737, 7
        %v5739 = vsub.s32 %v5736, %v5738
        %v5740 = vrot.slane %v5383, %v5739
        %v5742 = vunpack.c.l.s4 1983009808
        %v5743 = vunpack.c.0.s8 %v5742
        %v5744 = vlaneseq
        %v5745 = vshrl.u32 %v5744, 7
        %v5746 = vsub.s32 %v5743, %v5745
        %v5747 = vrot.slane %v5733, %v5746
        %v5748 = vcombine.high %v5740, %v5740
        %v5749 = vcombine.high %v5747, %v5747
        %v5750 = vcombine.high %v5386, %v5386
        %v5752 = vunpack.c.l.s4 1983009808
        %v5753 = vunpack.c.0.s8 %v5752
        %v5754 = vlaneseq
        %v5755 = vshrl.u32 %v5754, 7
        %v5756 = vsub.s32 %v5753, %v5755
        %v5757 = vrot.slane %v5386, %v5756
        %v5759 = vunpack.c.l.s4 1983009808
        %v5760 = vunpack.c.0.s8 %v5759
        %v5761 = vlaneseq
        %v5762 = vshrl.u32 %v5761, 7
        %v5763 = vsub.s32 %v5760, %v5762
        %v5764 = vrot.slane %v5750, %v5763
        %v5765 = vcombine.high %v5757, %v5757
        %v5766 = vcombine.high %v5764, %v5764
        %v5767 = vcombine.high %v5389, %v5389
        %v5769 = vunpack.c.l.s4 1983009808
        %v5770 = vunpack.c.0.s8 %v5769
        %v5771 = vlaneseq
        %v5772 = vshrl.u32 %v5771, 7
        %v5773 = vsub.s32 %v5770, %v5772
        %v5774 = vrot.slane %v5389, %v5773
        %v5776 = vunpack.c.l.s4 1983009808
        %v5777 = vunpack.c.0.s8 %v5776
        %v5778 = vlaneseq
        %v5779 = vshrl.u32 %v5778, 7
        %v5780 = vsub.s32 %v5777, %v5779
        %v5781 = vrot.slane %v5767, %v5780
        %v5782 = vcombine.high %v5774, %v5774
        %v5783 = vcombine.high %v5781, %v5781
        %v5784 = vcombine.high %v5392, %v5392
        %v5786 = vunpack.c.l.s4 1983009808
        %v5787 = vunpack.c.0.s8 %v5786
        %v5788 = vlaneseq
        %v5789 = vshrl.u32 %v5788, 7
        %v5790 = vsub.s32 %v5787, %v5789
        %v5791 = vrot.slane %v5392, %v5790
        %v5793 = vunpack.c.l.s4 1983009808
        %v5794 = vunpack.c.0.s8 %v5793
        %v5795 = vlaneseq
        %v5796 = vshrl.u32 %v5795, 7
        %v5797 = vsub.s32 %v5794, %v5796
        %v5798 = vrot.slane %v5784, %v5797
        %v5799 = vcombine.high %v5791, %v5791
        %v5800 = vcombine.high %v5798, %v5798
        %v5801 = vcombine.high %v5395, %v5395
        %v5803 = vunpack.c.l.s4 1983009808
        %v5804 = vunpack.c.0.s8 %v5803
        %v5805 = vlaneseq
        %v5806 = vshrl.u32 %v5805, 7
        %v5807 = vsub.s32 %v5804, %v5806
        %v5808 = vrot.slane %v5395, %v5807
        %v5810 = vunpack.c.l.s4 1983009808
        %v5811 = vunpack.c.0.s8 %v5810
        %v5812 = vlaneseq
        %v5813 = vshrl.u32 %v5812, 7
        %v5814 = vsub.s32 %v5811, %v5813
        %v5815 = vrot.slane %v5801, %v5814
        %v5816 = vcombine.high %v5808, %v5808
        %v5817 = vcombine.high %v5815, %v5815
        %v5818 = vcombine.high %v5398, %v5398
        %v5820 = vunpack.c.l.s4 1983009808
        %v5821 = vunpack.c.0.s8 %v5820
        %v5822 = vlaneseq
        %v5823 = vshrl.u32 %v5822, 7
        %v5824 = vsub.s32 %v5821, %v5823
        %v5825 = vrot.slane %v5398, %v5824
        %v5827 = vunpack.c.l.s4 1983009808
        %v5828 = vunpack.c.0.s8 %v5827
        %v5829 = vlaneseq
        %v5830 = vshrl.u32 %v5829, 7
        %v5831 = vsub.s32 %v5828, %v5830
        %v5832 = vrot.slane %v5818, %v5831
        %v5833 = vcombine.high %v5825, %v5825
        %v5834 = vcombine.high %v5832, %v5832
        %v5835 = vcombine.high %v5401, %v5401
        %v5837 = vunpack.c.l.s4 1983009808
        %v5838 = vunpack.c.0.s8 %v5837
        %v5839 = vlaneseq
        %v5840 = vshrl.u32 %v5839, 7
        %v5841 = vsub.s32 %v5838, %v5840
        %v5842 = vrot.slane %v5401, %v5841
        %v5844 = vunpack.c.l.s4 1983009808
        %v5845 = vunpack.c.0.s8 %v5844
        %v5846 = vlaneseq
        %v5847 = vshrl.u32 %v5846, 7
        %v5848 = vsub.s32 %v5845, %v5847
        %v5849 = vrot.slane %v5835, %v5848
        %v5850 = vcombine.high %v5842, %v5842
        %v5851 = vcombine.high %v5849, %v5849
        %v5852 = vcombine.high %v5404, %v5404
        %v5854 = vunpack.c.l.s4 1983009808
        %v5855 = vunpack.c.0.s8 %v5854
        %v5856 = vlaneseq
        %v5857 = vshrl.u32 %v5856, 7
        %v5858 = vsub.s32 %v5855, %v5857
        %v5859 = vrot.slane %v5404, %v5858
        %v5861 = vunpack.c.l.s4 1983009808
        %v5862 = vunpack.c.0.s8 %v5861
        %v5863 = vlaneseq
        %v5864 = vshrl.u32 %v5863, 7
        %v5865 = vsub.s32 %v5862, %v5864
        %v5866 = vrot.slane %v5852, %v5865
        %v5867 = vcombine.high %v5859, %v5859
        %v5868 = vcombine.high %v5866, %v5866
        %v5869 = vcombine.high %v5407, %v5407
        %v5871 = vunpack.c.l.s4 1983009808
        %v5872 = vunpack.c.0.s8 %v5871
        %v5873 = vlaneseq
        %v5874 = vshrl.u32 %v5873, 7
        %v5875 = vsub.s32 %v5872, %v5874
        %v5876 = vrot.slane %v5407, %v5875
        %v5878 = vunpack.c.l.s4 1983009808
        %v5879 = vunpack.c.0.s8 %v5878
        %v5880 = vlaneseq
        %v5881 = vshrl.u32 %v5880, 7
        %v5882 = vsub.s32 %v5879, %v5881
        %v5883 = vrot.slane %v5869, %v5882
        %v5884 = vcombine.high %v5876, %v5876
        %v5885 = vcombine.high %v5883, %v5883
        %v5886 = vcombine.high %v5410, %v5410
        %v5888 = vunpack.c.l.s4 1983009808
        %v5889 = vunpack.c.0.s8 %v5888
        %v5890 = vlaneseq
        %v5891 = vshrl.u32 %v5890, 7
        %v5892 = vsub.s32 %v5889, %v5891
        %v5893 = vrot.slane %v5410, %v5892
        %v5895 = vunpack.c.l.s4 1983009808
        %v5896 = vunpack.c.0.s8 %v5895
        %v5897 = vlaneseq
        %v5898 = vshrl.u32 %v5897, 7
        %v5899 = vsub.s32 %v5896, %v5898
        %v5900 = vrot.slane %v5886, %v5899
        %v5901 = vcombine.high %v5893, %v5893
        %v5902 = vcombine.high %v5900, %v5900
        %v5903 = vcombine.high %v5413, %v5413
        %v5905 = vunpack.c.l.s4 1983009808
        %v5906 = vunpack.c.0.s8 %v5905
        %v5907 = vlaneseq
        %v5908 = vshrl.u32 %v5907, 7
        %v5909 = vsub.s32 %v5906, %v5908
        %v5910 = vrot.slane %v5413, %v5909
        %v5912 = vunpack.c.l.s4 1983009808
        %v5913 = vunpack.c.0.s8 %v5912
        %v5914 = vlaneseq
        %v5915 = vshrl.u32 %v5914, 7
        %v5916 = vsub.s32 %v5913, %v5915
        %v5917 = vrot.slane %v5903, %v5916
        %v5918 = vcombine.high %v5910, %v5910
        %v5919 = vcombine.high %v5917, %v5917
        %v5920 = vcombine.high %v5416, %v5416
        %v5922 = vunpack.c.l.s4 1983009808
        %v5923 = vunpack.c.0.s8 %v5922
        %v5924 = vlaneseq
        %v5925 = vshrl.u32 %v5924, 7
        %v5926 = vsub.s32 %v5923, %v5925
        %v5927 = vrot.slane %v5416, %v5926
        %v5929 = vunpack.c.l.s4 1983009808
        %v5930 = vunpack.c.0.s8 %v5929
        %v5931 = vlaneseq
        %v5932 = vshrl.u32 %v5931, 7
        %v5933 = vsub.s32 %v5930, %v5932
        %v5934 = vrot.slane %v5920, %v5933
        %v5935 = vcombine.high %v5927, %v5927
        %v5936 = vcombine.high %v5934, %v5934
        %v5937 = vcombine.high %v5419, %v5419
        %v5939 = vunpack.c.l.s4 1983009808
        %v5940 = vunpack.c.0.s8 %v5939
        %v5941 = vlaneseq
        %v5942 = vshrl.u32 %v5941, 7
        %v5943 = vsub.s32 %v5940, %v5942
        %v5944 = vrot.slane %v5419, %v5943
        %v5946 = vunpack.c.l.s4 1983009808
        %v5947 = vunpack.c.0.s8 %v5946
        %v5948 = vlaneseq
        %v5949 = vshrl.u32 %v5948, 7
        %v5950 = vsub.s32 %v5947, %v5949
        %v5951 = vrot.slane %v5937, %v5950
        %v5952 = vcombine.high %v5944, %v5944
        %v5953 = vcombine.high %v5951, %v5951
        %v5954 = vcombine.high %v5422, %v5422
        %v5956 = vunpack.c.l.s4 1983009808
        %v5957 = vunpack.c.0.s8 %v5956
        %v5958 = vlaneseq
        %v5959 = vshrl.u32 %v5958, 7
        %v5960 = vsub.s32 %v5957, %v5959
        %v5961 = vrot.slane %v5422, %v5960
        %v5963 = vunpack.c.l.s4 1983009808
        %v5964 = vunpack.c.0.s8 %v5963
        %v5965 = vlaneseq
        %v5966 = vshrl.u32 %v5965, 7
        %v5967 = vsub.s32 %v5964, %v5966
        %v5968 = vrot.slane %v5954, %v5967
        %v5969 = vcombine.high %v5961, %v5961
        %v5970 = vcombine.high %v5968, %v5968
        %v5971 = vcombine.high %v5425, %v5425
        %v5973 = vunpack.c.l.s4 1983009808
        %v5974 = vunpack.c.0.s8 %v5973
        %v5975 = vlaneseq
        %v5976 = vshrl.u32 %v5975, 7
        %v5977 = vsub.s32 %v5974, %v5976
        %v5978 = vrot.slane %v5425, %v5977
        %v5980 = vunpack.c.l.s4 1983009808
        %v5981 = vunpack.c.0.s8 %v5980
        %v5982 = vlaneseq
        %v5983 = vshrl.u32 %v5982, 7
        %v5984 = vsub.s32 %v5981, %v5983
        %v5985 = vrot.slane %v5971, %v5984
        %v5986 = vcombine.high %v5978, %v5978
        %v5987 = vcombine.high %v5985, %v5985
        %v5988 = vcombine.high %v5428, %v5428
        %v5990 = vunpack.c.l.s4 1983009808
        %v5991 = vunpack.c.0.s8 %v5990
        %v5992 = vlaneseq
        %v5993 = vshrl.u32 %v5992, 7
        %v5994 = vsub.s32 %v5991, %v5993
        %v5995 = vrot.slane %v5428, %v5994
        %v5997 = vunpack.c.l.s4 1983009808
        %v5998 = vunpack.c.0.s8 %v5997
        %v5999 = vlaneseq
        %v6000 = vshrl.u32 %v5999, 7
        %v6001 = vsub.s32 %v5998, %v6000
        %v6002 = vrot.slane %v5988, %v6001
        %v6003 = vcombine.high %v5995, %v5995
        %v6004 = vcombine.high %v6002, %v6002
        %vm6133 = vcmask 254976
        %v6134 = vsel %vm6133, %v5468, -inf
        %v6135 = vrot.slane %v6134, 4
        %v6136 = vmax.f32 %v6134, %v6135
        %v6137 = vrot.slane %v6136, 2
        %v6138 = vmax.f32 %v6136, %v6137
        %v6139 = vrot.slane %v6138, 1
        %v6140 = vmax.f32 %v6138, %v6139
        %v6141 = vsel %vm6133, %v5476, -inf
        %v6142 = vrot.slane %v6141, 4
        %v6143 = vmax.f32 %v6141, %v6142
        %v6144 = vrot.slane %v6143, 2
        %v6145 = vmax.f32 %v6143, %v6144
        %v6146 = vrot.slane %v6145, 1
        %v6147 = vmax.f32 %v6145, %v6146
        %v6148 = vsel %vm6133, %v5475, -inf
        %v6149 = vrot.slane %v6148, 4
        %v6150 = vmax.f32 %v6148, %v6149
        %v6151 = vrot.slane %v6150, 2
        %v6152 = vmax.f32 %v6150, %v6151
        %v6153 = vrot.slane %v6152, 1
        %v6154 = vmax.f32 %v6152, %v6153
        %v6155 = vsel %vm6133, %v5477, -inf
        %v6156 = vrot.slane %v6155, 4
        %v6157 = vmax.f32 %v6155, %v6156
        %v6158 = vrot.slane %v6157, 2
        %v6159 = vmax.f32 %v6157, %v6158
        %v6160 = vrot.slane %v6159, 1
        %v6161 = vmax.f32 %v6159, %v6160
        %v6162 = vsel %vm6133, %v5485, -inf
        %v6163 = vrot.slane %v6162, 4
        %v6164 = vmax.f32 %v6162, %v6163
        %v6165 = vrot.slane %v6164, 2
        %v6166 = vmax.f32 %v6164, %v6165
        %v6167 = vrot.slane %v6166, 1
        %v6168 = vmax.f32 %v6166, %v6167
        %v6169 = vsel %vm6133, %v5493, -inf
        %v6170 = vrot.slane %v6169, 4
        %v6171 = vmax.f32 %v6169, %v6170
        %v6172 = vrot.slane %v6171, 2
        %v6173 = vmax.f32 %v6171, %v6172
        %v6174 = vrot.slane %v6173, 1
        %v6175 = vmax.f32 %v6173, %v6174
        %v6176 = vsel %vm6133, %v5492, -inf
        %v6177 = vrot.slane %v6176, 4
        %v6178 = vmax.f32 %v6176, %v6177
        %v6179 = vrot.slane %v6178, 2
        %v6180 = vmax.f32 %v6178, %v6179
        %v6181 = vrot.slane %v6180, 1
        %v6182 = vmax.f32 %v6180, %v6181
        %v6183 = vsel %vm6133, %v5494, -inf
        %v6184 = vrot.slane %v6183, 4
        %v6185 = vmax.f32 %v6183, %v6184
        %v6186 = vrot.slane %v6185, 2
        %v6187 = vmax.f32 %v6185, %v6186
        %v6188 = vrot.slane %v6187, 1
        %v6189 = vmax.f32 %v6187, %v6188
        %v6190 = vsel %vm6133, %v5502, -inf
        %v6191 = vrot.slane %v6190, 4
        %v6192 = vmax.f32 %v6190, %v6191
        %v6193 = vrot.slane %v6192, 2
        %v6194 = vmax.f32 %v6192, %v6193
        %v6195 = vrot.slane %v6194, 1
        %v6196 = vmax.f32 %v6194, %v6195
        %v6197 = vsel %vm6133, %v5510, -inf
        %v6198 = vrot.slane %v6197, 4
        %v6199 = vmax.f32 %v6197, %v6198
        %v6200 = vrot.slane %v6199, 2
        %v6201 = vmax.f32 %v6199, %v6200
        %v6202 = vrot.slane %v6201, 1
        %v6203 = vmax.f32 %v6201, %v6202
        %v6204 = vsel %vm6133, %v5509, -inf
        %v6205 = vrot.slane %v6204, 4
        %v6206 = vmax.f32 %v6204, %v6205
        %v6207 = vrot.slane %v6206, 2
        %v6208 = vmax.f32 %v6206, %v6207
        %v6209 = vrot.slane %v6208, 1
        %v6210 = vmax.f32 %v6208, %v6209
        %v6211 = vsel %vm6133, %v5511, -inf
        %v6212 = vrot.slane %v6211, 4
        %v6213 = vmax.f32 %v6211, %v6212
        %v6214 = vrot.slane %v6213, 2
        %v6215 = vmax.f32 %v6213, %v6214
        %v6216 = vrot.slane %v6215, 1
        %v6217 = vmax.f32 %v6215, %v6216
        %v6218 = vsel %vm6133, %v5519, -inf
        %v6219 = vrot.slane %v6218, 4
        %v6220 = vmax.f32 %v6218, %v6219
        %v6221 = vrot.slane %v6220, 2
        %v6222 = vmax.f32 %v6220, %v6221
        %v6223 = vrot.slane %v6222, 1
        %v6224 = vmax.f32 %v6222, %v6223
        %v6225 = vsel %vm6133, %v5527, -inf
        %v6226 = vrot.slane %v6225, 4
        %v6227 = vmax.f32 %v6225, %v6226
        %v6228 = vrot.slane %v6227, 2
        %v6229 = vmax.f32 %v6227, %v6228
        %v6230 = vrot.slane %v6229, 1
        %v6231 = vmax.f32 %v6229, %v6230
        %v6232 = vsel %vm6133, %v5526, -inf
        %v6233 = vrot.slane %v6232, 4
        %v6234 = vmax.f32 %v6232, %v6233
        %v6235 = vrot.slane %v6234, 2
        %v6236 = vmax.f32 %v6234, %v6235
        %v6237 = vrot.slane %v6236, 1
        %v6238 = vmax.f32 %v6236, %v6237
        %v6239 = vsel %vm6133, %v5528, -inf
        %v6240 = vrot.slane %v6239, 4
        %v6241 = vmax.f32 %v6239, %v6240
        %v6242 = vrot.slane %v6241, 2
        %v6243 = vmax.f32 %v6241, %v6242
        %v6244 = vrot.slane %v6243, 1
        %v6245 = vmax.f32 %v6243, %v6244
        %v6246 = vsel %vm6133, %v5536, -inf
        %v6247 = vrot.slane %v6246, 4
        %v6248 = vmax.f32 %v6246, %v6247
        %v6249 = vrot.slane %v6248, 2
        %v6250 = vmax.f32 %v6248, %v6249
        %v6251 = vrot.slane %v6250, 1
        %v6252 = vmax.f32 %v6250, %v6251
        %v6253 = vsel %vm6133, %v5544, -inf
        %v6254 = vrot.slane %v6253, 4
        %v6255 = vmax.f32 %v6253, %v6254
        %v6256 = vrot.slane %v6255, 2
        %v6257 = vmax.f32 %v6255, %v6256
        %v6258 = vrot.slane %v6257, 1
        %v6259 = vmax.f32 %v6257, %v6258
        %v6260 = vsel %vm6133, %v5543, -inf
        %v6261 = vrot.slane %v6260, 4
        %v6262 = vmax.f32 %v6260, %v6261
        %v6263 = vrot.slane %v6262, 2
        %v6264 = vmax.f32 %v6262, %v6263
        %v6265 = vrot.slane %v6264, 1
        %v6266 = vmax.f32 %v6264, %v6265
        %v6267 = vsel %vm6133, %v5545, -inf
        %v6268 = vrot.slane %v6267, 4
        %v6269 = vmax.f32 %v6267, %v6268
        %v6270 = vrot.slane %v6269, 2
        %v6271 = vmax.f32 %v6269, %v6270
        %v6272 = vrot.slane %v6271, 1
        %v6273 = vmax.f32 %v6271, %v6272
        %v6274 = vsel %vm6133, %v5553, -inf
        %v6275 = vrot.slane %v6274, 4
        %v6276 = vmax.f32 %v6274, %v6275
        %v6277 = vrot.slane %v6276, 2
        %v6278 = vmax.f32 %v6276, %v6277
        %v6279 = vrot.slane %v6278, 1
        %v6280 = vmax.f32 %v6278, %v6279
        %v6281 = vsel %vm6133, %v5561, -inf
        %v6282 = vrot.slane %v6281, 4
        %v6283 = vmax.f32 %v6281, %v6282
        %v6284 = vrot.slane %v6283, 2
        %v6285 = vmax.f32 %v6283, %v6284
        %v6286 = vrot.slane %v6285, 1
        %v6287 = vmax.f32 %v6285, %v6286
        %v6288 = vsel %vm6133, %v5560, -inf
        %v6289 = vrot.slane %v6288, 4
        %v6290 = vmax.f32 %v6288, %v6289
        %v6291 = vrot.slane %v6290, 2
        %v6292 = vmax.f32 %v6290, %v6291
        %v6293 = vrot.slane %v6292, 1
        %v6294 = vmax.f32 %v6292, %v6293
        %v6295 = vsel %vm6133, %v5562, -inf
        %v6296 = vrot.slane %v6295, 4
        %v6297 = vmax.f32 %v6295, %v6296
        %v6298 = vrot.slane %v6297, 2
        %v6299 = vmax.f32 %v6297, %v6298
        %v6300 = vrot.slane %v6299, 1
        %v6301 = vmax.f32 %v6299, %v6300
        %v6302 = vsel %vm6133, %v5570, -inf
        %v6303 = vrot.slane %v6302, 4
        %v6304 = vmax.f32 %v6302, %v6303
        %v6305 = vrot.slane %v6304, 2
        %v6306 = vmax.f32 %v6304, %v6305
        %v6307 = vrot.slane %v6306, 1
        %v6308 = vmax.f32 %v6306, %v6307
        %v6309 = vsel %vm6133, %v5578, -inf
        %v6310 = vrot.slane %v6309, 4
        %v6311 = vmax.f32 %v6309, %v6310
        %v6312 = vrot.slane %v6311, 2
        %v6313 = vmax.f32 %v6311, %v6312
        %v6314 = vrot.slane %v6313, 1
        %v6315 = vmax.f32 %v6313, %v6314
        %v6316 = vsel %vm6133, %v5577, -inf
        %v6317 = vrot.slane %v6316, 4
        %v6318 = vmax.f32 %v6316, %v6317
        %v6319 = vrot.slane %v6318, 2
        %v6320 = vmax.f32 %v6318, %v6319
        %v6321 = vrot.slane %v6320, 1
        %v6322 = vmax.f32 %v6320, %v6321
        %v6323 = vsel %vm6133, %v5579, -inf
        %v6324 = vrot.slane %v6323, 4
        %v6325 = vmax.f32 %v6323, %v6324
        %v6326 = vrot.slane %v6325, 2
        %v6327 = vmax.f32 %v6325, %v6326
        %v6328 = vrot.slane %v6327, 1
        %v6329 = vmax.f32 %v6327, %v6328
        %v6330 = vsel %vm6133, %v5587, -inf
        %v6331 = vrot.slane %v6330, 4
        %v6332 = vmax.f32 %v6330, %v6331
        %v6333 = vrot.slane %v6332, 2
        %v6334 = vmax.f32 %v6332, %v6333
        %v6335 = vrot.slane %v6334, 1
        %v6336 = vmax.f32 %v6334, %v6335
        %v6337 = vsel %vm6133, %v5595, -inf
        %v6338 = vrot.slane %v6337, 4
        %v6339 = vmax.f32 %v6337, %v6338
        %v6340 = vrot.slane %v6339, 2
        %v6341 = vmax.f32 %v6339, %v6340
        %v6342 = vrot.slane %v6341, 1
        %v6343 = vmax.f32 %v6341, %v6342
        %v6344 = vsel %vm6133, %v5594, -inf
        %v6345 = vrot.slane %v6344, 4
        %v6346 = vmax.f32 %v6344, %v6345
        %v6347 = vrot.slane %v6346, 2
        %v6348 = vmax.f32 %v6346, %v6347
        %v6349 = vrot.slane %v6348, 1
        %v6350 = vmax.f32 %v6348, %v6349
        %v6351 = vsel %vm6133, %v5596, -inf
        %v6352 = vrot.slane %v6351, 4
        %v6353 = vmax.f32 %v6351, %v6352
        %v6354 = vrot.slane %v6353, 2
        %v6355 = vmax.f32 %v6353, %v6354
        %v6356 = vrot.slane %v6355, 1
        %v6357 = vmax.f32 %v6355, %v6356
        %v6358 = vsel %vm6133, %v5604, -inf
        %v6359 = vrot.slane %v6358, 4
        %v6360 = vmax.f32 %v6358, %v6359
        %v6361 = vrot.slane %v6360, 2
        %v6362 = vmax.f32 %v6360, %v6361
        %v6363 = vrot.slane %v6362, 1
        %v6364 = vmax.f32 %v6362, %v6363
        %v6365 = vsel %vm6133, %v5612, -inf
        %v6366 = vrot.slane %v6365, 4
        %v6367 = vmax.f32 %v6365, %v6366
        %v6368 = vrot.slane %v6367, 2
        %v6369 = vmax.f32 %v6367, %v6368
        %v6370 = vrot.slane %v6369, 1
        %v6371 = vmax.f32 %v6369, %v6370
        %v6372 = vsel %vm6133, %v5611, -inf
        %v6373 = vrot.slane %v6372, 4
        %v6374 = vmax.f32 %v6372, %v6373
        %v6375 = vrot.slane %v6374, 2
        %v6376 = vmax.f32 %v6374, %v6375
        %v6377 = vrot.slane %v6376, 1
        %v6378 = vmax.f32 %v6376, %v6377
        %v6379 = vsel %vm6133, %v5613, -inf
        %v6380 = vrot.slane %v6379, 4
        %v6381 = vmax.f32 %v6379, %v6380
        %v6382 = vrot.slane %v6381, 2
        %v6383 = vmax.f32 %v6381, %v6382
        %v6384 = vrot.slane %v6383, 1
        %v6385 = vmax.f32 %v6383, %v6384
        %v6386 = vsel %vm6133, %v5621, -inf
        %v6387 = vrot.slane %v6386, 4
        %v6388 = vmax.f32 %v6386, %v6387
        %v6389 = vrot.slane %v6388, 2
        %v6390 = vmax.f32 %v6388, %v6389
        %v6391 = vrot.slane %v6390, 1
        %v6392 = vmax.f32 %v6390, %v6391
        %v6393 = vsel %vm6133, %v5629, -inf
        %v6394 = vrot.slane %v6393, 4
        %v6395 = vmax.f32 %v6393, %v6394
        %v6396 = vrot.slane %v6395, 2
        %v6397 = vmax.f32 %v6395, %v6396
        %v6398 = vrot.slane %v6397, 1
        %v6399 = vmax.f32 %v6397, %v6398
        %v6400 = vsel %vm6133, %v5628, -inf
        %v6401 = vrot.slane %v6400, 4
        %v6402 = vmax.f32 %v6400, %v6401
        %v6403 = vrot.slane %v6402, 2
        %v6404 = vmax.f32 %v6402, %v6403
        %v6405 = vrot.slane %v6404, 1
        %v6406 = vmax.f32 %v6404, %v6405
        %v6407 = vsel %vm6133, %v5630, -inf
        %v6408 = vrot.slane %v6407, 4
        %v6409 = vmax.f32 %v6407, %v6408
        %v6410 = vrot.slane %v6409, 2
        %v6411 = vmax.f32 %v6409, %v6410
        %v6412 = vrot.slane %v6411, 1
        %v6413 = vmax.f32 %v6411, %v6412
        %v6414 = vsel %vm6133, %v5638, -inf
        %v6415 = vrot.slane %v6414, 4
        %v6416 = vmax.f32 %v6414, %v6415
        %v6417 = vrot.slane %v6416, 2
        %v6418 = vmax.f32 %v6416, %v6417
        %v6419 = vrot.slane %v6418, 1
        %v6420 = vmax.f32 %v6418, %v6419
        %v6421 = vsel %vm6133, %v5646, -inf
        %v6422 = vrot.slane %v6421, 4
        %v6423 = vmax.f32 %v6421, %v6422
        %v6424 = vrot.slane %v6423, 2
        %v6425 = vmax.f32 %v6423, %v6424
        %v6426 = vrot.slane %v6425, 1
        %v6427 = vmax.f32 %v6425, %v6426
        %v6428 = vsel %vm6133, %v5645, -inf
        %v6429 = vrot.slane %v6428, 4
        %v6430 = vmax.f32 %v6428, %v6429
        %v6431 = vrot.slane %v6430, 2
        %v6432 = vmax.f32 %v6430, %v6431
        %v6433 = vrot.slane %v6432, 1
        %v6434 = vmax.f32 %v6432, %v6433
        %v6435 = vsel %vm6133, %v5647, -inf
        %v6436 = vrot.slane %v6435, 4
        %v6437 = vmax.f32 %v6435, %v6436
        %v6438 = vrot.slane %v6437, 2
        %v6439 = vmax.f32 %v6437, %v6438
        %v6440 = vrot.slane %v6439, 1
        %v6441 = vmax.f32 %v6439, %v6440
        %v6442 = vsel %vm6133, %v5655, -inf
        %v6443 = vrot.slane %v6442, 4
        %v6444 = vmax.f32 %v6442, %v6443
        %v6445 = vrot.slane %v6444, 2
        %v6446 = vmax.f32 %v6444, %v6445
        %v6447 = vrot.slane %v6446, 1
        %v6448 = vmax.f32 %v6446, %v6447
        %v6449 = vsel %vm6133, %v5663, -inf
        %v6450 = vrot.slane %v6449, 4
        %v6451 = vmax.f32 %v6449, %v6450
        %v6452 = vrot.slane %v6451, 2
        %v6453 = vmax.f32 %v6451, %v6452
        %v6454 = vrot.slane %v6453, 1
        %v6455 = vmax.f32 %v6453, %v6454
        %v6456 = vsel %vm6133, %v5662, -inf
        %v6457 = vrot.slane %v6456, 4
        %v6458 = vmax.f32 %v6456, %v6457
        %v6459 = vrot.slane %v6458, 2
        %v6460 = vmax.f32 %v6458, %v6459
        %v6461 = vrot.slane %v6460, 1
        %v6462 = vmax.f32 %v6460, %v6461
        %v6463 = vsel %vm6133, %v5664, -inf
        %v6464 = vrot.slane %v6463, 4
        %v6465 = vmax.f32 %v6463, %v6464
        %v6466 = vrot.slane %v6465, 2
        %v6467 = vmax.f32 %v6465, %v6466
        %v6468 = vrot.slane %v6467, 1
        %v6469 = vmax.f32 %v6467, %v6468
        %v6470 = vsel %vm6133, %v5672, -inf
        %v6471 = vrot.slane %v6470, 4
        %v6472 = vmax.f32 %v6470, %v6471
        %v6473 = vrot.slane %v6472, 2
        %v6474 = vmax.f32 %v6472, %v6473
        %v6475 = vrot.slane %v6474, 1
        %v6476 = vmax.f32 %v6474, %v6475
        %v6477 = vsel %vm6133, %v5680, -inf
        %v6478 = vrot.slane %v6477, 4
        %v6479 = vmax.f32 %v6477, %v6478
        %v6480 = vrot.slane %v6479, 2
        %v6481 = vmax.f32 %v6479, %v6480
        %v6482 = vrot.slane %v6481, 1
        %v6483 = vmax.f32 %v6481, %v6482
        %v6484 = vsel %vm6133, %v5679, -inf
        %v6485 = vrot.slane %v6484, 4
        %v6486 = vmax.f32 %v6484, %v6485
        %v6487 = vrot.slane %v6486, 2
        %v6488 = vmax.f32 %v6486, %v6487
        %v6489 = vrot.slane %v6488, 1
        %v6490 = vmax.f32 %v6488, %v6489
        %v6491 = vsel %vm6133, %v5681, -inf
        %v6492 = vrot.slane %v6491, 4
        %v6493 = vmax.f32 %v6491, %v6492
        %v6494 = vrot.slane %v6493, 2
        %v6495 = vmax.f32 %v6493, %v6494
        %v6496 = vrot.slane %v6495, 1
        %v6497 = vmax.f32 %v6495, %v6496
        %v6498 = vsel %vm6133, %v5689, -inf
        %v6499 = vrot.slane %v6498, 4
        %v6500 = vmax.f32 %v6498, %v6499
        %v6501 = vrot.slane %v6500, 2
        %v6502 = vmax.f32 %v6500, %v6501
        %v6503 = vrot.slane %v6502, 1
        %v6504 = vmax.f32 %v6502, %v6503
        %v6505 = vsel %vm6133, %v5697, -inf
        %v6506 = vrot.slane %v6505, 4
        %v6507 = vmax.f32 %v6505, %v6506
        %v6508 = vrot.slane %v6507, 2
        %v6509 = vmax.f32 %v6507, %v6508
        %v6510 = vrot.slane %v6509, 1
        %v6511 = vmax.f32 %v6509, %v6510
        %v6512 = vsel %vm6133, %v5696, -inf
        %v6513 = vrot.slane %v6512, 4
        %v6514 = vmax.f32 %v6512, %v6513
        %v6515 = vrot.slane %v6514, 2
        %v6516 = vmax.f32 %v6514, %v6515
        %v6517 = vrot.slane %v6516, 1
        %v6518 = vmax.f32 %v6516, %v6517
        %v6519 = vsel %vm6133, %v5698, -inf
        %v6520 = vrot.slane %v6519, 4
        %v6521 = vmax.f32 %v6519, %v6520
        %v6522 = vrot.slane %v6521, 2
        %v6523 = vmax.f32 %v6521, %v6522
        %v6524 = vrot.slane %v6523, 1
        %v6525 = vmax.f32 %v6523, %v6524
        %v6526 = vsel %vm6133, %v5706, -inf
        %v6527 = vrot.slane %v6526, 4
        %v6528 = vmax.f32 %v6526, %v6527
        %v6529 = vrot.slane %v6528, 2
        %v6530 = vmax.f32 %v6528, %v6529
        %v6531 = vrot.slane %v6530, 1
        %v6532 = vmax.f32 %v6530, %v6531
        %v6533 = vsel %vm6133, %v5714, -inf
        %v6534 = vrot.slane %v6533, 4
        %v6535 = vmax.f32 %v6533, %v6534
        %v6536 = vrot.slane %v6535, 2
        %v6537 = vmax.f32 %v6535, %v6536
        %v6538 = vrot.slane %v6537, 1
        %v6539 = vmax.f32 %v6537, %v6538
        %v6540 = vsel %vm6133, %v5713, -inf
        %v6541 = vrot.slane %v6540, 4
        %v6542 = vmax.f32 %v6540, %v6541
        %v6543 = vrot.slane %v6542, 2
        %v6544 = vmax.f32 %v6542, %v6543
        %v6545 = vrot.slane %v6544, 1
        %v6546 = vmax.f32 %v6544, %v6545
        %v6547 = vsel %vm6133, %v5715, -inf
        %v6548 = vrot.slane %v6547, 4
        %v6549 = vmax.f32 %v6547, %v6548
        %v6550 = vrot.slane %v6549, 2
        %v6551 = vmax.f32 %v6549, %v6550
        %v6552 = vrot.slane %v6551, 1
        %v6553 = vmax.f32 %v6551, %v6552
        %v6554 = vsel %vm6133, %v5723, -inf
        %v6555 = vrot.slane %v6554, 4
        %v6556 = vmax.f32 %v6554, %v6555
        %v6557 = vrot.slane %v6556, 2
        %v6558 = vmax.f32 %v6556, %v6557
        %v6559 = vrot.slane %v6558, 1
        %v6560 = vmax.f32 %v6558, %v6559
        %v6561 = vsel %vm6133, %v5731, -inf
        %v6562 = vrot.slane %v6561, 4
        %v6563 = vmax.f32 %v6561, %v6562
        %v6564 = vrot.slane %v6563, 2
        %v6565 = vmax.f32 %v6563, %v6564
        %v6566 = vrot.slane %v6565, 1
        %v6567 = vmax.f32 %v6565, %v6566
        %v6568 = vsel %vm6133, %v5730, -inf
        %v6569 = vrot.slane %v6568, 4
        %v6570 = vmax.f32 %v6568, %v6569
        %v6571 = vrot.slane %v6570, 2
        %v6572 = vmax.f32 %v6570, %v6571
        %v6573 = vrot.slane %v6572, 1
        %v6574 = vmax.f32 %v6572, %v6573
        %v6575 = vsel %vm6133, %v5732, -inf
        %v6576 = vrot.slane %v6575, 4
        %v6577 = vmax.f32 %v6575, %v6576
        %v6578 = vrot.slane %v6577, 2
        %v6579 = vmax.f32 %v6577, %v6578
        %v6580 = vrot.slane %v6579, 1
        %v6581 = vmax.f32 %v6579, %v6580
        %v6582 = vsel %vm6133, %v5740, -inf
        %v6583 = vrot.slane %v6582, 4
        %v6584 = vmax.f32 %v6582, %v6583
        %v6585 = vrot.slane %v6584, 2
        %v6586 = vmax.f32 %v6584, %v6585
        %v6587 = vrot.slane %v6586, 1
        %v6588 = vmax.f32 %v6586, %v6587
        %v6589 = vsel %vm6133, %v5748, -inf
        %v6590 = vrot.slane %v6589, 4
        %v6591 = vmax.f32 %v6589, %v6590
        %v6592 = vrot.slane %v6591, 2
        %v6593 = vmax.f32 %v6591, %v6592
        %v6594 = vrot.slane %v6593, 1
        %v6595 = vmax.f32 %v6593, %v6594
        %v6596 = vsel %vm6133, %v5747, -inf
        %v6597 = vrot.slane %v6596, 4
        %v6598 = vmax.f32 %v6596, %v6597
        %v6599 = vrot.slane %v6598, 2
        %v6600 = vmax.f32 %v6598, %v6599
        %v6601 = vrot.slane %v6600, 1
        %v6602 = vmax.f32 %v6600, %v6601
        %v6603 = vsel %vm6133, %v5749, -inf
        %v6604 = vrot.slane %v6603, 4
        %v6605 = vmax.f32 %v6603, %v6604
        %v6606 = vrot.slane %v6605, 2
        %v6607 = vmax.f32 %v6605, %v6606
        %v6608 = vrot.slane %v6607, 1
        %v6609 = vmax.f32 %v6607, %v6608
        %v6610 = vsel %vm6133, %v5757, -inf
        %v6611 = vrot.slane %v6610, 4
        %v6612 = vmax.f32 %v6610, %v6611
        %v6613 = vrot.slane %v6612, 2
        %v6614 = vmax.f32 %v6612, %v6613
        %v6615 = vrot.slane %v6614, 1
        %v6616 = vmax.f32 %v6614, %v6615
        %v6617 = vsel %vm6133, %v5765, -inf
        %v6618 = vrot.slane %v6617, 4
        %v6619 = vmax.f32 %v6617, %v6618
        %v6620 = vrot.slane %v6619, 2
        %v6621 = vmax.f32 %v6619, %v6620
        %v6622 = vrot.slane %v6621, 1
        %v6623 = vmax.f32 %v6621, %v6622
        %v6624 = vsel %vm6133, %v5764, -inf
        %v6625 = vrot.slane %v6624, 4
        %v6626 = vmax.f32 %v6624, %v6625
        %v6627 = vrot.slane %v6626, 2
        %v6628 = vmax.f32 %v6626, %v6627
        %v6629 = vrot.slane %v6628, 1
        %v6630 = vmax.f32 %v6628, %v6629
        %v6631 = vsel %vm6133, %v5766, -inf
        %v6632 = vrot.slane %v6631, 4
        %v6633 = vmax.f32 %v6631, %v6632
        %v6634 = vrot.slane %v6633, 2
        %v6635 = vmax.f32 %v6633, %v6634
        %v6636 = vrot.slane %v6635, 1
        %v6637 = vmax.f32 %v6635, %v6636
        %v6638 = vsel %vm6133, %v5774, -inf
        %v6639 = vrot.slane %v6638, 4
        %v6640 = vmax.f32 %v6638, %v6639
        %v6641 = vrot.slane %v6640, 2
        %v6642 = vmax.f32 %v6640, %v6641
        %v6643 = vrot.slane %v6642, 1
        %v6644 = vmax.f32 %v6642, %v6643
        %v6645 = vsel %vm6133, %v5782, -inf
        %v6646 = vrot.slane %v6645, 4
        %v6647 = vmax.f32 %v6645, %v6646
        %v6648 = vrot.slane %v6647, 2
        %v6649 = vmax.f32 %v6647, %v6648
        %v6650 = vrot.slane %v6649, 1
        %v6651 = vmax.f32 %v6649, %v6650
        %v6652 = vsel %vm6133, %v5781, -inf
        %v6653 = vrot.slane %v6652, 4
        %v6654 = vmax.f32 %v6652, %v6653
        %v6655 = vrot.slane %v6654, 2
        %v6656 = vmax.f32 %v6654, %v6655
        %v6657 = vrot.slane %v6656, 1
        %v6658 = vmax.f32 %v6656, %v6657
        %v6659 = vsel %vm6133, %v5783, -inf
        %v6660 = vrot.slane %v6659, 4
        %v6661 = vmax.f32 %v6659, %v6660
        %v6662 = vrot.slane %v6661, 2
        %v6663 = vmax.f32 %v6661, %v6662
        %v6664 = vrot.slane %v6663, 1
        %v6665 = vmax.f32 %v6663, %v6664
        %v6666 = vsel %vm6133, %v5791, -inf
        %v6667 = vrot.slane %v6666, 4
        %v6668 = vmax.f32 %v6666, %v6667
        %v6669 = vrot.slane %v6668, 2
        %v6670 = vmax.f32 %v6668, %v6669
        %v6671 = vrot.slane %v6670, 1
        %v6672 = vmax.f32 %v6670, %v6671
        %v6673 = vsel %vm6133, %v5799, -inf
        %v6674 = vrot.slane %v6673, 4
        %v6675 = vmax.f32 %v6673, %v6674
        %v6676 = vrot.slane %v6675, 2
        %v6677 = vmax.f32 %v6675, %v6676
        %v6678 = vrot.slane %v6677, 1
        %v6679 = vmax.f32 %v6677, %v6678
        %v6680 = vsel %vm6133, %v5798, -inf
        %v6681 = vrot.slane %v6680, 4
        %v6682 = vmax.f32 %v6680, %v6681
        %v6683 = vrot.slane %v6682, 2
        %v6684 = vmax.f32 %v6682, %v6683
        %v6685 = vrot.slane %v6684, 1
        %v6686 = vmax.f32 %v6684, %v6685
        %v6687 = vsel %vm6133, %v5800, -inf
        %v6688 = vrot.slane %v6687, 4
        %v6689 = vmax.f32 %v6687, %v6688
        %v6690 = vrot.slane %v6689, 2
        %v6691 = vmax.f32 %v6689, %v6690
        %v6692 = vrot.slane %v6691, 1
        %v6693 = vmax.f32 %v6691, %v6692
        %v6694 = vsel %vm6133, %v5808, -inf
        %v6695 = vrot.slane %v6694, 4
        %v6696 = vmax.f32 %v6694, %v6695
        %v6697 = vrot.slane %v6696, 2
        %v6698 = vmax.f32 %v6696, %v6697
        %v6699 = vrot.slane %v6698, 1
        %v6700 = vmax.f32 %v6698, %v6699
        %v6701 = vsel %vm6133, %v5816, -inf
        %v6702 = vrot.slane %v6701, 4
        %v6703 = vmax.f32 %v6701, %v6702
        %v6704 = vrot.slane %v6703, 2
        %v6705 = vmax.f32 %v6703, %v6704
        %v6706 = vrot.slane %v6705, 1
        %v6707 = vmax.f32 %v6705, %v6706
        %v6708 = vsel %vm6133, %v5815, -inf
        %v6709 = vrot.slane %v6708, 4
        %v6710 = vmax.f32 %v6708, %v6709
        %v6711 = vrot.slane %v6710, 2
        %v6712 = vmax.f32 %v6710, %v6711
        %v6713 = vrot.slane %v6712, 1
        %v6714 = vmax.f32 %v6712, %v6713
        %v6715 = vsel %vm6133, %v5817, -inf
        %v6716 = vrot.slane %v6715, 4
        %v6717 = vmax.f32 %v6715, %v6716
        %v6718 = vrot.slane %v6717, 2
        %v6719 = vmax.f32 %v6717, %v6718
        %v6720 = vrot.slane %v6719, 1
        %v6721 = vmax.f32 %v6719, %v6720
        %v6722 = vsel %vm6133, %v5825, -inf
        %v6723 = vrot.slane %v6722, 4
        %v6724 = vmax.f32 %v6722, %v6723
        %v6725 = vrot.slane %v6724, 2
        %v6726 = vmax.f32 %v6724, %v6725
        %v6727 = vrot.slane %v6726, 1
        %v6728 = vmax.f32 %v6726, %v6727
        %v6729 = vsel %vm6133, %v5833, -inf
        %v6730 = vrot.slane %v6729, 4
        %v6731 = vmax.f32 %v6729, %v6730
        %v6732 = vrot.slane %v6731, 2
        %v6733 = vmax.f32 %v6731, %v6732
        %v6734 = vrot.slane %v6733, 1
        %v6735 = vmax.f32 %v6733, %v6734
        %v6736 = vsel %vm6133, %v5832, -inf
        %v6737 = vrot.slane %v6736, 4
        %v6738 = vmax.f32 %v6736, %v6737
        %v6739 = vrot.slane %v6738, 2
        %v6740 = vmax.f32 %v6738, %v6739
        %v6741 = vrot.slane %v6740, 1
        %v6742 = vmax.f32 %v6740, %v6741
        %v6743 = vsel %vm6133, %v5834, -inf
        %v6744 = vrot.slane %v6743, 4
        %v6745 = vmax.f32 %v6743, %v6744
        %v6746 = vrot.slane %v6745, 2
        %v6747 = vmax.f32 %v6745, %v6746
        %v6748 = vrot.slane %v6747, 1
        %v6749 = vmax.f32 %v6747, %v6748
        %v6750 = vsel %vm6133, %v5842, -inf
        %v6751 = vrot.slane %v6750, 4
        %v6752 = vmax.f32 %v6750, %v6751
        %v6753 = vrot.slane %v6752, 2
        %v6754 = vmax.f32 %v6752, %v6753
        %v6755 = vrot.slane %v6754, 1
        %v6756 = vmax.f32 %v6754, %v6755
        %v6757 = vsel %vm6133, %v5850, -inf
        %v6758 = vrot.slane %v6757, 4
        %v6759 = vmax.f32 %v6757, %v6758
        %v6760 = vrot.slane %v6759, 2
        %v6761 = vmax.f32 %v6759, %v6760
        %v6762 = vrot.slane %v6761, 1
        %v6763 = vmax.f32 %v6761, %v6762
        %v6764 = vsel %vm6133, %v5849, -inf
        %v6765 = vrot.slane %v6764, 4
        %v6766 = vmax.f32 %v6764, %v6765
        %v6767 = vrot.slane %v6766, 2
        %v6768 = vmax.f32 %v6766, %v6767
        %v6769 = vrot.slane %v6768, 1
        %v6770 = vmax.f32 %v6768, %v6769
        %v6771 = vsel %vm6133, %v5851, -inf
        %v6772 = vrot.slane %v6771, 4
        %v6773 = vmax.f32 %v6771, %v6772
        %v6774 = vrot.slane %v6773, 2
        %v6775 = vmax.f32 %v6773, %v6774
        %v6776 = vrot.slane %v6775, 1
        %v6777 = vmax.f32 %v6775, %v6776
        %v6778 = vsel %vm6133, %v5859, -inf
        %v6779 = vrot.slane %v6778, 4
        %v6780 = vmax.f32 %v6778, %v6779
        %v6781 = vrot.slane %v6780, 2
        %v6782 = vmax.f32 %v6780, %v6781
        %v6783 = vrot.slane %v6782, 1
        %v6784 = vmax.f32 %v6782, %v6783
        %v6785 = vsel %vm6133, %v5867, -inf
        %v6786 = vrot.slane %v6785, 4
        %v6787 = vmax.f32 %v6785, %v6786
        %v6788 = vrot.slane %v6787, 2
        %v6789 = vmax.f32 %v6787, %v6788
        %v6790 = vrot.slane %v6789, 1
        %v6791 = vmax.f32 %v6789, %v6790
        %v6792 = vsel %vm6133, %v5866, -inf
        %v6793 = vrot.slane %v6792, 4
        %v6794 = vmax.f32 %v6792, %v6793
        %v6795 = vrot.slane %v6794, 2
        %v6796 = vmax.f32 %v6794, %v6795
        %v6797 = vrot.slane %v6796, 1
        %v6798 = vmax.f32 %v6796, %v6797
        %v6799 = vsel %vm6133, %v5868, -inf
        %v6800 = vrot.slane %v6799, 4
        %v6801 = vmax.f32 %v6799, %v6800
        %v6802 = vrot.slane %v6801, 2
        %v6803 = vmax.f32 %v6801, %v6802
        %v6804 = vrot.slane %v6803, 1
        %v6805 = vmax.f32 %v6803, %v6804
        %v6806 = vsel %vm6133, %v5876, -inf
        %v6807 = vrot.slane %v6806, 4
        %v6808 = vmax.f32 %v6806, %v6807
        %v6809 = vrot.slane %v6808, 2
        %v6810 = vmax.f32 %v6808, %v6809
        %v6811 = vrot.slane %v6810, 1
        %v6812 = vmax.f32 %v6810, %v6811
        %v6813 = vsel %vm6133, %v5884, -inf
        %v6814 = vrot.slane %v6813, 4
        %v6815 = vmax.f32 %v6813, %v6814
        %v6816 = vrot.slane %v6815, 2
        %v6817 = vmax.f32 %v6815, %v6816
        %v6818 = vrot.slane %v6817, 1
        %v6819 = vmax.f32 %v6817, %v6818
        %v6820 = vsel %vm6133, %v5883, -inf
        %v6821 = vrot.slane %v6820, 4
        %v6822 = vmax.f32 %v6820, %v6821
        %v6823 = vrot.slane %v6822, 2
        %v6824 = vmax.f32 %v6822, %v6823
        %v6825 = vrot.slane %v6824, 1
        %v6826 = vmax.f32 %v6824, %v6825
        %v6827 = vsel %vm6133, %v5885, -inf
        %v6828 = vrot.slane %v6827, 4
        %v6829 = vmax.f32 %v6827, %v6828
        %v6830 = vrot.slane %v6829, 2
        %v6831 = vmax.f32 %v6829, %v6830
        %v6832 = vrot.slane %v6831, 1
        %v6833 = vmax.f32 %v6831, %v6832
        %v6834 = vsel %vm6133, %v5893, -inf
        %v6835 = vrot.slane %v6834, 4
        %v6836 = vmax.f32 %v6834, %v6835
        %v6837 = vrot.slane %v6836, 2
        %v6838 = vmax.f32 %v6836, %v6837
        %v6839 = vrot.slane %v6838, 1
        %v6840 = vmax.f32 %v6838, %v6839
        %v6841 = vsel %vm6133, %v5901, -inf
        %v6842 = vrot.slane %v6841, 4
        %v6843 = vmax.f32 %v6841, %v6842
        %v6844 = vrot.slane %v6843, 2
        %v6845 = vmax.f32 %v6843, %v6844
        %v6846 = vrot.slane %v6845, 1
        %v6847 = vmax.f32 %v6845, %v6846
        %v6848 = vsel %vm6133, %v5900, -inf
        %v6849 = vrot.slane %v6848, 4
        %v6850 = vmax.f32 %v6848, %v6849
        %v6851 = vrot.slane %v6850, 2
        %v6852 = vmax.f32 %v6850, %v6851
        %v6853 = vrot.slane %v6852, 1
        %v6854 = vmax.f32 %v6852, %v6853
        %v6855 = vsel %vm6133, %v5902, -inf
        %v6856 = vrot.slane %v6855, 4
        %v6857 = vmax.f32 %v6855, %v6856
        %v6858 = vrot.slane %v6857, 2
        %v6859 = vmax.f32 %v6857, %v6858
        %v6860 = vrot.slane %v6859, 1
        %v6861 = vmax.f32 %v6859, %v6860
        %v6862 = vsel %vm6133, %v5910, -inf
        %v6863 = vrot.slane %v6862, 4
        %v6864 = vmax.f32 %v6862, %v6863
        %v6865 = vrot.slane %v6864, 2
        %v6866 = vmax.f32 %v6864, %v6865
        %v6867 = vrot.slane %v6866, 1
        %v6868 = vmax.f32 %v6866, %v6867
        %v6869 = vsel %vm6133, %v5918, -inf
        %v6870 = vrot.slane %v6869, 4
        %v6871 = vmax.f32 %v6869, %v6870
        %v6872 = vrot.slane %v6871, 2
        %v6873 = vmax.f32 %v6871, %v6872
        %v6874 = vrot.slane %v6873, 1
        %v6875 = vmax.f32 %v6873, %v6874
        %v6876 = vsel %vm6133, %v5917, -inf
        %v6877 = vrot.slane %v6876, 4
        %v6878 = vmax.f32 %v6876, %v6877
        %v6879 = vrot.slane %v6878, 2
        %v6880 = vmax.f32 %v6878, %v6879
        %v6881 = vrot.slane %v6880, 1
        %v6882 = vmax.f32 %v6880, %v6881
        %v6883 = vsel %vm6133, %v5919, -inf
        %v6884 = vrot.slane %v6883, 4
        %v6885 = vmax.f32 %v6883, %v6884
        %v6886 = vrot.slane %v6885, 2
        %v6887 = vmax.f32 %v6885, %v6886
        %v6888 = vrot.slane %v6887, 1
        %v6889 = vmax.f32 %v6887, %v6888
        %v6890 = vsel %vm6133, %v5927, -inf
        %v6891 = vrot.slane %v6890, 4
        %v6892 = vmax.f32 %v6890, %v6891
        %v6893 = vrot.slane %v6892, 2
        %v6894 = vmax.f32 %v6892, %v6893
        %v6895 = vrot.slane %v6894, 1
        %v6896 = vmax.f32 %v6894, %v6895
        %v6897 = vsel %vm6133, %v5935, -inf
        %v6898 = vrot.slane %v6897, 4
        %v6899 = vmax.f32 %v6897, %v6898
        %v6900 = vrot.slane %v6899, 2
        %v6901 = vmax.f32 %v6899, %v6900
        %v6902 = vrot.slane %v6901, 1
        %v6903 = vmax.f32 %v6901, %v6902
        %v6904 = vsel %vm6133, %v5934, -inf
        %v6905 = vrot.slane %v6904, 4
        %v6906 = vmax.f32 %v6904, %v6905
        %v6907 = vrot.slane %v6906, 2
        %v6908 = vmax.f32 %v6906, %v6907
        %v6909 = vrot.slane %v6908, 1
        %v6910 = vmax.f32 %v6908, %v6909
        %v6911 = vsel %vm6133, %v5936, -inf
        %v6912 = vrot.slane %v6911, 4
        %v6913 = vmax.f32 %v6911, %v6912
        %v6914 = vrot.slane %v6913, 2
        %v6915 = vmax.f32 %v6913, %v6914
        %v6916 = vrot.slane %v6915, 1
        %v6917 = vmax.f32 %v6915, %v6916
        %v6918 = vsel %vm6133, %v5944, -inf
        %v6919 = vrot.slane %v6918, 4
        %v6920 = vmax.f32 %v6918, %v6919
        %v6921 = vrot.slane %v6920, 2
        %v6922 = vmax.f32 %v6920, %v6921
        %v6923 = vrot.slane %v6922, 1
        %v6924 = vmax.f32 %v6922, %v6923
        %v6925 = vsel %vm6133, %v5952, -inf
        %v6926 = vrot.slane %v6925, 4
        %v6927 = vmax.f32 %v6925, %v6926
        %v6928 = vrot.slane %v6927, 2
        %v6929 = vmax.f32 %v6927, %v6928
        %v6930 = vrot.slane %v6929, 1
        %v6931 = vmax.f32 %v6929, %v6930
        %v6932 = vsel %vm6133, %v5951, -inf
        %v6933 = vrot.slane %v6932, 4
        %v6934 = vmax.f32 %v6932, %v6933
        %v6935 = vrot.slane %v6934, 2
        %v6936 = vmax.f32 %v6934, %v6935
        %v6937 = vrot.slane %v6936, 1
        %v6938 = vmax.f32 %v6936, %v6937
        %v6939 = vsel %vm6133, %v5953, -inf
        %v6940 = vrot.slane %v6939, 4
        %v6941 = vmax.f32 %v6939, %v6940
        %v6942 = vrot.slane %v6941, 2
        %v6943 = vmax.f32 %v6941, %v6942
        %v6944 = vrot.slane %v6943, 1
        %v6945 = vmax.f32 %v6943, %v6944
        %v6946 = vsel %vm6133, %v5961, -inf
        %v6947 = vrot.slane %v6946, 4
        %v6948 = vmax.f32 %v6946, %v6947
        %v6949 = vrot.slane %v6948, 2
        %v6950 = vmax.f32 %v6948, %v6949
        %v6951 = vrot.slane %v6950, 1
        %v6952 = vmax.f32 %v6950, %v6951
        %v6953 = vsel %vm6133, %v5969, -inf
        %v6954 = vrot.slane %v6953, 4
        %v6955 = vmax.f32 %v6953, %v6954
        %v6956 = vrot.slane %v6955, 2
        %v6957 = vmax.f32 %v6955, %v6956
        %v6958 = vrot.slane %v6957, 1
        %v6959 = vmax.f32 %v6957, %v6958
        %v6960 = vsel %vm6133, %v5968, -inf
        %v6961 = vrot.slane %v6960, 4
        %v6962 = vmax.f32 %v6960, %v6961
        %v6963 = vrot.slane %v6962, 2
        %v6964 = vmax.f32 %v6962, %v6963
        %v6965 = vrot.slane %v6964, 1
        %v6966 = vmax.f32 %v6964, %v6965
        %v6967 = vsel %vm6133, %v5970, -inf
        %v6968 = vrot.slane %v6967, 4
        %v6969 = vmax.f32 %v6967, %v6968
        %v6970 = vrot.slane %v6969, 2
        %v6971 = vmax.f32 %v6969, %v6970
        %v6972 = vrot.slane %v6971, 1
        %v6973 = vmax.f32 %v6971, %v6972
        %v6974 = vsel %vm6133, %v5978, -inf
        %v6975 = vrot.slane %v6974, 4
        %v6976 = vmax.f32 %v6974, %v6975
        %v6977 = vrot.slane %v6976, 2
        %v6978 = vmax.f32 %v6976, %v6977
        %v6979 = vrot.slane %v6978, 1
        %v6980 = vmax.f32 %v6978, %v6979
        %v6981 = vsel %vm6133, %v5986, -inf
        %v6982 = vrot.slane %v6981, 4
        %v6983 = vmax.f32 %v6981, %v6982
        %v6984 = vrot.slane %v6983, 2
        %v6985 = vmax.f32 %v6983, %v6984
        %v6986 = vrot.slane %v6985, 1
        %v6987 = vmax.f32 %v6985, %v6986
        %v6988 = vsel %vm6133, %v5985, -inf
        %v6989 = vrot.slane %v6988, 4
        %v6990 = vmax.f32 %v6988, %v6989
        %v6991 = vrot.slane %v6990, 2
        %v6992 = vmax.f32 %v6990, %v6991
        %v6993 = vrot.slane %v6992, 1
        %v6994 = vmax.f32 %v6992, %v6993
        %v6995 = vsel %vm6133, %v5987, -inf
        %v6996 = vrot.slane %v6995, 4
        %v6997 = vmax.f32 %v6995, %v6996
        %v6998 = vrot.slane %v6997, 2
        %v6999 = vmax.f32 %v6997, %v6998
        %v7000 = vrot.slane %v6999, 1
        %v7001 = vmax.f32 %v6999, %v7000
        %v7002 = vsel %vm6133, %v5995, -inf
        %v7003 = vrot.slane %v7002, 4
        %v7004 = vmax.f32 %v7002, %v7003
        %v7005 = vrot.slane %v7004, 2
        %v7006 = vmax.f32 %v7004, %v7005
        %v7007 = vrot.slane %v7006, 1
        %v7008 = vmax.f32 %v7006, %v7007
        %v7009 = vsel %vm6133, %v6003, -inf
        %v7010 = vrot.slane %v7009, 4
        %v7011 = vmax.f32 %v7009, %v7010
        %v7012 = vrot.slane %v7011, 2
        %v7013 = vmax.f32 %v7011, %v7012
        %v7014 = vrot.slane %v7013, 1
        %v7015 = vmax.f32 %v7013, %v7014
        %v7016 = vsel %vm6133, %v6002, -inf
        %v7017 = vrot.slane %v7016, 4
        %v7018 = vmax.f32 %v7016, %v7017
        %v7019 = vrot.slane %v7018, 2
        %v7020 = vmax.f32 %v7018, %v7019
        %v7021 = vrot.slane %v7020, 1
        %v7022 = vmax.f32 %v7020, %v7021
        %v7023 = vsel %vm6133, %v6004, -inf
        %v7024 = vrot.slane %v7023, 4
        %v7025 = vmax.f32 %v7023, %v7024
        %v7026 = vrot.slane %v7025, 2
        %v7027 = vmax.f32 %v7025, %v7026
        %v7028 = vrot.slane %v7027, 1
        %v7029 = vmax.f32 %v7027, %v7028
        %vm7030 = vcmask 259072
        %7031 = vst.msk [vmem:[#allocation3] sm:$0x3f] %vm7030, 0.0
        %7032 = vst.msk [vmem:[#allocation3 + $0x30] sm:$0x3f] %vm7030, 0.0
        %7033 = vst.msk [vmem:[#allocation3 + $0x60] sm:$0x3f] %vm7030, 0.0
        %7034 = vst.msk [vmem:[#allocation3 + $0x90] sm:$0x3f] %vm7030, 0.0
        %7035 = vst.msk [vmem:[#allocation3 + $0xc0] sm:$0x3f] %vm7030, 0.0
        %7036 = vst.msk [vmem:[#allocation3 + $0xf0] sm:$0x3f] %vm7030, 0.0
        %7037 = vst.msk [vmem:[#allocation3 + $0x120] sm:$0x3f] %vm7030, 0.0
        %7038 = vst.msk [vmem:[#allocation3 + $0x150] sm:$0x3f] %vm7030, 0.0
        %s7039 = scalar_lea.vmem [#allocation3], 40
        %7040 = vst.msk [vmem:[%s7039] sm:$0x3f] %vm7030, 0.0
        %7041 = vst.msk [vmem:[%s7039 + $0x30] sm:$0x3f] %vm7030, 0.0
        %7042 = vst.msk [vmem:[%s7039 + $0x60] sm:$0x3f] %vm7030, 0.0
        %7043 = vst.msk [vmem:[%s7039 + $0x90] sm:$0x3f] %vm7030, 0.0
        %7044 = vst.msk [vmem:[%s7039 + $0xc0] sm:$0x3f] %vm7030, 0.0
        %7045 = vst.msk [vmem:[%s7039 + $0xf0] sm:$0x3f] %vm7030, 0.0
        %7046 = vst.msk [vmem:[%s7039 + $0x120] sm:$0x3f] %vm7030, 0.0
        %7047 = vst.msk [vmem:[%s7039 + $0x150] sm:$0x3f] %vm7030, 0.0
        %vm7176 = vcmask 1042434
        %v7177 = vsel %vm7176, %v6147, %v6140
        %vm7178 = vcmask 1043459
        %v7179 = vsel %vm7178, %v6154, %v7177
        %vm7180 = vcmask 1044484
        %v7181 = vsel %vm7180, %v6161, %v7179
        %v7182 = vsel %vm7176, %v6175, %v6168
        %v7183 = vsel %vm7178, %v6182, %v7182
        %v7184 = vsel %vm7180, %v6189, %v7183
        %v7185 = vsel %vm7176, %v6203, %v6196
        %v7186 = vsel %vm7178, %v6210, %v7185
        %v7187 = vsel %vm7180, %v6217, %v7186
        %v7188 = vsel %vm7176, %v6231, %v6224
        %v7189 = vsel %vm7178, %v6238, %v7188
        %v7190 = vsel %vm7180, %v6245, %v7189
        %v7191 = vsel %vm7176, %v6259, %v6252
        %v7192 = vsel %vm7178, %v6266, %v7191
        %v7193 = vsel %vm7180, %v6273, %v7192
        %v7194 = vsel %vm7176, %v6287, %v6280
        %v7195 = vsel %vm7178, %v6294, %v7194
        %v7196 = vsel %vm7180, %v6301, %v7195
        %v7197 = vsel %vm7176, %v6315, %v6308
        %v7198 = vsel %vm7178, %v6322, %v7197
        %v7199 = vsel %vm7180, %v6329, %v7198
        %v7200 = vsel %vm7176, %v6343, %v6336
        %v7201 = vsel %vm7178, %v6350, %v7200
        %v7202 = vsel %vm7180, %v6357, %v7201
        %v7203 = vsel %vm7176, %v6371, %v6364
        %v7204 = vsel %vm7178, %v6378, %v7203
        %v7205 = vsel %vm7180, %v6385, %v7204
        %v7206 = vsel %vm7176, %v6399, %v6392
        %v7207 = vsel %vm7178, %v6406, %v7206
        %v7208 = vsel %vm7180, %v6413, %v7207
        %v7209 = vsel %vm7176, %v6427, %v6420
        %v7210 = vsel %vm7178, %v6434, %v7209
        %v7211 = vsel %vm7180, %v6441, %v7210
        %v7212 = vsel %vm7176, %v6455, %v6448
        %v7213 = vsel %vm7178, %v6462, %v7212
        %v7214 = vsel %vm7180, %v6469, %v7213
        %v7215 = vsel %vm7176, %v6483, %v6476
        %v7216 = vsel %vm7178, %v6490, %v7215
        %v7217 = vsel %vm7180, %v6497, %v7216
        %v7218 = vsel %vm7176, %v6511, %v6504
        %v7219 = vsel %vm7178, %v6518, %v7218
        %v7220 = vsel %vm7180, %v6525, %v7219
        %v7221 = vsel %vm7176, %v6539, %v6532
        %v7222 = vsel %vm7178, %v6546, %v7221
        %v7223 = vsel %vm7180, %v6553, %v7222
        %v7224 = vsel %vm7176, %v6567, %v6560
        %v7225 = vsel %vm7178, %v6574, %v7224
        %v7226 = vsel %vm7180, %v6581, %v7225
        %v7227 = vsel %vm7176, %v6595, %v6588
        %v7228 = vsel %vm7178, %v6602, %v7227
        %v7229 = vsel %vm7180, %v6609, %v7228
        %v7230 = vsel %vm7176, %v6623, %v6616
        %v7231 = vsel %vm7178, %v6630, %v7230
        %v7232 = vsel %vm7180, %v6637, %v7231
        %v7233 = vsel %vm7176, %v6651, %v6644
        %v7234 = vsel %vm7178, %v6658, %v7233
        %v7235 = vsel %vm7180, %v6665, %v7234
        %v7236 = vsel %vm7176, %v6679, %v6672
        %v7237 = vsel %vm7178, %v6686, %v7236
        %v7238 = vsel %vm7180, %v6693, %v7237
        %v7239 = vsel %vm7176, %v6707, %v6700
        %v7240 = vsel %vm7178, %v6714, %v7239
        %v7241 = vsel %vm7180, %v6721, %v7240
        %v7242 = vsel %vm7176, %v6735, %v6728
        %v7243 = vsel %vm7178, %v6742, %v7242
        %v7244 = vsel %vm7180, %v6749, %v7243
        %v7245 = vsel %vm7176, %v6763, %v6756
        %v7246 = vsel %vm7178, %v6770, %v7245
        %v7247 = vsel %vm7180, %v6777, %v7246
        %v7248 = vsel %vm7176, %v6791, %v6784
        %v7249 = vsel %vm7178, %v6798, %v7248
        %v7250 = vsel %vm7180, %v6805, %v7249
        %v7251 = vsel %vm7176, %v6819, %v6812
        %v7252 = vsel %vm7178, %v6826, %v7251
        %v7253 = vsel %vm7180, %v6833, %v7252
        %v7254 = vsel %vm7176, %v6847, %v6840
        %v7255 = vsel %vm7178, %v6854, %v7254
        %v7256 = vsel %vm7180, %v6861, %v7255
        %v7257 = vsel %vm7176, %v6875, %v6868
        %v7258 = vsel %vm7178, %v6882, %v7257
        %v7259 = vsel %vm7180, %v6889, %v7258
        %v7260 = vsel %vm7176, %v6903, %v6896
        %v7261 = vsel %vm7178, %v6910, %v7260
        %v7262 = vsel %vm7180, %v6917, %v7261
        %v7263 = vsel %vm7176, %v6931, %v6924
        %v7264 = vsel %vm7178, %v6938, %v7263
        %v7265 = vsel %vm7180, %v6945, %v7264
        %v7266 = vsel %vm7176, %v6959, %v6952
        %v7267 = vsel %vm7178, %v6966, %v7266
        %v7268 = vsel %vm7180, %v6973, %v7267
        %v7269 = vsel %vm7176, %v6987, %v6980
        %v7270 = vsel %vm7178, %v6994, %v7269
        %v7271 = vsel %vm7180, %v7001, %v7270
        %v7272 = vsel %vm7176, %v7015, %v7008
        %v7273 = vsel %vm7178, %v7022, %v7272
        %v7274 = vsel %vm7180, %v7029, %v7273
        %vm7307 = vcmask 1040384
        %v7308 = vsel %vm7307, 0.0, %v7181
        %v7309 = vsel %vm7307, 0.0, %v7184
        %v7310 = vsel %vm7307, 0.0, %v7187
        %v7311 = vsel %vm7307, 0.0, %v7190
        %v7312 = vsel %vm7307, 0.0, %v7193
        %v7313 = vsel %vm7307, 0.0, %v7196
        %v7314 = vsel %vm7307, 0.0, %v7199
        %v7315 = vsel %vm7307, 0.0, %v7202
        %v7316 = vsel %vm7307, 0.0, %v7205
        %v7317 = vsel %vm7307, 0.0, %v7208
        %v7318 = vsel %vm7307, 0.0, %v7211
        %v7319 = vsel %vm7307, 0.0, %v7214
        %v7320 = vsel %vm7307, 0.0, %v7217
        %v7321 = vsel %vm7307, 0.0, %v7220
        %v7322 = vsel %vm7307, 0.0, %v7223
        %v7323 = vsel %vm7307, 0.0, %v7226
        %v7324 = vsel %vm7307, 0.0, %v7229
        %v7325 = vsel %vm7307, 0.0, %v7232
        %v7326 = vsel %vm7307, 0.0, %v7235
        %v7327 = vsel %vm7307, 0.0, %v7238
        %v7328 = vsel %vm7307, 0.0, %v7241
        %v7329 = vsel %vm7307, 0.0, %v7244
        %v7330 = vsel %vm7307, 0.0, %v7247
        %v7331 = vsel %vm7307, 0.0, %v7250
        %v7332 = vsel %vm7307, 0.0, %v7253
        %v7333 = vsel %vm7307, 0.0, %v7256
        %v7334 = vsel %vm7307, 0.0, %v7259
        %v7335 = vsel %vm7307, 0.0, %v7262
        %v7336 = vsel %vm7307, 0.0, %v7265
        %v7337 = vsel %vm7307, 0.0, %v7268
        %v7338 = vsel %vm7307, 0.0, %v7271
        %v7339 = vsel %vm7307, 0.0, %v7274
        %vm7340 = vcmask 1044480
        %v7341 = vsel %vm7340, %v7308, 0.0
        %v7342 = vsel %vm7340, %v7309, 0.0
        %v7343 = vsel %vm7340, %v7310, 0.0
        %v7344 = vsel %vm7340, %v7311, 0.0
        %v7345 = vsel %vm7340, %v7312, 0.0
        %v7346 = vsel %vm7340, %v7313, 0.0
        %v7347 = vsel %vm7340, %v7314, 0.0
        %v7348 = vsel %vm7340, %v7315, 0.0
        %v7349 = vsel %vm7340, %v7316, 0.0
        %v7350 = vsel %vm7340, %v7317, 0.0
        %v7351 = vsel %vm7340, %v7318, 0.0
        %v7352 = vsel %vm7340, %v7319, 0.0
        %v7353 = vsel %vm7340, %v7320, 0.0
        %v7354 = vsel %vm7340, %v7321, 0.0
        %v7355 = vsel %vm7340, %v7322, 0.0
        %v7356 = vsel %vm7340, %v7323, 0.0
        %v7357 = vsel %vm7340, %v7324, 0.0
        %v7358 = vsel %vm7340, %v7325, 0.0
        %v7359 = vsel %vm7340, %v7326, 0.0
        %v7360 = vsel %vm7340, %v7327, 0.0
        %v7361 = vsel %vm7340, %v7328, 0.0
        %v7362 = vsel %vm7340, %v7329, 0.0
        %v7363 = vsel %vm7340, %v7330, 0.0
        %v7364 = vsel %vm7340, %v7331, 0.0
        %v7365 = vsel %vm7340, %v7332, 0.0
        %v7366 = vsel %vm7340, %v7333, 0.0
        %v7367 = vsel %vm7340, %v7334, 0.0
        %v7368 = vsel %vm7340, %v7335, 0.0
        %v7369 = vsel %vm7340, %v7336, 0.0
        %v7370 = vsel %vm7340, %v7337, 0.0
        %v7371 = vsel %vm7340, %v7338, 0.0
        %v7372 = vsel %vm7340, %v7339, 0.0
        %s7373 = scalar_lea.vmem [#allocation3], 8
        %7374 = vst.msk [vmem:[%s7373] sm:$0x3f] %vm7030, %v7341
        %7375 = vst.msk [vmem:[%s7373 + $0x8] sm:$0x3f] %vm7030, %v7342
        %7376 = vst.msk [vmem:[%s7373 + $0x10] sm:$0x3f] %vm7030, %v7343
        %7377 = vst.msk [vmem:[%s7373 + $0x18] sm:$0x3f] %vm7030, %v7344
        %7378 = vst.msk [vmem:[%s7373 + $0x30] sm:$0x3f] %vm7030, %v7345
        %7379 = vst.msk [vmem:[%s7373 + $0x38] sm:$0x3f] %vm7030, %v7346
        %7380 = vst.msk [vmem:[%s7373 + $0x40] sm:$0x3f] %vm7030, %v7347
        %7381 = vst.msk [vmem:[%s7373 + $0x48] sm:$0x3f] %vm7030, %v7348
        %7382 = vst.msk [vmem:[%s7373 + $0x60] sm:$0x3f] %vm7030, %v7349
        %7383 = vst.msk [vmem:[%s7373 + $0x68] sm:$0x3f] %vm7030, %v7350
        %7384 = vst.msk [vmem:[%s7373 + $0x70] sm:$0x3f] %vm7030, %v7351
        %7385 = vst.msk [vmem:[%s7373 + $0x78] sm:$0x3f] %vm7030, %v7352
        %7386 = vst.msk [vmem:[%s7373 + $0x90] sm:$0x3f] %vm7030, %v7353
        %7387 = vst.msk [vmem:[%s7373 + $0x98] sm:$0x3f] %vm7030, %v7354
        %7388 = vst.msk [vmem:[%s7373 + $0xa0] sm:$0x3f] %vm7030, %v7355
        %7389 = vst.msk [vmem:[%s7373 + $0xa8] sm:$0x3f] %vm7030, %v7356
        %7390 = vst.msk [vmem:[%s7373 + $0xc0] sm:$0x3f] %vm7030, %v7357
        %7391 = vst.msk [vmem:[%s7373 + $0xc8] sm:$0x3f] %vm7030, %v7358
        %7392 = vst.msk [vmem:[%s7373 + $0xd0] sm:$0x3f] %vm7030, %v7359
        %7393 = vst.msk [vmem:[%s7373 + $0xd8] sm:$0x3f] %vm7030, %v7360
        %7394 = vst.msk [vmem:[%s7373 + $0xf0] sm:$0x3f] %vm7030, %v7361
        %7395 = vst.msk [vmem:[%s7373 + $0xf8] sm:$0x3f] %vm7030, %v7362
        %7396 = vst.msk [vmem:[%s7373 + $0x100] sm:$0x3f] %vm7030, %v7363
        %7397 = vst.msk [vmem:[%s7373 + $0x108] sm:$0x3f] %vm7030, %v7364
        %7398 = vst.msk [vmem:[%s7373 + $0x120] sm:$0x3f] %vm7030, %v7365
        %7399 = vst.msk [vmem:[%s7373 + $0x128] sm:$0x3f] %vm7030, %v7366
        %7400 = vst.msk [vmem:[%s7373 + $0x130] sm:$0x3f] %vm7030, %v7367
        %7401 = vst.msk [vmem:[%s7373 + $0x138] sm:$0x3f] %vm7030, %v7368
        %7402 = vst.msk [vmem:[%s7373 + $0x150] sm:$0x3f] %vm7030, %v7369
        %7403 = vst.msk [vmem:[%s7373 + $0x158] sm:$0x3f] %vm7030, %v7370
        %7404 = vst.msk [vmem:[%s7373 + $0x160] sm:$0x3f] %vm7030, %v7371
        %7405 = vst.msk [vmem:[%s7373 + $0x168] sm:$0x3f] %vm7030, %v7372
        %v7406 = vld [vmem:[#allocation3] sm:$0xf]
        %v7407 = vld [vmem:[#allocation3 + $0x8] sm:$0xf]
        %v7408 = vld [vmem:[#allocation3 + $0x10] sm:$0xf]
        %v7409 = vld [vmem:[#allocation3 + $0x18] sm:$0xf]
        %v7410 = vld [vmem:[#allocation3 + $0x30] sm:$0xf]
        %v7411 = vld [vmem:[#allocation3 + $0x38] sm:$0xf]
        %v7412 = vld [vmem:[#allocation3 + $0x40] sm:$0xf]
        %v7413 = vld [vmem:[#allocation3 + $0x48] sm:$0xf]
        %v7414 = vld [vmem:[#allocation3 + $0x60] sm:$0xf]
        %v7415 = vld [vmem:[#allocation3 + $0x68] sm:$0xf]
        %v7416 = vld [vmem:[#allocation3 + $0x70] sm:$0xf]
        %v7417 = vld [vmem:[#allocation3 + $0x78] sm:$0xf]
        %v7418 = vld [vmem:[#allocation3 + $0x90] sm:$0xf]
        %v7419 = vld [vmem:[#allocation3 + $0x98] sm:$0xf]
        %v7420 = vld [vmem:[#allocation3 + $0xa0] sm:$0xf]
        %v7421 = vld [vmem:[#allocation3 + $0xa8] sm:$0xf]
        %v7422 = vld [vmem:[#allocation3 + $0xc0] sm:$0xf]
        %v7423 = vld [vmem:[#allocation3 + $0xc8] sm:$0xf]
        %v7424 = vld [vmem:[#allocation3 + $0xd0] sm:$0xf]
        %v7425 = vld [vmem:[#allocation3 + $0xd8] sm:$0xf]
        %v7426 = vld [vmem:[#allocation3 + $0xf0] sm:$0xf]
        %v7427 = vld [vmem:[#allocation3 + $0xf8] sm:$0xf]
        %v7428 = vld [vmem:[#allocation3 + $0x100] sm:$0xf]
        %v7429 = vld [vmem:[#allocation3 + $0x108] sm:$0xf]
        %v7430 = vld [vmem:[#allocation3 + $0x120] sm:$0xf]
        %v7431 = vld [vmem:[#allocation3 + $0x128] sm:$0xf]
        %v7432 = vld [vmem:[#allocation3 + $0x130] sm:$0xf]
        %v7433 = vld [vmem:[#allocation3 + $0x138] sm:$0xf]
        %v7434 = vld [vmem:[#allocation3 + $0x150] sm:$0xf]
        %v7435 = vld [vmem:[#allocation3 + $0x158] sm:$0xf]
        %v7436 = vld [vmem:[#allocation3 + $0x160] sm:$0xf]
        %v7437 = vld [vmem:[#allocation3 + $0x168] sm:$0xf]
        %v7470 = vcombine.low %v7406, %v7407
        %v7471 = vcombine.low %v7408, %v7409
        %v7472 = vcombine.low %v7410, %v7411
        %v7473 = vcombine.low %v7412, %v7413
        %v7474 = vcombine.low %v7414, %v7415
        %v7475 = vcombine.low %v7416, %v7417
        %v7476 = vcombine.low %v7418, %v7419
        %v7477 = vcombine.low %v7420, %v7421
        %v7478 = vcombine.low %v7422, %v7423
        %v7479 = vcombine.low %v7424, %v7425
        %v7480 = vcombine.low %v7426, %v7427
        %v7481 = vcombine.low %v7428, %v7429
        %v7482 = vcombine.low %v7430, %v7431
        %v7483 = vcombine.low %v7432, %v7433
        %v7484 = vcombine.low %v7434, %v7435
        %v7485 = vcombine.low %v7436, %v7437
        %7502 = vst.msk [vmem:[#allocation5] sm:$0xff] %vm5332, %v7470
        %7503 = vst.msk [vmem:[#allocation5 + $0x18] sm:$0xff] %vm5332, %v7471
        %7504 = vst.msk [vmem:[#allocation5 + $0x30] sm:$0xff] %vm5332, %v7472
        %7505 = vst.msk [vmem:[#allocation5 + $0x48] sm:$0xff] %vm5332, %v7473
        %7506 = vst.msk [vmem:[#allocation5 + $0x60] sm:$0xff] %vm5332, %v7474
        %7507 = vst.msk [vmem:[#allocation5 + $0x78] sm:$0xff] %vm5332, %v7475
        %7508 = vst.msk [vmem:[#allocation5 + $0x90] sm:$0xff] %vm5332, %v7476
        %7509 = vst.msk [vmem:[#allocation5 + $0xa8] sm:$0xff] %vm5332, %v7477
        %7510 = vst.msk [vmem:[#allocation5 + $0xc0] sm:$0xff] %vm5332, %v7478
        %7511 = vst.msk [vmem:[#allocation5 + $0xd8] sm:$0xff] %vm5332, %v7479
        %7512 = vst.msk [vmem:[#allocation5 + $0xf0] sm:$0xff] %vm5332, %v7480
        %7513 = vst.msk [vmem:[#allocation5 + $0x108] sm:$0xff] %vm5332, %v7481
        %7514 = vst.msk [vmem:[#allocation5 + $0x120] sm:$0xff] %vm5332, %v7482
        %7515 = vst.msk [vmem:[#allocation5 + $0x138] sm:$0xff] %vm5332, %v7483
        %7516 = vst.msk [vmem:[#allocation5 + $0x150] sm:$0xff] %vm5332, %v7484
        %7517 = vst.msk [vmem:[#allocation5 + $0x168] sm:$0xff] %vm5332, %v7485
        %v7518 = vld [vmem:[#allocation3 + $0x1] sm:$0xf]
        %v7519 = vld [vmem:[#allocation3 + $0x9] sm:$0xf]
        %v7520 = vld [vmem:[#allocation3 + $0x11] sm:$0xf]
        %v7521 = vld [vmem:[#allocation3 + $0x19] sm:$0xf]
        %v7522 = vld [vmem:[#allocation3 + $0x31] sm:$0xf]
        %v7523 = vld [vmem:[#allocation3 + $0x39] sm:$0xf]
        %v7524 = vld [vmem:[#allocation3 + $0x41] sm:$0xf]
        %v7525 = vld [vmem:[#allocation3 + $0x49] sm:$0xf]
        %v7526 = vld [vmem:[#allocation3 + $0x61] sm:$0xf]
        %v7527 = vld [vmem:[#allocation3 + $0x69] sm:$0xf]
        %v7528 = vld [vmem:[#allocation3 + $0x71] sm:$0xf]
        %v7529 = vld [vmem:[#allocation3 + $0x79] sm:$0xf]
        %v7530 = vld [vmem:[#allocation3 + $0x91] sm:$0xf]
        %v7531 = vld [vmem:[#allocation3 + $0x99] sm:$0xf]
        %v7532 = vld [vmem:[#allocation3 + $0xa1] sm:$0xf]
        %v7533 = vld [vmem:[#allocation3 + $0xa9] sm:$0xf]
        %v7534 = vld [vmem:[#allocation3 + $0xc1] sm:$0xf]
        %v7535 = vld [vmem:[#allocation3 + $0xc9] sm:$0xf]
        %v7536 = vld [vmem:[#allocation3 + $0xd1] sm:$0xf]
        %v7537 = vld [vmem:[#allocation3 + $0xd9] sm:$0xf]
        %v7538 = vld [vmem:[#allocation3 + $0xf1] sm:$0xf]
        %v7539 = vld [vmem:[#allocation3 + $0xf9] sm:$0xf]
        %v7540 = vld [vmem:[#allocation3 + $0x101] sm:$0xf]
        %v7541 = vld [vmem:[#allocation3 + $0x109] sm:$0xf]
        %v7542 = vld [vmem:[#allocation3 + $0x121] sm:$0xf]
        %v7543 = vld [vmem:[#allocation3 + $0x129] sm:$0xf]
        %v7544 = vld [vmem:[#allocation3 + $0x131] sm:$0xf]
        %v7545 = vld [vmem:[#allocation3 + $0x139] sm:$0xf]
        %v7546 = vld [vmem:[#allocation3 + $0x151] sm:$0xf]
        %v7547 = vld [vmem:[#allocation3 + $0x159] sm:$0xf]
        %v7548 = vld [vmem:[#allocation3 + $0x161] sm:$0xf]
        %v7549 = vld [vmem:[#allocation3 + $0x169] sm:$0xf]
        %v7582 = vcombine.low %v7518, %v7519
        %v7583 = vcombine.low %v7520, %v7521
        %v7584 = vcombine.low %v7522, %v7523
        %v7585 = vcombine.low %v7524, %v7525
        %v7586 = vcombine.low %v7526, %v7527
        %v7587 = vcombine.low %v7528, %v7529
        %v7588 = vcombine.low %v7530, %v7531
        %v7589 = vcombine.low %v7532, %v7533
        %v7590 = vcombine.low %v7534, %v7535
        %v7591 = vcombine.low %v7536, %v7537
        %v7592 = vcombine.low %v7538, %v7539
        %v7593 = vcombine.low %v7540, %v7541
        %v7594 = vcombine.low %v7542, %v7543
        %v7595 = vcombine.low %v7544, %v7545
        %v7596 = vcombine.low %v7546, %v7547
        %v7597 = vcombine.low %v7548, %v7549
        %7598 = vrot.lane.b32.xlu0 %v7582, 32
        %v7599 = vpop.permute.xlu0 %7598
        %7600 = vrot.lane.b32.xlu0 %v7583, 32
        %v7601 = vpop.permute.xlu0 %7600
        %7602 = vrot.lane.b32.xlu0 %v7584, 32
        %v7603 = vpop.permute.xlu0 %7602
        %7604 = vrot.lane.b32.xlu0 %v7585, 32
        %v7605 = vpop.permute.xlu0 %7604
        %7606 = vrot.lane.b32.xlu0 %v7586, 32
        %v7607 = vpop.permute.xlu0 %7606
        %7608 = vrot.lane.b32.xlu0 %v7587, 32
        %v7609 = vpop.permute.xlu0 %7608
        %7610 = vrot.lane.b32.xlu0 %v7588, 32
        %v7611 = vpop.permute.xlu0 %7610
        %7612 = vrot.lane.b32.xlu0 %v7589, 32
        %v7613 = vpop.permute.xlu0 %7612
        %7614 = vrot.lane.b32.xlu0 %v7590, 32
        %v7615 = vpop.permute.xlu0 %7614
        %7616 = vrot.lane.b32.xlu0 %v7591, 32
        %v7617 = vpop.permute.xlu0 %7616
        %7618 = vrot.lane.b32.xlu0 %v7592, 32
        %v7619 = vpop.permute.xlu0 %7618
        %7620 = vrot.lane.b32.xlu0 %v7593, 32
        %v7621 = vpop.permute.xlu0 %7620
        %7622 = vrot.lane.b32.xlu0 %v7594, 32
        %v7623 = vpop.permute.xlu0 %7622
        %7624 = vrot.lane.b32.xlu0 %v7595, 32
        %v7625 = vpop.permute.xlu0 %7624
        %7626 = vrot.lane.b32.xlu0 %v7596, 32
        %v7627 = vpop.permute.xlu0 %7626
        %7628 = vrot.lane.b32.xlu0 %v7597, 32
        %v7629 = vpop.permute.xlu0 %7628
        %vm7646 = vcmask 523520
        %7647 = vst.msk [vmem:[#allocation5] sm:$0xff] %vm7646, %v7599
        %7648 = vst.msk [vmem:[#allocation5 + $0x18] sm:$0xff] %vm7646, %v7601
        %7649 = vst.msk [vmem:[#allocation5 + $0x30] sm:$0xff] %vm7646, %v7603
        %7650 = vst.msk [vmem:[#allocation5 + $0x48] sm:$0xff] %vm7646, %v7605
        %7651 = vst.msk [vmem:[#allocation5 + $0x60] sm:$0xff] %vm7646, %v7607
        %7652 = vst.msk [vmem:[#allocation5 + $0x78] sm:$0xff] %vm7646, %v7609
        %7653 = vst.msk [vmem:[#allocation5 + $0x90] sm:$0xff] %vm7646, %v7611
        %7654 = vst.msk [vmem:[#allocation5 + $0xa8] sm:$0xff] %vm7646, %v7613
        %7655 = vst.msk [vmem:[#allocation5 + $0xc0] sm:$0xff] %vm7646, %v7615
        %7656 = vst.msk [vmem:[#allocation5 + $0xd8] sm:$0xff] %vm7646, %v7617
        %7657 = vst.msk [vmem:[#allocation5 + $0xf0] sm:$0xff] %vm7646, %v7619
        %7658 = vst.msk [vmem:[#allocation5 + $0x108] sm:$0xff] %vm7646, %v7621
        %7659 = vst.msk [vmem:[#allocation5 + $0x120] sm:$0xff] %vm7646, %v7623
        %7660 = vst.msk [vmem:[#allocation5 + $0x138] sm:$0xff] %vm7646, %v7625
        %7661 = vst.msk [vmem:[#allocation5 + $0x150] sm:$0xff] %vm7646, %v7627
        %7662 = vst.msk [vmem:[#allocation5 + $0x168] sm:$0xff] %vm7646, %v7629
        %v7663 = vld [vmem:[#allocation3 + $0x2] sm:$0xf]
        %v7664 = vld [vmem:[#allocation3 + $0xa] sm:$0xf]
        %v7665 = vld [vmem:[#allocation3 + $0x12] sm:$0xf]
        %v7666 = vld [vmem:[#allocation3 + $0x1a] sm:$0xf]
        %v7667 = vld [vmem:[#allocation3 + $0x32] sm:$0xf]
        %v7668 = vld [vmem:[#allocation3 + $0x3a] sm:$0xf]
        %v7669 = vld [vmem:[#allocation3 + $0x42] sm:$0xf]
        %v7670 = vld [vmem:[#allocation3 + $0x4a] sm:$0xf]
        %v7671 = vld [vmem:[#allocation3 + $0x62] sm:$0xf]
        %v7672 = vld [vmem:[#allocation3 + $0x6a] sm:$0xf]
        %v7673 = vld [vmem:[#allocation3 + $0x72] sm:$0xf]
        %v7674 = vld [vmem:[#allocation3 + $0x7a] sm:$0xf]
        %v7675 = vld [vmem:[#allocation3 + $0x92] sm:$0xf]
        %v7676 = vld [vmem:[#allocation3 + $0x9a] sm:$0xf]
        %v7677 = vld [vmem:[#allocation3 + $0xa2] sm:$0xf]
        %v7678 = vld [vmem:[#allocation3 + $0xaa] sm:$0xf]
        %v7679 = vld [vmem:[#allocation3 + $0xc2] sm:$0xf]
        %v7680 = vld [vmem:[#allocation3 + $0xca] sm:$0xf]
        %v7681 = vld [vmem:[#allocation3 + $0xd2] sm:$0xf]
        %v7682 = vld [vmem:[#allocation3 + $0xda] sm:$0xf]
        %v7683 = vld [vmem:[#allocation3 + $0xf2] sm:$0xf]
        %v7684 = vld [vmem:[#allocation3 + $0xfa] sm:$0xf]
        %v7685 = vld [vmem:[#allocation3 + $0x102] sm:$0xf]
        %v7686 = vld [vmem:[#allocation3 + $0x10a] sm:$0xf]
        %v7687 = vld [vmem:[#allocation3 + $0x122] sm:$0xf]
        %v7688 = vld [vmem:[#allocation3 + $0x12a] sm:$0xf]
        %v7689 = vld [vmem:[#allocation3 + $0x132] sm:$0xf]
        %v7690 = vld [vmem:[#allocation3 + $0x13a] sm:$0xf]
        %v7691 = vld [vmem:[#allocation3 + $0x152] sm:$0xf]
        %v7692 = vld [vmem:[#allocation3 + $0x15a] sm:$0xf]
        %v7693 = vld [vmem:[#allocation3 + $0x162] sm:$0xf]
        %v7694 = vld [vmem:[#allocation3 + $0x16a] sm:$0xf]
        %v7727 = vcombine.low %v7663, %v7664
        %v7728 = vcombine.low %v7665, %v7666
        %v7729 = vcombine.low %v7667, %v7668
        %v7730 = vcombine.low %v7669, %v7670
        %v7731 = vcombine.low %v7671, %v7672
        %v7732 = vcombine.low %v7673, %v7674
        %v7733 = vcombine.low %v7675, %v7676
        %v7734 = vcombine.low %v7677, %v7678
        %v7735 = vcombine.low %v7679, %v7680
        %v7736 = vcombine.low %v7681, %v7682
        %v7737 = vcombine.low %v7683, %v7684
        %v7738 = vcombine.low %v7685, %v7686
        %v7739 = vcombine.low %v7687, %v7688
        %v7740 = vcombine.low %v7689, %v7690
        %v7741 = vcombine.low %v7691, %v7692
        %v7742 = vcombine.low %v7693, %v7694
        %7743 = vrot.lane.b32.xlu0 %v7727, 64
        %v7744 = vpop.permute.xlu0 %7743
        %7745 = vrot.lane.b32.xlu0 %v7728, 64
        %v7746 = vpop.permute.xlu0 %7745
        %7747 = vrot.lane.b32.xlu0 %v7729, 64
        %v7748 = vpop.permute.xlu0 %7747
        %7749 = vrot.lane.b32.xlu0 %v7730, 64
        %v7750 = vpop.permute.xlu0 %7749
        %7751 = vrot.lane.b32.xlu0 %v7731, 64
        %v7752 = vpop.permute.xlu0 %7751
        %7753 = vrot.lane.b32.xlu0 %v7732, 64
        %v7754 = vpop.permute.xlu0 %7753
        %7755 = vrot.lane.b32.xlu0 %v7733, 64
        %v7756 = vpop.permute.xlu0 %7755
        %7757 = vrot.lane.b32.xlu0 %v7734, 64
        %v7758 = vpop.permute.xlu0 %7757
        %7759 = vrot.lane.b32.xlu0 %v7735, 64
        %v7760 = vpop.permute.xlu0 %7759
        %7761 = vrot.lane.b32.xlu0 %v7736, 64
        %v7762 = vpop.permute.xlu0 %7761
        %7763 = vrot.lane.b32.xlu0 %v7737, 64
        %v7764 = vpop.permute.xlu0 %7763
        %7765 = vrot.lane.b32.xlu0 %v7738, 64
        %v7766 = vpop.permute.xlu0 %7765
        %7767 = vrot.lane.b32.xlu0 %v7739, 64
        %v7768 = vpop.permute.xlu0 %7767
        %7769 = vrot.lane.b32.xlu0 %v7740, 64
        %v7770 = vpop.permute.xlu0 %7769
        %7771 = vrot.lane.b32.xlu0 %v7741, 64
        %v7772 = vpop.permute.xlu0 %7771
        %7773 = vrot.lane.b32.xlu0 %v7742, 64
        %v7774 = vpop.permute.xlu0 %7773
        %vm7791 = vcmask 785920
        %7792 = vst.msk [vmem:[#allocation5] sm:$0xff] %vm7791, %v7744
        %7793 = vst.msk [vmem:[#allocation5 + $0x18] sm:$0xff] %vm7791, %v7746
        %7794 = vst.msk [vmem:[#allocation5 + $0x30] sm:$0xff] %vm7791, %v7748
        %7795 = vst.msk [vmem:[#allocation5 + $0x48] sm:$0xff] %vm7791, %v7750
        %7796 = vst.msk [vmem:[#allocation5 + $0x60] sm:$0xff] %vm7791, %v7752
        %7797 = vst.msk [vmem:[#allocation5 + $0x78] sm:$0xff] %vm7791, %v7754
        %7798 = vst.msk [vmem:[#allocation5 + $0x90] sm:$0xff] %vm7791, %v7756
        %7799 = vst.msk [vmem:[#allocation5 + $0xa8] sm:$0xff] %vm7791, %v7758
        %7800 = vst.msk [vmem:[#allocation5 + $0xc0] sm:$0xff] %vm7791, %v7760
        %7801 = vst.msk [vmem:[#allocation5 + $0xd8] sm:$0xff] %vm7791, %v7762
        %7802 = vst.msk [vmem:[#allocation5 + $0xf0] sm:$0xff] %vm7791, %v7764
        %7803 = vst.msk [vmem:[#allocation5 + $0x108] sm:$0xff] %vm7791, %v7766
        %7804 = vst.msk [vmem:[#allocation5 + $0x120] sm:$0xff] %vm7791, %v7768
        %7805 = vst.msk [vmem:[#allocation5 + $0x138] sm:$0xff] %vm7791, %v7770
        %7806 = vst.msk [vmem:[#allocation5 + $0x150] sm:$0xff] %vm7791, %v7772
        %7807 = vst.msk [vmem:[#allocation5 + $0x168] sm:$0xff] %vm7791, %v7774
        %v7808 = vld [vmem:[%s7373] sm:$0xf]
        %v7809 = vld [vmem:[%s7373 + $0x8] sm:$0xf]
        %v7810 = vld [vmem:[%s7373 + $0x10] sm:$0xf]
        %v7811 = vld [vmem:[%s7373 + $0x18] sm:$0xf]
        %v7812 = vld [vmem:[%s7373 + $0x30] sm:$0xf]
        %v7813 = vld [vmem:[%s7373 + $0x38] sm:$0xf]
        %v7814 = vld [vmem:[%s7373 + $0x40] sm:$0xf]
        %v7815 = vld [vmem:[%s7373 + $0x48] sm:$0xf]
        %v7816 = vld [vmem:[%s7373 + $0x60] sm:$0xf]
        %v7817 = vld [vmem:[%s7373 + $0x68] sm:$0xf]
        %v7818 = vld [vmem:[%s7373 + $0x70] sm:$0xf]
        %v7819 = vld [vmem:[%s7373 + $0x78] sm:$0xf]
        %v7820 = vld [vmem:[%s7373 + $0x90] sm:$0xf]
        %v7821 = vld [vmem:[%s7373 + $0x98] sm:$0xf]
        %v7822 = vld [vmem:[%s7373 + $0xa0] sm:$0xf]
        %v7823 = vld [vmem:[%s7373 + $0xa8] sm:$0xf]
        %v7824 = vld [vmem:[%s7373 + $0xc0] sm:$0xf]
        %v7825 = vld [vmem:[%s7373 + $0xc8] sm:$0xf]
        %v7826 = vld [vmem:[%s7373 + $0xd0] sm:$0xf]
        %v7827 = vld [vmem:[%s7373 + $0xd8] sm:$0xf]
        %v7828 = vld [vmem:[%s7373 + $0xf0] sm:$0xf]
        %v7829 = vld [vmem:[%s7373 + $0xf8] sm:$0xf]
        %v7830 = vld [vmem:[%s7373 + $0x100] sm:$0xf]
        %v7831 = vld [vmem:[%s7373 + $0x108] sm:$0xf]
        %v7832 = vld [vmem:[%s7373 + $0x120] sm:$0xf]
        %v7833 = vld [vmem:[%s7373 + $0x128] sm:$0xf]
        %v7834 = vld [vmem:[%s7373 + $0x130] sm:$0xf]
        %v7835 = vld [vmem:[%s7373 + $0x138] sm:$0xf]
        %v7836 = vld [vmem:[%s7373 + $0x150] sm:$0xf]
        %v7837 = vld [vmem:[%s7373 + $0x158] sm:$0xf]
        %v7838 = vld [vmem:[%s7373 + $0x160] sm:$0xf]
        %v7839 = vld [vmem:[%s7373 + $0x168] sm:$0xf]
        %v7872 = vcombine.low %v7808, %v7809
        %v7873 = vcombine.low %v7810, %v7811
        %v7874 = vcombine.low %v7812, %v7813
        %v7875 = vcombine.low %v7814, %v7815
        %v7876 = vcombine.low %v7816, %v7817
        %v7877 = vcombine.low %v7818, %v7819
        %v7878 = vcombine.low %v7820, %v7821
        %v7879 = vcombine.low %v7822, %v7823
        %v7880 = vcombine.low %v7824, %v7825
        %v7881 = vcombine.low %v7826, %v7827
        %v7882 = vcombine.low %v7828, %v7829
        %v7883 = vcombine.low %v7830, %v7831
        %v7884 = vcombine.low %v7832, %v7833
        %v7885 = vcombine.low %v7834, %v7835
        %v7886 = vcombine.low %v7836, %v7837
        %v7887 = vcombine.low %v7838, %v7839
        %7888 = vrot.lane.b32.xlu0 %v7872, 96
        %v7889 = vpop.permute.xlu0 %7888
        %7890 = vrot.lane.b32.xlu0 %v7873, 96
        %v7891 = vpop.permute.xlu0 %7890
        %7892 = vrot.lane.b32.xlu0 %v7874, 96
        %v7893 = vpop.permute.xlu0 %7892
        %7894 = vrot.lane.b32.xlu0 %v7875, 96
        %v7895 = vpop.permute.xlu0 %7894
        %7896 = vrot.lane.b32.xlu0 %v7876, 96
        %v7897 = vpop.permute.xlu0 %7896
        %7898 = vrot.lane.b32.xlu0 %v7877, 96
        %v7899 = vpop.permute.xlu0 %7898
        %7900 = vrot.lane.b32.xlu0 %v7878, 96
        %v7901 = vpop.permute.xlu0 %7900
        %7902 = vrot.lane.b32.xlu0 %v7879, 96
        %v7903 = vpop.permute.xlu0 %7902
        %7904 = vrot.lane.b32.xlu0 %v7880, 96
        %v7905 = vpop.permute.xlu0 %7904
        %7906 = vrot.lane.b32.xlu0 %v7881, 96
        %v7907 = vpop.permute.xlu0 %7906
        %7908 = vrot.lane.b32.xlu0 %v7882, 96
        %v7909 = vpop.permute.xlu0 %7908
        %7910 = vrot.lane.b32.xlu0 %v7883, 96
        %v7911 = vpop.permute.xlu0 %7910
        %7912 = vrot.lane.b32.xlu0 %v7884, 96
        %v7913 = vpop.permute.xlu0 %7912
        %7914 = vrot.lane.b32.xlu0 %v7885, 96
        %v7915 = vpop.permute.xlu0 %7914
        %7916 = vrot.lane.b32.xlu0 %v7886, 96
        %v7917 = vpop.permute.xlu0 %7916
        %7918 = vrot.lane.b32.xlu0 %v7887, 96
        %v7919 = vpop.permute.xlu0 %7918
        %vm7936 = vcmask 1048320
        %7937 = vst.msk [vmem:[#allocation5] sm:$0xff] %vm7936, %v7889
        %7938 = vst.msk [vmem:[#allocation5 + $0x18] sm:$0xff] %vm7936, %v7891
        %7939 = vst.msk [vmem:[#allocation5 + $0x30] sm:$0xff] %vm7936, %v7893
        %7940 = vst.msk [vmem:[#allocation5 + $0x48] sm:$0xff] %vm7936, %v7895
        %7941 = vst.msk [vmem:[#allocation5 + $0x60] sm:$0xff] %vm7936, %v7897
        %7942 = vst.msk [vmem:[#allocation5 + $0x78] sm:$0xff] %vm7936, %v7899
        %7943 = vst.msk [vmem:[#allocation5 + $0x90] sm:$0xff] %vm7936, %v7901
        %7944 = vst.msk [vmem:[#allocation5 + $0xa8] sm:$0xff] %vm7936, %v7903
        %7945 = vst.msk [vmem:[#allocation5 + $0xc0] sm:$0xff] %vm7936, %v7905
        %7946 = vst.msk [vmem:[#allocation5 + $0xd8] sm:$0xff] %vm7936, %v7907
        %7947 = vst.msk [vmem:[#allocation5 + $0xf0] sm:$0xff] %vm7936, %v7909
        %7948 = vst.msk [vmem:[#allocation5 + $0x108] sm:$0xff] %vm7936, %v7911
        %7949 = vst.msk [vmem:[#allocation5 + $0x120] sm:$0xff] %vm7936, %v7913
        %7950 = vst.msk [vmem:[#allocation5 + $0x138] sm:$0xff] %vm7936, %v7915
        %7951 = vst.msk [vmem:[#allocation5 + $0x150] sm:$0xff] %vm7936, %v7917
        %7952 = vst.msk [vmem:[#allocation5 + $0x168] sm:$0xff] %vm7936, %v7919
        %v7953 = vld [vmem:[%s7373 + $0x1] sm:$0xf]
        %v7954 = vld [vmem:[%s7373 + $0x9] sm:$0xf]
        %v7955 = vld [vmem:[%s7373 + $0x11] sm:$0xf]
        %v7956 = vld [vmem:[%s7373 + $0x19] sm:$0xf]
        %v7957 = vld [vmem:[%s7373 + $0x31] sm:$0xf]
        %v7958 = vld [vmem:[%s7373 + $0x39] sm:$0xf]
        %v7959 = vld [vmem:[%s7373 + $0x41] sm:$0xf]
        %v7960 = vld [vmem:[%s7373 + $0x49] sm:$0xf]
        %v7961 = vld [vmem:[%s7373 + $0x61] sm:$0xf]
        %v7962 = vld [vmem:[%s7373 + $0x69] sm:$0xf]
        %v7963 = vld [vmem:[%s7373 + $0x71] sm:$0xf]
        %v7964 = vld [vmem:[%s7373 + $0x79] sm:$0xf]
        %v7965 = vld [vmem:[%s7373 + $0x91] sm:$0xf]
        %v7966 = vld [vmem:[%s7373 + $0x99] sm:$0xf]
        %v7967 = vld [vmem:[%s7373 + $0xa1] sm:$0xf]
        %v7968 = vld [vmem:[%s7373 + $0xa9] sm:$0xf]
        %v7969 = vld [vmem:[%s7373 + $0xc1] sm:$0xf]
        %v7970 = vld [vmem:[%s7373 + $0xc9] sm:$0xf]
        %v7971 = vld [vmem:[%s7373 + $0xd1] sm:$0xf]
        %v7972 = vld [vmem:[%s7373 + $0xd9] sm:$0xf]
        %v7973 = vld [vmem:[%s7373 + $0xf1] sm:$0xf]
        %v7974 = vld [vmem:[%s7373 + $0xf9] sm:$0xf]
        %v7975 = vld [vmem:[%s7373 + $0x101] sm:$0xf]
        %v7976 = vld [vmem:[%s7373 + $0x109] sm:$0xf]
        %v7977 = vld [vmem:[%s7373 + $0x121] sm:$0xf]
        %v7978 = vld [vmem:[%s7373 + $0x129] sm:$0xf]
        %v7979 = vld [vmem:[%s7373 + $0x131] sm:$0xf]
        %v7980 = vld [vmem:[%s7373 + $0x139] sm:$0xf]
        %v7981 = vld [vmem:[%s7373 + $0x151] sm:$0xf]
        %v7982 = vld [vmem:[%s7373 + $0x159] sm:$0xf]
        %v7983 = vld [vmem:[%s7373 + $0x161] sm:$0xf]
        %v7984 = vld [vmem:[%s7373 + $0x169] sm:$0xf]
        %v8017 = vcombine.low %v7953, %v7954
        %v8018 = vcombine.low %v7955, %v7956
        %v8019 = vcombine.low %v7957, %v7958
        %v8020 = vcombine.low %v7959, %v7960
        %v8021 = vcombine.low %v7961, %v7962
        %v8022 = vcombine.low %v7963, %v7964
        %v8023 = vcombine.low %v7965, %v7966
        %v8024 = vcombine.low %v7967, %v7968
        %v8025 = vcombine.low %v7969, %v7970
        %v8026 = vcombine.low %v7971, %v7972
        %v8027 = vcombine.low %v7973, %v7974
        %v8028 = vcombine.low %v7975, %v7976
        %v8029 = vcombine.low %v7977, %v7978
        %v8030 = vcombine.low %v7979, %v7980
        %v8031 = vcombine.low %v7981, %v7982
        %v8032 = vcombine.low %v7983, %v7984
        %8049 = vst.msk [vmem:[#allocation5 + $0x8] sm:$0xff] %vm5332, %v8017
        %8050 = vst.msk [vmem:[#allocation5 + $0x20] sm:$0xff] %vm5332, %v8018
        %8051 = vst.msk [vmem:[#allocation5 + $0x38] sm:$0xff] %vm5332, %v8019
        %8052 = vst.msk [vmem:[#allocation5 + $0x50] sm:$0xff] %vm5332, %v8020
        %8053 = vst.msk [vmem:[#allocation5 + $0x68] sm:$0xff] %vm5332, %v8021
        %8054 = vst.msk [vmem:[#allocation5 + $0x80] sm:$0xff] %vm5332, %v8022
        %8055 = vst.msk [vmem:[#allocation5 + $0x98] sm:$0xff] %vm5332, %v8023
        %8056 = vst.msk [vmem:[#allocation5 + $0xb0] sm:$0xff] %vm5332, %v8024
        %8057 = vst.msk [vmem:[#allocation5 + $0xc8] sm:$0xff] %vm5332, %v8025
        %8058 = vst.msk [vmem:[#allocation5 + $0xe0] sm:$0xff] %vm5332, %v8026
        %8059 = vst.msk [vmem:[#allocation5 + $0xf8] sm:$0xff] %vm5332, %v8027
        %8060 = vst.msk [vmem:[#allocation5 + $0x110] sm:$0xff] %vm5332, %v8028
        %8061 = vst.msk [vmem:[#allocation5 + $0x128] sm:$0xff] %vm5332, %v8029
        %8062 = vst.msk [vmem:[#allocation5 + $0x140] sm:$0xff] %vm5332, %v8030
        %8063 = vst.msk [vmem:[#allocation5 + $0x158] sm:$0xff] %vm5332, %v8031
        %8064 = vst.msk [vmem:[#allocation5 + $0x170] sm:$0xff] %vm5332, %v8032
        %v8065 = vld [vmem:[%s7373 + $0x2] sm:$0xf]
        %v8066 = vld [vmem:[%s7373 + $0xa] sm:$0xf]
        %v8067 = vld [vmem:[%s7373 + $0x12] sm:$0xf]
        %v8068 = vld [vmem:[%s7373 + $0x1a] sm:$0xf]
        %v8069 = vld [vmem:[%s7373 + $0x32] sm:$0xf]
        %v8070 = vld [vmem:[%s7373 + $0x3a] sm:$0xf]
        %v8071 = vld [vmem:[%s7373 + $0x42] sm:$0xf]
        %v8072 = vld [vmem:[%s7373 + $0x4a] sm:$0xf]
        %v8073 = vld [vmem:[%s7373 + $0x62] sm:$0xf]
        %v8074 = vld [vmem:[%s7373 + $0x6a] sm:$0xf]
        %v8075 = vld [vmem:[%s7373 + $0x72] sm:$0xf]
        %v8076 = vld [vmem:[%s7373 + $0x7a] sm:$0xf]
        %v8077 = vld [vmem:[%s7373 + $0x92] sm:$0xf]
        %v8078 = vld [vmem:[%s7373 + $0x9a] sm:$0xf]
        %v8079 = vld [vmem:[%s7373 + $0xa2] sm:$0xf]
        %v8080 = vld [vmem:[%s7373 + $0xaa] sm:$0xf]
        %v8081 = vld [vmem:[%s7373 + $0xc2] sm:$0xf]
        %v8082 = vld [vmem:[%s7373 + $0xca] sm:$0xf]
        %v8083 = vld [vmem:[%s7373 + $0xd2] sm:$0xf]
        %v8084 = vld [vmem:[%s7373 + $0xda] sm:$0xf]
        %v8085 = vld [vmem:[%s7373 + $0xf2] sm:$0xf]
        %v8086 = vld [vmem:[%s7373 + $0xfa] sm:$0xf]
        %v8087 = vld [vmem:[%s7373 + $0x102] sm:$0xf]
        %v8088 = vld [vmem:[%s7373 + $0x10a] sm:$0xf]
        %v8089 = vld [vmem:[%s7373 + $0x122] sm:$0xf]
        %v8090 = vld [vmem:[%s7373 + $0x12a] sm:$0xf]
        %v8091 = vld [vmem:[%s7373 + $0x132] sm:$0xf]
        %v8092 = vld [vmem:[%s7373 + $0x13a] sm:$0xf]
        %v8093 = vld [vmem:[%s7373 + $0x152] sm:$0xf]
        %v8094 = vld [vmem:[%s7373 + $0x15a] sm:$0xf]
        %v8095 = vld [vmem:[%s7373 + $0x162] sm:$0xf]
        %v8096 = vld [vmem:[%s7373 + $0x16a] sm:$0xf]
        %v8129 = vcombine.low %v8065, %v8066
        %v8130 = vcombine.low %v8067, %v8068
        %v8131 = vcombine.low %v8069, %v8070
        %v8132 = vcombine.low %v8071, %v8072
        %v8133 = vcombine.low %v8073, %v8074
        %v8134 = vcombine.low %v8075, %v8076
        %v8135 = vcombine.low %v8077, %v8078
        %v8136 = vcombine.low %v8079, %v8080
        %v8137 = vcombine.low %v8081, %v8082
        %v8138 = vcombine.low %v8083, %v8084
        %v8139 = vcombine.low %v8085, %v8086
        %v8140 = vcombine.low %v8087, %v8088
        %v8141 = vcombine.low %v8089, %v8090
        %v8142 = vcombine.low %v8091, %v8092
        %v8143 = vcombine.low %v8093, %v8094
        %v8144 = vcombine.low %v8095, %v8096
        %8145 = vrot.lane.b32.xlu0 %v8129, 32
        %v8146 = vpop.permute.xlu0 %8145
        %8147 = vrot.lane.b32.xlu0 %v8130, 32
        %v8148 = vpop.permute.xlu0 %8147
        %8149 = vrot.lane.b32.xlu0 %v8131, 32
        %v8150 = vpop.permute.xlu0 %8149
        %8151 = vrot.lane.b32.xlu0 %v8132, 32
        %v8152 = vpop.permute.xlu0 %8151
        %8153 = vrot.lane.b32.xlu0 %v8133, 32
        %v8154 = vpop.permute.xlu0 %8153
        %8155 = vrot.lane.b32.xlu0 %v8134, 32
        %v8156 = vpop.permute.xlu0 %8155
        %8157 = vrot.lane.b32.xlu0 %v8135, 32
        %v8158 = vpop.permute.xlu0 %8157
        %8159 = vrot.lane.b32.xlu0 %v8136, 32
        %v8160 = vpop.permute.xlu0 %8159
        %8161 = vrot.lane.b32.xlu0 %v8137, 32
        %v8162 = vpop.permute.xlu0 %8161
        %8163 = vrot.lane.b32.xlu0 %v8138, 32
        %v8164 = vpop.permute.xlu0 %8163
        %8165 = vrot.lane.b32.xlu0 %v8139, 32
        %v8166 = vpop.permute.xlu0 %8165
        %8167 = vrot.lane.b32.xlu0 %v8140, 32
        %v8168 = vpop.permute.xlu0 %8167
        %8169 = vrot.lane.b32.xlu0 %v8141, 32
        %v8170 = vpop.permute.xlu0 %8169
        %8171 = vrot.lane.b32.xlu0 %v8142, 32
        %v8172 = vpop.permute.xlu0 %8171
        %8173 = vrot.lane.b32.xlu0 %v8143, 32
        %v8174 = vpop.permute.xlu0 %8173
        %8175 = vrot.lane.b32.xlu0 %v8144, 32
        %v8176 = vpop.permute.xlu0 %8175
        %8193 = vst.msk [vmem:[#allocation5 + $0x8] sm:$0xff] %vm7646, %v8146
        %8194 = vst.msk [vmem:[#allocation5 + $0x20] sm:$0xff] %vm7646, %v8148
        %8195 = vst.msk [vmem:[#allocation5 + $0x38] sm:$0xff] %vm7646, %v8150
        %8196 = vst.msk [vmem:[#allocation5 + $0x50] sm:$0xff] %vm7646, %v8152
        %8197 = vst.msk [vmem:[#allocation5 + $0x68] sm:$0xff] %vm7646, %v8154
        %8198 = vst.msk [vmem:[#allocation5 + $0x80] sm:$0xff] %vm7646, %v8156
        %8199 = vst.msk [vmem:[#allocation5 + $0x98] sm:$0xff] %vm7646, %v8158
        %8200 = vst.msk [vmem:[#allocation5 + $0xb0] sm:$0xff] %vm7646, %v8160
        %8201 = vst.msk [vmem:[#allocation5 + $0xc8] sm:$0xff] %vm7646, %v8162
        %8202 = vst.msk [vmem:[#allocation5 + $0xe0] sm:$0xff] %vm7646, %v8164
        %8203 = vst.msk [vmem:[#allocation5 + $0xf8] sm:$0xff] %vm7646, %v8166
        %8204 = vst.msk [vmem:[#allocation5 + $0x110] sm:$0xff] %vm7646, %v8168
        %8205 = vst.msk [vmem:[#allocation5 + $0x128] sm:$0xff] %vm7646, %v8170
        %8206 = vst.msk [vmem:[#allocation5 + $0x140] sm:$0xff] %vm7646, %v8172
        %8207 = vst.msk [vmem:[#allocation5 + $0x158] sm:$0xff] %vm7646, %v8174
        %8208 = vst.msk [vmem:[#allocation5 + $0x170] sm:$0xff] %vm7646, %v8176
        %s8209 = scalar_lea.vmem [#allocation3], 16
        %v8210 = vld [vmem:[%s8209] sm:$0xf]
        %v8211 = vld [vmem:[%s8209 + $0x8] sm:$0xf]
        %v8212 = vld [vmem:[%s8209 + $0x10] sm:$0xf]
        %v8213 = vld [vmem:[%s8209 + $0x18] sm:$0xf]
        %v8214 = vld [vmem:[%s8209 + $0x30] sm:$0xf]
        %v8215 = vld [vmem:[%s8209 + $0x38] sm:$0xf]
        %v8216 = vld [vmem:[%s8209 + $0x40] sm:$0xf]
        %v8217 = vld [vmem:[%s8209 + $0x48] sm:$0xf]
        %v8218 = vld [vmem:[%s8209 + $0x60] sm:$0xf]
        %v8219 = vld [vmem:[%s8209 + $0x68] sm:$0xf]
        %v8220 = vld [vmem:[%s8209 + $0x70] sm:$0xf]
        %v8221 = vld [vmem:[%s8209 + $0x78] sm:$0xf]
        %v8222 = vld [vmem:[%s8209 + $0x90] sm:$0xf]
        %v8223 = vld [vmem:[%s8209 + $0x98] sm:$0xf]
        %v8224 = vld [vmem:[%s8209 + $0xa0] sm:$0xf]
        %v8225 = vld [vmem:[%s8209 + $0xa8] sm:$0xf]
        %v8226 = vld [vmem:[%s8209 + $0xc0] sm:$0xf]
        %v8227 = vld [vmem:[%s8209 + $0xc8] sm:$0xf]
        %v8228 = vld [vmem:[%s8209 + $0xd0] sm:$0xf]
        %v8229 = vld [vmem:[%s8209 + $0xd8] sm:$0xf]
        %v8230 = vld [vmem:[%s8209 + $0xf0] sm:$0xf]
        %v8231 = vld [vmem:[%s8209 + $0xf8] sm:$0xf]
        %v8232 = vld [vmem:[%s8209 + $0x100] sm:$0xf]
        %v8233 = vld [vmem:[%s8209 + $0x108] sm:$0xf]
        %v8234 = vld [vmem:[%s8209 + $0x120] sm:$0xf]
        %v8235 = vld [vmem:[%s8209 + $0x128] sm:$0xf]
        %v8236 = vld [vmem:[%s8209 + $0x130] sm:$0xf]
        %v8237 = vld [vmem:[%s8209 + $0x138] sm:$0xf]
        %v8238 = vld [vmem:[%s8209 + $0x150] sm:$0xf]
        %v8239 = vld [vmem:[%s8209 + $0x158] sm:$0xf]
        %v8240 = vld [vmem:[%s8209 + $0x160] sm:$0xf]
        %v8241 = vld [vmem:[%s8209 + $0x168] sm:$0xf]
        %v8274 = vcombine.low %v8210, %v8211
        %v8275 = vcombine.low %v8212, %v8213
        %v8276 = vcombine.low %v8214, %v8215
        %v8277 = vcombine.low %v8216, %v8217
        %v8278 = vcombine.low %v8218, %v8219
        %v8279 = vcombine.low %v8220, %v8221
        %v8280 = vcombine.low %v8222, %v8223
        %v8281 = vcombine.low %v8224, %v8225
        %v8282 = vcombine.low %v8226, %v8227
        %v8283 = vcombine.low %v8228, %v8229
        %v8284 = vcombine.low %v8230, %v8231
        %v8285 = vcombine.low %v8232, %v8233
        %v8286 = vcombine.low %v8234, %v8235
        %v8287 = vcombine.low %v8236, %v8237
        %v8288 = vcombine.low %v8238, %v8239
        %v8289 = vcombine.low %v8240, %v8241
        %8290 = vrot.lane.b32.xlu0 %v8274, 64
        %v8291 = vpop.permute.xlu0 %8290
        %8292 = vrot.lane.b32.xlu0 %v8275, 64
        %v8293 = vpop.permute.xlu0 %8292
        %8294 = vrot.lane.b32.xlu0 %v8276, 64
        %v8295 = vpop.permute.xlu0 %8294
        %8296 = vrot.lane.b32.xlu0 %v8277, 64
        %v8297 = vpop.permute.xlu0 %8296
        %8298 = vrot.lane.b32.xlu0 %v8278, 64
        %v8299 = vpop.permute.xlu0 %8298
        %8300 = vrot.lane.b32.xlu0 %v8279, 64
        %v8301 = vpop.permute.xlu0 %8300
        %8302 = vrot.lane.b32.xlu0 %v8280, 64
        %v8303 = vpop.permute.xlu0 %8302
        %8304 = vrot.lane.b32.xlu0 %v8281, 64
        %v8305 = vpop.permute.xlu0 %8304
        %8306 = vrot.lane.b32.xlu0 %v8282, 64
        %v8307 = vpop.permute.xlu0 %8306
        %8308 = vrot.lane.b32.xlu0 %v8283, 64
        %v8309 = vpop.permute.xlu0 %8308
        %8310 = vrot.lane.b32.xlu0 %v8284, 64
        %v8311 = vpop.permute.xlu0 %8310
        %8312 = vrot.lane.b32.xlu0 %v8285, 64
        %v8313 = vpop.permute.xlu0 %8312
        %8314 = vrot.lane.b32.xlu0 %v8286, 64
        %v8315 = vpop.permute.xlu0 %8314
        %8316 = vrot.lane.b32.xlu0 %v8287, 64
        %v8317 = vpop.permute.xlu0 %8316
        %8318 = vrot.lane.b32.xlu0 %v8288, 64
        %v8319 = vpop.permute.xlu0 %8318
        %8320 = vrot.lane.b32.xlu0 %v8289, 64
        %v8321 = vpop.permute.xlu0 %8320
        %8338 = vst.msk [vmem:[#allocation5 + $0x8] sm:$0xff] %vm7791, %v8291
        %8339 = vst.msk [vmem:[#allocation5 + $0x20] sm:$0xff] %vm7791, %v8293
        %8340 = vst.msk [vmem:[#allocation5 + $0x38] sm:$0xff] %vm7791, %v8295
        %8341 = vst.msk [vmem:[#allocation5 + $0x50] sm:$0xff] %vm7791, %v8297
        %8342 = vst.msk [vmem:[#allocation5 + $0x68] sm:$0xff] %vm7791, %v8299
        %8343 = vst.msk [vmem:[#allocation5 + $0x80] sm:$0xff] %vm7791, %v8301
        %8344 = vst.msk [vmem:[#allocation5 + $0x98] sm:$0xff] %vm7791, %v8303
        %8345 = vst.msk [vmem:[#allocation5 + $0xb0] sm:$0xff] %vm7791, %v8305
        %8346 = vst.msk [vmem:[#allocation5 + $0xc8] sm:$0xff] %vm7791, %v8307
        %8347 = vst.msk [vmem:[#allocation5 + $0xe0] sm:$0xff] %vm7791, %v8309
        %8348 = vst.msk [vmem:[#allocation5 + $0xf8] sm:$0xff] %vm7791, %v8311
        %8349 = vst.msk [vmem:[#allocation5 + $0x110] sm:$0xff] %vm7791, %v8313
        %8350 = vst.msk [vmem:[#allocation5 + $0x128] sm:$0xff] %vm7791, %v8315
        %8351 = vst.msk [vmem:[#allocation5 + $0x140] sm:$0xff] %vm7791, %v8317
        %8352 = vst.msk [vmem:[#allocation5 + $0x158] sm:$0xff] %vm7791, %v8319
        %8353 = vst.msk [vmem:[#allocation5 + $0x170] sm:$0xff] %vm7791, %v8321
        %v8354 = vld [vmem:[%s8209 + $0x1] sm:$0xf]
        %v8355 = vld [vmem:[%s8209 + $0x9] sm:$0xf]
        %v8356 = vld [vmem:[%s8209 + $0x11] sm:$0xf]
        %v8357 = vld [vmem:[%s8209 + $0x19] sm:$0xf]
        %v8358 = vld [vmem:[%s8209 + $0x31] sm:$0xf]
        %v8359 = vld [vmem:[%s8209 + $0x39] sm:$0xf]
        %v8360 = vld [vmem:[%s8209 + $0x41] sm:$0xf]
        %v8361 = vld [vmem:[%s8209 + $0x49] sm:$0xf]
        %v8362 = vld [vmem:[%s8209 + $0x61] sm:$0xf]
        %v8363 = vld [vmem:[%s8209 + $0x69] sm:$0xf]
        %v8364 = vld [vmem:[%s8209 + $0x71] sm:$0xf]
        %v8365 = vld [vmem:[%s8209 + $0x79] sm:$0xf]
        %v8366 = vld [vmem:[%s8209 + $0x91] sm:$0xf]
        %v8367 = vld [vmem:[%s8209 + $0x99] sm:$0xf]
        %v8368 = vld [vmem:[%s8209 + $0xa1] sm:$0xf]
        %v8369 = vld [vmem:[%s8209 + $0xa9] sm:$0xf]
        %v8370 = vld [vmem:[%s8209 + $0xc1] sm:$0xf]
        %v8371 = vld [vmem:[%s8209 + $0xc9] sm:$0xf]
        %v8372 = vld [vmem:[%s8209 + $0xd1] sm:$0xf]
        %v8373 = vld [vmem:[%s8209 + $0xd9] sm:$0xf]
        %v8374 = vld [vmem:[%s8209 + $0xf1] sm:$0xf]
        %v8375 = vld [vmem:[%s8209 + $0xf9] sm:$0xf]
        %v8376 = vld [vmem:[%s8209 + $0x101] sm:$0xf]
        %v8377 = vld [vmem:[%s8209 + $0x109] sm:$0xf]
        %v8378 = vld [vmem:[%s8209 + $0x121] sm:$0xf]
        %v8379 = vld [vmem:[%s8209 + $0x129] sm:$0xf]
        %v8380 = vld [vmem:[%s8209 + $0x131] sm:$0xf]
        %v8381 = vld [vmem:[%s8209 + $0x139] sm:$0xf]
        %v8382 = vld [vmem:[%s8209 + $0x151] sm:$0xf]
        %v8383 = vld [vmem:[%s8209 + $0x159] sm:$0xf]
        %v8384 = vld [vmem:[%s8209 + $0x161] sm:$0xf]
        %v8385 = vld [vmem:[%s8209 + $0x169] sm:$0xf]
        %v8418 = vcombine.low %v8354, %v8355
        %v8419 = vcombine.low %v8356, %v8357
        %v8420 = vcombine.low %v8358, %v8359
        %v8421 = vcombine.low %v8360, %v8361
        %v8422 = vcombine.low %v8362, %v8363
        %v8423 = vcombine.low %v8364, %v8365
        %v8424 = vcombine.low %v8366, %v8367
        %v8425 = vcombine.low %v8368, %v8369
        %v8426 = vcombine.low %v8370, %v8371
        %v8427 = vcombine.low %v8372, %v8373
        %v8428 = vcombine.low %v8374, %v8375
        %v8429 = vcombine.low %v8376, %v8377
        %v8430 = vcombine.low %v8378, %v8379
        %v8431 = vcombine.low %v8380, %v8381
        %v8432 = vcombine.low %v8382, %v8383
        %v8433 = vcombine.low %v8384, %v8385
        %8434 = vrot.lane.b32.xlu0 %v8418, 96
        %v8435 = vpop.permute.xlu0 %8434
        %8436 = vrot.lane.b32.xlu0 %v8419, 96
        %v8437 = vpop.permute.xlu0 %8436
        %8438 = vrot.lane.b32.xlu0 %v8420, 96
        %v8439 = vpop.permute.xlu0 %8438
        %8440 = vrot.lane.b32.xlu0 %v8421, 96
        %v8441 = vpop.permute.xlu0 %8440
        %8442 = vrot.lane.b32.xlu0 %v8422, 96
        %v8443 = vpop.permute.xlu0 %8442
        %8444 = vrot.lane.b32.xlu0 %v8423, 96
        %v8445 = vpop.permute.xlu0 %8444
        %8446 = vrot.lane.b32.xlu0 %v8424, 96
        %v8447 = vpop.permute.xlu0 %8446
        %8448 = vrot.lane.b32.xlu0 %v8425, 96
        %v8449 = vpop.permute.xlu0 %8448
        %8450 = vrot.lane.b32.xlu0 %v8426, 96
        %v8451 = vpop.permute.xlu0 %8450
        %8452 = vrot.lane.b32.xlu0 %v8427, 96
        %v8453 = vpop.permute.xlu0 %8452
        %8454 = vrot.lane.b32.xlu0 %v8428, 96
        %v8455 = vpop.permute.xlu0 %8454
        %8456 = vrot.lane.b32.xlu0 %v8429, 96
        %v8457 = vpop.permute.xlu0 %8456
        %8458 = vrot.lane.b32.xlu0 %v8430, 96
        %v8459 = vpop.permute.xlu0 %8458
        %8460 = vrot.lane.b32.xlu0 %v8431, 96
        %v8461 = vpop.permute.xlu0 %8460
        %8462 = vrot.lane.b32.xlu0 %v8432, 96
        %v8463 = vpop.permute.xlu0 %8462
        %8464 = vrot.lane.b32.xlu0 %v8433, 96
        %v8465 = vpop.permute.xlu0 %8464
        %8482 = vst.msk [vmem:[#allocation5 + $0x8] sm:$0xff] %vm7936, %v8435
        %8483 = vst.msk [vmem:[#allocation5 + $0x20] sm:$0xff] %vm7936, %v8437
        %8484 = vst.msk [vmem:[#allocation5 + $0x38] sm:$0xff] %vm7936, %v8439
        %8485 = vst.msk [vmem:[#allocation5 + $0x50] sm:$0xff] %vm7936, %v8441
        %8486 = vst.msk [vmem:[#allocation5 + $0x68] sm:$0xff] %vm7936, %v8443
        %8487 = vst.msk [vmem:[#allocation5 + $0x80] sm:$0xff] %vm7936, %v8445
        %8488 = vst.msk [vmem:[#allocation5 + $0x98] sm:$0xff] %vm7936, %v8447
        %8489 = vst.msk [vmem:[#allocation5 + $0xb0] sm:$0xff] %vm7936, %v8449
        %8490 = vst.msk [vmem:[#allocation5 + $0xc8] sm:$0xff] %vm7936, %v8451
        %8491 = vst.msk [vmem:[#allocation5 + $0xe0] sm:$0xff] %vm7936, %v8453
        %8492 = vst.msk [vmem:[#allocation5 + $0xf8] sm:$0xff] %vm7936, %v8455
        %8493 = vst.msk [vmem:[#allocation5 + $0x110] sm:$0xff] %vm7936, %v8457
        %8494 = vst.msk [vmem:[#allocation5 + $0x128] sm:$0xff] %vm7936, %v8459
        %8495 = vst.msk [vmem:[#allocation5 + $0x140] sm:$0xff] %vm7936, %v8461
        %8496 = vst.msk [vmem:[#allocation5 + $0x158] sm:$0xff] %vm7936, %v8463
        %8497 = vst.msk [vmem:[#allocation5 + $0x170] sm:$0xff] %vm7936, %v8465
        %v8498 = vld [vmem:[%s8209 + $0x2] sm:$0xf]
        %v8499 = vld [vmem:[%s8209 + $0xa] sm:$0xf]
        %v8500 = vld [vmem:[%s8209 + $0x12] sm:$0xf]
        %v8501 = vld [vmem:[%s8209 + $0x1a] sm:$0xf]
        %v8502 = vld [vmem:[%s8209 + $0x32] sm:$0xf]
        %v8503 = vld [vmem:[%s8209 + $0x3a] sm:$0xf]
        %v8504 = vld [vmem:[%s8209 + $0x42] sm:$0xf]
        %v8505 = vld [vmem:[%s8209 + $0x4a] sm:$0xf]
        %v8506 = vld [vmem:[%s8209 + $0x62] sm:$0xf]
        %v8507 = vld [vmem:[%s8209 + $0x6a] sm:$0xf]
        %v8508 = vld [vmem:[%s8209 + $0x72] sm:$0xf]
        %v8509 = vld [vmem:[%s8209 + $0x7a] sm:$0xf]
        %v8510 = vld [vmem:[%s8209 + $0x92] sm:$0xf]
        %v8511 = vld [vmem:[%s8209 + $0x9a] sm:$0xf]
        %v8512 = vld [vmem:[%s8209 + $0xa2] sm:$0xf]
        %v8513 = vld [vmem:[%s8209 + $0xaa] sm:$0xf]
        %v8514 = vld [vmem:[%s8209 + $0xc2] sm:$0xf]
        %v8515 = vld [vmem:[%s8209 + $0xca] sm:$0xf]
        %v8516 = vld [vmem:[%s8209 + $0xd2] sm:$0xf]
        %v8517 = vld [vmem:[%s8209 + $0xda] sm:$0xf]
        %v8518 = vld [vmem:[%s8209 + $0xf2] sm:$0xf]
        %v8519 = vld [vmem:[%s8209 + $0xfa] sm:$0xf]
        %v8520 = vld [vmem:[%s8209 + $0x102] sm:$0xf]
        %v8521 = vld [vmem:[%s8209 + $0x10a] sm:$0xf]
        %v8522 = vld [vmem:[%s8209 + $0x122] sm:$0xf]
        %v8523 = vld [vmem:[%s8209 + $0x12a] sm:$0xf]
        %v8524 = vld [vmem:[%s8209 + $0x132] sm:$0xf]
        %v8525 = vld [vmem:[%s8209 + $0x13a] sm:$0xf]
        %v8526 = vld [vmem:[%s8209 + $0x152] sm:$0xf]
        %v8527 = vld [vmem:[%s8209 + $0x15a] sm:$0xf]
        %v8528 = vld [vmem:[%s8209 + $0x162] sm:$0xf]
        %v8529 = vld [vmem:[%s8209 + $0x16a] sm:$0xf]
        %v8562 = vcombine.low %v8498, %v8499
        %v8563 = vcombine.low %v8500, %v8501
        %v8564 = vcombine.low %v8502, %v8503
        %v8565 = vcombine.low %v8504, %v8505
        %v8566 = vcombine.low %v8506, %v8507
        %v8567 = vcombine.low %v8508, %v8509
        %v8568 = vcombine.low %v8510, %v8511
        %v8569 = vcombine.low %v8512, %v8513
        %v8570 = vcombine.low %v8514, %v8515
        %v8571 = vcombine.low %v8516, %v8517
        %v8572 = vcombine.low %v8518, %v8519
        %v8573 = vcombine.low %v8520, %v8521
        %v8574 = vcombine.low %v8522, %v8523
        %v8575 = vcombine.low %v8524, %v8525
        %v8576 = vcombine.low %v8526, %v8527
        %v8577 = vcombine.low %v8528, %v8529
        %8594 = vst.msk [vmem:[#allocation5 + $0x10] sm:$0xff] %vm5332, %v8562
        %8595 = vst.msk [vmem:[#allocation5 + $0x28] sm:$0xff] %vm5332, %v8563
        %8596 = vst.msk [vmem:[#allocation5 + $0x40] sm:$0xff] %vm5332, %v8564
        %8597 = vst.msk [vmem:[#allocation5 + $0x58] sm:$0xff] %vm5332, %v8565
        %8598 = vst.msk [vmem:[#allocation5 + $0x70] sm:$0xff] %vm5332, %v8566
        %8599 = vst.msk [vmem:[#allocation5 + $0x88] sm:$0xff] %vm5332, %v8567
        %8600 = vst.msk [vmem:[#allocation5 + $0xa0] sm:$0xff] %vm5332, %v8568
        %8601 = vst.msk [vmem:[#allocation5 + $0xb8] sm:$0xff] %vm5332, %v8569
        %8602 = vst.msk [vmem:[#allocation5 + $0xd0] sm:$0xff] %vm5332, %v8570
        %8603 = vst.msk [vmem:[#allocation5 + $0xe8] sm:$0xff] %vm5332, %v8571
        %8604 = vst.msk [vmem:[#allocation5 + $0x100] sm:$0xff] %vm5332, %v8572
        %8605 = vst.msk [vmem:[#allocation5 + $0x118] sm:$0xff] %vm5332, %v8573
        %8606 = vst.msk [vmem:[#allocation5 + $0x130] sm:$0xff] %vm5332, %v8574
        %8607 = vst.msk [vmem:[#allocation5 + $0x148] sm:$0xff] %vm5332, %v8575
        %8608 = vst.msk [vmem:[#allocation5 + $0x160] sm:$0xff] %vm5332, %v8576
        %8609 = vst.msk [vmem:[#allocation5 + $0x178] sm:$0xff] %vm5332, %v8577
        %v8610 = vld [vmem:[#allocation5] sm:$0xff]
        %v8611 = vld [vmem:[#allocation5 + $0x8] sm:$0xff]
        %v8612 = vld [vmem:[#allocation5 + $0x10] sm:$0xff]
        %v8613 = vld [vmem:[#allocation5 + $0x18] sm:$0xff]
        %v8614 = vld [vmem:[#allocation5 + $0x20] sm:$0xff]
        %v8615 = vld [vmem:[#allocation5 + $0x28] sm:$0xff]
        %v8616 = vld [vmem:[#allocation5 + $0x30] sm:$0xff]
        %v8617 = vld [vmem:[#allocation5 + $0x38] sm:$0xff]
        %v8618 = vld [vmem:[#allocation5 + $0x40] sm:$0xff]
        %v8619 = vld [vmem:[#allocation5 + $0x48] sm:$0xff]
        %v8620 = vld [vmem:[#allocation5 + $0x50] sm:$0xff]
        %v8621 = vld [vmem:[#allocation5 + $0x58] sm:$0xff]
        %v8622 = vld [vmem:[#allocation5 + $0x60] sm:$0xff]
        %v8623 = vld [vmem:[#allocation5 + $0x68] sm:$0xff]
        %v8624 = vld [vmem:[#allocation5 + $0x70] sm:$0xff]
        %v8625 = vld [vmem:[#allocation5 + $0x78] sm:$0xff]
        %v8626 = vld [vmem:[#allocation5 + $0x80] sm:$0xff]
        %v8627 = vld [vmem:[#allocation5 + $0x88] sm:$0xff]
        %v8628 = vld [vmem:[#allocation5 + $0x90] sm:$0xff]
        %v8629 = vld [vmem:[#allocation5 + $0x98] sm:$0xff]
        %v8630 = vld [vmem:[#allocation5 + $0xa0] sm:$0xff]
        %v8631 = vld [vmem:[#allocation5 + $0xa8] sm:$0xff]
        %v8632 = vld [vmem:[#allocation5 + $0xb0] sm:$0xff]
        %v8633 = vld [vmem:[#allocation5 + $0xb8] sm:$0xff]
        %v8634 = vld [vmem:[#allocation5 + $0xc0] sm:$0xff]
        %v8635 = vld [vmem:[#allocation5 + $0xc8] sm:$0xff]
        %v8636 = vld [vmem:[#allocation5 + $0xd0] sm:$0xff]
        %v8637 = vld [vmem:[#allocation5 + $0xd8] sm:$0xff]
        %v8638 = vld [vmem:[#allocation5 + $0xe0] sm:$0xff]
        %v8639 = vld [vmem:[#allocation5 + $0xe8] sm:$0xff]
        %v8640 = vld [vmem:[#allocation5 + $0xf0] sm:$0xff]
        %v8641 = vld [vmem:[#allocation5 + $0xf8] sm:$0xff]
        %v8642 = vld [vmem:[#allocation5 + $0x100] sm:$0xff]
        %v8643 = vld [vmem:[#allocation5 + $0x108] sm:$0xff]
        %v8644 = vld [vmem:[#allocation5 + $0x110] sm:$0xff]
        %v8645 = vld [vmem:[#allocation5 + $0x118] sm:$0xff]
        %v8646 = vld [vmem:[#allocation5 + $0x120] sm:$0xff]
        %v8647 = vld [vmem:[#allocation5 + $0x128] sm:$0xff]
        %v8648 = vld [vmem:[#allocation5 + $0x130] sm:$0xff]
        %v8649 = vld [vmem:[#allocation5 + $0x138] sm:$0xff]
        %v8650 = vld [vmem:[#allocation5 + $0x140] sm:$0xff]
        %v8651 = vld [vmem:[#allocation5 + $0x148] sm:$0xff]
        %v8652 = vld [vmem:[#allocation5 + $0x150] sm:$0xff]
        %v8653 = vld [vmem:[#allocation5 + $0x158] sm:$0xff]
        %v8654 = vld [vmem:[#allocation5 + $0x160] sm:$0xff]
        %v8655 = vld [vmem:[#allocation5 + $0x168] sm:$0xff]
        %v8656 = vld [vmem:[#allocation5 + $0x170] sm:$0xff]
        %v8657 = vld [vmem:[#allocation5 + $0x178] sm:$0xff]
        %v8658 = vld [vmem:[#allocation9 + $0x10] sm:$0xff]
        %v8659 = vld [vmem:[#allocation9 + $0x18] sm:$0xff]
        %v8660 = vld [vmem:[#allocation9 + $0x20] sm:$0xff]
        %v8661 = vld [vmem:[#allocation9 + $0x28] sm:$0xff]
        %v8662 = vld [vmem:[#allocation9 + $0x30] sm:$0xff]
        %v8663 = vld [vmem:[#allocation9 + $0x38] sm:$0xff]
        %v8664 = vld [vmem:[#allocation9 + $0x40] sm:$0xff]
        %v8665 = vld [vmem:[#allocation9 + $0x48] sm:$0xff]
        %v8666 = vld [vmem:[#allocation9 + $0x50] sm:$0xff]
        %v8667 = vld [vmem:[#allocation9 + $0x58] sm:$0xff]
        %v8668 = vld [vmem:[#allocation9 + $0x60] sm:$0xff]
        %v8669 = vld [vmem:[#allocation9 + $0x68] sm:$0xff]
        %v8670 = vld [vmem:[#allocation9 + $0x70] sm:$0xff]
        %v8671 = vld [vmem:[#allocation9 + $0x78] sm:$0xff]
        %v8672 = vld [vmem:[#allocation9 + $0x80] sm:$0xff]
        %v8673 = vld [vmem:[#allocation9 + $0x88] sm:$0xff]
        %v8674 = vld [vmem:[#allocation9 + $0x90] sm:$0xff]
        %v8675 = vld [vmem:[#allocation9 + $0x98] sm:$0xff]
        %v8676 = vld [vmem:[#allocation9 + $0xa0] sm:$0xff]
        %v8677 = vld [vmem:[#allocation9 + $0xa8] sm:$0xff]
        %v8678 = vld [vmem:[#allocation9 + $0xb0] sm:$0xff]
        %v8679 = vld [vmem:[#allocation9 + $0xb8] sm:$0xff]
        %v8680 = vld [vmem:[#allocation9 + $0xc0] sm:$0xff]
        %v8681 = vld [vmem:[#allocation9 + $0xc8] sm:$0xff]
        %v8682 = vld [vmem:[#allocation9 + $0xd0] sm:$0xff]
        %v8683 = vld [vmem:[#allocation9 + $0xd8] sm:$0xff]
        %v8684 = vld [vmem:[#allocation9 + $0xe0] sm:$0xff]
        %v8685 = vld [vmem:[#allocation9 + $0xe8] sm:$0xff]
        %v8686 = vld [vmem:[#allocation9 + $0xf0] sm:$0xff]
        %v8687 = vld [vmem:[#allocation9 + $0xf8] sm:$0xff]
        %v8688 = vld [vmem:[#allocation9 + $0x100] sm:$0xff]
        %v8689 = vld [vmem:[#allocation9 + $0x108] sm:$0xff]
        %v8690 = vld [vmem:[#allocation9 + $0x110] sm:$0xff]
        %v8691 = vld [vmem:[#allocation9 + $0x118] sm:$0xff]
        %v8692 = vld [vmem:[#allocation9 + $0x120] sm:$0xff]
        %v8693 = vld [vmem:[#allocation9 + $0x128] sm:$0xff]
        %v8694 = vld [vmem:[#allocation11 + $0x3] sm:$0x1]
        %v8695 = vlaneseq
        %v8696 = vshrl.u32 %v8695, 7
        %v8697 = vsub.s32 0, %v8696
        %v8698 = vrot.slane %v8694, %v8697
        %v8700 = vsel %vm5332, %v8612, 0
        %v8703 = vsel %vm5332, %v8615, 0
        %v8706 = vsel %vm5332, %v8618, 0
        %v8709 = vsel %vm5332, %v8621, 0
        %v8712 = vsel %vm5332, %v8624, 0
        %v8715 = vsel %vm5332, %v8627, 0
        %v8718 = vsel %vm5332, %v8630, 0
        %v8721 = vsel %vm5332, %v8633, 0
        %v8724 = vsel %vm5332, %v8636, 0
        %v8727 = vsel %vm5332, %v8639, 0
        %v8730 = vsel %vm5332, %v8642, 0
        %v8733 = vsel %vm5332, %v8645, 0
        %v8736 = vsel %vm5332, %v8648, 0
        %v8739 = vsel %vm5332, %v8651, 0
        %v8742 = vsel %vm5332, %v8654, 0
        %v8745 = vsel %vm5332, %v8657, 0
        %8747 = vmatprep.subr.mxu0 0.0
        %8748 = vmatpush1.msra.mxu0 %v8658
        %8749 = vmatprep.subr.mxu0 0.0
        %8750 = vmatpush1.msra.mxu0 %v8659
        %8751 = vmatprep.subr.mxu0 0.0
        %8752 = vmatpush1.msra.mxu0 %v8660
        %8753 = vmatprep.subr.mxu0 0.0
        %8754 = vmatpush1.msra.mxu0 %v8661
        %8755 = vmatprep.subr.mxu0 0.0
        %8756 = vmatpush1.msra.mxu0 %v8662
        %8757 = vmatprep.subr.mxu0 0.0
        %8758 = vmatpush1.msra.mxu0 %v8663
        %8759 = vmatprep.subr.mxu0 0.0
        %8760 = vmatpush1.msra.mxu0 %v8664
        %8761 = vmatprep.subr.mxu0 0.0
        %8762 = vmatpush1.msra.mxu0 %v8665
        %8763 = vmatprep.subr.mxu0 0.0
        %8764 = vmatpush1.msra.mxu0 %v8666
        %8765 = vmatprep.subr.mxu0 0.0
        %8766 = vmatpush1.msra.mxu0 %v8667
        %8767 = vmatprep.subr.mxu0 0.0
        %8768 = vmatpush1.msra.mxu0 %v8668
        %8769 = vmatprep.subr.mxu0 0.0
        %8770 = vmatpush1.msra.mxu0 %v8669
        %8771 = vmatprep.subr.mxu0 0.0
        %8772 = vmatpush1.msra.mxu0 %v8670
        %8773 = vmatprep.subr.mxu0 0.0
        %8774 = vmatpush1.msra.mxu0 %v8671
        %8775 = vmatprep.subr.mxu0 0.0
        %8776 = vmatpush1.msra.mxu0 %v8672
        %8777 = vmatprep.subr.mxu0 0.0
        %8778 = vmatpush1.msra.mxu0 %v8673
        %8779 = vmatprep.subr.mxu0 0.0
        %8780 = vmatpush1.msra.mxu0 %v8674
        %8781 = vmatprep.subr.mxu0 0.0
        %8782 = vmatpush1.msra.mxu0 %v8675
        %8783 = vmatprep.subr.mxu0 0.0
        %8784 = vmatpush1.msra.mxu0 %v8676
        %8785 = vmatprep.subr.mxu0 0.0
        %8786 = vmatpush1.msra.mxu0 %v8677
        %8787 = vmatprep.subr.mxu0 0.0
        %8788 = vmatpush1.msra.mxu0 %v8678
        %8789 = vmatprep.subr.mxu0 0.0
        %8790 = vmatpush1.msra.mxu0 %v8679
        %8791 = vmatprep.subr.mxu0 0.0
        %8792 = vmatpush1.msra.mxu0 %v8680
        %8793 = vmatprep.subr.mxu0 0.0
        %8794 = vmatpush1.msra.mxu0 %v8681
        %8795 = vmatprep.subr.mxu0 0.0
        %8796 = vmatpush1.msra.mxu0 %v8682
        %8797 = vmatprep.subr.mxu0 0.0
        %8798 = vmatpush1.msra.mxu0 %v8683
        %8799 = vmatprep.subr.mxu0 0.0
        %8800 = vmatpush1.msra.mxu0 %v8684
        %8801 = vmatprep.subr.mxu0 0.0
        %8802 = vmatpush1.msra.mxu0 %v8685
        %8803 = vmatprep.subr.mxu0 0.0
        %8804 = vmatpush1.msra.mxu0 %v8686
        %8805 = vmatprep.subr.mxu0 0.0
        %8806 = vmatpush1.msra.mxu0 %v8687
        %8807 = vmatprep.subr.mxu0 0.0
        %8808 = vmatpush1.msra.mxu0 %v8688
        %8809 = vmatprep.subr.mxu0 0.0
        %8810 = vmatpush1.msra.mxu0 %v8689
        %8811 = vmatprep.mubr.f32.mxu0 %v8611
        %8812 = vmatmul.mubr.f32.gmra.mrb[0].mxu0 %v8610
        %v8813 = vpop.f32.mrb[0].mxu0
        %v8814 = vadd.f32 %v8698, %v8813
        %v8815 = vpop.f32.mrb[0].mxu0
        %8816 = vmatprep.mubr.f32.mxu0 %v8614
        %8817 = vmatmul.mubr.f32.gmra.mrb[0].mxu0 %v8613
        %v8818 = vpop.f32.mrb[0].mxu0
        %v8819 = vadd.f32 %v8698, %v8818
        %v8820 = vpop.f32.mrb[0].mxu0
        %8821 = vmatprep.mubr.f32.mxu0 %v8617
        %8822 = vmatmul.mubr.f32.gmra.mrb[0].mxu0 %v8616
        %v8823 = vpop.f32.mrb[0].mxu0
        %v8824 = vadd.f32 %v8698, %v8823
        %v8825 = vpop.f32.mrb[0].mxu0
        %8826 = vmatprep.mubr.f32.mxu0 %v8620
        %8827 = vmatmul.mubr.f32.gmra.mrb[0].mxu0 %v8619
        %v8828 = vpop.f32.mrb[0].mxu0
        %v8829 = vadd.f32 %v8698, %v8828
        %v8830 = vpop.f32.mrb[0].mxu0
        %8831 = vmatprep.mubr.f32.mxu0 %v8623
        %8832 = vmatmul.mubr.f32.gmra.mrb[0].mxu0 %v8622
        %v8833 = vpop.f32.mrb[0].mxu0
        %v8834 = vadd.f32 %v8698, %v8833
        %v8835 = vpop.f32.mrb[0].mxu0
        %8836 = vmatprep.mubr.f32.mxu0 %v8626
        %8837 = vmatmul.mubr.f32.gmra.mrb[0].mxu0 %v8625
        %v8838 = vpop.f32.mrb[0].mxu0
        %v8839 = vadd.f32 %v8698, %v8838
        %v8840 = vpop.f32.mrb[0].mxu0
        %8841 = vmatprep.mubr.f32.mxu0 %v8629
        %8842 = vmatmul.mubr.f32.gmra.mrb[0].mxu0 %v8628
        %v8843 = vpop.f32.mrb[0].mxu0
        %v8844 = vadd.f32 %v8698, %v8843
        %v8845 = vpop.f32.mrb[0].mxu0
        %8846 = vmatprep.mubr.f32.mxu0 %v8632
        %8847 = vmatmul.mubr.f32.gmra.mrb[0].mxu0 %v8631
        %v8848 = vpop.f32.mrb[0].mxu0
        %v8849 = vadd.f32 %v8698, %v8848
        %v8850 = vpop.f32.mrb[0].mxu0
        %8851 = vmatprep.mubr.f32.mxu0 %v8635
        %8852 = vmatmul.mubr.f32.gmra.mrb[0].mxu0 %v8634
        %v8853 = vpop.f32.mrb[0].mxu0
        %v8854 = vadd.f32 %v8698, %v8853
        %v8855 = vpop.f32.mrb[0].mxu0
        %8856 = vmatprep.mubr.f32.mxu0 %v8638
        %8857 = vmatmul.mubr.f32.gmra.mrb[0].mxu0 %v8637
        %v8858 = vpop.f32.mrb[0].mxu0
        %v8859 = vadd.f32 %v8698, %v8858
        %v8860 = vpop.f32.mrb[0].mxu0
        %8861 = vmatprep.mubr.f32.mxu0 %v8641
        %8862 = vmatmul.mubr.f32.gmra.mrb[0].mxu0 %v8640
        %v8863 = vpop.f32.mrb[0].mxu0
        %v8864 = vadd.f32 %v8698, %v8863
        %v8865 = vpop.f32.mrb[0].mxu0
        %8866 = vmatprep.mubr.f32.mxu0 %v8644
        %8867 = vmatmul.mubr.f32.gmra.mrb[0].mxu0 %v8643
        %v8868 = vpop.f32.mrb[0].mxu0
        %v8869 = vadd.f32 %v8698, %v8868
        %v8870 = vpop.f32.mrb[0].mxu0
        %8871 = vmatprep.mubr.f32.mxu0 %v8647
        %8872 = vmatmul.mubr.f32.gmra.mrb[0].mxu0 %v8646
        %v8873 = vpop.f32.mrb[0].mxu0
        %v8874 = vadd.f32 %v8698, %v8873
        %v8875 = vpop.f32.mrb[0].mxu0
        %8876 = vmatprep.mubr.f32.mxu0 %v8650
        %8877 = vmatmul.mubr.f32.gmra.mrb[0].mxu0 %v8649
        %v8878 = vpop.f32.mrb[0].mxu0
        %v8879 = vadd.f32 %v8698, %v8878
        %v8880 = vpop.f32.mrb[0].mxu0
        %8881 = vmatprep.mubr.f32.mxu0 %v8653
        %8882 = vmatmul.mubr.f32.gmra.mrb[0].mxu0 %v8652
        %v8883 = vpop.f32.mrb[0].mxu0
        %v8884 = vadd.f32 %v8698, %v8883
        %v8885 = vpop.f32.mrb[0].mxu0
        %8886 = vmatprep.mubr.f32.mxu0 %v8656
        %8887 = vmatmul.mubr.f32.gmra.mrb[0].mxu0 %v8655
        %v8888 = vpop.f32.mrb[0].mxu0
        %v8889 = vadd.f32 %v8698, %v8888
        %v8890 = vpop.f32.mrb[0].mxu0
        %8891 = vdwg.mxu0
        %8892 = vmatprep.subr.mxu0 0.0
        %8893 = vmatpush1.msra.mxu0 %v8690
        %8894 = vmatprep.subr.mxu0 0.0
        %8895 = vmatpush1.msra.mxu0 %v8691
        %8896 = vmatprep.subr.mxu0 0.0
        %8897 = vmatpush1.msra.mxu0 %v8692
        %8898 = vmatprep.subr.mxu0 0.0
        %8899 = vmatpush1.msra.mxu0 %v8693
        %8900 = vmatprep.subr.mxu0 0.0
        %8901 = vmatpush1.msra.mxu0 0.0
        %8902 = vmatprep.subr.mxu0 0.0
        %8903 = vmatpush1.msra.mxu0 0.0
        %8904 = vmatprep.subr.mxu0 0.0
        %8905 = vmatpush1.msra.mxu0 0.0
        %8906 = vmatprep.subr.mxu0 0.0
        %8907 = vmatpush1.msra.mxu0 0.0
        %8908 = vmatprep.subr.mxu0 0.0
        %8909 = vmatpush1.msra.mxu0 0.0
        %8910 = vmatprep.subr.mxu0 0.0
        %8911 = vmatpush1.msra.mxu0 0.0
        %8912 = vmatprep.subr.mxu0 0.0
        %8913 = vmatpush1.msra.mxu0 0.0
        %8914 = vmatprep.subr.mxu0 0.0
        %8915 = vmatpush1.msra.mxu0 0.0
        %8916 = vmatprep.subr.mxu0 0.0
        %8917 = vmatpush1.msra.mxu0 0.0
        %8918 = vmatprep.subr.mxu0 0.0
        %8919 = vmatpush1.msra.mxu0 0.0
        %8920 = vmatprep.subr.mxu0 0.0
        %8921 = vmatpush1.msra.mxu0 0.0
        %8922 = vmatprep.subr.mxu0 0.0
        %8923 = vmatpush1.msra.mxu0 0.0
        %8924 = vmatprep.subr.mxu0 0.0
        %8925 = vmatpush1.msra.mxu0 0.0
        %8926 = vmatprep.subr.mxu0 0.0
        %8927 = vmatpush1.msra.mxu0 0.0
        %8928 = vmatprep.subr.mxu0 0.0
        %8929 = vmatpush1.msra.mxu0 0.0
        %8930 = vmatprep.subr.mxu0 0.0
        %8931 = vmatpush1.msra.mxu0 0.0
        %8932 = vmatprep.subr.mxu0 0.0
        %8933 = vmatpush1.msra.mxu0 0.0
        %8934 = vmatprep.subr.mxu0 0.0
        %8935 = vmatpush1.msra.mxu0 0.0
        %8936 = vmatprep.subr.mxu0 0.0
        %8937 = vmatpush1.msra.mxu0 0.0
        %8938 = vmatprep.subr.mxu0 0.0
        %8939 = vmatpush1.msra.mxu0 0.0
        %8940 = vmatprep.subr.mxu0 0.0
        %8941 = vmatpush1.msra.mxu0 0.0
        %8942 = vmatprep.subr.mxu0 0.0
        %8943 = vmatpush1.msra.mxu0 0.0
        %8944 = vmatprep.subr.mxu0 0.0
        %8945 = vmatpush1.msra.mxu0 0.0
        %8946 = vmatprep.subr.mxu0 0.0
        %8947 = vmatpush1.msra.mxu0 0.0
        %8948 = vmatprep.subr.mxu0 0.0
        %8949 = vmatpush1.msra.mxu0 0.0
        %8950 = vmatprep.subr.mxu0 0.0
        %8951 = vmatpush1.msra.mxu0 0.0
        %8952 = vmatprep.subr.mxu0 0.0
        %8953 = vmatpush1.msra.mxu0 0.0
        %8954 = vmatprep.subr.mxu0 0.0
        %8955 = vmatpush1.msra.mxu0 0.0
        %8956 = vmatprep.mubr.f32.mxu0 0.0
        %8957 = vmatmul.mubr.f32.gmra.mrb[0].mxu0 %v8700
        %v8958 = vpop.f32.mrb[0].mxu0
        %v8959 = vadd.f32 %v8814, %v8958
        %v8960 = vpop.f32.mrb[0].mxu0
        %8961 = vmatprep.mubr.f32.mxu0 0.0
        %8962 = vmatmul.mubr.f32.gmra.mrb[0].mxu0 %v8703
        %v8963 = vpop.f32.mrb[0].mxu0
        %v8964 = vadd.f32 %v8819, %v8963
        %v8965 = vpop.f32.mrb[0].mxu0
        %8966 = vmatprep.mubr.f32.mxu0 0.0
        %8967 = vmatmul.mubr.f32.gmra.mrb[0].mxu0 %v8706
        %v8968 = vpop.f32.mrb[0].mxu0
        %v8969 = vadd.f32 %v8824, %v8968
        %v8970 = vpop.f32.mrb[0].mxu0
        %8971 = vmatprep.mubr.f32.mxu0 0.0
        %8972 = vmatmul.mubr.f32.gmra.mrb[0].mxu0 %v8709
        %v8973 = vpop.f32.mrb[0].mxu0
        %v8974 = vadd.f32 %v8829, %v8973
        %v8975 = vpop.f32.mrb[0].mxu0
        %8976 = vmatprep.mubr.f32.mxu0 0.0
        %8977 = vmatmul.mubr.f32.gmra.mrb[0].mxu0 %v8712
        %v8978 = vpop.f32.mrb[0].mxu0
        %v8979 = vadd.f32 %v8834, %v8978
        %v8980 = vpop.f32.mrb[0].mxu0
        %8981 = vmatprep.mubr.f32.mxu0 0.0
        %8982 = vmatmul.mubr.f32.gmra.mrb[0].mxu0 %v8715
        %v8983 = vpop.f32.mrb[0].mxu0
        %v8984 = vadd.f32 %v8839, %v8983
        %v8985 = vpop.f32.mrb[0].mxu0
        %8986 = vmatprep.mubr.f32.mxu0 0.0
        %8987 = vmatmul.mubr.f32.gmra.mrb[0].mxu0 %v8718
        %v8988 = vpop.f32.mrb[0].mxu0
        %v8989 = vadd.f32 %v8844, %v8988
        %v8990 = vpop.f32.mrb[0].mxu0
        %8991 = vmatprep.mubr.f32.mxu0 0.0
        %8992 = vmatmul.mubr.f32.gmra.mrb[0].mxu0 %v8721
        %v8993 = vpop.f32.mrb[0].mxu0
        %v8994 = vadd.f32 %v8849, %v8993
        %v8995 = vpop.f32.mrb[0].mxu0
        %8996 = vmatprep.mubr.f32.mxu0 0.0
        %8997 = vmatmul.mubr.f32.gmra.mrb[0].mxu0 %v8724
        %v8998 = vpop.f32.mrb[0].mxu0
        %v8999 = vadd.f32 %v8854, %v8998
        %v9000 = vpop.f32.mrb[0].mxu0
        %9001 = vmatprep.mubr.f32.mxu0 0.0
        %9002 = vmatmul.mubr.f32.gmra.mrb[0].mxu0 %v8727
        %v9003 = vpop.f32.mrb[0].mxu0
        %v9004 = vadd.f32 %v8859, %v9003
        %v9005 = vpop.f32.mrb[0].mxu0
        %9006 = vmatprep.mubr.f32.mxu0 0.0
        %9007 = vmatmul.mubr.f32.gmra.mrb[0].mxu0 %v8730
        %v9008 = vpop.f32.mrb[0].mxu0
        %v9009 = vadd.f32 %v8864, %v9008
        %v9010 = vpop.f32.mrb[0].mxu0
        %9011 = vmatprep.mubr.f32.mxu0 0.0
        %9012 = vmatmul.mubr.f32.gmra.mrb[0].mxu0 %v8733
        %v9013 = vpop.f32.mrb[0].mxu0
        %v9014 = vadd.f32 %v8869, %v9013
        %v9015 = vpop.f32.mrb[0].mxu0
        %9016 = vmatprep.mubr.f32.mxu0 0.0
        %9017 = vmatmul.mubr.f32.gmra.mrb[0].mxu0 %v8736
        %v9018 = vpop.f32.mrb[0].mxu0
        %v9019 = vadd.f32 %v8874, %v9018
        %v9020 = vpop.f32.mrb[0].mxu0
        %9021 = vmatprep.mubr.f32.mxu0 0.0
        %9022 = vmatmul.mubr.f32.gmra.mrb[0].mxu0 %v8739
        %v9023 = vpop.f32.mrb[0].mxu0
        %v9024 = vadd.f32 %v8879, %v9023
        %v9025 = vpop.f32.mrb[0].mxu0
        %9026 = vmatprep.mubr.f32.mxu0 0.0
        %9027 = vmatmul.mubr.f32.gmra.mrb[0].mxu0 %v8742
        %v9028 = vpop.f32.mrb[0].mxu0
        %v9029 = vadd.f32 %v8884, %v9028
        %v9030 = vpop.f32.mrb[0].mxu0
        %9031 = vmatprep.mubr.f32.mxu0 0.0
        %9032 = vmatmul.mubr.f32.gmra.mrb[0].mxu0 %v8745
        %v9033 = vpop.f32.mrb[0].mxu0
        %v9034 = vadd.f32 %v8889, %v9033
        %v9035 = vpop.f32.mrb[0].mxu0
        %9036 = vdwg.mxu0
        %v9037 = vmax.f32 %v8959, 0.0
        %v9038 = vmax.f32 %v8964, 0.0
        %v9039 = vmax.f32 %v8969, 0.0
        %v9040 = vmax.f32 %v8974, 0.0
        %v9041 = vmax.f32 %v8979, 0.0
        %v9042 = vmax.f32 %v8984, 0.0
        %v9043 = vmax.f32 %v8989, 0.0
        %v9044 = vmax.f32 %v8994, 0.0
        %v9045 = vmax.f32 %v8999, 0.0
        %v9046 = vmax.f32 %v9004, 0.0
        %v9047 = vmax.f32 %v9009, 0.0
        %v9048 = vmax.f32 %v9014, 0.0
        %v9049 = vmax.f32 %v9019, 0.0
        %v9050 = vmax.f32 %v9024, 0.0
        %v9051 = vmax.f32 %v9029, 0.0
        %v9052 = vmax.f32 %v9034, 0.0
        %v9053 = vld [vmem:[#allocation11 + $0x4] sm:$0x1]
        %v9054 = vlaneseq
        %v9055 = vshrl.u32 %v9054, 7
        %v9056 = vsub.s32 0, %v9055
        %v9057 = vrot.slane %v9053, %v9056
        %v9058 = vmul.f32 %v9037, %v9057
        %v9059 = vmul.f32 %v9038, %v9057
        %v9060 = vmul.f32 %v9039, %v9057
        %v9061 = vmul.f32 %v9040, %v9057
        %v9062 = vmul.f32 %v9041, %v9057
        %v9063 = vmul.f32 %v9042, %v9057
        %v9064 = vmul.f32 %v9043, %v9057
        %v9065 = vmul.f32 %v9044, %v9057
        %v9066 = vmul.f32 %v9045, %v9057
        %v9067 = vmul.f32 %v9046, %v9057
        %v9068 = vmul.f32 %v9047, %v9057
        %v9069 = vmul.f32 %v9048, %v9057
        %v9070 = vmul.f32 %v9049, %v9057
        %v9071 = vmul.f32 %v9050, %v9057
        %v9072 = vmul.f32 %v9051, %v9057
        %v9073 = vmul.f32 %v9052, %v9057
        %v9074 = vld [vmem:[#allocation11 + $0x5] sm:$0x1]
        %v9075 = vlaneseq
        %v9076 = vshrl.u32 %v9075, 7
        %v9077 = vsub.s32 0, %v9076
        %v9078 = vrot.slane %v9074, %v9077
        %v9079 = vadd.f32 %v9058, %v9078
        %v9080 = vadd.f32 %v9059, %v9078
        %v9081 = vadd.f32 %v9060, %v9078
        %v9082 = vadd.f32 %v9061, %v9078
        %v9083 = vadd.f32 %v9062, %v9078
        %v9084 = vadd.f32 %v9063, %v9078
        %v9085 = vadd.f32 %v9064, %v9078
        %v9086 = vadd.f32 %v9065, %v9078
        %v9087 = vadd.f32 %v9066, %v9078
        %v9088 = vadd.f32 %v9067, %v9078
        %v9089 = vadd.f32 %v9068, %v9078
        %v9090 = vadd.f32 %v9069, %v9078
        %v9091 = vadd.f32 %v9070, %v9078
        %v9092 = vadd.f32 %v9071, %v9078
        %v9093 = vadd.f32 %v9072, %v9078
        %v9094 = vadd.f32 %v9073, %v9078
        %v9111 = vcombine.high %v9079, %v9079
        %v9112 = vcombine.high %v9080, %v9080
        %v9113 = vcombine.high %v9081, %v9081
        %v9114 = vcombine.high %v9082, %v9082
        %v9115 = vcombine.high %v9083, %v9083
        %v9116 = vcombine.high %v9084, %v9084
        %v9117 = vcombine.high %v9085, %v9085
        %v9118 = vcombine.high %v9086, %v9086
        %v9119 = vcombine.high %v9087, %v9087
        %v9120 = vcombine.high %v9088, %v9088
        %v9121 = vcombine.high %v9089, %v9089
        %v9122 = vcombine.high %v9090, %v9090
        %v9123 = vcombine.high %v9091, %v9091
        %v9124 = vcombine.high %v9092, %v9092
        %v9125 = vcombine.high %v9093, %v9093
        %v9126 = vcombine.high %v9094, %v9094
        %vm9143 = vcmask 519168
        %v9144 = vsel %vm9143, %v9079, -inf
        %v9145 = vsel %vm9143, %v9111, -inf
        %v9146 = vmax.f32 %v9144, %v9145
        %v9147 = vsel %vm9143, %v9080, -inf
        %v9148 = vsel %vm9143, %v9112, -inf
        %v9149 = vmax.f32 %v9147, %v9148
        %v9150 = vsel %vm9143, %v9081, -inf
        %v9151 = vsel %vm9143, %v9113, -inf
        %v9152 = vmax.f32 %v9150, %v9151
        %v9153 = vsel %vm9143, %v9082, -inf
        %v9154 = vsel %vm9143, %v9114, -inf
        %v9155 = vmax.f32 %v9153, %v9154
        %v9156 = vsel %vm9143, %v9083, -inf
        %v9157 = vsel %vm9143, %v9115, -inf
        %v9158 = vmax.f32 %v9156, %v9157
        %v9159 = vsel %vm9143, %v9084, -inf
        %v9160 = vsel %vm9143, %v9116, -inf
        %v9161 = vmax.f32 %v9159, %v9160
        %v9162 = vsel %vm9143, %v9085, -inf
        %v9163 = vsel %vm9143, %v9117, -inf
        %v9164 = vmax.f32 %v9162, %v9163
        %v9165 = vsel %vm9143, %v9086, -inf
        %v9166 = vsel %vm9143, %v9118, -inf
        %v9167 = vmax.f32 %v9165, %v9166
        %v9168 = vsel %vm9143, %v9087, -inf
        %v9169 = vsel %vm9143, %v9119, -inf
        %v9170 = vmax.f32 %v9168, %v9169
        %v9171 = vsel %vm9143, %v9088, -inf
        %v9172 = vsel %vm9143, %v9120, -inf
        %v9173 = vmax.f32 %v9171, %v9172
        %v9174 = vsel %vm9143, %v9089, -inf
        %v9175 = vsel %vm9143, %v9121, -inf
        %v9176 = vmax.f32 %v9174, %v9175
        %v9177 = vsel %vm9143, %v9090, -inf
        %v9178 = vsel %vm9143, %v9122, -inf
        %v9179 = vmax.f32 %v9177, %v9178
        %v9180 = vsel %vm9143, %v9091, -inf
        %v9181 = vsel %vm9143, %v9123, -inf
        %v9182 = vmax.f32 %v9180, %v9181
        %v9183 = vsel %vm9143, %v9092, -inf
        %v9184 = vsel %vm9143, %v9124, -inf
        %v9185 = vmax.f32 %v9183, %v9184
        %v9186 = vsel %vm9143, %v9093, -inf
        %v9187 = vsel %vm9143, %v9125, -inf
        %v9188 = vmax.f32 %v9186, %v9187
        %v9189 = vsel %vm9143, %v9094, -inf
        %v9190 = vsel %vm9143, %v9126, -inf
        %v9191 = vmax.f32 %v9189, %v9190
        %v9209 = vunpack.c.l.s4 1983009808
        %v9210 = vunpack.c.0.s8 %v9209
        %v9211 = vlaneseq
        %v9212 = vshrl.u32 %v9211, 7
        %v9213 = vsub.s32 %v9210, %v9212
        %v9214 = vrot.slane %v9146, %v9213
        %v9215 = vcombine.high %v9214, %v9214
        %v9217 = vunpack.c.l.s4 1983009808
        %v9218 = vunpack.c.0.s8 %v9217
        %v9219 = vlaneseq
        %v9220 = vshrl.u32 %v9219, 7
        %v9221 = vsub.s32 %v9218, %v9220
        %v9222 = vrot.slane %v9149, %v9221
        %v9223 = vcombine.high %v9222, %v9222
        %v9225 = vunpack.c.l.s4 1983009808
        %v9226 = vunpack.c.0.s8 %v9225
        %v9227 = vlaneseq
        %v9228 = vshrl.u32 %v9227, 7
        %v9229 = vsub.s32 %v9226, %v9228
        %v9230 = vrot.slane %v9152, %v9229
        %v9231 = vcombine.high %v9230, %v9230
        %v9233 = vunpack.c.l.s4 1983009808
        %v9234 = vunpack.c.0.s8 %v9233
        %v9235 = vlaneseq
        %v9236 = vshrl.u32 %v9235, 7
        %v9237 = vsub.s32 %v9234, %v9236
        %v9238 = vrot.slane %v9155, %v9237
        %v9239 = vcombine.high %v9238, %v9238
        %v9241 = vunpack.c.l.s4 1983009808
        %v9242 = vunpack.c.0.s8 %v9241
        %v9243 = vlaneseq
        %v9244 = vshrl.u32 %v9243, 7
        %v9245 = vsub.s32 %v9242, %v9244
        %v9246 = vrot.slane %v9158, %v9245
        %v9247 = vcombine.high %v9246, %v9246
        %v9249 = vunpack.c.l.s4 1983009808
        %v9250 = vunpack.c.0.s8 %v9249
        %v9251 = vlaneseq
        %v9252 = vshrl.u32 %v9251, 7
        %v9253 = vsub.s32 %v9250, %v9252
        %v9254 = vrot.slane %v9161, %v9253
        %v9255 = vcombine.high %v9254, %v9254
        %v9257 = vunpack.c.l.s4 1983009808
        %v9258 = vunpack.c.0.s8 %v9257
        %v9259 = vlaneseq
        %v9260 = vshrl.u32 %v9259, 7
        %v9261 = vsub.s32 %v9258, %v9260
        %v9262 = vrot.slane %v9164, %v9261
        %v9263 = vcombine.high %v9262, %v9262
        %v9265 = vunpack.c.l.s4 1983009808
        %v9266 = vunpack.c.0.s8 %v9265
        %v9267 = vlaneseq
        %v9268 = vshrl.u32 %v9267, 7
        %v9269 = vsub.s32 %v9266, %v9268
        %v9270 = vrot.slane %v9167, %v9269
        %v9271 = vcombine.high %v9270, %v9270
        %v9273 = vunpack.c.l.s4 1983009808
        %v9274 = vunpack.c.0.s8 %v9273
        %v9275 = vlaneseq
        %v9276 = vshrl.u32 %v9275, 7
        %v9277 = vsub.s32 %v9274, %v9276
        %v9278 = vrot.slane %v9170, %v9277
        %v9279 = vcombine.high %v9278, %v9278
        %v9281 = vunpack.c.l.s4 1983009808
        %v9282 = vunpack.c.0.s8 %v9281
        %v9283 = vlaneseq
        %v9284 = vshrl.u32 %v9283, 7
        %v9285 = vsub.s32 %v9282, %v9284
        %v9286 = vrot.slane %v9173, %v9285
        %v9287 = vcombine.high %v9286, %v9286
        %v9289 = vunpack.c.l.s4 1983009808
        %v9290 = vunpack.c.0.s8 %v9289
        %v9291 = vlaneseq
        %v9292 = vshrl.u32 %v9291, 7
        %v9293 = vsub.s32 %v9290, %v9292
        %v9294 = vrot.slane %v9176, %v9293
        %v9295 = vcombine.high %v9294, %v9294
        %v9297 = vunpack.c.l.s4 1983009808
        %v9298 = vunpack.c.0.s8 %v9297
        %v9299 = vlaneseq
        %v9300 = vshrl.u32 %v9299, 7
        %v9301 = vsub.s32 %v9298, %v9300
        %v9302 = vrot.slane %v9179, %v9301
        %v9303 = vcombine.high %v9302, %v9302
        %v9305 = vunpack.c.l.s4 1983009808
        %v9306 = vunpack.c.0.s8 %v9305
        %v9307 = vlaneseq
        %v9308 = vshrl.u32 %v9307, 7
        %v9309 = vsub.s32 %v9306, %v9308
        %v9310 = vrot.slane %v9182, %v9309
        %v9311 = vcombine.high %v9310, %v9310
        %v9313 = vunpack.c.l.s4 1983009808
        %v9314 = vunpack.c.0.s8 %v9313
        %v9315 = vlaneseq
        %v9316 = vshrl.u32 %v9315, 7
        %v9317 = vsub.s32 %v9314, %v9316
        %v9318 = vrot.slane %v9185, %v9317
        %v9319 = vcombine.high %v9318, %v9318
        %v9321 = vunpack.c.l.s4 1983009808
        %v9322 = vunpack.c.0.s8 %v9321
        %v9323 = vlaneseq
        %v9324 = vshrl.u32 %v9323, 7
        %v9325 = vsub.s32 %v9322, %v9324
        %v9326 = vrot.slane %v9188, %v9325
        %v9327 = vcombine.high %v9326, %v9326
        %v9329 = vunpack.c.l.s4 1983009808
        %v9330 = vunpack.c.0.s8 %v9329
        %v9331 = vlaneseq
        %v9332 = vshrl.u32 %v9331, 7
        %v9333 = vsub.s32 %v9330, %v9332
        %v9334 = vrot.slane %v9191, %v9333
        %v9335 = vcombine.high %v9334, %v9334
        %vm9368 = vcmask 517120
        %v9369 = vsel %vm9368, %v9214, -inf
        %v9370 = vrot.slane %v9369, 4
        %v9371 = vmax.f32 %v9369, %v9370
        %v9372 = vrot.slane %v9371, 2
        %v9373 = vmax.f32 %v9371, %v9372
        %v9374 = vrot.slane %v9373, 1
        %v9375 = vmax.f32 %v9373, %v9374
        %v9376 = vsel %vm9368, %v9215, -inf
        %v9377 = vrot.slane %v9376, 4
        %v9378 = vmax.f32 %v9376, %v9377
        %v9379 = vrot.slane %v9378, 2
        %v9380 = vmax.f32 %v9378, %v9379
        %v9381 = vrot.slane %v9380, 1
        %v9382 = vmax.f32 %v9380, %v9381
        %v9383 = vsel %vm9368, %v9222, -inf
        %v9384 = vrot.slane %v9383, 4
        %v9385 = vmax.f32 %v9383, %v9384
        %v9386 = vrot.slane %v9385, 2
        %v9387 = vmax.f32 %v9385, %v9386
        %v9388 = vrot.slane %v9387, 1
        %v9389 = vmax.f32 %v9387, %v9388
        %v9390 = vsel %vm9368, %v9223, -inf
        %v9391 = vrot.slane %v9390, 4
        %v9392 = vmax.f32 %v9390, %v9391
        %v9393 = vrot.slane %v9392, 2
        %v9394 = vmax.f32 %v9392, %v9393
        %v9395 = vrot.slane %v9394, 1
        %v9396 = vmax.f32 %v9394, %v9395
        %v9397 = vsel %vm9368, %v9230, -inf
        %v9398 = vrot.slane %v9397, 4
        %v9399 = vmax.f32 %v9397, %v9398
        %v9400 = vrot.slane %v9399, 2
        %v9401 = vmax.f32 %v9399, %v9400
        %v9402 = vrot.slane %v9401, 1
        %v9403 = vmax.f32 %v9401, %v9402
        %v9404 = vsel %vm9368, %v9231, -inf
        %v9405 = vrot.slane %v9404, 4
        %v9406 = vmax.f32 %v9404, %v9405
        %v9407 = vrot.slane %v9406, 2
        %v9408 = vmax.f32 %v9406, %v9407
        %v9409 = vrot.slane %v9408, 1
        %v9410 = vmax.f32 %v9408, %v9409
        %v9411 = vsel %vm9368, %v9238, -inf
        %v9412 = vrot.slane %v9411, 4
        %v9413 = vmax.f32 %v9411, %v9412
        %v9414 = vrot.slane %v9413, 2
        %v9415 = vmax.f32 %v9413, %v9414
        %v9416 = vrot.slane %v9415, 1
        %v9417 = vmax.f32 %v9415, %v9416
        %v9418 = vsel %vm9368, %v9239, -inf
        %v9419 = vrot.slane %v9418, 4
        %v9420 = vmax.f32 %v9418, %v9419
        %v9421 = vrot.slane %v9420, 2
        %v9422 = vmax.f32 %v9420, %v9421
        %v9423 = vrot.slane %v9422, 1
        %v9424 = vmax.f32 %v9422, %v9423
        %v9425 = vsel %vm9368, %v9246, -inf
        %v9426 = vrot.slane %v9425, 4
        %v9427 = vmax.f32 %v9425, %v9426
        %v9428 = vrot.slane %v9427, 2
        %v9429 = vmax.f32 %v9427, %v9428
        %v9430 = vrot.slane %v9429, 1
        %v9431 = vmax.f32 %v9429, %v9430
        %v9432 = vsel %vm9368, %v9247, -inf
        %v9433 = vrot.slane %v9432, 4
        %v9434 = vmax.f32 %v9432, %v9433
        %v9435 = vrot.slane %v9434, 2
        %v9436 = vmax.f32 %v9434, %v9435
        %v9437 = vrot.slane %v9436, 1
        %v9438 = vmax.f32 %v9436, %v9437
        %v9439 = vsel %vm9368, %v9254, -inf
        %v9440 = vrot.slane %v9439, 4
        %v9441 = vmax.f32 %v9439, %v9440
        %v9442 = vrot.slane %v9441, 2
        %v9443 = vmax.f32 %v9441, %v9442
        %v9444 = vrot.slane %v9443, 1
        %v9445 = vmax.f32 %v9443, %v9444
        %v9446 = vsel %vm9368, %v9255, -inf
        %v9447 = vrot.slane %v9446, 4
        %v9448 = vmax.f32 %v9446, %v9447
        %v9449 = vrot.slane %v9448, 2
        %v9450 = vmax.f32 %v9448, %v9449
        %v9451 = vrot.slane %v9450, 1
        %v9452 = vmax.f32 %v9450, %v9451
        %v9453 = vsel %vm9368, %v9262, -inf
        %v9454 = vrot.slane %v9453, 4
        %v9455 = vmax.f32 %v9453, %v9454
        %v9456 = vrot.slane %v9455, 2
        %v9457 = vmax.f32 %v9455, %v9456
        %v9458 = vrot.slane %v9457, 1
        %v9459 = vmax.f32 %v9457, %v9458
        %v9460 = vsel %vm9368, %v9263, -inf
        %v9461 = vrot.slane %v9460, 4
        %v9462 = vmax.f32 %v9460, %v9461
        %v9463 = vrot.slane %v9462, 2
        %v9464 = vmax.f32 %v9462, %v9463
        %v9465 = vrot.slane %v9464, 1
        %v9466 = vmax.f32 %v9464, %v9465
        %v9467 = vsel %vm9368, %v9270, -inf
        %v9468 = vrot.slane %v9467, 4
        %v9469 = vmax.f32 %v9467, %v9468
        %v9470 = vrot.slane %v9469, 2
        %v9471 = vmax.f32 %v9469, %v9470
        %v9472 = vrot.slane %v9471, 1
        %v9473 = vmax.f32 %v9471, %v9472
        %v9474 = vsel %vm9368, %v9271, -inf
        %v9475 = vrot.slane %v9474, 4
        %v9476 = vmax.f32 %v9474, %v9475
        %v9477 = vrot.slane %v9476, 2
        %v9478 = vmax.f32 %v9476, %v9477
        %v9479 = vrot.slane %v9478, 1
        %v9480 = vmax.f32 %v9478, %v9479
        %v9481 = vsel %vm9368, %v9278, -inf
        %v9482 = vrot.slane %v9481, 4
        %v9483 = vmax.f32 %v9481, %v9482
        %v9484 = vrot.slane %v9483, 2
        %v9485 = vmax.f32 %v9483, %v9484
        %v9486 = vrot.slane %v9485, 1
        %v9487 = vmax.f32 %v9485, %v9486
        %v9488 = vsel %vm9368, %v9279, -inf
        %v9489 = vrot.slane %v9488, 4
        %v9490 = vmax.f32 %v9488, %v9489
        %v9491 = vrot.slane %v9490, 2
        %v9492 = vmax.f32 %v9490, %v9491
        %v9493 = vrot.slane %v9492, 1
        %v9494 = vmax.f32 %v9492, %v9493
        %v9495 = vsel %vm9368, %v9286, -inf
        %v9496 = vrot.slane %v9495, 4
        %v9497 = vmax.f32 %v9495, %v9496
        %v9498 = vrot.slane %v9497, 2
        %v9499 = vmax.f32 %v9497, %v9498
        %v9500 = vrot.slane %v9499, 1
        %v9501 = vmax.f32 %v9499, %v9500
        %v9502 = vsel %vm9368, %v9287, -inf
        %v9503 = vrot.slane %v9502, 4
        %v9504 = vmax.f32 %v9502, %v9503
        %v9505 = vrot.slane %v9504, 2
        %v9506 = vmax.f32 %v9504, %v9505
        %v9507 = vrot.slane %v9506, 1
        %v9508 = vmax.f32 %v9506, %v9507
        %v9509 = vsel %vm9368, %v9294, -inf
        %v9510 = vrot.slane %v9509, 4
        %v9511 = vmax.f32 %v9509, %v9510
        %v9512 = vrot.slane %v9511, 2
        %v9513 = vmax.f32 %v9511, %v9512
        %v9514 = vrot.slane %v9513, 1
        %v9515 = vmax.f32 %v9513, %v9514
        %v9516 = vsel %vm9368, %v9295, -inf
        %v9517 = vrot.slane %v9516, 4
        %v9518 = vmax.f32 %v9516, %v9517
        %v9519 = vrot.slane %v9518, 2
        %v9520 = vmax.f32 %v9518, %v9519
        %v9521 = vrot.slane %v9520, 1
        %v9522 = vmax.f32 %v9520, %v9521
        %v9523 = vsel %vm9368, %v9302, -inf
        %v9524 = vrot.slane %v9523, 4
        %v9525 = vmax.f32 %v9523, %v9524
        %v9526 = vrot.slane %v9525, 2
        %v9527 = vmax.f32 %v9525, %v9526
        %v9528 = vrot.slane %v9527, 1
        %v9529 = vmax.f32 %v9527, %v9528
        %v9530 = vsel %vm9368, %v9303, -inf
        %v9531 = vrot.slane %v9530, 4
        %v9532 = vmax.f32 %v9530, %v9531
        %v9533 = vrot.slane %v9532, 2
        %v9534 = vmax.f32 %v9532, %v9533
        %v9535 = vrot.slane %v9534, 1
        %v9536 = vmax.f32 %v9534, %v9535
        %v9537 = vsel %vm9368, %v9310, -inf
        %v9538 = vrot.slane %v9537, 4
        %v9539 = vmax.f32 %v9537, %v9538
        %v9540 = vrot.slane %v9539, 2
        %v9541 = vmax.f32 %v9539, %v9540
        %v9542 = vrot.slane %v9541, 1
        %v9543 = vmax.f32 %v9541, %v9542
        %v9544 = vsel %vm9368, %v9311, -inf
        %v9545 = vrot.slane %v9544, 4
        %v9546 = vmax.f32 %v9544, %v9545
        %v9547 = vrot.slane %v9546, 2
        %v9548 = vmax.f32 %v9546, %v9547
        %v9549 = vrot.slane %v9548, 1
        %v9550 = vmax.f32 %v9548, %v9549
        %v9551 = vsel %vm9368, %v9318, -inf
        %v9552 = vrot.slane %v9551, 4
        %v9553 = vmax.f32 %v9551, %v9552
        %v9554 = vrot.slane %v9553, 2
        %v9555 = vmax.f32 %v9553, %v9554
        %v9556 = vrot.slane %v9555, 1
        %v9557 = vmax.f32 %v9555, %v9556
        %v9558 = vsel %vm9368, %v9319, -inf
        %v9559 = vrot.slane %v9558, 4
        %v9560 = vmax.f32 %v9558, %v9559
        %v9561 = vrot.slane %v9560, 2
        %v9562 = vmax.f32 %v9560, %v9561
        %v9563 = vrot.slane %v9562, 1
        %v9564 = vmax.f32 %v9562, %v9563
        %v9565 = vsel %vm9368, %v9326, -inf
        %v9566 = vrot.slane %v9565, 4
        %v9567 = vmax.f32 %v9565, %v9566
        %v9568 = vrot.slane %v9567, 2
        %v9569 = vmax.f32 %v9567, %v9568
        %v9570 = vrot.slane %v9569, 1
        %v9571 = vmax.f32 %v9569, %v9570
        %v9572 = vsel %vm9368, %v9327, -inf
        %v9573 = vrot.slane %v9572, 4
        %v9574 = vmax.f32 %v9572, %v9573
        %v9575 = vrot.slane %v9574, 2
        %v9576 = vmax.f32 %v9574, %v9575
        %v9577 = vrot.slane %v9576, 1
        %v9578 = vmax.f32 %v9576, %v9577
        %v9579 = vsel %vm9368, %v9334, -inf
        %v9580 = vrot.slane %v9579, 4
        %v9581 = vmax.f32 %v9579, %v9580
        %v9582 = vrot.slane %v9581, 2
        %v9583 = vmax.f32 %v9581, %v9582
        %v9584 = vrot.slane %v9583, 1
        %v9585 = vmax.f32 %v9583, %v9584
        %v9586 = vsel %vm9368, %v9335, -inf
        %v9587 = vrot.slane %v9586, 4
        %v9588 = vmax.f32 %v9586, %v9587
        %v9589 = vrot.slane %v9588, 2
        %v9590 = vmax.f32 %v9588, %v9589
        %v9591 = vrot.slane %v9590, 1
        %v9592 = vmax.f32 %v9590, %v9591
        %9593 = vst.msk [vmem:[#allocation4] sm:$0xf] %vm9143, 0.0
        %9594 = vst.msk [vmem:[#allocation4 + $0x10] sm:$0xf] %vm9143, 0.0
        %9595 = vst.msk [vmem:[#allocation4 + $0x20] sm:$0xf] %vm9143, 0.0
        %9596 = vst.msk [vmem:[#allocation4 + $0x30] sm:$0xf] %vm9143, 0.0
        %9597 = vst.msk [vmem:[#allocation4 + $0x40] sm:$0xf] %vm9143, 0.0
        %9598 = vst.msk [vmem:[#allocation4 + $0x50] sm:$0xf] %vm9143, 0.0
        %9599 = vst.msk [vmem:[#allocation4 + $0x60] sm:$0xf] %vm9143, 0.0
        %9600 = vst.msk [vmem:[#allocation4 + $0x70] sm:$0xf] %vm9143, 0.0
        %s9601 = scalar_lea.vmem [#allocation4], 12
        %9602 = vst.msk [vmem:[%s9601] sm:$0xf] %vm9143, 0.0
        %9603 = vst.msk [vmem:[%s9601 + $0x10] sm:$0xf] %vm9143, 0.0
        %9604 = vst.msk [vmem:[%s9601 + $0x20] sm:$0xf] %vm9143, 0.0
        %9605 = vst.msk [vmem:[%s9601 + $0x30] sm:$0xf] %vm9143, 0.0
        %9606 = vst.msk [vmem:[%s9601 + $0x40] sm:$0xf] %vm9143, 0.0
        %9607 = vst.msk [vmem:[%s9601 + $0x50] sm:$0xf] %vm9143, 0.0
        %9608 = vst.msk [vmem:[%s9601 + $0x60] sm:$0xf] %vm9143, 0.0
        %9609 = vst.msk [vmem:[%s9601 + $0x70] sm:$0xf] %vm9143, 0.0
        %v9642 = vsel %vm7176, %v9382, %v9375
        %v9643 = vsel %vm7176, %v9396, %v9389
        %v9644 = vsel %vm7176, %v9410, %v9403
        %v9645 = vsel %vm7176, %v9424, %v9417
        %v9646 = vsel %vm7176, %v9438, %v9431
        %v9647 = vsel %vm7176, %v9452, %v9445
        %v9648 = vsel %vm7176, %v9466, %v9459
        %v9649 = vsel %vm7176, %v9480, %v9473
        %v9650 = vsel %vm7176, %v9494, %v9487
        %v9651 = vsel %vm7176, %v9508, %v9501
        %v9652 = vsel %vm7176, %v9522, %v9515
        %v9653 = vsel %vm7176, %v9536, %v9529
        %v9654 = vsel %vm7176, %v9550, %v9543
        %v9655 = vsel %vm7176, %v9564, %v9557
        %v9656 = vsel %vm7176, %v9578, %v9571
        %v9657 = vsel %vm7176, %v9592, %v9585
        %v9674 = vsel %vm7307, 0.0, %v9642
        %v9675 = vsel %vm7307, 0.0, %v9643
        %v9676 = vsel %vm7307, 0.0, %v9644
        %v9677 = vsel %vm7307, 0.0, %v9645
        %v9678 = vsel %vm7307, 0.0, %v9646
        %v9679 = vsel %vm7307, 0.0, %v9647
        %v9680 = vsel %vm7307, 0.0, %v9648
        %v9681 = vsel %vm7307, 0.0, %v9649
        %v9682 = vsel %vm7307, 0.0, %v9650
        %v9683 = vsel %vm7307, 0.0, %v9651
        %v9684 = vsel %vm7307, 0.0, %v9652
        %v9685 = vsel %vm7307, 0.0, %v9653
        %v9686 = vsel %vm7307, 0.0, %v9654
        %v9687 = vsel %vm7307, 0.0, %v9655
        %v9688 = vsel %vm7307, 0.0, %v9656
        %v9689 = vsel %vm7307, 0.0, %v9657
        %vm9690 = vcmask 1042432
        %v9691 = vsel %vm9690, %v9674, 0.0
        %v9692 = vsel %vm9690, %v9675, 0.0
        %v9693 = vsel %vm9690, %v9676, 0.0
        %v9694 = vsel %vm9690, %v9677, 0.0
        %v9695 = vsel %vm9690, %v9678, 0.0
        %v9696 = vsel %vm9690, %v9679, 0.0
        %v9697 = vsel %vm9690, %v9680, 0.0
        %v9698 = vsel %vm9690, %v9681, 0.0
        %v9699 = vsel %vm9690, %v9682, 0.0
        %v9700 = vsel %vm9690, %v9683, 0.0
        %v9701 = vsel %vm9690, %v9684, 0.0
        %v9702 = vsel %vm9690, %v9685, 0.0
        %v9703 = vsel %vm9690, %v9686, 0.0
        %v9704 = vsel %vm9690, %v9687, 0.0
        %v9705 = vsel %vm9690, %v9688, 0.0
        %v9706 = vsel %vm9690, %v9689, 0.0
        %s9707 = scalar_lea.vmem [#allocation4], 4
        %9708 = vst.msk [vmem:[%s9707] sm:$0xf] %vm9143, %v9691
        %9709 = vst.msk [vmem:[%s9707 + $0x4] sm:$0xf] %vm9143, %v9692
        %9710 = vst.msk [vmem:[%s9707 + $0x10] sm:$0xf] %vm9143, %v9693
        %9711 = vst.msk [vmem:[%s9707 + $0x14] sm:$0xf] %vm9143, %v9694
        %9712 = vst.msk [vmem:[%s9707 + $0x20] sm:$0xf] %vm9143, %v9695
        %9713 = vst.msk [vmem:[%s9707 + $0x24] sm:$0xf] %vm9143, %v9696
        %9714 = vst.msk [vmem:[%s9707 + $0x30] sm:$0xf] %vm9143, %v9697
        %9715 = vst.msk [vmem:[%s9707 + $0x34] sm:$0xf] %vm9143, %v9698
        %9716 = vst.msk [vmem:[%s9707 + $0x40] sm:$0xf] %vm9143, %v9699
        %9717 = vst.msk [vmem:[%s9707 + $0x44] sm:$0xf] %vm9143, %v9700
        %9718 = vst.msk [vmem:[%s9707 + $0x50] sm:$0xf] %vm9143, %v9701
        %9719 = vst.msk [vmem:[%s9707 + $0x54] sm:$0xf] %vm9143, %v9702
        %9720 = vst.msk [vmem:[%s9707 + $0x60] sm:$0xf] %vm9143, %v9703
        %9721 = vst.msk [vmem:[%s9707 + $0x64] sm:$0xf] %vm9143, %v9704
        %9722 = vst.msk [vmem:[%s9707 + $0x70] sm:$0xf] %vm9143, %v9705
        %9723 = vst.msk [vmem:[%s9707 + $0x74] sm:$0xf] %vm9143, %v9706
        %v9724 = vld [vmem:[#allocation4] sm:$0x3]
        %v9725 = vld [vmem:[#allocation4 + $0x4] sm:$0x3]
        %v9726 = vld [vmem:[#allocation4 + $0x10] sm:$0x3]
        %v9727 = vld [vmem:[#allocation4 + $0x14] sm:$0x3]
        %v9728 = vld [vmem:[#allocation4 + $0x20] sm:$0x3]
        %v9729 = vld [vmem:[#allocation4 + $0x24] sm:$0x3]
        %v9730 = vld [vmem:[#allocation4 + $0x30] sm:$0x3]
        %v9731 = vld [vmem:[#allocation4 + $0x34] sm:$0x3]
        %v9732 = vld [vmem:[#allocation4 + $0x40] sm:$0x3]
        %v9733 = vld [vmem:[#allocation4 + $0x44] sm:$0x3]
        %v9734 = vld [vmem:[#allocation4 + $0x50] sm:$0x3]
        %v9735 = vld [vmem:[#allocation4 + $0x54] sm:$0x3]
        %v9736 = vld [vmem:[#allocation4 + $0x60] sm:$0x3]
        %v9737 = vld [vmem:[#allocation4 + $0x64] sm:$0x3]
        %v9738 = vld [vmem:[#allocation4 + $0x70] sm:$0x3]
        %v9739 = vld [vmem:[#allocation4 + $0x74] sm:$0x3]
        %v9756 = vcombine.low %v9724, %v9725
        %v9757 = vcombine.low %v9726, %v9727
        %v9759 = vunpack.c.l.s4 1983009808
        %v9760 = vunpack.c.0.s8 %v9759
        %v9761 = vlaneseq
        %v9762 = vshrl.u32 %v9761, 7
        %v9763 = vsub.s32 %v9760, %v9762
        %v9764 = vrot.slane %v9756, %v9763
        %v9766 = vunpack.c.l.s4 1983009808
        %v9767 = vunpack.c.0.s8 %v9766
        %v9768 = vlaneseq
        %v9769 = vshrl.u32 %v9768, 7
        %v9770 = vsub.s32 %v9767, %v9769
        %v9771 = vrot.slane %v9757, %v9770
        %v9772 = vcombine.low %v9764, %v9771
        %v9773 = vcombine.low %v9728, %v9729
        %v9774 = vcombine.low %v9730, %v9731
        %v9776 = vunpack.c.l.s4 1983009808
        %v9777 = vunpack.c.0.s8 %v9776
        %v9778 = vlaneseq
        %v9779 = vshrl.u32 %v9778, 7
        %v9780 = vsub.s32 %v9777, %v9779
        %v9781 = vrot.slane %v9773, %v9780
        %v9783 = vunpack.c.l.s4 1983009808
        %v9784 = vunpack.c.0.s8 %v9783
        %v9785 = vlaneseq
        %v9786 = vshrl.u32 %v9785, 7
        %v9787 = vsub.s32 %v9784, %v9786
        %v9788 = vrot.slane %v9774, %v9787
        %v9789 = vcombine.low %v9781, %v9788
        %v9790 = vcombine.low %v9732, %v9733
        %v9791 = vcombine.low %v9734, %v9735
        %v9793 = vunpack.c.l.s4 1983009808
        %v9794 = vunpack.c.0.s8 %v9793
        %v9795 = vlaneseq
        %v9796 = vshrl.u32 %v9795, 7
        %v9797 = vsub.s32 %v9794, %v9796
        %v9798 = vrot.slane %v9790, %v9797
        %v9800 = vunpack.c.l.s4 1983009808
        %v9801 = vunpack.c.0.s8 %v9800
        %v9802 = vlaneseq
        %v9803 = vshrl.u32 %v9802, 7
        %v9804 = vsub.s32 %v9801, %v9803
        %v9805 = vrot.slane %v9791, %v9804
        %v9806 = vcombine.low %v9798, %v9805
        %v9807 = vcombine.low %v9736, %v9737
        %v9808 = vcombine.low %v9738, %v9739
        %v9810 = vunpack.c.l.s4 1983009808
        %v9811 = vunpack.c.0.s8 %v9810
        %v9812 = vlaneseq
        %v9813 = vshrl.u32 %v9812, 7
        %v9814 = vsub.s32 %v9811, %v9813
        %v9815 = vrot.slane %v9807, %v9814
        %v9817 = vunpack.c.l.s4 1983009808
        %v9818 = vunpack.c.0.s8 %v9817
        %v9819 = vlaneseq
        %v9820 = vshrl.u32 %v9819, 7
        %v9821 = vsub.s32 %v9818, %v9820
        %v9822 = vrot.slane %v9808, %v9821
        %v9823 = vcombine.low %v9815, %v9822
        %vm9828 = vcmask 523264
        %9829 = vst.msk [vmem:[#allocation6] sm:$0xff] %vm9828, %v9772
        %9830 = vst.msk [vmem:[#allocation6 + $0x28] sm:$0xff] %vm9828, %v9789
        %9831 = vst.msk [vmem:[#allocation6 + $0x50] sm:$0xff] %vm9828, %v9806
        %9832 = vst.msk [vmem:[#allocation6 + $0x78] sm:$0xff] %vm9828, %v9823
        %v9833 = vld [vmem:[#allocation4 + $0x1] sm:$0x3]
        %v9834 = vld [vmem:[#allocation4 + $0x5] sm:$0x3]
        %v9835 = vld [vmem:[#allocation4 + $0x11] sm:$0x3]
        %v9836 = vld [vmem:[#allocation4 + $0x15] sm:$0x3]
        %v9837 = vld [vmem:[#allocation4 + $0x21] sm:$0x3]
        %v9838 = vld [vmem:[#allocation4 + $0x25] sm:$0x3]
        %v9839 = vld [vmem:[#allocation4 + $0x31] sm:$0x3]
        %v9840 = vld [vmem:[#allocation4 + $0x35] sm:$0x3]
        %v9841 = vld [vmem:[#allocation4 + $0x41] sm:$0x3]
        %v9842 = vld [vmem:[#allocation4 + $0x45] sm:$0x3]
        %v9843 = vld [vmem:[#allocation4 + $0x51] sm:$0x3]
        %v9844 = vld [vmem:[#allocation4 + $0x55] sm:$0x3]
        %v9845 = vld [vmem:[#allocation4 + $0x61] sm:$0x3]
        %v9846 = vld [vmem:[#allocation4 + $0x65] sm:$0x3]
        %v9847 = vld [vmem:[#allocation4 + $0x71] sm:$0x3]
        %v9848 = vld [vmem:[#allocation4 + $0x75] sm:$0x3]
        %v9865 = vcombine.low %v9833, %v9834
        %v9866 = vcombine.low %v9835, %v9836
        %v9868 = vunpack.c.l.s4 1983009808
        %v9869 = vunpack.c.0.s8 %v9868
        %v9870 = vlaneseq
        %v9871 = vshrl.u32 %v9870, 7
        %v9872 = vsub.s32 %v9869, %v9871
        %v9873 = vrot.slane %v9865, %v9872
        %v9875 = vunpack.c.l.s4 1983009808
        %v9876 = vunpack.c.0.s8 %v9875
        %v9877 = vlaneseq
        %v9878 = vshrl.u32 %v9877, 7
        %v9879 = vsub.s32 %v9876, %v9878
        %v9880 = vrot.slane %v9866, %v9879
        %v9881 = vcombine.low %v9873, %v9880
        %v9882 = vcombine.low %v9837, %v9838
        %v9883 = vcombine.low %v9839, %v9840
        %v9885 = vunpack.c.l.s4 1983009808
        %v9886 = vunpack.c.0.s8 %v9885
        %v9887 = vlaneseq
        %v9888 = vshrl.u32 %v9887, 7
        %v9889 = vsub.s32 %v9886, %v9888
        %v9890 = vrot.slane %v9882, %v9889
        %v9892 = vunpack.c.l.s4 1983009808
        %v9893 = vunpack.c.0.s8 %v9892
        %v9894 = vlaneseq
        %v9895 = vshrl.u32 %v9894, 7
        %v9896 = vsub.s32 %v9893, %v9895
        %v9897 = vrot.slane %v9883, %v9896
        %v9898 = vcombine.low %v9890, %v9897
        %v9899 = vcombine.low %v9841, %v9842
        %v9900 = vcombine.low %v9843, %v9844
        %v9902 = vunpack.c.l.s4 1983009808
        %v9903 = vunpack.c.0.s8 %v9902
        %v9904 = vlaneseq
        %v9905 = vshrl.u32 %v9904, 7
        %v9906 = vsub.s32 %v9903, %v9905
        %v9907 = vrot.slane %v9899, %v9906
        %v9909 = vunpack.c.l.s4 1983009808
        %v9910 = vunpack.c.0.s8 %v9909
        %v9911 = vlaneseq
        %v9912 = vshrl.u32 %v9911, 7
        %v9913 = vsub.s32 %v9910, %v9912
        %v9914 = vrot.slane %v9900, %v9913
        %v9915 = vcombine.low %v9907, %v9914
        %v9916 = vcombine.low %v9845, %v9846
        %v9917 = vcombine.low %v9847, %v9848
        %v9919 = vunpack.c.l.s4 1983009808
        %v9920 = vunpack.c.0.s8 %v9919
        %v9921 = vlaneseq
        %v9922 = vshrl.u32 %v9921, 7
        %v9923 = vsub.s32 %v9920, %v9922
        %v9924 = vrot.slane %v9916, %v9923
        %v9926 = vunpack.c.l.s4 1983009808
        %v9927 = vunpack.c.0.s8 %v9926
        %v9928 = vlaneseq
        %v9929 = vshrl.u32 %v9928, 7
        %v9930 = vsub.s32 %v9927, %v9929
        %v9931 = vrot.slane %v9917, %v9930
        %v9932 = vcombine.low %v9924, %v9931
        %9933 = vrot.lane.b32.xlu0 %v9881, 64
        %v9934 = vpop.permute.xlu0 %9933
        %9935 = vrot.lane.b32.xlu0 %v9898, 64
        %v9936 = vpop.permute.xlu0 %9935
        %9937 = vrot.lane.b32.xlu0 %v9915, 64
        %v9938 = vpop.permute.xlu0 %9937
        %9939 = vrot.lane.b32.xlu0 %v9932, 64
        %v9940 = vpop.permute.xlu0 %9939
        %vm9945 = vcmask 1048064
        %9946 = vst.msk [vmem:[#allocation6] sm:$0xff] %vm9945, %v9934
        %9947 = vst.msk [vmem:[#allocation6 + $0x28] sm:$0xff] %vm9945, %v9936
        %9948 = vst.msk [vmem:[#allocation6 + $0x50] sm:$0xff] %vm9945, %v9938
        %9949 = vst.msk [vmem:[#allocation6 + $0x78] sm:$0xff] %vm9945, %v9940
        %v9950 = vld [vmem:[#allocation4 + $0x2] sm:$0x3]
        %v9951 = vld [vmem:[#allocation4 + $0x6] sm:$0x3]
        %v9952 = vld [vmem:[#allocation4 + $0x12] sm:$0x3]
        %v9953 = vld [vmem:[#allocation4 + $0x16] sm:$0x3]
        %v9954 = vld [vmem:[#allocation4 + $0x22] sm:$0x3]
        %v9955 = vld [vmem:[#allocation4 + $0x26] sm:$0x3]
        %v9956 = vld [vmem:[#allocation4 + $0x32] sm:$0x3]
        %v9957 = vld [vmem:[#allocation4 + $0x36] sm:$0x3]
        %v9958 = vld [vmem:[#allocation4 + $0x42] sm:$0x3]
        %v9959 = vld [vmem:[#allocation4 + $0x46] sm:$0x3]
        %v9960 = vld [vmem:[#allocation4 + $0x52] sm:$0x3]
        %v9961 = vld [vmem:[#allocation4 + $0x56] sm:$0x3]
        %v9962 = vld [vmem:[#allocation4 + $0x62] sm:$0x3]
        %v9963 = vld [vmem:[#allocation4 + $0x66] sm:$0x3]
        %v9964 = vld [vmem:[#allocation4 + $0x72] sm:$0x3]
        %v9965 = vld [vmem:[#allocation4 + $0x76] sm:$0x3]
        %v9982 = vcombine.low %v9950, %v9951
        %v9983 = vcombine.low %v9952, %v9953
        %v9985 = vunpack.c.l.s4 1983009808
        %v9986 = vunpack.c.0.s8 %v9985
        %v9987 = vlaneseq
        %v9988 = vshrl.u32 %v9987, 7
        %v9989 = vsub.s32 %v9986, %v9988
        %v9990 = vrot.slane %v9982, %v9989
        %v9992 = vunpack.c.l.s4 1983009808
        %v9993 = vunpack.c.0.s8 %v9992
        %v9994 = vlaneseq
        %v9995 = vshrl.u32 %v9994, 7
        %v9996 = vsub.s32 %v9993, %v9995
        %v9997 = vrot.slane %v9983, %v9996
        %v9998 = vcombine.low %v9990, %v9997
        %v9999 = vcombine.low %v9954, %v9955
        %v10000 = vcombine.low %v9956, %v9957
        %v10002 = vunpack.c.l.s4 1983009808
        %v10003 = vunpack.c.0.s8 %v10002
        %v10004 = vlaneseq
        %v10005 = vshrl.u32 %v10004, 7
        %v10006 = vsub.s32 %v10003, %v10005
        %v10007 = vrot.slane %v9999, %v10006
        %v10009 = vunpack.c.l.s4 1983009808
        %v10010 = vunpack.c.0.s8 %v10009
        %v10011 = vlaneseq
        %v10012 = vshrl.u32 %v10011, 7
        %v10013 = vsub.s32 %v10010, %v10012
        %v10014 = vrot.slane %v10000, %v10013
        %v10015 = vcombine.low %v10007, %v10014
        %v10016 = vcombine.low %v9958, %v9959
        %v10017 = vcombine.low %v9960, %v9961
        %v10019 = vunpack.c.l.s4 1983009808
        %v10020 = vunpack.c.0.s8 %v10019
        %v10021 = vlaneseq
        %v10022 = vshrl.u32 %v10021, 7
        %v10023 = vsub.s32 %v10020, %v10022
        %v10024 = vrot.slane %v10016, %v10023
        %v10026 = vunpack.c.l.s4 1983009808
        %v10027 = vunpack.c.0.s8 %v10026
        %v10028 = vlaneseq
        %v10029 = vshrl.u32 %v10028, 7
        %v10030 = vsub.s32 %v10027, %v10029
        %v10031 = vrot.slane %v10017, %v10030
        %v10032 = vcombine.low %v10024, %v10031
        %v10033 = vcombine.low %v9962, %v9963
        %v10034 = vcombine.low %v9964, %v9965
        %v10036 = vunpack.c.l.s4 1983009808
        %v10037 = vunpack.c.0.s8 %v10036
        %v10038 = vlaneseq
        %v10039 = vshrl.u32 %v10038, 7
        %v10040 = vsub.s32 %v10037, %v10039
        %v10041 = vrot.slane %v10033, %v10040
        %v10043 = vunpack.c.l.s4 1983009808
        %v10044 = vunpack.c.0.s8 %v10043
        %v10045 = vlaneseq
        %v10046 = vshrl.u32 %v10045, 7
        %v10047 = vsub.s32 %v10044, %v10046
        %v10048 = vrot.slane %v10034, %v10047
        %v10049 = vcombine.low %v10041, %v10048
        %10054 = vst.msk [vmem:[#allocation6 + $0x8] sm:$0xff] %vm9828, %v9998
        %10055 = vst.msk [vmem:[#allocation6 + $0x30] sm:$0xff] %vm9828, %v10015
        %10056 = vst.msk [vmem:[#allocation6 + $0x58] sm:$0xff] %vm9828, %v10032
        %10057 = vst.msk [vmem:[#allocation6 + $0x80] sm:$0xff] %vm9828, %v10049
        %v10058 = vld [vmem:[%s9707] sm:$0x3]
        %v10059 = vld [vmem:[%s9707 + $0x4] sm:$0x3]
        %v10060 = vld [vmem:[%s9707 + $0x10] sm:$0x3]
        %v10061 = vld [vmem:[%s9707 + $0x14] sm:$0x3]
        %v10062 = vld [vmem:[%s9707 + $0x20] sm:$0x3]
        %v10063 = vld [vmem:[%s9707 + $0x24] sm:$0x3]
        %v10064 = vld [vmem:[%s9707 + $0x30] sm:$0x3]
        %v10065 = vld [vmem:[%s9707 + $0x34] sm:$0x3]
        %v10066 = vld [vmem:[%s9707 + $0x40] sm:$0x3]
        %v10067 = vld [vmem:[%s9707 + $0x44] sm:$0x3]
        %v10068 = vld [vmem:[%s9707 + $0x50] sm:$0x3]
        %v10069 = vld [vmem:[%s9707 + $0x54] sm:$0x3]
        %v10070 = vld [vmem:[%s9707 + $0x60] sm:$0x3]
        %v10071 = vld [vmem:[%s9707 + $0x64] sm:$0x3]
        %v10072 = vld [vmem:[%s9707 + $0x70] sm:$0x3]
        %v10073 = vld [vmem:[%s9707 + $0x74] sm:$0x3]
        %v10090 = vcombine.low %v10058, %v10059
        %v10091 = vcombine.low %v10060, %v10061
        %v10093 = vunpack.c.l.s4 1983009808
        %v10094 = vunpack.c.0.s8 %v10093
        %v10095 = vlaneseq
        %v10096 = vshrl.u32 %v10095, 7
        %v10097 = vsub.s32 %v10094, %v10096
        %v10098 = vrot.slane %v10090, %v10097
        %v10100 = vunpack.c.l.s4 1983009808
        %v10101 = vunpack.c.0.s8 %v10100
        %v10102 = vlaneseq
        %v10103 = vshrl.u32 %v10102, 7
        %v10104 = vsub.s32 %v10101, %v10103
        %v10105 = vrot.slane %v10091, %v10104
        %v10106 = vcombine.low %v10098, %v10105
        %v10107 = vcombine.low %v10062, %v10063
        %v10108 = vcombine.low %v10064, %v10065
        %v10110 = vunpack.c.l.s4 1983009808
        %v10111 = vunpack.c.0.s8 %v10110
        %v10112 = vlaneseq
        %v10113 = vshrl.u32 %v10112, 7
        %v10114 = vsub.s32 %v10111, %v10113
        %v10115 = vrot.slane %v10107, %v10114
        %v10117 = vunpack.c.l.s4 1983009808
        %v10118 = vunpack.c.0.s8 %v10117
        %v10119 = vlaneseq
        %v10120 = vshrl.u32 %v10119, 7
        %v10121 = vsub.s32 %v10118, %v10120
        %v10122 = vrot.slane %v10108, %v10121
        %v10123 = vcombine.low %v10115, %v10122
        %v10124 = vcombine.low %v10066, %v10067
        %v10125 = vcombine.low %v10068, %v10069
        %v10127 = vunpack.c.l.s4 1983009808
        %v10128 = vunpack.c.0.s8 %v10127
        %v10129 = vlaneseq
        %v10130 = vshrl.u32 %v10129, 7
        %v10131 = vsub.s32 %v10128, %v10130
        %v10132 = vrot.slane %v10124, %v10131
        %v10134 = vunpack.c.l.s4 1983009808
        %v10135 = vunpack.c.0.s8 %v10134
        %v10136 = vlaneseq
        %v10137 = vshrl.u32 %v10136, 7
        %v10138 = vsub.s32 %v10135, %v10137
        %v10139 = vrot.slane %v10125, %v10138
        %v10140 = vcombine.low %v10132, %v10139
        %v10141 = vcombine.low %v10070, %v10071
        %v10142 = vcombine.low %v10072, %v10073
        %v10144 = vunpack.c.l.s4 1983009808
        %v10145 = vunpack.c.0.s8 %v10144
        %v10146 = vlaneseq
        %v10147 = vshrl.u32 %v10146, 7
        %v10148 = vsub.s32 %v10145, %v10147
        %v10149 = vrot.slane %v10141, %v10148
        %v10151 = vunpack.c.l.s4 1983009808
        %v10152 = vunpack.c.0.s8 %v10151
        %v10153 = vlaneseq
        %v10154 = vshrl.u32 %v10153, 7
        %v10155 = vsub.s32 %v10152, %v10154
        %v10156 = vrot.slane %v10142, %v10155
        %v10157 = vcombine.low %v10149, %v10156
        %10158 = vrot.lane.b32.xlu0 %v10106, 64
        %v10159 = vpop.permute.xlu0 %10158
        %10160 = vrot.lane.b32.xlu0 %v10123, 64
        %v10161 = vpop.permute.xlu0 %10160
        %10162 = vrot.lane.b32.xlu0 %v10140, 64
        %v10163 = vpop.permute.xlu0 %10162
        %10164 = vrot.lane.b32.xlu0 %v10157, 64
        %v10165 = vpop.permute.xlu0 %10164
        %10170 = vst.msk [vmem:[#allocation6 + $0x8] sm:$0xff] %vm9945, %v10159
        %10171 = vst.msk [vmem:[#allocation6 + $0x30] sm:$0xff] %vm9945, %v10161
        %10172 = vst.msk [vmem:[#allocation6 + $0x58] sm:$0xff] %vm9945, %v10163
        %10173 = vst.msk [vmem:[#allocation6 + $0x80] sm:$0xff] %vm9945, %v10165
        %v10174 = vld [vmem:[%s9707 + $0x1] sm:$0x3]
        %v10175 = vld [vmem:[%s9707 + $0x5] sm:$0x3]
        %v10176 = vld [vmem:[%s9707 + $0x11] sm:$0x3]
        %v10177 = vld [vmem:[%s9707 + $0x15] sm:$0x3]
        %v10178 = vld [vmem:[%s9707 + $0x21] sm:$0x3]
        %v10179 = vld [vmem:[%s9707 + $0x25] sm:$0x3]
        %v10180 = vld [vmem:[%s9707 + $0x31] sm:$0x3]
        %v10181 = vld [vmem:[%s9707 + $0x35] sm:$0x3]
        %v10182 = vld [vmem:[%s9707 + $0x41] sm:$0x3]
        %v10183 = vld [vmem:[%s9707 + $0x45] sm:$0x3]
        %v10184 = vld [vmem:[%s9707 + $0x51] sm:$0x3]
        %v10185 = vld [vmem:[%s9707 + $0x55] sm:$0x3]
        %v10186 = vld [vmem:[%s9707 + $0x61] sm:$0x3]
        %v10187 = vld [vmem:[%s9707 + $0x65] sm:$0x3]
        %v10188 = vld [vmem:[%s9707 + $0x71] sm:$0x3]
        %v10189 = vld [vmem:[%s9707 + $0x75] sm:$0x3]
        %v10206 = vcombine.low %v10174, %v10175
        %v10207 = vcombine.low %v10176, %v10177
        %v10209 = vunpack.c.l.s4 1983009808
        %v10210 = vunpack.c.0.s8 %v10209
        %v10211 = vlaneseq
        %v10212 = vshrl.u32 %v10211, 7
        %v10213 = vsub.s32 %v10210, %v10212
        %v10214 = vrot.slane %v10206, %v10213
        %v10216 = vunpack.c.l.s4 1983009808
        %v10217 = vunpack.c.0.s8 %v10216
        %v10218 = vlaneseq
        %v10219 = vshrl.u32 %v10218, 7
        %v10220 = vsub.s32 %v10217, %v10219
        %v10221 = vrot.slane %v10207, %v10220
        %v10222 = vcombine.low %v10214, %v10221
        %v10223 = vcombine.low %v10178, %v10179
        %v10224 = vcombine.low %v10180, %v10181
        %v10226 = vunpack.c.l.s4 1983009808
        %v10227 = vunpack.c.0.s8 %v10226
        %v10228 = vlaneseq
        %v10229 = vshrl.u32 %v10228, 7
        %v10230 = vsub.s32 %v10227, %v10229
        %v10231 = vrot.slane %v10223, %v10230
        %v10233 = vunpack.c.l.s4 1983009808
        %v10234 = vunpack.c.0.s8 %v10233
        %v10235 = vlaneseq
        %v10236 = vshrl.u32 %v10235, 7
        %v10237 = vsub.s32 %v10234, %v10236
        %v10238 = vrot.slane %v10224, %v10237
        %v10239 = vcombine.low %v10231, %v10238
        %v10240 = vcombine.low %v10182, %v10183
        %v10241 = vcombine.low %v10184, %v10185
        %v10243 = vunpack.c.l.s4 1983009808
        %v10244 = vunpack.c.0.s8 %v10243
        %v10245 = vlaneseq
        %v10246 = vshrl.u32 %v10245, 7
        %v10247 = vsub.s32 %v10244, %v10246
        %v10248 = vrot.slane %v10240, %v10247
        %v10250 = vunpack.c.l.s4 1983009808
        %v10251 = vunpack.c.0.s8 %v10250
        %v10252 = vlaneseq
        %v10253 = vshrl.u32 %v10252, 7
        %v10254 = vsub.s32 %v10251, %v10253
        %v10255 = vrot.slane %v10241, %v10254
        %v10256 = vcombine.low %v10248, %v10255
        %v10257 = vcombine.low %v10186, %v10187
        %v10258 = vcombine.low %v10188, %v10189
        %v10260 = vunpack.c.l.s4 1983009808
        %v10261 = vunpack.c.0.s8 %v10260
        %v10262 = vlaneseq
        %v10263 = vshrl.u32 %v10262, 7
        %v10264 = vsub.s32 %v10261, %v10263
        %v10265 = vrot.slane %v10257, %v10264
        %v10267 = vunpack.c.l.s4 1983009808
        %v10268 = vunpack.c.0.s8 %v10267
        %v10269 = vlaneseq
        %v10270 = vshrl.u32 %v10269, 7
        %v10271 = vsub.s32 %v10268, %v10270
        %v10272 = vrot.slane %v10258, %v10271
        %v10273 = vcombine.low %v10265, %v10272
        %10278 = vst.msk [vmem:[#allocation6 + $0x10] sm:$0xff] %vm9828, %v10222
        %10279 = vst.msk [vmem:[#allocation6 + $0x38] sm:$0xff] %vm9828, %v10239
        %10280 = vst.msk [vmem:[#allocation6 + $0x60] sm:$0xff] %vm9828, %v10256
        %10281 = vst.msk [vmem:[#allocation6 + $0x88] sm:$0xff] %vm9828, %v10273
        %v10282 = vld [vmem:[%s9707 + $0x2] sm:$0x3]
        %v10283 = vld [vmem:[%s9707 + $0x6] sm:$0x3]
        %v10284 = vld [vmem:[%s9707 + $0x12] sm:$0x3]
        %v10285 = vld [vmem:[%s9707 + $0x16] sm:$0x3]
        %v10286 = vld [vmem:[%s9707 + $0x22] sm:$0x3]
        %v10287 = vld [vmem:[%s9707 + $0x26] sm:$0x3]
        %v10288 = vld [vmem:[%s9707 + $0x32] sm:$0x3]
        %v10289 = vld [vmem:[%s9707 + $0x36] sm:$0x3]
        %v10290 = vld [vmem:[%s9707 + $0x42] sm:$0x3]
        %v10291 = vld [vmem:[%s9707 + $0x46] sm:$0x3]
        %v10292 = vld [vmem:[%s9707 + $0x52] sm:$0x3]
        %v10293 = vld [vmem:[%s9707 + $0x56] sm:$0x3]
        %v10294 = vld [vmem:[%s9707 + $0x62] sm:$0x3]
        %v10295 = vld [vmem:[%s9707 + $0x66] sm:$0x3]
        %v10296 = vld [vmem:[%s9707 + $0x72] sm:$0x3]
        %v10297 = vld [vmem:[%s9707 + $0x76] sm:$0x3]
        %v10314 = vcombine.low %v10282, %v10283
        %v10315 = vcombine.low %v10284, %v10285
        %v10317 = vunpack.c.l.s4 1983009808
        %v10318 = vunpack.c.0.s8 %v10317
        %v10319 = vlaneseq
        %v10320 = vshrl.u32 %v10319, 7
        %v10321 = vsub.s32 %v10318, %v10320
        %v10322 = vrot.slane %v10314, %v10321
        %v10324 = vunpack.c.l.s4 1983009808
        %v10325 = vunpack.c.0.s8 %v10324
        %v10326 = vlaneseq
        %v10327 = vshrl.u32 %v10326, 7
        %v10328 = vsub.s32 %v10325, %v10327
        %v10329 = vrot.slane %v10315, %v10328
        %v10330 = vcombine.low %v10322, %v10329
        %v10331 = vcombine.low %v10286, %v10287
        %v10332 = vcombine.low %v10288, %v10289
        %v10334 = vunpack.c.l.s4 1983009808
        %v10335 = vunpack.c.0.s8 %v10334
        %v10336 = vlaneseq
        %v10337 = vshrl.u32 %v10336, 7
        %v10338 = vsub.s32 %v10335, %v10337
        %v10339 = vrot.slane %v10331, %v10338
        %v10341 = vunpack.c.l.s4 1983009808
        %v10342 = vunpack.c.0.s8 %v10341
        %v10343 = vlaneseq
        %v10344 = vshrl.u32 %v10343, 7
        %v10345 = vsub.s32 %v10342, %v10344
        %v10346 = vrot.slane %v10332, %v10345
        %v10347 = vcombine.low %v10339, %v10346
        %v10348 = vcombine.low %v10290, %v10291
        %v10349 = vcombine.low %v10292, %v10293
        %v10351 = vunpack.c.l.s4 1983009808
        %v10352 = vunpack.c.0.s8 %v10351
        %v10353 = vlaneseq
        %v10354 = vshrl.u32 %v10353, 7
        %v10355 = vsub.s32 %v10352, %v10354
        %v10356 = vrot.slane %v10348, %v10355
        %v10358 = vunpack.c.l.s4 1983009808
        %v10359 = vunpack.c.0.s8 %v10358
        %v10360 = vlaneseq
        %v10361 = vshrl.u32 %v10360, 7
        %v10362 = vsub.s32 %v10359, %v10361
        %v10363 = vrot.slane %v10349, %v10362
        %v10364 = vcombine.low %v10356, %v10363
        %v10365 = vcombine.low %v10294, %v10295
        %v10366 = vcombine.low %v10296, %v10297
        %v10368 = vunpack.c.l.s4 1983009808
        %v10369 = vunpack.c.0.s8 %v10368
        %v10370 = vlaneseq
        %v10371 = vshrl.u32 %v10370, 7
        %v10372 = vsub.s32 %v10369, %v10371
        %v10373 = vrot.slane %v10365, %v10372
        %v10375 = vunpack.c.l.s4 1983009808
        %v10376 = vunpack.c.0.s8 %v10375
        %v10377 = vlaneseq
        %v10378 = vshrl.u32 %v10377, 7
        %v10379 = vsub.s32 %v10376, %v10378
        %v10380 = vrot.slane %v10366, %v10379
        %v10381 = vcombine.low %v10373, %v10380
        %10382 = vrot.lane.b32.xlu0 %v10330, 64
        %v10383 = vpop.permute.xlu0 %10382
        %10384 = vrot.lane.b32.xlu0 %v10347, 64
        %v10385 = vpop.permute.xlu0 %10384
        %10386 = vrot.lane.b32.xlu0 %v10364, 64
        %v10387 = vpop.permute.xlu0 %10386
        %10388 = vrot.lane.b32.xlu0 %v10381, 64
        %v10389 = vpop.permute.xlu0 %10388
        %10394 = vst.msk [vmem:[#allocation6 + $0x10] sm:$0xff] %vm9945, %v10383
        %10395 = vst.msk [vmem:[#allocation6 + $0x38] sm:$0xff] %vm9945, %v10385
        %10396 = vst.msk [vmem:[#allocation6 + $0x60] sm:$0xff] %vm9945, %v10387
        %10397 = vst.msk [vmem:[#allocation6 + $0x88] sm:$0xff] %vm9945, %v10389
        %s10398 = scalar_lea.vmem [#allocation4], 8
        %v10399 = vld [vmem:[%s10398] sm:$0x3]
        %v10400 = vld [vmem:[%s10398 + $0x4] sm:$0x3]
        %v10401 = vld [vmem:[%s10398 + $0x10] sm:$0x3]
        %v10402 = vld [vmem:[%s10398 + $0x14] sm:$0x3]
        %v10403 = vld [vmem:[%s10398 + $0x20] sm:$0x3]
        %v10404 = vld [vmem:[%s10398 + $0x24] sm:$0x3]
        %v10405 = vld [vmem:[%s10398 + $0x30] sm:$0x3]
        %v10406 = vld [vmem:[%s10398 + $0x34] sm:$0x3]
        %v10407 = vld [vmem:[%s10398 + $0x40] sm:$0x3]
        %v10408 = vld [vmem:[%s10398 + $0x44] sm:$0x3]
        %v10409 = vld [vmem:[%s10398 + $0x50] sm:$0x3]
        %v10410 = vld [vmem:[%s10398 + $0x54] sm:$0x3]
        %v10411 = vld [vmem:[%s10398 + $0x60] sm:$0x3]
        %v10412 = vld [vmem:[%s10398 + $0x64] sm:$0x3]
        %v10413 = vld [vmem:[%s10398 + $0x70] sm:$0x3]
        %v10414 = vld [vmem:[%s10398 + $0x74] sm:$0x3]
        %v10431 = vcombine.low %v10399, %v10400
        %v10432 = vcombine.low %v10401, %v10402
        %v10434 = vunpack.c.l.s4 1983009808
        %v10435 = vunpack.c.0.s8 %v10434
        %v10436 = vlaneseq
        %v10437 = vshrl.u32 %v10436, 7
        %v10438 = vsub.s32 %v10435, %v10437
        %v10439 = vrot.slane %v10431, %v10438
        %v10441 = vunpack.c.l.s4 1983009808
        %v10442 = vunpack.c.0.s8 %v10441
        %v10443 = vlaneseq
        %v10444 = vshrl.u32 %v10443, 7
        %v10445 = vsub.s32 %v10442, %v10444
        %v10446 = vrot.slane %v10432, %v10445
        %v10447 = vcombine.low %v10439, %v10446
        %v10448 = vcombine.low %v10403, %v10404
        %v10449 = vcombine.low %v10405, %v10406
        %v10451 = vunpack.c.l.s4 1983009808
        %v10452 = vunpack.c.0.s8 %v10451
        %v10453 = vlaneseq
        %v10454 = vshrl.u32 %v10453, 7
        %v10455 = vsub.s32 %v10452, %v10454
        %v10456 = vrot.slane %v10448, %v10455
        %v10458 = vunpack.c.l.s4 1983009808
        %v10459 = vunpack.c.0.s8 %v10458
        %v10460 = vlaneseq
        %v10461 = vshrl.u32 %v10460, 7
        %v10462 = vsub.s32 %v10459, %v10461
        %v10463 = vrot.slane %v10449, %v10462
        %v10464 = vcombine.low %v10456, %v10463
        %v10465 = vcombine.low %v10407, %v10408
        %v10466 = vcombine.low %v10409, %v10410
        %v10468 = vunpack.c.l.s4 1983009808
        %v10469 = vunpack.c.0.s8 %v10468
        %v10470 = vlaneseq
        %v10471 = vshrl.u32 %v10470, 7
        %v10472 = vsub.s32 %v10469, %v10471
        %v10473 = vrot.slane %v10465, %v10472
        %v10475 = vunpack.c.l.s4 1983009808
        %v10476 = vunpack.c.0.s8 %v10475
        %v10477 = vlaneseq
        %v10478 = vshrl.u32 %v10477, 7
        %v10479 = vsub.s32 %v10476, %v10478
        %v10480 = vrot.slane %v10466, %v10479
        %v10481 = vcombine.low %v10473, %v10480
        %v10482 = vcombine.low %v10411, %v10412
        %v10483 = vcombine.low %v10413, %v10414
        %v10485 = vunpack.c.l.s4 1983009808
        %v10486 = vunpack.c.0.s8 %v10485
        %v10487 = vlaneseq
        %v10488 = vshrl.u32 %v10487, 7
        %v10489 = vsub.s32 %v10486, %v10488
        %v10490 = vrot.slane %v10482, %v10489
        %v10492 = vunpack.c.l.s4 1983009808
        %v10493 = vunpack.c.0.s8 %v10492
        %v10494 = vlaneseq
        %v10495 = vshrl.u32 %v10494, 7
        %v10496 = vsub.s32 %v10493, %v10495
        %v10497 = vrot.slane %v10483, %v10496
        %v10498 = vcombine.low %v10490, %v10497
        %10503 = vst.msk [vmem:[#allocation6 + $0x18] sm:$0xff] %vm9828, %v10447
        %10504 = vst.msk [vmem:[#allocation6 + $0x40] sm:$0xff] %vm9828, %v10464
        %10505 = vst.msk [vmem:[#allocation6 + $0x68] sm:$0xff] %vm9828, %v10481
        %10506 = vst.msk [vmem:[#allocation6 + $0x90] sm:$0xff] %vm9828, %v10498
        %v10507 = vld [vmem:[%s10398 + $0x1] sm:$0x3]
        %v10508 = vld [vmem:[%s10398 + $0x5] sm:$0x3]
        %v10509 = vld [vmem:[%s10398 + $0x11] sm:$0x3]
        %v10510 = vld [vmem:[%s10398 + $0x15] sm:$0x3]
        %v10511 = vld [vmem:[%s10398 + $0x21] sm:$0x3]
        %v10512 = vld [vmem:[%s10398 + $0x25] sm:$0x3]
        %v10513 = vld [vmem:[%s10398 + $0x31] sm:$0x3]
        %v10514 = vld [vmem:[%s10398 + $0x35] sm:$0x3]
        %v10515 = vld [vmem:[%s10398 + $0x41] sm:$0x3]
        %v10516 = vld [vmem:[%s10398 + $0x45] sm:$0x3]
        %v10517 = vld [vmem:[%s10398 + $0x51] sm:$0x3]
        %v10518 = vld [vmem:[%s10398 + $0x55] sm:$0x3]
        %v10519 = vld [vmem:[%s10398 + $0x61] sm:$0x3]
        %v10520 = vld [vmem:[%s10398 + $0x65] sm:$0x3]
        %v10521 = vld [vmem:[%s10398 + $0x71] sm:$0x3]
        %v10522 = vld [vmem:[%s10398 + $0x75] sm:$0x3]
        %v10539 = vcombine.low %v10507, %v10508
        %v10540 = vcombine.low %v10509, %v10510
        %v10542 = vunpack.c.l.s4 1983009808
        %v10543 = vunpack.c.0.s8 %v10542
        %v10544 = vlaneseq
        %v10545 = vshrl.u32 %v10544, 7
        %v10546 = vsub.s32 %v10543, %v10545
        %v10547 = vrot.slane %v10539, %v10546
        %v10549 = vunpack.c.l.s4 1983009808
        %v10550 = vunpack.c.0.s8 %v10549
        %v10551 = vlaneseq
        %v10552 = vshrl.u32 %v10551, 7
        %v10553 = vsub.s32 %v10550, %v10552
        %v10554 = vrot.slane %v10540, %v10553
        %v10555 = vcombine.low %v10547, %v10554
        %v10556 = vcombine.low %v10511, %v10512
        %v10557 = vcombine.low %v10513, %v10514
        %v10559 = vunpack.c.l.s4 1983009808
        %v10560 = vunpack.c.0.s8 %v10559
        %v10561 = vlaneseq
        %v10562 = vshrl.u32 %v10561, 7
        %v10563 = vsub.s32 %v10560, %v10562
        %v10564 = vrot.slane %v10556, %v10563
        %v10566 = vunpack.c.l.s4 1983009808
        %v10567 = vunpack.c.0.s8 %v10566
        %v10568 = vlaneseq
        %v10569 = vshrl.u32 %v10568, 7
        %v10570 = vsub.s32 %v10567, %v10569
        %v10571 = vrot.slane %v10557, %v10570
        %v10572 = vcombine.low %v10564, %v10571
        %v10573 = vcombine.low %v10515, %v10516
        %v10574 = vcombine.low %v10517, %v10518
        %v10576 = vunpack.c.l.s4 1983009808
        %v10577 = vunpack.c.0.s8 %v10576
        %v10578 = vlaneseq
        %v10579 = vshrl.u32 %v10578, 7
        %v10580 = vsub.s32 %v10577, %v10579
        %v10581 = vrot.slane %v10573, %v10580
        %v10583 = vunpack.c.l.s4 1983009808
        %v10584 = vunpack.c.0.s8 %v10583
        %v10585 = vlaneseq
        %v10586 = vshrl.u32 %v10585, 7
        %v10587 = vsub.s32 %v10584, %v10586
        %v10588 = vrot.slane %v10574, %v10587
        %v10589 = vcombine.low %v10581, %v10588
        %v10590 = vcombine.low %v10519, %v10520
        %v10591 = vcombine.low %v10521, %v10522
        %v10593 = vunpack.c.l.s4 1983009808
        %v10594 = vunpack.c.0.s8 %v10593
        %v10595 = vlaneseq
        %v10596 = vshrl.u32 %v10595, 7
        %v10597 = vsub.s32 %v10594, %v10596
        %v10598 = vrot.slane %v10590, %v10597
        %v10600 = vunpack.c.l.s4 1983009808
        %v10601 = vunpack.c.0.s8 %v10600
        %v10602 = vlaneseq
        %v10603 = vshrl.u32 %v10602, 7
        %v10604 = vsub.s32 %v10601, %v10603
        %v10605 = vrot.slane %v10591, %v10604
        %v10606 = vcombine.low %v10598, %v10605
        %10607 = vrot.lane.b32.xlu0 %v10555, 64
        %v10608 = vpop.permute.xlu0 %10607
        %10609 = vrot.lane.b32.xlu0 %v10572, 64
        %v10610 = vpop.permute.xlu0 %10609
        %10611 = vrot.lane.b32.xlu0 %v10589, 64
        %v10612 = vpop.permute.xlu0 %10611
        %10613 = vrot.lane.b32.xlu0 %v10606, 64
        %v10614 = vpop.permute.xlu0 %10613
        %10619 = vst.msk [vmem:[#allocation6 + $0x18] sm:$0xff] %vm9945, %v10608
        %10620 = vst.msk [vmem:[#allocation6 + $0x40] sm:$0xff] %vm9945, %v10610
        %10621 = vst.msk [vmem:[#allocation6 + $0x68] sm:$0xff] %vm9945, %v10612
        %10622 = vst.msk [vmem:[#allocation6 + $0x90] sm:$0xff] %vm9945, %v10614
        %v10623 = vld [vmem:[%s10398 + $0x2] sm:$0x3]
        %v10624 = vld [vmem:[%s10398 + $0x6] sm:$0x3]
        %v10625 = vld [vmem:[%s10398 + $0x12] sm:$0x3]
        %v10626 = vld [vmem:[%s10398 + $0x16] sm:$0x3]
        %v10627 = vld [vmem:[%s10398 + $0x22] sm:$0x3]
        %v10628 = vld [vmem:[%s10398 + $0x26] sm:$0x3]
        %v10629 = vld [vmem:[%s10398 + $0x32] sm:$0x3]
        %v10630 = vld [vmem:[%s10398 + $0x36] sm:$0x3]
        %v10631 = vld [vmem:[%s10398 + $0x42] sm:$0x3]
        %v10632 = vld [vmem:[%s10398 + $0x46] sm:$0x3]
        %v10633 = vld [vmem:[%s10398 + $0x52] sm:$0x3]
        %v10634 = vld [vmem:[%s10398 + $0x56] sm:$0x3]
        %v10635 = vld [vmem:[%s10398 + $0x62] sm:$0x3]
        %v10636 = vld [vmem:[%s10398 + $0x66] sm:$0x3]
        %v10637 = vld [vmem:[%s10398 + $0x72] sm:$0x3]
        %v10638 = vld [vmem:[%s10398 + $0x76] sm:$0x3]
        %v10655 = vcombine.low %v10623, %v10624
        %v10656 = vcombine.low %v10625, %v10626
        %v10658 = vunpack.c.l.s4 1983009808
        %v10659 = vunpack.c.0.s8 %v10658
        %v10660 = vlaneseq
        %v10661 = vshrl.u32 %v10660, 7
        %v10662 = vsub.s32 %v10659, %v10661
        %v10663 = vrot.slane %v10655, %v10662
        %v10665 = vunpack.c.l.s4 1983009808
        %v10666 = vunpack.c.0.s8 %v10665
        %v10667 = vlaneseq
        %v10668 = vshrl.u32 %v10667, 7
        %v10669 = vsub.s32 %v10666, %v10668
        %v10670 = vrot.slane %v10656, %v10669
        %v10671 = vcombine.low %v10663, %v10670
        %v10672 = vcombine.low %v10627, %v10628
        %v10673 = vcombine.low %v10629, %v10630
        %v10675 = vunpack.c.l.s4 1983009808
        %v10676 = vunpack.c.0.s8 %v10675
        %v10677 = vlaneseq
        %v10678 = vshrl.u32 %v10677, 7
        %v10679 = vsub.s32 %v10676, %v10678
        %v10680 = vrot.slane %v10672, %v10679
        %v10682 = vunpack.c.l.s4 1983009808
        %v10683 = vunpack.c.0.s8 %v10682
        %v10684 = vlaneseq
        %v10685 = vshrl.u32 %v10684, 7
        %v10686 = vsub.s32 %v10683, %v10685
        %v10687 = vrot.slane %v10673, %v10686
        %v10688 = vcombine.low %v10680, %v10687
        %v10689 = vcombine.low %v10631, %v10632
        %v10690 = vcombine.low %v10633, %v10634
        %v10692 = vunpack.c.l.s4 1983009808
        %v10693 = vunpack.c.0.s8 %v10692
        %v10694 = vlaneseq
        %v10695 = vshrl.u32 %v10694, 7
        %v10696 = vsub.s32 %v10693, %v10695
        %v10697 = vrot.slane %v10689, %v10696
        %v10699 = vunpack.c.l.s4 1983009808
        %v10700 = vunpack.c.0.s8 %v10699
        %v10701 = vlaneseq
        %v10702 = vshrl.u32 %v10701, 7
        %v10703 = vsub.s32 %v10700, %v10702
        %v10704 = vrot.slane %v10690, %v10703
        %v10705 = vcombine.low %v10697, %v10704
        %v10706 = vcombine.low %v10635, %v10636
        %v10707 = vcombine.low %v10637, %v10638
        %v10709 = vunpack.c.l.s4 1983009808
        %v10710 = vunpack.c.0.s8 %v10709
        %v10711 = vlaneseq
        %v10712 = vshrl.u32 %v10711, 7
        %v10713 = vsub.s32 %v10710, %v10712
        %v10714 = vrot.slane %v10706, %v10713
        %v10716 = vunpack.c.l.s4 1983009808
        %v10717 = vunpack.c.0.s8 %v10716
        %v10718 = vlaneseq
        %v10719 = vshrl.u32 %v10718, 7
        %v10720 = vsub.s32 %v10717, %v10719
        %v10721 = vrot.slane %v10707, %v10720
        %v10722 = vcombine.low %v10714, %v10721
        %10727 = vst.msk [vmem:[#allocation6 + $0x20] sm:$0xff] %vm9828, %v10671
        %10728 = vst.msk [vmem:[#allocation6 + $0x48] sm:$0xff] %vm9828, %v10688
        %10729 = vst.msk [vmem:[#allocation6 + $0x70] sm:$0xff] %vm9828, %v10705
        %10730 = vst.msk [vmem:[#allocation6 + $0x98] sm:$0xff] %vm9828, %v10722
        %v10731 = vld [vmem:[#allocation6] sm:$0xff]
        %v10732 = vld [vmem:[#allocation6 + $0x8] sm:$0xff]
        %v10733 = vld [vmem:[#allocation6 + $0x10] sm:$0xff]
        %v10734 = vld [vmem:[#allocation6 + $0x18] sm:$0xff]
        %v10735 = vld [vmem:[#allocation6 + $0x20] sm:$0xff]
        %v10736 = vld [vmem:[#allocation6 + $0x28] sm:$0xff]
        %v10737 = vld [vmem:[#allocation6 + $0x30] sm:$0xff]
        %v10738 = vld [vmem:[#allocation6 + $0x38] sm:$0xff]
        %v10739 = vld [vmem:[#allocation6 + $0x40] sm:$0xff]
        %v10740 = vld [vmem:[#allocation6 + $0x48] sm:$0xff]
        %v10741 = vld [vmem:[#allocation6 + $0x50] sm:$0xff]
        %v10742 = vld [vmem:[#allocation6 + $0x58] sm:$0xff]
        %v10743 = vld [vmem:[#allocation6 + $0x60] sm:$0xff]
        %v10744 = vld [vmem:[#allocation6 + $0x68] sm:$0xff]
        %v10745 = vld [vmem:[#allocation6 + $0x70] sm:$0xff]
        %v10746 = vld [vmem:[#allocation6 + $0x78] sm:$0xff]
        %v10747 = vld [vmem:[#allocation6 + $0x80] sm:$0xff]
        %v10748 = vld [vmem:[#allocation6 + $0x88] sm:$0xff]
        %v10749 = vld [vmem:[#allocation6 + $0x90] sm:$0xff]
        %v10750 = vld [vmem:[#allocation6 + $0x98] sm:$0xff]
        %v10751 = vld [vmem:[#allocation9 + $0x130] sm:$0xff]
        %v10752 = vld [vmem:[#allocation9 + $0x138] sm:$0xff]
        %v10753 = vld [vmem:[#allocation9 + $0x140] sm:$0xff]
        %v10754 = vld [vmem:[#allocation9 + $0x148] sm:$0xff]
        %v10755 = vld [vmem:[#allocation9 + $0x150] sm:$0xff]
        %v10756 = vld [vmem:[#allocation9 + $0x158] sm:$0xff]
        %v10757 = vld [vmem:[#allocation9 + $0x160] sm:$0xff]
        %v10758 = vld [vmem:[#allocation9 + $0x168] sm:$0xff]
        %v10759 = vld [vmem:[#allocation9 + $0x170] sm:$0xff]
        %v10760 = vld [vmem:[#allocation9 + $0x178] sm:$0xff]
        %v10761 = vld [vmem:[#allocation9 + $0x180] sm:$0xff]
        %v10762 = vld [vmem:[#allocation9 + $0x188] sm:$0xff]
        %v10763 = vld [vmem:[#allocation9 + $0x190] sm:$0xff]
        %v10764 = vld [vmem:[#allocation9 + $0x198] sm:$0xff]
        %v10765 = vld [vmem:[#allocation9 + $0x1a0] sm:$0xff]
        %v10766 = vld [vmem:[#allocation9 + $0x1a8] sm:$0xff]
        %v10767 = vld [vmem:[#allocation9 + $0x1b0] sm:$0xff]
        %v10768 = vld [vmem:[#allocation9 + $0x1b8] sm:$0xff]
        %v10769 = vld [vmem:[#allocation9 + $0x1c0] sm:$0xff]
        %v10770 = vld [vmem:[#allocation9 + $0x1c8] sm:$0xff]
        %v10771 = vld [vmem:[#allocation9 + $0x1d0] sm:$0xff]
        %v10772 = vld [vmem:[#allocation9 + $0x1d8] sm:$0xff]
        %v10773 = vld [vmem:[#allocation9 + $0x1e0] sm:$0xff]
        %v10774 = vld [vmem:[#allocation9 + $0x1e8] sm:$0xff]
        %v10775 = vld [vmem:[#allocation9 + $0x1f0] sm:$0xff]
        %v10776 = vld [vmem:[#allocation9 + $0x1f8] sm:$0xff]
        %v10777 = vld [vmem:[#allocation9 + $0x200] sm:$0xff]
        %v10778 = vld [vmem:[#allocation9 + $0x208] sm:$0xff]
        %v10779 = vld [vmem:[#allocation9 + $0x210] sm:$0xff]
        %v10780 = vld [vmem:[#allocation9 + $0x218] sm:$0xff]
        %v10781 = vld [vmem:[#allocation9 + $0x220] sm:$0xff]
        %v10782 = vld [vmem:[#allocation9 + $0x228] sm:$0xff]
        %v10783 = vld [vmem:[#allocation9 + $0x230] sm:$0xff]
        %v10784 = vld [vmem:[#allocation9 + $0x238] sm:$0xff]
        %v10785 = vld [vmem:[#allocation9 + $0x240] sm:$0xff]
        %v10786 = vld [vmem:[#allocation9 + $0x248] sm:$0xff]
        %v10787 = vld [vmem:[#allocation9 + $0x250] sm:$0xff]
        %v10788 = vld [vmem:[#allocation9 + $0x258] sm:$0xff]
        %v10789 = vld [vmem:[#allocation9 + $0x260] sm:$0xff]
        %v10790 = vld [vmem:[#allocation9 + $0x268] sm:$0xff]
        %v10791 = vld [vmem:[#allocation9 + $0x270] sm:$0xff]
        %v10792 = vld [vmem:[#allocation9 + $0x278] sm:$0xff]
        %v10793 = vld [vmem:[#allocation9 + $0x280] sm:$0xff]
        %v10794 = vld [vmem:[#allocation9 + $0x288] sm:$0xff]
        %v10795 = vld [vmem:[#allocation9 + $0x290] sm:$0xff]
        %v10796 = vld [vmem:[#allocation9 + $0x298] sm:$0xff]
        %v10797 = vld [vmem:[#allocation9 + $0x2a0] sm:$0xff]
        %v10798 = vld [vmem:[#allocation9 + $0x2a8] sm:$0xff]
        %v10799 = vld [vmem:[#allocation9 + $0x2b0] sm:$0xff]
        %v10800 = vld [vmem:[#allocation9 + $0x2b8] sm:$0xff]
        %v10801 = vld [vmem:[#allocation9 + $0x2c0] sm:$0xff]
        %v10802 = vld [vmem:[#allocation9 + $0x2c8] sm:$0xff]
        %v10803 = vld [vmem:[#allocation9 + $0x2d0] sm:$0xff]
        %v10804 = vld [vmem:[#allocation9 + $0x2d8] sm:$0xff]
        %v10805 = vld [vmem:[#allocation9 + $0x2e0] sm:$0xff]
        %v10806 = vld [vmem:[#allocation9 + $0x2e8] sm:$0xff]
        %v10807 = vld [vmem:[#allocation9 + $0x2f0] sm:$0xff]
        %v10808 = vld [vmem:[#allocation9 + $0x2f8] sm:$0xff]
        %v10809 = vld [vmem:[#allocation9 + $0x300] sm:$0xff]
        %v10810 = vld [vmem:[#allocation9 + $0x308] sm:$0xff]
        %v10811 = vld [vmem:[#allocation9 + $0x310] sm:$0xff]
        %v10812 = vld [vmem:[#allocation9 + $0x318] sm:$0xff]
        %v10813 = vld [vmem:[#allocation9 + $0x320] sm:$0xff]
        %v10814 = vld [vmem:[#allocation9 + $0x328] sm:$0xff]
        %v10815 = vld [vmem:[#allocation9 + $0x330] sm:$0xff]
        %v10816 = vld [vmem:[#allocation9 + $0x338] sm:$0xff]
        %v10817 = vld [vmem:[#allocation9 + $0x340] sm:$0xff]
        %v10818 = vld [vmem:[#allocation9 + $0x348] sm:$0xff]
        %v10819 = vld [vmem:[#allocation9 + $0x350] sm:$0xff]
        %v10820 = vld [vmem:[#allocation9 + $0x358] sm:$0xff]
        %v10821 = vld [vmem:[#allocation9 + $0x360] sm:$0xff]
        %v10822 = vld [vmem:[#allocation9 + $0x368] sm:$0xff]
        %v10823 = vld [vmem:[#allocation11 + $0x6] sm:$0x1]
        %v10824 = vlaneseq
        %v10825 = vshrl.u32 %v10824, 7
        %v10826 = vsub.s32 0, %v10825
        %v10827 = vrot.slane %v10823, %v10826
        %v10829 = vsel %vm9828, %v10735, 0
        %v10832 = vsel %vm9828, %v10740, 0
        %v10835 = vsel %vm9828, %v10745, 0
        %v10838 = vsel %vm9828, %v10750, 0
        %10840 = vmatprep.subr.mxu0 0.0
        %10841 = vmatpush1.msra.mxu0 %v10751
        %10842 = vmatprep.subr.mxu0 0.0
        %10843 = vmatpush1.msra.mxu0 %v10752
        %10844 = vmatprep.subr.mxu0 0.0
        %10845 = vmatpush1.msra.mxu0 %v10753
        %10846 = vmatprep.subr.mxu0 0.0
        %10847 = vmatpush1.msra.mxu0 %v10754
        %10848 = vmatprep.subr.mxu0 0.0
        %10849 = vmatpush1.msra.mxu0 %v10755
        %10850 = vmatprep.subr.mxu0 0.0
        %10851 = vmatpush1.msra.mxu0 %v10756
        %10852 = vmatprep.subr.mxu0 0.0
        %10853 = vmatpush1.msra.mxu0 %v10757
        %10854 = vmatprep.subr.mxu0 0.0
        %10855 = vmatpush1.msra.mxu0 %v10758
        %10856 = vmatprep.subr.mxu0 0.0
        %10857 = vmatpush1.msra.mxu0 %v10759
        %10858 = vmatprep.subr.mxu0 0.0
        %10859 = vmatpush1.msra.mxu0 %v10760
        %10860 = vmatprep.subr.mxu0 0.0
        %10861 = vmatpush1.msra.mxu0 %v10761
        %10862 = vmatprep.subr.mxu0 0.0
        %10863 = vmatpush1.msra.mxu0 %v10762
        %10864 = vmatprep.subr.mxu0 0.0
        %10865 = vmatpush1.msra.mxu0 %v10763
        %10866 = vmatprep.subr.mxu0 0.0
        %10867 = vmatpush1.msra.mxu0 %v10764
        %10868 = vmatprep.subr.mxu0 0.0
        %10869 = vmatpush1.msra.mxu0 %v10765
        %10870 = vmatprep.subr.mxu0 0.0
        %10871 = vmatpush1.msra.mxu0 %v10766
        %10872 = vmatprep.subr.mxu0 0.0
        %10873 = vmatpush1.msra.mxu0 %v10767
        %10874 = vmatprep.subr.mxu0 0.0
        %10875 = vmatpush1.msra.mxu0 %v10768
        %10876 = vmatprep.subr.mxu0 0.0
        %10877 = vmatpush1.msra.mxu0 %v10769
        %10878 = vmatprep.subr.mxu0 0.0
        %10879 = vmatpush1.msra.mxu0 %v10770
        %10880 = vmatprep.subr.mxu0 0.0
        %10881 = vmatpush1.msra.mxu0 %v10771
        %10882 = vmatprep.subr.mxu0 0.0
        %10883 = vmatpush1.msra.mxu0 %v10772
        %10884 = vmatprep.subr.mxu0 0.0
        %10885 = vmatpush1.msra.mxu0 %v10773
        %10886 = vmatprep.subr.mxu0 0.0
        %10887 = vmatpush1.msra.mxu0 %v10774
        %10888 = vmatprep.subr.mxu0 0.0
        %10889 = vmatpush1.msra.mxu0 %v10775
        %10890 = vmatprep.subr.mxu0 0.0
        %10891 = vmatpush1.msra.mxu0 %v10776
        %10892 = vmatprep.subr.mxu0 0.0
        %10893 = vmatpush1.msra.mxu0 %v10777
        %10894 = vmatprep.subr.mxu0 0.0
        %10895 = vmatpush1.msra.mxu0 %v10778
        %10896 = vmatprep.subr.mxu0 0.0
        %10897 = vmatpush1.msra.mxu0 %v10779
        %10898 = vmatprep.subr.mxu0 0.0
        %10899 = vmatpush1.msra.mxu0 %v10780
        %10900 = vmatprep.subr.mxu0 0.0
        %10901 = vmatpush1.msra.mxu0 %v10781
        %10902 = vmatprep.subr.mxu0 0.0
        %10903 = vmatpush1.msra.mxu0 %v10782
        %10904 = vmatprep.mubr.f32.mxu0 %v10732
        %10905 = vmatmul.mubr.f32.gmra.mrb[0].mxu0 %v10731
        %v10906 = vpop.f32.mrb[0].mxu0
        %v10907 = vadd.f32 %v10827, %v10906
        %v10908 = vpop.f32.mrb[0].mxu0
        %10909 = vmatprep.mubr.f32.mxu0 %v10737
        %10910 = vmatmul.mubr.f32.gmra.mrb[0].mxu0 %v10736
        %v10911 = vpop.f32.mrb[0].mxu0
        %v10912 = vadd.f32 %v10827, %v10911
        %v10913 = vpop.f32.mrb[0].mxu0
        %10914 = vmatprep.mubr.f32.mxu0 %v10742
        %10915 = vmatmul.mubr.f32.gmra.mrb[0].mxu0 %v10741
        %v10916 = vpop.f32.mrb[0].mxu0
        %v10917 = vadd.f32 %v10827, %v10916
        %v10918 = vpop.f32.mrb[0].mxu0
        %10919 = vmatprep.mubr.f32.mxu0 %v10747
        %10920 = vmatmul.mubr.f32.gmra.mrb[0].mxu0 %v10746
        %v10921 = vpop.f32.mrb[0].mxu0
        %v10922 = vadd.f32 %v10827, %v10921
        %v10923 = vpop.f32.mrb[0].mxu0
        %10924 = vdwg.mxu0
        %10925 = vmatprep.subr.mxu0 0.0
        %10926 = vmatpush1.msra.mxu0 %v10783
        %10927 = vmatprep.subr.mxu0 0.0
        %10928 = vmatpush1.msra.mxu0 %v10784
        %10929 = vmatprep.subr.mxu0 0.0
        %10930 = vmatpush1.msra.mxu0 %v10785
        %10931 = vmatprep.subr.mxu0 0.0
        %10932 = vmatpush1.msra.mxu0 %v10786
        %10933 = vmatprep.subr.mxu0 0.0
        %10934 = vmatpush1.msra.mxu0 %v10787
        %10935 = vmatprep.subr.mxu0 0.0
        %10936 = vmatpush1.msra.mxu0 %v10788
        %10937 = vmatprep.subr.mxu0 0.0
        %10938 = vmatpush1.msra.mxu0 %v10789
        %10939 = vmatprep.subr.mxu0 0.0
        %10940 = vmatpush1.msra.mxu0 %v10790
        %10941 = vmatprep.subr.mxu0 0.0
        %10942 = vmatpush1.msra.mxu0 %v10791
        %10943 = vmatprep.subr.mxu0 0.0
        %10944 = vmatpush1.msra.mxu0 %v10792
        %10945 = vmatprep.subr.mxu0 0.0
        %10946 = vmatpush1.msra.mxu0 %v10793
        %10947 = vmatprep.subr.mxu0 0.0
        %10948 = vmatpush1.msra.mxu0 %v10794
        %10949 = vmatprep.subr.mxu0 0.0
        %10950 = vmatpush1.msra.mxu0 %v10795
        %10951 = vmatprep.subr.mxu0 0.0
        %10952 = vmatpush1.msra.mxu0 %v10796
        %10953 = vmatprep.subr.mxu0 0.0
        %10954 = vmatpush1.msra.mxu0 %v10797
        %10955 = vmatprep.subr.mxu0 0.0
        %10956 = vmatpush1.msra.mxu0 %v10798
        %10957 = vmatprep.subr.mxu0 0.0
        %10958 = vmatpush1.msra.mxu0 %v10799
        %10959 = vmatprep.subr.mxu0 0.0
        %10960 = vmatpush1.msra.mxu0 %v10800
        %10961 = vmatprep.subr.mxu0 0.0
        %10962 = vmatpush1.msra.mxu0 %v10801
        %10963 = vmatprep.subr.mxu0 0.0
        %10964 = vmatpush1.msra.mxu0 %v10802
        %10965 = vmatprep.subr.mxu0 0.0
        %10966 = vmatpush1.msra.mxu0 %v10803
        %10967 = vmatprep.subr.mxu0 0.0
        %10968 = vmatpush1.msra.mxu0 %v10804
        %10969 = vmatprep.subr.mxu0 0.0
        %10970 = vmatpush1.msra.mxu0 %v10805
        %10971 = vmatprep.subr.mxu0 0.0
        %10972 = vmatpush1.msra.mxu0 %v10806
        %10973 = vmatprep.subr.mxu0 0.0
        %10974 = vmatpush1.msra.mxu0 %v10807
        %10975 = vmatprep.subr.mxu0 0.0
        %10976 = vmatpush1.msra.mxu0 %v10808
        %10977 = vmatprep.subr.mxu0 0.0
        %10978 = vmatpush1.msra.mxu0 %v10809
        %10979 = vmatprep.subr.mxu0 0.0
        %10980 = vmatpush1.msra.mxu0 %v10810
        %10981 = vmatprep.subr.mxu0 0.0
        %10982 = vmatpush1.msra.mxu0 %v10811
        %10983 = vmatprep.subr.mxu0 0.0
        %10984 = vmatpush1.msra.mxu0 %v10812
        %10985 = vmatprep.subr.mxu0 0.0
        %10986 = vmatpush1.msra.mxu0 %v10813
        %10987 = vmatprep.subr.mxu0 0.0
        %10988 = vmatpush1.msra.mxu0 %v10814
        %10989 = vmatprep.mubr.f32.mxu0 %v10734
        %10990 = vmatmul.mubr.f32.gmra.mrb[0].mxu0 %v10733
        %v10991 = vpop.f32.mrb[0].mxu0
        %v10992 = vadd.f32 %v10907, %v10991
        %v10993 = vpop.f32.mrb[0].mxu0
        %10994 = vmatprep.mubr.f32.mxu0 %v10739
        %10995 = vmatmul.mubr.f32.gmra.mrb[0].mxu0 %v10738
        %v10996 = vpop.f32.mrb[0].mxu0
        %v10997 = vadd.f32 %v10912, %v10996
        %v10998 = vpop.f32.mrb[0].mxu0
        %10999 = vmatprep.mubr.f32.mxu0 %v10744
        %11000 = vmatmul.mubr.f32.gmra.mrb[0].mxu0 %v10743
        %v11001 = vpop.f32.mrb[0].mxu0
        %v11002 = vadd.f32 %v10917, %v11001
        %v11003 = vpop.f32.mrb[0].mxu0
        %11004 = vmatprep.mubr.f32.mxu0 %v10749
        %11005 = vmatmul.mubr.f32.gmra.mrb[0].mxu0 %v10748
        %v11006 = vpop.f32.mrb[0].mxu0
        %v11007 = vadd.f32 %v10922, %v11006
        %v11008 = vpop.f32.mrb[0].mxu0
        %11009 = vdwg.mxu0
        %11010 = vmatprep.subr.mxu0 0.0
        %11011 = vmatpush1.msra.mxu0 %v10815
        %11012 = vmatprep.subr.mxu0 0.0
        %11013 = vmatpush1.msra.mxu0 %v10816
        %11014 = vmatprep.subr.mxu0 0.0
        %11015 = vmatpush1.msra.mxu0 %v10817
        %11016 = vmatprep.subr.mxu0 0.0
        %11017 = vmatpush1.msra.mxu0 %v10818
        %11018 = vmatprep.subr.mxu0 0.0
        %11019 = vmatpush1.msra.mxu0 %v10819
        %11020 = vmatprep.subr.mxu0 0.0
        %11021 = vmatpush1.msra.mxu0 %v10820
        %11022 = vmatprep.subr.mxu0 0.0
        %11023 = vmatpush1.msra.mxu0 %v10821
        %11024 = vmatprep.subr.mxu0 0.0
        %11025 = vmatpush1.msra.mxu0 %v10822
        %11026 = vmatprep.subr.mxu0 0.0
        %11027 = vmatpush1.msra.mxu0 0.0
        %11028 = vmatprep.subr.mxu0 0.0
        %11029 = vmatpush1.msra.mxu0 0.0
        %11030 = vmatprep.subr.mxu0 0.0
        %11031 = vmatpush1.msra.mxu0 0.0
        %11032 = vmatprep.subr.mxu0 0.0
        %11033 = vmatpush1.msra.mxu0 0.0
        %11034 = vmatprep.subr.mxu0 0.0
        %11035 = vmatpush1.msra.mxu0 0.0
        %11036 = vmatprep.subr.mxu0 0.0
        %11037 = vmatpush1.msra.mxu0 0.0
        %11038 = vmatprep.subr.mxu0 0.0
        %11039 = vmatpush1.msra.mxu0 0.0
        %11040 = vmatprep.subr.mxu0 0.0
        %11041 = vmatpush1.msra.mxu0 0.0
        %11042 = vmatprep.subr.mxu0 0.0
        %11043 = vmatpush1.msra.mxu0 0.0
        %11044 = vmatprep.subr.mxu0 0.0
        %11045 = vmatpush1.msra.mxu0 0.0
        %11046 = vmatprep.subr.mxu0 0.0
        %11047 = vmatpush1.msra.mxu0 0.0
        %11048 = vmatprep.subr.mxu0 0.0
        %11049 = vmatpush1.msra.mxu0 0.0
        %11050 = vmatprep.subr.mxu0 0.0
        %11051 = vmatpush1.msra.mxu0 0.0
        %11052 = vmatprep.subr.mxu0 0.0
        %11053 = vmatpush1.msra.mxu0 0.0
        %11054 = vmatprep.subr.mxu0 0.0
        %11055 = vmatpush1.msra.mxu0 0.0
        %11056 = vmatprep.subr.mxu0 0.0
        %11057 = vmatpush1.msra.mxu0 0.0
        %11058 = vmatprep.subr.mxu0 0.0
        %11059 = vmatpush1.msra.mxu0 0.0
        %11060 = vmatprep.subr.mxu0 0.0
        %11061 = vmatpush1.msra.mxu0 0.0
        %11062 = vmatprep.subr.mxu0 0.0
        %11063 = vmatpush1.msra.mxu0 0.0
        %11064 = vmatprep.subr.mxu0 0.0
        %11065 = vmatpush1.msra.mxu0 0.0
        %11066 = vmatprep.subr.mxu0 0.0
        %11067 = vmatpush1.msra.mxu0 0.0
        %11068 = vmatprep.subr.mxu0 0.0
        %11069 = vmatpush1.msra.mxu0 0.0
        %11070 = vmatprep.subr.mxu0 0.0
        %11071 = vmatpush1.msra.mxu0 0.0
        %11072 = vmatprep.subr.mxu0 0.0
        %11073 = vmatpush1.msra.mxu0 0.0
        %11074 = vmatprep.mubr.f32.mxu0 0.0
        %11075 = vmatmul.mubr.f32.gmra.mrb[0].mxu0 %v10829
        %v11076 = vpop.f32.mrb[0].mxu0
        %v11077 = vadd.f32 %v10992, %v11076
        %v11078 = vpop.f32.mrb[0].mxu0
        %11079 = vmatprep.mubr.f32.mxu0 0.0
        %11080 = vmatmul.mubr.f32.gmra.mrb[0].mxu0 %v10832
        %v11081 = vpop.f32.mrb[0].mxu0
        %v11082 = vadd.f32 %v10997, %v11081
        %v11083 = vpop.f32.mrb[0].mxu0
        %11084 = vmatprep.mubr.f32.mxu0 0.0
        %11085 = vmatmul.mubr.f32.gmra.mrb[0].mxu0 %v10835
        %v11086 = vpop.f32.mrb[0].mxu0
        %v11087 = vadd.f32 %v11002, %v11086
        %v11088 = vpop.f32.mrb[0].mxu0
        %11089 = vmatprep.mubr.f32.mxu0 0.0
        %11090 = vmatmul.mubr.f32.gmra.mrb[0].mxu0 %v10838
        %v11091 = vpop.f32.mrb[0].mxu0
        %v11092 = vadd.f32 %v11007, %v11091
        %v11093 = vpop.f32.mrb[0].mxu0
        %11094 = vdwg.mxu0
        %v11095 = vmax.f32 %v11077, 0.0
        %v11096 = vmax.f32 %v11082, 0.0
        %v11097 = vmax.f32 %v11087, 0.0
        %v11098 = vmax.f32 %v11092, 0.0
        %v11099 = vld [vmem:[#allocation11 + $0x7] sm:$0x1]
        %v11100 = vlaneseq
        %v11101 = vshrl.u32 %v11100, 7
        %v11102 = vsub.s32 0, %v11101
        %v11103 = vrot.slane %v11099, %v11102
        %v11104 = vmul.f32 %v11095, %v11103
        %v11105 = vmul.f32 %v11096, %v11103
        %v11106 = vmul.f32 %v11097, %v11103
        %v11107 = vmul.f32 %v11098, %v11103
        %v11108 = vld [vmem:[#allocation11 + $0x8] sm:$0x1]
        %v11109 = vlaneseq
        %v11110 = vshrl.u32 %v11109, 7
        %v11111 = vsub.s32 0, %v11110
        %v11112 = vrot.slane %v11108, %v11111
        %v11113 = vadd.f32 %v11104, %v11112
        %v11114 = vadd.f32 %v11105, %v11112
        %v11115 = vadd.f32 %v11106, %v11112
        %v11116 = vadd.f32 %v11107, %v11112
        %v11121 = vcombine.high %v11113, %v11113
        %v11122 = vcombine.high %v11114, %v11114
        %v11123 = vcombine.high %v11115, %v11115
        %v11124 = vcombine.high %v11116, %v11116
        %vm11129 = vcmask 1043456
        %v11130 = vsel %vm11129, %v11113, -inf
        %v11131 = vrot.slane %v11130, 4
        %v11132 = vmax.f32 %v11130, %v11131
        %v11133 = vrot.slane %v11132, 2
        %v11134 = vmax.f32 %v11132, %v11133
        %v11135 = vrot.slane %v11134, 1
        %v11136 = vmax.f32 %v11134, %v11135
        %v11137 = vsel %vm11129, %v11121, -inf
        %v11138 = vrot.slane %v11137, 4
        %v11139 = vmax.f32 %v11137, %v11138
        %v11140 = vrot.slane %v11139, 2
        %v11141 = vmax.f32 %v11139, %v11140
        %v11142 = vrot.slane %v11141, 1
        %v11143 = vmax.f32 %v11141, %v11142
        %v11144 = vsel %vm11129, %v11114, -inf
        %v11145 = vrot.slane %v11144, 4
        %v11146 = vmax.f32 %v11144, %v11145
        %v11147 = vrot.slane %v11146, 2
        %v11148 = vmax.f32 %v11146, %v11147
        %v11149 = vrot.slane %v11148, 1
        %v11150 = vmax.f32 %v11148, %v11149
        %v11151 = vsel %vm11129, %v11122, -inf
        %v11152 = vrot.slane %v11151, 4
        %v11153 = vmax.f32 %v11151, %v11152
        %v11154 = vrot.slane %v11153, 2
        %v11155 = vmax.f32 %v11153, %v11154
        %v11156 = vrot.slane %v11155, 1
        %v11157 = vmax.f32 %v11155, %v11156
        %v11158 = vsel %vm11129, %v11115, -inf
        %v11159 = vrot.slane %v11158, 4
        %v11160 = vmax.f32 %v11158, %v11159
        %v11161 = vrot.slane %v11160, 2
        %v11162 = vmax.f32 %v11160, %v11161
        %v11163 = vrot.slane %v11162, 1
        %v11164 = vmax.f32 %v11162, %v11163
        %v11165 = vsel %vm11129, %v11123, -inf
        %v11166 = vrot.slane %v11165, 4
        %v11167 = vmax.f32 %v11165, %v11166
        %v11168 = vrot.slane %v11167, 2
        %v11169 = vmax.f32 %v11167, %v11168
        %v11170 = vrot.slane %v11169, 1
        %v11171 = vmax.f32 %v11169, %v11170
        %v11172 = vsel %vm11129, %v11116, -inf
        %v11173 = vrot.slane %v11172, 4
        %v11174 = vmax.f32 %v11172, %v11173
        %v11175 = vrot.slane %v11174, 2
        %v11176 = vmax.f32 %v11174, %v11175
        %v11177 = vrot.slane %v11176, 1
        %v11178 = vmax.f32 %v11176, %v11177
        %v11179 = vsel %vm11129, %v11124, -inf
        %v11180 = vrot.slane %v11179, 4
        %v11181 = vmax.f32 %v11179, %v11180
        %v11182 = vrot.slane %v11181, 2
        %v11183 = vmax.f32 %v11181, %v11182
        %v11184 = vrot.slane %v11183, 1
        %v11185 = vmax.f32 %v11183, %v11184
        %vm11194 = vcmask 1041409
        %v11195 = vsel %vm11194, %v11143, %v11136
        %v11196 = vsel %vm7176, %v11150, %v11195
        %v11197 = vsel %vm7178, %v11157, %v11196
        %v11198 = vsel %vm7180, %v11164, %v11197
        %vm11199 = vcmask 1045509
        %v11200 = vsel %vm11199, %v11171, %v11198
        %vm11201 = vcmask 1046534
        %v11202 = vsel %vm11201, %v11178, %v11200
        %vm11203 = vcmask 1047559
        %v11204 = vsel %vm11203, %v11185, %v11202
        %v11207 = vunpack.c.l.s4 1966171168
        %v11208 = vunpack.c.0.s8 %v11207
        %v11209 = vlaneseq
        %v11210 = vshrl.u32 %v11209, 7
        %v11211 = vsub.s32 %v11208, %v11210
        %v11212 = vrot.slane %v11204, %v11211
        %v11213 = vld [vmem:[#allocation9 + $0x370] sm:$0xff]
        %v11214 = vld [vmem:[#allocation9 + $0x378] sm:$0xff]
        %v11215 = vld [vmem:[#allocation9 + $0x380] sm:$0xff]
        %v11216 = vld [vmem:[#allocation9 + $0x388] sm:$0xff]
        %v11217 = vld [vmem:[#allocation9 + $0x390] sm:$0xff]
        %v11218 = vld [vmem:[#allocation9 + $0x398] sm:$0xff]
        %v11219 = vld [vmem:[#allocation9 + $0x3a0] sm:$0xff]
        %v11220 = vld [vmem:[#allocation9 + $0x3a8] sm:$0xff]
        %v11221 = vld [vmem:[#allocation9 + $0x3b0] sm:$0xff]
        %v11222 = vld [vmem:[#allocation9 + $0x3b8] sm:$0xff]
        %v11223 = vld [vmem:[#allocation9 + $0x3c0] sm:$0xff]
        %v11224 = vld [vmem:[#allocation9 + $0x3c8] sm:$0xff]
        %v11225 = vld [vmem:[#allocation9 + $0x3d0] sm:$0xff]
        %v11226 = vld [vmem:[#allocation9 + $0x3d8] sm:$0xff]
        %v11227 = vld [vmem:[#allocation9 + $0x3e0] sm:$0xff]
        %v11228 = vld [vmem:[#allocation9 + $0x3e8] sm:$0xff]
        %v11229 = vld [vmem:[#allocation9 + $0x3f0] sm:$0xff]
        %v11230 = vld [vmem:[#allocation9 + $0x3f8] sm:$0xff]
        %v11231 = vld [vmem:[#allocation9 + $0x400] sm:$0xff]
        %v11232 = vld [vmem:[#allocation9 + $0x408] sm:$0xff]
        %v11233 = vld [vmem:[#allocation9 + $0x410] sm:$0xff]
        %v11234 = vld [vmem:[#allocation9 + $0x418] sm:$0xff]
        %v11235 = vld [vmem:[#allocation9 + $0x420] sm:$0xff]
        %v11236 = vld [vmem:[#allocation9 + $0x428] sm:$0xff]
        %v11237 = vld [vmem:[#allocation9 + $0x430] sm:$0xff]
        %v11238 = vld [vmem:[#allocation9 + $0x438] sm:$0xff]
        %v11239 = vld [vmem:[#allocation9 + $0x440] sm:$0xff]
        %v11240 = vld [vmem:[#allocation9 + $0x448] sm:$0xff]
        %v11241 = vld [vmem:[#allocation9 + $0x450] sm:$0xff]
        %v11242 = vld [vmem:[#allocation9 + $0x458] sm:$0xff]
        %v11243 = vld [vmem:[#allocation9 + $0x460] sm:$0xff]
        %v11244 = vld [vmem:[#allocation9 + $0x468] sm:$0xff]
        %v11245 = vld [vmem:[#allocation11 + $0x9] sm:$0x1]
        %v11246 = vlaneseq
        %v11247 = vshrl.u32 %v11246, 7
        %v11248 = vsub.s32 0, %v11247
        %v11249 = vrot.slane %v11245, %v11248
        %v11251 = vcombine.high %v11212, %v11212
        %11253 = vmatprep.subr.mxu0 0.0
        %11254 = vmatpush1.msra.mxu0 %v11213
        %11255 = vmatprep.subr.mxu0 0.0
        %11256 = vmatpush1.msra.mxu0 %v11214
        %11257 = vmatprep.subr.mxu0 0.0
        %11258 = vmatpush1.msra.mxu0 %v11215
        %11259 = vmatprep.subr.mxu0 0.0
        %11260 = vmatpush1.msra.mxu0 %v11216
        %11261 = vmatprep.subr.mxu0 0.0
        %11262 = vmatpush1.msra.mxu0 %v11217
        %11263 = vmatprep.subr.mxu0 0.0
        %11264 = vmatpush1.msra.mxu0 %v11218
        %11265 = vmatprep.subr.mxu0 0.0
        %11266 = vmatpush1.msra.mxu0 %v11219
        %11267 = vmatprep.subr.mxu0 0.0
        %11268 = vmatpush1.msra.mxu0 %v11220
        %11269 = vmatprep.subr.mxu0 0.0
        %11270 = vmatpush1.msra.mxu0 %v11221
        %11271 = vmatprep.subr.mxu0 0.0
        %11272 = vmatpush1.msra.mxu0 %v11222
        %11273 = vmatprep.subr.mxu0 0.0
        %11274 = vmatpush1.msra.mxu0 %v11223
        %11275 = vmatprep.subr.mxu0 0.0
        %11276 = vmatpush1.msra.mxu0 %v11224
        %11277 = vmatprep.subr.mxu0 0.0
        %11278 = vmatpush1.msra.mxu0 %v11225
        %11279 = vmatprep.subr.mxu0 0.0
        %11280 = vmatpush1.msra.mxu0 %v11226
        %11281 = vmatprep.subr.mxu0 0.0
        %11282 = vmatpush1.msra.mxu0 %v11227
        %11283 = vmatprep.subr.mxu0 0.0
        %11284 = vmatpush1.msra.mxu0 %v11228
        %11285 = vmatprep.subr.mxu0 0.0
        %11286 = vmatpush1.msra.mxu0 %v11229
        %11287 = vmatprep.subr.mxu0 0.0
        %11288 = vmatpush1.msra.mxu0 %v11230
        %11289 = vmatprep.subr.mxu0 0.0
        %11290 = vmatpush1.msra.mxu0 %v11231
        %11291 = vmatprep.subr.mxu0 0.0
        %11292 = vmatpush1.msra.mxu0 %v11232
        %11293 = vmatprep.subr.mxu0 0.0
        %11294 = vmatpush1.msra.mxu0 %v11233
        %11295 = vmatprep.subr.mxu0 0.0
        %11296 = vmatpush1.msra.mxu0 %v11234
        %11297 = vmatprep.subr.mxu0 0.0
        %11298 = vmatpush1.msra.mxu0 %v11235
        %11299 = vmatprep.subr.mxu0 0.0
        %11300 = vmatpush1.msra.mxu0 %v11236
        %11301 = vmatprep.subr.mxu0 0.0
        %11302 = vmatpush1.msra.mxu0 %v11237
        %11303 = vmatprep.subr.mxu0 0.0
        %11304 = vmatpush1.msra.mxu0 %v11238
        %11305 = vmatprep.subr.mxu0 0.0
        %11306 = vmatpush1.msra.mxu0 %v11239
        %11307 = vmatprep.subr.mxu0 0.0
        %11308 = vmatpush1.msra.mxu0 %v11240
        %11309 = vmatprep.subr.mxu0 0.0
        %11310 = vmatpush1.msra.mxu0 %v11241
        %11311 = vmatprep.subr.mxu0 0.0
        %11312 = vmatpush1.msra.mxu0 %v11242
        %11313 = vmatprep.subr.mxu0 0.0
        %11314 = vmatpush1.msra.mxu0 %v11243
        %11315 = vmatprep.subr.mxu0 0.0
        %11316 = vmatpush1.msra.mxu0 %v11244
        %11317 = vmatprep.mubr.f32.mxu0 %v11251
        %11318 = vmatmul.mubr.f32.gmra.mrb[0].mxu0 %v11212
        %v11319 = vpop.f32.mrb[0].mxu0
        %v11320 = vadd.f32 %v11249, %v11319
        %v11321 = vpop.f32.mrb[0].mxu0
        %11322 = vdwg.mxu0
        %v11323 = vmax.f32 %v11320, 0.0
        %v11324 = vld [vmem:[#allocation9 + $0x470] sm:$0xff]
        %v11325 = vld [vmem:[#allocation9 + $0x478] sm:$0xff]
        %v11326 = vld [vmem:[#allocation9 + $0x480] sm:$0xff]
        %v11327 = vld [vmem:[#allocation9 + $0x488] sm:$0xff]
        %v11328 = vld [vmem:[#allocation9 + $0x490] sm:$0xff]
        %v11329 = vld [vmem:[#allocation9 + $0x498] sm:$0xff]
        %v11330 = vld [vmem:[#allocation9 + $0x4a0] sm:$0xff]
        %v11331 = vld [vmem:[#allocation9 + $0x4a8] sm:$0xff]
        %v11332 = vld [vmem:[#allocation9 + $0x4b0] sm:$0xff]
        %v11333 = vld [vmem:[#allocation9 + $0x4b8] sm:$0xff]
        %v11334 = vld [vmem:[#allocation9 + $0x4c0] sm:$0xff]
        %v11335 = vld [vmem:[#allocation9 + $0x4c8] sm:$0xff]
        %v11336 = vld [vmem:[#allocation9 + $0x4d0] sm:$0xff]
        %v11337 = vld [vmem:[#allocation9 + $0x4d8] sm:$0xff]
        %v11338 = vld [vmem:[#allocation9 + $0x4e0] sm:$0xff]
        %v11339 = vld [vmem:[#allocation9 + $0x4e8] sm:$0xff]
        %v11340 = vld [vmem:[#allocation11 + $0xa] sm:$0x1]
        %v11341 = vlaneseq
        %v11342 = vshrl.u32 %v11341, 7
        %v11343 = vsub.s32 0, %v11342
        %v11344 = vrot.slane %v11340, %v11343
        %11345 = vmatprep.subr.mxu0 0.0
        %11346 = vmatpush1.msra.mxu0 %v11324
        %11347 = vmatprep.subr.mxu0 0.0
        %11348 = vmatpush1.msra.mxu0 %v11325
        %11349 = vmatprep.subr.mxu0 0.0
        %11350 = vmatpush1.msra.mxu0 %v11326
        %11351 = vmatprep.subr.mxu0 0.0
        %11352 = vmatpush1.msra.mxu0 %v11327
        %11353 = vmatprep.subr.mxu0 0.0
        %11354 = vmatpush1.msra.mxu0 %v11328
        %11355 = vmatprep.subr.mxu0 0.0
        %11356 = vmatpush1.msra.mxu0 %v11329
        %11357 = vmatprep.subr.mxu0 0.0
        %11358 = vmatpush1.msra.mxu0 %v11330
        %11359 = vmatprep.subr.mxu0 0.0
        %11360 = vmatpush1.msra.mxu0 %v11331
        %11361 = vmatprep.subr.mxu0 0.0
        %11362 = vmatpush1.msra.mxu0 %v11332
        %11363 = vmatprep.subr.mxu0 0.0
        %11364 = vmatpush1.msra.mxu0 %v11333
        %11365 = vmatprep.subr.mxu0 0.0
        %11366 = vmatpush1.msra.mxu0 %v11334
        %11367 = vmatprep.subr.mxu0 0.0
        %11368 = vmatpush1.msra.mxu0 %v11335
        %11369 = vmatprep.subr.mxu0 0.0
        %11370 = vmatpush1.msra.mxu0 %v11336
        %11371 = vmatprep.subr.mxu0 0.0
        %11372 = vmatpush1.msra.mxu0 %v11337
        %11373 = vmatprep.subr.mxu0 0.0
        %11374 = vmatpush1.msra.mxu0 %v11338
        %11375 = vmatprep.subr.mxu0 0.0
        %11376 = vmatpush1.msra.mxu0 %v11339
        %11377 = vmatprep.subr.mxu0 0.0
        %11378 = vmatpush1.msra.mxu0 0.0
        %11379 = vmatprep.subr.mxu0 0.0
        %11380 = vmatpush1.msra.mxu0 0.0
        %11381 = vmatprep.subr.mxu0 0.0
        %11382 = vmatpush1.msra.mxu0 0.0
        %11383 = vmatprep.subr.mxu0 0.0
        %11384 = vmatpush1.msra.mxu0 0.0
        %11385 = vmatprep.subr.mxu0 0.0
        %11386 = vmatpush1.msra.mxu0 0.0
        %11387 = vmatprep.subr.mxu0 0.0
        %11388 = vmatpush1.msra.mxu0 0.0
        %11389 = vmatprep.subr.mxu0 0.0
        %11390 = vmatpush1.msra.mxu0 0.0
        %11391 = vmatprep.subr.mxu0 0.0
        %11392 = vmatpush1.msra.mxu0 0.0
        %11393 = vmatprep.subr.mxu0 0.0
        %11394 = vmatpush1.msra.mxu0 0.0
        %11395 = vmatprep.subr.mxu0 0.0
        %11396 = vmatpush1.msra.mxu0 0.0
        %11397 = vmatprep.subr.mxu0 0.0
        %11398 = vmatpush1.msra.mxu0 0.0
        %11399 = vmatprep.subr.mxu0 0.0
        %11400 = vmatpush1.msra.mxu0 0.0
        %11401 = vmatprep.subr.mxu0 0.0
        %11402 = vmatpush1.msra.mxu0 0.0
        %11403 = vmatprep.subr.mxu0 0.0
        %11404 = vmatpush1.msra.mxu0 0.0
        %11405 = vmatprep.subr.mxu0 0.0
        %11406 = vmatpush1.msra.mxu0 0.0
        %11407 = vmatprep.subr.mxu0 0.0
        %11408 = vmatpush1.msra.mxu0 0.0
        %11409 = vmatprep.mubr.f32.mxu0 0.0
        %11410 = vmatmul.mubr.f32.gmra.mrb[0].mxu0 %v11323
        %v11411 = vpop.f32.mrb[0].mxu0
        %v11412 = vadd.f32 %v11344, %v11411
        %v11413 = vpop.f32.mrb[0].mxu0
        %11414 = vdwg.mxu0
        %v11415 = vmax.f32 %v11412, 0.0
        %v11416 = vld [vmem:[#allocation9 + $0x4f0] sm:$0x1]
        %v11417 = vlaneseq
        %v11418 = vshrl.u32 %v11417, 7
        %v11419 = vsub.s32 0, %v11418
        %v11420 = vrot.slane %v11416, %v11419
        %v11421 = vmul.f32 %v11415, %v11420
        %v11422 = vsel %vm11129, %v11421, 0.0
        %11423 = vadd.xlane.f32.xlu0 %v11422
        %v11424 = vpop.xlane.xlu0 %11423
        %v11425 = vld [vmem:[#allocation11 + $0xb] sm:$0x1]
        %v11426 = vlaneseq
        %v11427 = vshrl.u32 %v11426, 7
        %v11428 = vsub.s32 0, %v11427
        %v11429 = vrot.slane %v11425, %v11428
        %v11430 = vadd.f32 %v11424, %v11429
        %v11431 = vsub.f32 0.0, %v11430
        %v11432 = vmul.f32 %v11431, 1.442695
        %v11433 = vpow.pop %v11432
        %v11434 = vadd.f32 %v11433, 1.0
        %v11435 = vrcp.pop %v11434
        %v11436 = vmul.f32 1.0, %v11435
        %11438 = vset.pattern.permute.xlu0 0
        %11439 = vperm.xlu0 %11438, %v11436
        %v11440 = vpop.permute.xlu0 %11439
        %v11441 = vlaneseq
        %v11442 = vand.u32 %v11441, 127
        %v11443 = vlaneseq
        %v11444 = vshrl.u32 %v11443, 7
        %v11445 = vsub.s32 %v11442, %v11444
        %v11446 = vrot.slane %v11440, %v11445
        %vm11448 = vcmask 24576
        %11449 = vst.msk [vmem:[%s217] sm:$0x1] %vm11448, %v11446
        %p11450 = scmp.lt.s32.totalorder %s18, 1
        %s11451 = scalar_select %p11450, %s18, 1
        %s11452 = scalar_lea.vmem %s3, %s11451
        // Predicated region
        $region45: #{w_net_forward.1} parent=31 // pred_check
          %p11453 = pneg %p104
        $region46: #{w_net_forward.1} parent=31 // pred_check_branch
          %11455 = sbr.rel (%p11453) target = $region48
        $region47: #{w_net_forward.1} parent=31 // pred_region
          _
        $region48: #{w_net_forward.1} parent=31 // pred_fallthru
          _
      $region32: #{w_net_forward.1} parent=5 // pred_fallthru
        _
      %p11456 = scmp.le.s32.totalorder 2, %s13
      // Predicated region
      $region49: #{w_net_forward.1} parent=5 // pred_check
        %p11457 = pneg %p11456
      $region50: #{w_net_forward.1} parent=5 // pred_check_branch
        %11459 = sbr.rel (%p11457) target = $region52
      $region51: #{w_net_forward.1} parent=5 // pred_region
        %s11460 = ssub.s32 %s13, 2
        // Predicated region
        $region53: #{w_net_forward.1} parent=51 // pred_check
          %p11461 = pneg %p110
        $region54: #{w_net_forward.1} parent=51 // pred_check_branch
          %11463 = sbr.rel (%p11461) target = $region56
        $region55: #{w_net_forward.1} parent=51 // pred_region
          %p11464 = scmp.lt.s32.totalorder %s19, 1
          %s11465 = scalar_select %p11464, %s19, 1
          %s11466 = scalar_lea.vmem %s3, %s11465
        $region56: #{w_net_forward.1} parent=51 // pred_fallthru
          _
      $region52: #{w_net_forward.1} parent=5 // pred_fallthru
        _
    $region6: #{w_net_forward.1} parent=1 // loop_footer
      %s17 = sadd.s32 1, %s13
    $region7: #{w_net_forward.1} parent=1 // loop_footer_branch
      %12 = sbr.rel target = $region3
    $region8: #{w_net_forward.1} parent=1 // loop_exit
      _
    %11467 = vsyncpa [#allocation8], 1
    %s11468 = scalar_lea.sflag [#allocation8], 1
    %11469 = vsyncpa %s11468, 1
    %11470 = vsyncpa [#allocation10], 1

</llo_original>
